<compile_context>
chip_gen: v5e
topology: v5e:2x2
jax: 0.10.0
libtpu: 0.0.40
codegen_flags: <defaults>
</compile_context>

<pallas_src>
import functools
import math

import jax
import jax.numpy as jnp
from jax.experimental import pallas as pl
from jax.experimental.pallas import tpu as pltpu

# MXU operand / inter-kernel activation dtype (accumulation is always f32).
# Use jnp.float32 here for bit-close parity testing against the reference.
MXU_DTYPE = jnp.bfloat16

_CONV_FRONT = 8        # sublane-aligned front padding rows of the conv buffer


# ----------------------------------------------------------------------------
# small helpers
# ----------------------------------------------------------------------------
def _round_up(v, m):
    return ((v + m - 1) // m) * m


def _choose_row_tile(M, max_rows=512):
    """Pick an M (row) tile. Small M -> one full block; large M -> 128/256/512."""
    if M <= max_rows:
        Mp = _round_up(M, 8)
        return Mp, Mp
    for t in (512, 256, 128):
        if M % t == 0:
            return t, M
    Mp = _round_up(M, 256)
    return 256, Mp


def _compiler_params(n_parallel, block_bytes=0):
    kw = dict(dimension_semantics=("parallel",) * n_parallel)
    # 2x for double-buffering of the per-step working set.  Only raise the
    # scoped-VMEM limit when actually needed, and never request v7x's entire
    # 64 MiB/TC -- cap at 48 MiB to leave compiler scratch headroom.
    need = int(2 * block_bytes)
    if need > 32 * 1024 * 1024:
        kw["vmem_limit_bytes"] = int(min(need, 48 * 1024 * 1024))
    return pltpu.CompilerParams(**kw)


def prepare_params(params):
    """Pre-cast matmul/conv weights (ndim>=2) to bf16 in HBM; keep biases,
    LayerNorm params and other 1-D leaves in f32."""
    def cast(leaf):
        leaf = jnp.asarray(leaf)
        if leaf.ndim >= 2:
            return leaf.astype(MXU_DTYPE)
        return leaf.astype(jnp.float32)
    return jax.tree_util.tree_map(cast, params)


# ----------------------------------------------------------------------------
# Fused LayerNorm + PE-add + multi-projection (+residual, +ReLU) kernel
# ----------------------------------------------------------------------------
def _fused_proj_kernel(*refs, n_out, use_ln, use_pe, use_res, act_in,
                       pe_flags, act_flags, return_xn):
    idx = 0
    x_ref = refs[idx]; idx += 1
    pe_ref = None
    if use_pe:
        pe_ref = refs[idx]; idx += 1
    res_ref = None
    if use_res:
        res_ref = refs[idx]; idx += 1
    g_ref = beta_ref = None
    if use_ln:
        g_ref, beta_ref = refs[idx], refs[idx + 1]; idx += 2
    wb = []
    for _ in range(n_out):
        wb.append((refs[idx], refs[idx + 1])); idx += 2
    out_refs = refs[idx:]

    x = x_ref[...]
    if act_in == "relu":
        x = jnp.maximum(x, 0)
    if use_ln:
        xf = x.astype(jnp.float32)
        mu = jnp.mean(xf, axis=-1, keepdims=True)
        xc = xf - mu
        var = jnp.mean(xc * xc, axis=-1, keepdims=True)
        xf = xc * jax.lax.rsqrt(var + 1e-5)
        x = xf * g_ref[...].astype(jnp.float32) + beta_ref[...].astype(jnp.float32)

    o = 0
    if return_xn:
        out_refs[o][...] = x.astype(out_refs[o].dtype)
        o += 1

    need_plain = not all(pe_flags)
    x_mm = x.astype(MXU_DTYPE) if need_plain else None
    xpe_mm = None
    if use_pe:
        xpe_mm = (x.astype(jnp.float32)
                  + pe_ref[...].astype(jnp.float32)).astype(MXU_DTYPE)

    for i in range(n_out):
        w_ref, b_ref = wb[i]
        inp = xpe_mm if pe_flags[i] else x_mm
        y = jnp.dot(inp, w_ref[...].astype(MXU_DTYPE),
                    preferred_element_type=jnp.float32)
        y = y + b_ref[...].astype(jnp.float32)
        if i == 0 and use_res:
            y = y + res_ref[...].astype(jnp.float32)
        if act_flags[i] == "relu":
            y = jnp.maximum(y, 0.0)
        out_refs[o][...] = y.astype(out_refs[o].dtype)
        o += 1


def pallas_fused_proj(x, weights, biases, *, pe=None, res=None, ln=None,
                      act_in="none", pe_flags=None, act_flags=None,
                      return_xn=False):
    """y_i = act_i( [ln(relu? x)] (+pe?) @ W_i + b_i (+res for i==0) ).

    x: (..., K) (bf16).  Each W_i: (K, N_i) (bf16).  Returns a tuple of
    outputs shaped x.shape[:-1] + (N_i,) (prefixed with xn if return_xn).
    Row dim is tiled over a parallel grid so the kernel pipelines and shards
    across TensorCores.
    """
    lead = x.shape[:-1]
    K = x.shape[-1]
    M = math.prod(lead)
    n_out = len(weights)
    pe_flags = tuple(pe_flags) if pe_flags is not None else (False,) * n_out
    act_flags = tuple(act_flags) if act_flags is not None else ("none",) * n_out
    use_pe, use_res, use_ln = pe is not None, res is not None, ln is not None
    assert (not any(pe_flags)) or use_pe

    tm, Mp = _choose_row_tile(M)

    def rows(a):
        a = a.reshape(M, a.shape[-1])
        if Mp != M:
            a = jnp.pad(a, ((0, Mp - M), (0, 0)))
        return a

    inputs = [rows(x)]
    in_specs = [pl.BlockSpec((tm, K), lambda i: (i, 0))]
    if use_pe:
        inputs.append(rows(pe))
        in_specs.append(pl.BlockSpec((tm, K), lambda i: (i, 0)))
    if use_res:
        n0 = weights[0].shape[1]
        inputs.append(rows(res))
        in_specs.append(pl.BlockSpec((tm, n0), lambda i: (i, 0)))
    if use_ln:
        g, bta = ln
        inputs += [g.reshape(1, K), bta.reshape(1, K)]
        in_specs += [pl.BlockSpec((1, K), lambda i: (0, 0)),
                     pl.BlockSpec((1, K), lambda i: (0, 0))]
    for w, bb in zip(weights, biases):
        Nw = w.shape[1]
        inputs += [w, bb.reshape(1, Nw)]
        in_specs += [pl.BlockSpec((K, Nw), lambda i: (0, 0)),
                     pl.BlockSpec((1, Nw), lambda i: (0, 0))]

    out_shapes, out_specs, out_widths = [], [], []
    if return_xn:
        out_shapes.append(jax.ShapeDtypeStruct((Mp, K), x.dtype))
        out_specs.append(pl.BlockSpec((tm, K), lambda i: (i, 0)))
        out_widths.append(K)
    for w in weights:
        Nw = w.shape[1]
        out_shapes.append(jax.ShapeDtypeStruct((Mp, Nw), x.dtype))
        out_specs.append(pl.BlockSpec((tm, Nw), lambda i: (i, 0)))
        out_widths.append(Nw)

    kernel = functools.partial(
        _fused_proj_kernel, n_out=n_out, use_ln=use_ln, use_pe=use_pe,
        use_res=use_res, act_in=act_in, pe_flags=pe_flags,
        act_flags=act_flags, return_xn=return_xn)

    block_bytes = (2 * tm * K * (2 if use_pe else 1) + 4 * tm * K
                   + 2 * sum(K * w.shape[1] for w in weights)
                   + 6 * tm * sum(out_widths))
    outs = pl.pallas_call(
        kernel,
        out_shape=tuple(out_shapes),
        grid=(Mp // tm,),
        in_specs=in_specs,
        out_specs=tuple(out_specs),
        compiler_params=_compiler_params(1, block_bytes),
    )(*inputs)
    return tuple(o[:M].reshape(lead + (wd,)) for o, wd in zip(outs, out_widths))


# ----------------------------------------------------------------------------
# Multi-head attention kernel (fused output projection + residual, L-tiled)
# ----------------------------------------------------------------------------
def _attn_kernel(*refs, num_heads, scale, has_mask, n_fg_rows):
    if has_mask:
        q_ref, k_ref, v_ref, wo_ref, bo_ref, res_ref, fg_ref, o_ref = refs
    else:
        q_ref, k_ref, v_ref, wo_ref, bo_ref, res_ref, o_ref = refs
        fg_ref = None

    q = q_ref[0]                       # (L, E) bf16
    k = k_ref[0]                       # (S, E)
    v = v_ref[0]                       # (S, E)
    L, E = q.shape
    S = k.shape[0]
    Dh = E // num_heads
    C = o_ref.shape[-1]

    mask_add = None
    if has_mask:
        # fg: (1, S), 1.0 = foreground pixel.  Query rows [0, n_fg_rows) are
        # foreground queries (attend only to fg), the rest are background
        # queries.  A query half whose mask would disallow everything is left
        # unmasked (matches aux_mask[sum == S] = False in the reference).
        fg = fg_ref[0].astype(jnp.float32)
        neg = jnp.float32(-1e9)
        n_fg = jnp.sum(fg, axis=-1, keepdims=True)        # (1, 1)
        n_bg = jnp.float32(S) - n_fg
        keep_fg = jnp.where(n_fg > 0.5, 1.0, 0.0)
        keep_bg = jnp.where(n_bg > 0.5, 1.0, 0.0)
        add_fg = jnp.where(fg < 0.5, neg, 0.0) * keep_fg  # (1, S)
        add_bg = jnp.where(fg > 0.5, neg, 0.0) * keep_bg
        row_is_fg = (jax.lax.broadcasted_iota(jnp.int32, (L, 1), 0)
                     < n_fg_rows).astype(jnp.float32)
        mask_add = row_is_fg * add_fg + (1.0 - row_is_fg) * add_bg   # (L, S)

    # out = res + bo + sum_h softmax(q_h k_h^T) v_h @ Wo_h  -- the per-head Wo
    # decomposition fuses the output projection with no head concatenation.
    acc = jnp.zeros((L, C), jnp.float32)
    for h in range(num_heads):
        sl = slice(h * Dh, (h + 1) * Dh)
        qh = q[:, sl].astype(MXU_DTYPE)
        kh = k[:, sl].astype(MXU_DTYPE)
        s = jax.lax.dot_general(qh, kh, (((1,), (1,)), ((), ())),
                                preferred_element_type=jnp.float32) * scale
        if mask_add is not None:
            s = s + mask_add
        s = s - jnp.max(s, axis=-1, keepdims=True)
        p = jnp.exp(s)
        p = p * pl.reciprocal(jnp.sum(p, axis=-1, keepdims=True), approx=True)
        ov = jnp.dot(p.astype(MXU_DTYPE), v[:, sl].astype(MXU_DTYPE),
                     preferred_element_type=jnp.float32)           # (L, Dh)
        acc = acc + jnp.dot(ov.astype(MXU_DTYPE), wo_ref[h].astype(MXU_DTYPE),
                            preferred_element_type=jnp.float32)    # (L, C)

    out = acc + bo_ref[...].astype(jnp.float32) + res_ref[0].astype(jnp.float32)
    o_ref[0] = out.astype(o_ref.dtype)


def pallas_attention_proj(q, k, v, wo, bo, res, num_heads, fg_mask=None):
    """Fused MHA + output projection + residual.

    q: (D, L, E); k, v: (D, S, E); wo: (E, C); bo: (C,); res: (D, L, C);
    fg_mask: (D, S) bool/float (1 = foreground), identical for every head.
    Returns (D, L, C) = res + MHA(q, k, v) @ wo + bo.
    """
    D, L, E = q.shape
    S = k.shape[1]
    C = wo.shape[1]
    Dh = E // num_heads
    scale = 1.0 / math.sqrt(Dh)
    has_mask = fg_mask is not None

    if has_mask:
        tl, Lp = L, L                 # masked path: L = num_queries (tiny)
    else:
        tl, Lp = _choose_row_tile(L)  # pixel-query path: tile query rows
    if Lp != L:
        q = jnp.pad(q, ((0, 0), (0, Lp - L), (0, 0)))
        res = jnp.pad(res, ((0, 0), (0, Lp - L), (0, 0)))

    wo_h = wo.reshape(num_heads, Dh, C)   # pure reshape, no transpose
    bo2 = bo.reshape(1, C)

    inputs = [q, k, v, wo_h, bo2, res]
    in_specs = [pl.BlockSpec((1, tl, E), lambda d, l: (d, l, 0)),
                pl.BlockSpec((1, S, E), lambda d, l: (d, 0, 0)),
                pl.BlockSpec((1, S, E), lambda d, l: (d, 0, 0)),
                pl.BlockSpec((num_heads, Dh, C), lambda d, l: (0, 0, 0)),
                pl.BlockSpec((1, C), lambda d, l: (0, 0)),
                pl.BlockSpec((1, tl, C), lambda d, l: (d, l, 0))]
    if has_mask:
        inputs.append(fg_mask.reshape(D, 1, S).astype(jnp.float32))
        in_specs.append(pl.BlockSpec((1, 1, S), lambda d, l: (d, 0, 0)))

    kernel = functools.partial(_attn_kernel, num_heads=num_heads, scale=scale,
                               has_mask=has_mask, n_fg_rows=L // 2)
    block_bytes = (2 * (tl * E + 2 * S * E + E * C + 2 * tl * C)
                   + 4 * (tl * S + tl * C) + (4 * S if has_mask else 0))
    out = pl.pallas_call(
        kernel,
        out_shape=jax.ShapeDtypeStruct((D, Lp, C), q.dtype),
        grid=(D, Lp // tl),
        in_specs=in_specs,
        out_specs=pl.BlockSpec((1, tl, C), lambda d, l: (d, l, 0)),
        compiler_params=_compiler_params(2, block_bytes),
    )(*inputs)
    return out[:, :L]


# ----------------------------------------------------------------------------
# 3x3 conv kernel (CAResBlock) — aligned taps of one padded flat buffer
# ----------------------------------------------------------------------------
def _conv3x3_kernel(x_ref, w_ref, b_ref, o_ref, *, Wp, Lout, relu_input):
    xf = x_ref[0].astype(jnp.float32)            # (Lbuf, Cin)
    if relu_input:
        xf = jnp.maximum(xf, 0.0)                # relu(0-padding) == 0, so safe
    Lbuf = xf.shape[0]
    # dx = -1/0/+1 column shifts as two whole-buffer sublane rotations (XLU).
    # Rolls are done on the unpacked f32 buffer (robust lowering), then cast
    # to the MXU dtype once per shifted copy.
    x_shift = (pltpu.roll(xf, 1, 0),             # [i] = x[i-1]   (dx = -1)
               xf,                               # [i] = x[i]     (dx =  0)
               pltpu.roll(xf, Lbuf - 1, 0))      # [i] = x[i+1]   (dx = +1)
    x_shift = tuple(a.astype(MXU_DTYPE) for a in x_shift)

    Cout = o_ref.shape[-1]
    acc = jnp.zeros((Lout, Cout), jnp.float32)
    for dy in (-1, 0, 1):
        base = _CONV_FRONT + (1 + dy) * Wp       # multiple of 8 -> aligned slice
        for dx in (-1, 0, 1):
            tap = (dy + 1) * 3 + (dx + 1)
            xt = x_shift[dx + 1][base:base + Lout, :]
            acc = acc + jnp.dot(xt, w_ref[tap].astype(MXU_DTYPE),
                                preferred_element_type=jnp.float32)
    o_ref[0] = (acc + b_ref[...].astype(jnp.float32)).astype(o_ref.dtype)


def pallas_conv3x3(x, w, b, relu_input=False):
    """3x3 conv, padding=1.  x: (D,H,W,Cin); w: (Cout,Cin,3,3) torch layout.

    The padded row stride Wp is rounded up to a multiple of 8 so every tap is
    a sublane-aligned flat slice; only the H interior rows are computed and
    the wrapper slices out the real W columns.
    """
    D, H, W, Cin = x.shape
    Cout = w.shape[0]
    Wp = _round_up(W + 2, 8)
    Hp = H + 2
    Lout = H * Wp
    Lbuf = _CONV_FRONT + Hp * Wp + 8
    xp = jnp.pad(x, ((0, 0), (1, 1), (1, Wp - W - 1), (0, 0)))
    xp = xp.reshape(D, Hp * Wp, Cin)
    xp = jnp.pad(xp, ((0, 0), (_CONV_FRONT, 8), (0, 0)))
    w9 = jnp.transpose(w, (2, 3, 1, 0)).reshape(9, Cin, Cout).astype(MXU_DTYPE)
    kernel = functools.partial(_conv3x3_kernel, Wp=Wp, Lout=Lout,
                               relu_input=relu_input)
    block_bytes = (4 * Lbuf * Cin + 2 * 3 * Lbuf * Cin + 2 * 9 * Cin * Cout
                   + 6 * Lout * Cout)
    out = pl.pallas_call(
        kernel,
        out_shape=jax.ShapeDtypeStruct((D, Lout, Cout), x.dtype),
        grid=(D,),
        in_specs=[pl.BlockSpec((1, Lbuf, Cin), lambda i: (i, 0, 0)),
                  pl.BlockSpec((9, Cin, Cout), lambda i: (0, 0, 0)),
                  pl.BlockSpec((1, Cout), lambda i: (0, 0))],
        out_specs=pl.BlockSpec((1, Lout, Cout), lambda i: (i, 0, 0)),
        compiler_params=_compiler_params(1, block_bytes),
    )(xp, w9, b.reshape(1, Cout))
    # TODO(synk): tile Lout (halo blocks) to split a single image across v7x's
    # two TensorCores and bound the f32 accumulator at large H*W.
    return out.reshape(D, H, Wp, Cout)[:, :, 1:W + 1, :]


# ----------------------------------------------------------------------------
# Composite ops built on the kernels
# ----------------------------------------------------------------------------
def cross_attention(x, mem, x_pe, mem_pe, p, num_heads, fg_mask=None, norm=None):
    """Cutie CrossAttention: q from (norm?x)+x_pe, k from mem+mem_pe, v from mem.
    Returns base + Wo(MHA(...)) + bo, where base is the (optionally normalized) x."""
    if norm is not None:
        xn, q = pallas_fused_proj(x, [p['wq']], [p['bq']], pe=x_pe, ln=norm,
                                  pe_flags=(True,), return_xn=True)
    else:
        (q,) = pallas_fused_proj(x, [p['wq']], [p['bq']], pe=x_pe,
                                 pe_flags=(True,))
        xn = x
    # k and v projections share one read of `mem` (k gets +pe, v does not).
    k, v = pallas_fused_proj(mem, [p['wk'], p['wv']], [p['bk'], p['bv']],
                             pe=mem_pe, pe_flags=(True, False))
    # attention + output projection + residual fused into one kernel
    return pallas_attention_proj(q, k, v, p['wo'], p['bo'], xn, num_heads,
                                 fg_mask=fg_mask)


def self_attention(x, pe, p, num_heads, norm):
    """Cutie SelfAttention (add_pe_to_qkv=[T,T,F]), residual on normalized x."""
    C = x.shape[-1]
    wqk = jnp.concatenate([p['wq'], p['wk']], axis=1)     # (C, 2C): better MXU fill
    bqk = jnp.concatenate([p['bq'], p['bk']], axis=0)
    xn, qk, v = pallas_fused_proj(x, [wqk, p['wv']], [bqk, p['bv']],
                                  pe=pe, ln=norm, pe_flags=(True, False),
                                  return_xn=True)
    q, k = qk[..., :C], qk[..., C:]
    return pallas_attention_proj(q, k, v, p['wo'], p['bo'], xn, num_heads)


def ffn(x, bp):
    """FFN: x + W2(relu(W1(LN(x)))).  LN fused into the first matmul,
    residual fused into the second."""
    (h1,) = pallas_fused_proj(x, [bp['ffn_w1']], [bp['ffn_b1']],
                              ln=(bp['ffn_ln_g'], bp['ffn_ln_b']),
                              act_flags=("relu",))
    (out,) = pallas_fused_proj(h1, [bp['ffn_w2']], [bp['ffn_b2']], res=x)
    return out


def ca_res_block(x, p):
    """CAResBlock(dim, dim): x: (D, H, W, C)."""
    r = x
    h = pallas_conv3x3(x, p['w1'], p['b1'], relu_input=True)   # conv1(relu(x))
    h = pallas_conv3x3(h, p['w2'], p['b2'], relu_input=True)   # conv2(relu(.))
    hf = h.astype(jnp.float32)
    pooled = jnp.mean(hf, axis=(1, 2))                         # (D, C) global pool
    # ECA: Conv1d(1,1,k=3,pad=1,bias=False) over channels + sigmoid (tiny -> XLA).
    pad = jnp.pad(pooled, ((0, 0), (1, 1)))
    we = p['w_eca'].astype(jnp.float32)
    att = we[0] * pad[:, :-2] + we[1] * pad[:, 1:-1] + we[2] * pad[:, 2:]
    att = jax.nn.sigmoid(att)
    return (hf * att[:, None, None, :] + r.astype(jnp.float32)).astype(x.dtype)


def sine_pe_2d(H, W, embed_dim, scale, temperature):
    # TODO(synk): PositionalEncoding body was not provided; reconstructed as the
    # DETR-style normalized sine PE used by Cutie (normalize=True, eps=1e-6).
    dim = int(math.ceil(embed_dim / 4) * 2)
    inv_freq = 1.0 / (temperature ** (jnp.arange(0, dim, 2, dtype=jnp.float32) / dim))
    eps = 1e-6
    y_pos = jnp.arange(1, H + 1, dtype=jnp.float32)
    x_pos = jnp.arange(1, W + 1, dtype=jnp.float32)
    y_pos = y_pos / (y_pos[-1] + eps) * scale
    x_pos = x_pos / (x_pos[-1] + eps) * scale
    sin_y = y_pos[:, None] * inv_freq[None, :]
    sin_x = x_pos[:, None] * inv_freq[None, :]

    def interleave(s):
        return jnp.stack([jnp.sin(s), jnp.cos(s)], axis=-1).reshape(s.shape[0], -1)

    emb_y = interleave(sin_y)
    emb_x = interleave(sin_x)
    pe = jnp.concatenate([
        jnp.broadcast_to(emb_x[None, :, :], (H, W, dim)),
        jnp.broadcast_to(emb_y[:, None, :], (H, W, dim)),
    ], axis=-1)
    return pe[:, :, :embed_dim]


def get_fg_mask(logits, selector):
    """logits: (B, N, H, W) -> compact foreground mask (B*N, H*W) bool."""
    B, N, H, W = logits.shape
    prob = jax.nn.sigmoid(logits)
    if selector is not None:
        prob = prob * selector
    bg = jnp.prod(1.0 - prob, axis=1, keepdims=True)
    new_prob = jnp.clip(jnp.concatenate([bg, prob], axis=1), 1e-7, 1 - 1e-7)
    agg = jnp.log(new_prob / (1.0 - new_prob))                  # aggregate(prob, dim=1)
    is_fg = agg[:, 1:] >= jnp.max(agg, axis=1, keepdims=True)
    return is_fg.reshape(B * N, H * W)


def expand_aux_mask(fg, Q):
    """Reconstruct the full (D, Q, S) boolean attn mask (identical per head)."""
    D, S = fg.shape
    not_fg = jnp.logical_not(fg)
    has_fg = jnp.any(fg, axis=-1, keepdims=True)
    has_bg = jnp.any(not_fg, axis=-1, keepdims=True)
    m_fg = jnp.logical_and(not_fg, has_fg)
    m_bg = jnp.logical_and(fg, has_bg)
    half = Q // 2
    return jnp.concatenate(
        [jnp.broadcast_to(m_fg[:, None, :], (D, half, S)),
         jnp.broadcast_to(m_bg[:, None, :], (D, Q - half, S))], axis=1)


def mask_pred(pixel_dhwc, mp, B, N, H, W):
    """Sequential(ReLU, GConv2d(C, 1, 1)): tiny (M,C)@(C,1) matmul -> plain XLA
    so it fuses with the sigmoid/aggregate in get_fg_mask."""
    x = jnp.maximum(pixel_dhwc.astype(jnp.float32), 0.0)
    w = mp['w'].astype(jnp.float32)[:, 0]
    b = mp['b'].astype(jnp.float32)[0]
    logits = jnp.einsum('dhwc,c->dhw', x, w) + b
    return logits.reshape(B, N, H, W)


def transformer_block(x, pixel, query_pe, pixel_pe, fg_mask, bp, num_heads):
    D, H, W, C = pixel.shape
    pixel_flat = pixel.reshape(D, H * W, C)

    # read_from_pixel: CrossAttention(norm=True), add_pe_to_qkv=[T,T,F]
    x = cross_attention(x, pixel_flat, query_pe, pixel_pe, bp['rfp_mha'],
                        num_heads, fg_mask=fg_mask,
                        norm=(bp['rfp_ln_g'], bp['rfp_ln_b']))
    # self_attn
    x = self_attention(x, query_pe, bp['sa_mha'], num_heads,
                       norm=(bp['sa_ln_g'], bp['sa_ln_b']))
    # FFN
    x = ffn(x, bp)
    # read_from_query: CrossAttention(norm=False)
    pixel_flat = cross_attention(pixel_flat, x, pixel_pe, query_pe,
                                 bp['rfq_mha'], num_heads, norm=None)
    # PixelFFN (CAResBlock on the updated pixel features)
    pixel_new = ca_res_block(pixel_flat.reshape(D, H, W, C), bp['carb'])
    return x, pixel_new


# ----------------------------------------------------------------------------
# QueryTransformer forward
# ----------------------------------------------------------------------------
def query_transformer_forward(params, pixel_BNCHW, object_memory_BNQC,
                              selector=None, *, cfg):
    B, N, C, H, W = pixel_BNCHW.shape
    Q, heads, nb = cfg['num_queries'], cfg['num_heads'], cfg['num_blocks']
    assert Q % 2 == 0, "num_queries must be even (fg/bg query split)"
    D, L = B * N, H * W
    act_dt = MXU_DTYPE

    obj = object_memory_BNQC.reshape(D, Q, C + 1).astype(jnp.float32)
    obj_vals = (obj[:, :, :-1] / (obj[:, :, -1:] + 0.0001)).astype(act_dt)
    # summary_to_query_init / _emb fused into one wide (C, 2C) matmul
    w_s2q = jnp.concatenate([params['s2q_init_w'], params['s2q_emb_w']], axis=1)
    b_s2q = jnp.concatenate([params['s2q_init_b'], params['s2q_emb_b']], axis=0)
    (obj_both,) = pallas_fused_proj(obj_vals, [w_s2q], [b_s2q])
    obj_init, obj_emb = obj_both[..., :C], obj_both[..., C:]
    query = params['query_init'][None].astype(act_dt) + obj_init
    query_emb = params['query_emb'][None].astype(act_dt) + obj_emb

    # NCHW -> channel-last working layout (D, H, W, C), bf16 activations
    pix = pixel_BNCHW.reshape(D, C, H, W).transpose(0, 2, 3, 1).astype(act_dt)
    pixel_init, pixel_emb = pallas_fused_proj(
        pix.reshape(D, L, C), [params['pix_init_w'], params['pix_emb_w']],
        [params['pix_init_b'], params['pix_emb_b']])

    pe = sine_pe_2d(H, W, C, cfg['pixel_pe_scale'], cfg['pixel_pe_temperature'])
    pixel_pe_DLC = (pe.reshape(1, L, C)
                    + pixel_emb.astype(jnp.float32)).astype(act_dt)   # (D, L, C)

    pixel_cur = pixel_init.reshape(D, H, W, C)

    aux_logits = mask_pred(pixel_cur, params['mask_pred'][0], B, N, H, W)
    fg_mask = get_fg_mask(aux_logits, selector)                   # (D, L) bool
    q_logits = [aux_logits]

    x = query
    for i in range(nb):
        x, pixel_cur = transformer_block(x, pixel_cur, query_emb, pixel_pe_DLC,
                                         fg_mask, params['blocks'][i], heads)
        aux_logits = mask_pred(pixel_cur, params['mask_pred'][i + 1], B, N, H, W)
        fg_mask = get_fg_mask(aux_logits, selector)
        q_logits.append(aux_logits)

    pixel_out = pixel_cur.transpose(0, 3, 1, 2).reshape(B, N, C, H, W)
    pixel_out = pixel_out.astype(jnp.float32)
    aux = {
        'q_logits': q_logits,
        'q_weights': None,   # need_weights=False
        'p_weights': None,   # need_weights=False
        'attn_mask': expand_aux_mask(fg_mask, Q).reshape(B, N, Q, H, W),
    }
    return pixel_out, aux


# ----------------------------------------------------------------------------
# Deterministic synthetic parameter init
# ----------------------------------------------------------------------------
def init_params(key, C, ff_dim, num_heads, Q, num_blocks):
    keys = iter(jax.random.split(key, 256))

    def w(shape, scale=0.02):
        return jax.random.normal(next(keys), shape, jnp.float32) * scale

    def mha_p():
        return dict(wq=w((C, C)), wk=w((C, C)), wv=w((C, C)),
                    bq=w((C,)), bk=w((C,)), bv=w((C,)),
                    wo=w((C, C)), bo=w((C,)))

    p = {
        'query_init': w((Q, C), 1.0),
        'query_emb': w((Q, C), 1.0),
        's2q_init_w': w((C, C)), 's2q_init_b': w((C,)),
        's2q_emb_w': w((C, C)), 's2q_emb_b': w((C,)),
        'pix_init_w': w((C, C)), 'pix_init_b': w((C,)),
        'pix_emb_w': w((C, C)), 'pix_emb_b': w((C,)),
        'mask_pred': [dict(w=w((C, 1)), b=w((1,))) for _ in range(num_blocks + 1)],
    }
    blocks = []
    for _ in range(num_blocks):
        blocks.append(dict(
            rfp_ln_g=jnp.ones((C,), jnp.float32), rfp_ln_b=jnp.zeros((C,), jnp.float32),
            rfp_mha=mha_p(),
            sa_ln_g=jnp.ones((C,), jnp.float32), sa_ln_b=jnp.zeros((C,), jnp.float32),
            sa_mha=mha_p(),
            ffn_ln_g=jnp.ones((C,), jnp.float32), ffn_ln_b=jnp.zeros((C,), jnp.float32),
            ffn_w1=w((C, ff_dim)), ffn_b1=w((ff_dim,)),
            ffn_w2=w((ff_dim, C)), ffn_b2=w((C,)),
            rfq_mha=mha_p(),
            carb=dict(w1=w((C, C, 3, 3)), b1=w((C,)),
                      w2=w((C, C, 3, 3)), b2=w((C,)),
                      w_eca=w((3,), 0.5)),
        ))
    p['blocks'] = blocks
    return p


if __name__ == "__main__":
    B, N = 1, 2            # batch, num_objects
    C = 64                 # embed_dim (== value_dim here)
    H = W = 8
    Q = 8                  # num_queries (even -> Q//2 fg / bg split)
    heads = 2
    ff_dim = 64
    num_blocks = 1
    cfg = dict(num_queries=Q, num_heads=heads, num_blocks=num_blocks,
               pixel_pe_scale=32, pixel_pe_temperature=128)

    key = jax.random.PRNGKey(0)
    kp, kx, km = jax.random.split(key, 3)
    params = prepare_params(init_params(kp, C, ff_dim, heads, Q, num_blocks))
    pixel = jax.random.normal(kx, (B, N, C, H, W), jnp.float32)
    obj_mem = jax.random.normal(km, (B, N, Q, C + 1), jnp.float32)
    # area channel (last) positive, as real pooled areas would be
    obj_mem = obj_mem.at[..., -1].set(jnp.abs(obj_mem[..., -1]) + 1.0)

    fwd = jax.jit(functools.partial(query_transformer_forward, cfg=cfg))
    out_pixel, aux = fwd(params, pixel, obj_mem)
    jax.block_until_ready(out_pixel)
    jax.block_until_ready(aux['attn_mask'])

    assert out_pixel.shape == (B, N, C, H, W)
    assert aux['attn_mask'].shape == (B, N, Q, H, W)
    assert len(aux['q_logits']) == num_blocks + 1
    assert bool(jnp.all(jnp.isfinite(out_pixel)))
    print("KERNEL_OK")
</pallas_src>

<mosaic_0001>
module attributes {stable_mosaic.version = 11 : i64} {
  func.func @_fused_proj_kernel(%arg0: i32, %arg1: memref<128x64xbf16, #tpu.memory_space<vmem>>, %arg2: memref<64x64xbf16, #tpu.memory_space<vmem>>, %arg3: memref<1x64xf32, #tpu.memory_space<vmem>>, %arg4: memref<64x64xbf16, #tpu.memory_space<vmem>>, %arg5: memref<1x64xf32, #tpu.memory_space<vmem>>, %arg6: memref<128x64xbf16, #tpu.memory_space<vmem>>, %arg7: memref<128x64xbf16, #tpu.memory_space<vmem>>) attributes {dimension_semantics = [#tpu.dimension_semantics<parallel>], iteration_bounds = array<i64: 1>, scalar_prefetch = 0 : i64, scratch_operands = 0 : i64, tpu.core_type = #tpu.core_type<tc>, window_params = [{transform_indices = @transform_0, window_bounds = array<i64: 128, 64>}, {pipeline_mode = #tpu.pipeline_mode<synchronous>, transform_indices = @transform_1, window_bounds = array<i64: 64, 64>}, {pipeline_mode = #tpu.pipeline_mode<synchronous>, transform_indices = @transform_2, window_bounds = array<i64: 1, 64>}, {pipeline_mode = #tpu.pipeline_mode<synchronous>, transform_indices = @transform_3, window_bounds = array<i64: 64, 64>}, {pipeline_mode = #tpu.pipeline_mode<synchronous>, transform_indices = @transform_4, window_bounds = array<i64: 1, 64>}, {transform_indices = @transform_5, window_bounds = array<i64: 128, 64>}, {transform_indices = @transform_6, window_bounds = array<i64: 128, 64>}]} {
    %c0 = arith.constant 0 : index
    %c0_0 = arith.constant 0 : index
    %0 = vector.load %arg1[%c0, %c0_0] : memref<128x64xbf16, #tpu.memory_space<vmem>>, vector<128x64xbf16>
    %c0_1 = arith.constant 0 : index
    %c0_2 = arith.constant 0 : index
    %1 = vector.load %arg2[%c0_1, %c0_2] : memref<64x64xbf16, #tpu.memory_space<vmem>>, vector<64x64xbf16>
    %cst = arith.constant dense<0.000000e+00> : vector<128x64xf32>
    %2 = tpu.matmul %0, %1, %cst {dimension_numbers = #tpu.dot_dimension_numbers<[1], [0], [0], [1], [0, 0, 1, 1], [], []>} : vector<128x64xbf16>, vector<64x64xbf16>, vector<128x64xf32> -> vector<128x64xf32>
    %c0_3 = arith.constant 0 : index
    %c0_4 = arith.constant 0 : index
    %3 = vector.load %arg3[%c0_3, %c0_4] : memref<1x64xf32, #tpu.memory_space<vmem>>, vector<1x64xf32>
    %4 = vector.broadcast %3 : vector<1x64xf32> to vector<128x64xf32>
    %5 = arith.addf %2, %4 : vector<128x64xf32>
    %6 = arith.truncf %5 : vector<128x64xf32> to vector<128x64xbf16>
    %c0_5 = arith.constant 0 : index
    %c0_6 = arith.constant 0 : index
    %7 = vector.load %arg6[%c0_5, %c0_6] : memref<128x64xbf16, #tpu.memory_space<vmem>>, vector<128x64xbf16>
    tpu.vector_store %arg6[%c0_5, %c0_6], %6 {strides = array<i32>} : memref<128x64xbf16, #tpu.memory_space<vmem>>, vector<128x64xbf16>,
    %c0_7 = arith.constant 0 : index
    %c0_8 = arith.constant 0 : index
    %8 = vector.load %arg4[%c0_7, %c0_8] : memref<64x64xbf16, #tpu.memory_space<vmem>>, vector<64x64xbf16>
    %cst_9 = arith.constant dense<0.000000e+00> : vector<128x64xf32>
    %9 = tpu.matmul %0, %8, %cst_9 {dimension_numbers = #tpu.dot_dimension_numbers<[1], [0], [0], [1], [0, 0, 1, 1], [], []>} : vector<128x64xbf16>, vector<64x64xbf16>, vector<128x64xf32> -> vector<128x64xf32>
    %c0_10 = arith.constant 0 : index
    %c0_11 = arith.constant 0 : index
    %10 = vector.load %arg5[%c0_10, %c0_11] : memref<1x64xf32, #tpu.memory_space<vmem>>, vector<1x64xf32>
    %11 = vector.broadcast %10 : vector<1x64xf32> to vector<128x64xf32>
    %12 = arith.addf %9, %11 : vector<128x64xf32>
    %13 = arith.truncf %12 : vector<128x64xf32> to vector<128x64xbf16>
    %c0_12 = arith.constant 0 : index
    %c0_13 = arith.constant 0 : index
    %14 = vector.load %arg7[%c0_12, %c0_13] : memref<128x64xbf16, #tpu.memory_space<vmem>>, vector<128x64xbf16>
    tpu.vector_store %arg7[%c0_12, %c0_13], %13 {strides = array<i32>} : memref<128x64xbf16, #tpu.memory_space<vmem>>, vector<128x64xbf16>,
    return
  }
  func.func @transform_0(%arg0: i32) -> (i32, i32) {
    %c0_i32 = arith.constant 0 : i32
    %c0_i32_0 = arith.constant 0 : i32
    return %arg0, %c0_i32 : i32, i32
  }
  func.func @transform_1(%arg0: i32) -> (i32, i32) {
    %c0_i32 = arith.constant 0 : i32
    %c0_i32_0 = arith.constant 0 : i32
    %c0_i32_1 = arith.constant 0 : i32
    return %c0_i32, %c0_i32_0 : i32, i32
  }
  func.func @transform_2(%arg0: i32) -> (i32, i32) {
    %c0_i32 = arith.constant 0 : i32
    %c0_i32_0 = arith.constant 0 : i32
    %c0_i32_1 = arith.constant 0 : i32
    return %c0_i32, %c0_i32_0 : i32, i32
  }
  func.func @transform_3(%arg0: i32) -> (i32, i32) {
    %c0_i32 = arith.constant 0 : i32
    %c0_i32_0 = arith.constant 0 : i32
    %c0_i32_1 = arith.constant 0 : i32
    return %c0_i32, %c0_i32_0 : i32, i32
  }
  func.func @transform_4(%arg0: i32) -> (i32, i32) {
    %c0_i32 = arith.constant 0 : i32
    %c0_i32_0 = arith.constant 0 : i32
    %c0_i32_1 = arith.constant 0 : i32
    return %c0_i32, %c0_i32_0 : i32, i32
  }
  func.func @transform_5(%arg0: i32) -> (i32, i32) {
    %c0_i32 = arith.constant 0 : i32
    %c0_i32_0 = arith.constant 0 : i32
    return %arg0, %c0_i32 : i32, i32
  }
  func.func @transform_6(%arg0: i32) -> (i32, i32) {
    %c0_i32 = arith.constant 0 : i32
    %c0_i32_0 = arith.constant 0 : i32
    return %arg0, %c0_i32 : i32, i32
  }
}

module attributes {stable_mosaic.version = 11 : i64} {
  func.func @_fused_proj_kernel(%arg0: i32, %arg1: memref<128x64xbf16, #tpu.memory_space<vmem>>, %arg2: memref<128x64xbf16, #tpu.memory_space<vmem>>, %arg3: memref<64x64xbf16, #tpu.memory_space<vmem>>, %arg4: memref<1x64xf32, #tpu.memory_space<vmem>>, %arg5: memref<64x64xbf16, #tpu.memory_space<vmem>>, %arg6: memref<1x64xf32, #tpu.memory_space<vmem>>, %arg7: memref<128x64xbf16, #tpu.memory_space<vmem>>, %arg8: memref<128x64xbf16, #tpu.memory_space<vmem>>) attributes {dimension_semantics = [#tpu.dimension_semantics<parallel>], iteration_bounds = array<i64: 1>, scalar_prefetch = 0 : i64, scratch_operands = 0 : i64, tpu.core_type = #tpu.core_type<tc>, window_params = [{transform_indices = @transform_0, window_bounds = array<i64: 128, 64>}, {transform_indices = @transform_1, window_bounds = array<i64: 128, 64>}, {pipeline_mode = #tpu.pipeline_mode<synchronous>, transform_indices = @transform_2, window_bounds = array<i64: 64, 64>}, {pipeline_mode = #tpu.pipeline_mode<synchronous>, transform_indices = @transform_3, window_bounds = array<i64: 1, 64>}, {pipeline_mode = #tpu.pipeline_mode<synchronous>, transform_indices = @transform_4, window_bounds = array<i64: 64, 64>}, {pipeline_mode = #tpu.pipeline_mode<synchronous>, transform_indices = @transform_5, window_bounds = array<i64: 1, 64>}, {transform_indices = @transform_6, window_bounds = array<i64: 128, 64>}, {transform_indices = @transform_7, window_bounds = array<i64: 128, 64>}]} {
    %c0 = arith.constant 0 : index
    %c0_0 = arith.constant 0 : index
    %0 = vector.load %arg1[%c0, %c0_0] : memref<128x64xbf16, #tpu.memory_space<vmem>>, vector<128x64xbf16>
    %1 = arith.extf %0 : vector<128x64xbf16> to vector<128x64xf32>
    %c0_1 = arith.constant 0 : index
    %c0_2 = arith.constant 0 : index
    %2 = vector.load %arg2[%c0_1, %c0_2] : memref<128x64xbf16, #tpu.memory_space<vmem>>, vector<128x64xbf16>
    %3 = arith.extf %2 : vector<128x64xbf16> to vector<128x64xf32>
    %4 = arith.addf %1, %3 : vector<128x64xf32>
    %5 = arith.truncf %4 : vector<128x64xf32> to vector<128x64xbf16>
    %c0_3 = arith.constant 0 : index
    %c0_4 = arith.constant 0 : index
    %6 = vector.load %arg3[%c0_3, %c0_4] : memref<64x64xbf16, #tpu.memory_space<vmem>>, vector<64x64xbf16>
    %cst = arith.constant dense<0.000000e+00> : vector<128x64xf32>
    %7 = tpu.matmul %5, %6, %cst {dimension_numbers = #tpu.dot_dimension_numbers<[1], [0], [0], [1], [0, 0, 1, 1], [], []>} : vector<128x64xbf16>, vector<64x64xbf16>, vector<128x64xf32> -> vector<128x64xf32>
    %c0_5 = arith.constant 0 : index
    %c0_6 = arith.constant 0 : index
    %8 = vector.load %arg4[%c0_5, %c0_6] : memref<1x64xf32, #tpu.memory_space<vmem>>, vector<1x64xf32>
    %9 = vector.broadcast %8 : vector<1x64xf32> to vector<128x64xf32>
    %10 = arith.addf %7, %9 : vector<128x64xf32>
    %11 = arith.truncf %10 : vector<128x64xf32> to vector<128x64xbf16>
    %c0_7 = arith.constant 0 : index
    %c0_8 = arith.constant 0 : index
    %12 = vector.load %arg7[%c0_7, %c0_8] : memref<128x64xbf16, #tpu.memory_space<vmem>>, vector<128x64xbf16>
    tpu.vector_store %arg7[%c0_7, %c0_8], %11 {strides = array<i32>} : memref<128x64xbf16, #tpu.memory_space<vmem>>, vector<128x64xbf16>,
    %c0_9 = arith.constant 0 : index
    %c0_10 = arith.constant 0 : index
    %13 = vector.load %arg5[%c0_9, %c0_10] : memref<64x64xbf16, #tpu.memory_space<vmem>>, vector<64x64xbf16>
    %cst_11 = arith.constant dense<0.000000e+00> : vector<128x64xf32>
    %14 = tpu.matmul %0, %13, %cst_11 {dimension_numbers = #tpu.dot_dimension_numbers<[1], [0], [0], [1], [0, 0, 1, 1], [], []>} : vector<128x64xbf16>, vector<64x64xbf16>, vector<128x64xf32> -> vector<128x64xf32>
    %c0_12 = arith.constant 0 : index
    %c0_13 = arith.constant 0 : index
    %15 = vector.load %arg6[%c0_12, %c0_13] : memref<1x64xf32, #tpu.memory_space<vmem>>, vector<1x64xf32>
    %16 = vector.broadcast %15 : vector<1x64xf32> to vector<128x64xf32>
    %17 = arith.addf %14, %16 : vector<128x64xf32>
    %18 = arith.truncf %17 : vector<128x64xf32> to vector<128x64xbf16>
    %c0_14 = arith.constant 0 : index
    %c0_15 = arith.constant 0 : index
    %19 = vector.load %arg8[%c0_14, %c0_15] : memref<128x64xbf16, #tpu.memory_space<vmem>>, vector<128x64xbf16>
    tpu.vector_store %arg8[%c0_14, %c0_15], %18 {strides = array<i32>} : memref<128x64xbf16, #tpu.memory_space<vmem>>, vector<128x64xbf16>,
    return
  }
  func.func @transform_0(%arg0: i32) -> (i32, i32) {
    %c0_i32 = arith.constant 0 : i32
    %c0_i32_0 = arith.constant 0 : i32
    return %arg0, %c0_i32 : i32, i32
  }
  func.func @transform_1(%arg0: i32) -> (i32, i32) {
    %c0_i32 = arith.constant 0 : i32
    %c0_i32_0 = arith.constant 0 : i32
    return %arg0, %c0_i32 : i32, i32
  }
  func.func @transform_2(%arg0: i32) -> (i32, i32) {
    %c0_i32 = arith.constant 0 : i32
    %c0_i32_0 = arith.constant 0 : i32
    %c0_i32_1 = arith.constant 0 : i32
    return %c0_i32, %c0_i32_0 : i32, i32
  }
  func.func @transform_3(%arg0: i32) -> (i32, i32) {
    %c0_i32 = arith.constant 0 : i32
    %c0_i32_0 = arith.constant 0 : i32
    %c0_i32_1 = arith.constant 0 : i32
    return %c0_i32, %c0_i32_0 : i32, i32
  }
  func.func @transform_4(%arg0: i32) -> (i32, i32) {
    %c0_i32 = arith.constant 0 : i32
    %c0_i32_0 = arith.constant 0 : i32
    %c0_i32_1 = arith.constant 0 : i32
    return %c0_i32, %c0_i32_0 : i32, i32
  }
  func.func @transform_5(%arg0: i32) -> (i32, i32) {
    %c0_i32 = arith.constant 0 : i32
    %c0_i32_0 = arith.constant 0 : i32
    %c0_i32_1 = arith.constant 0 : i32
    return %c0_i32, %c0_i32_0 : i32, i32
  }
  func.func @transform_6(%arg0: i32) -> (i32, i32) {
    %c0_i32 = arith.constant 0 : i32
    %c0_i32_0 = arith.constant 0 : i32
    return %arg0, %c0_i32 : i32, i32
  }
  func.func @transform_7(%arg0: i32) -> (i32, i32) {
    %c0_i32 = arith.constant 0 : i32
    %c0_i32_0 = arith.constant 0 : i32
    return %arg0, %c0_i32 : i32, i32
  }
}

module attributes {stable_mosaic.version = 11 : i64} {
  func.func @_fused_proj_kernel(%arg0: i32, %arg1: memref<16x64xbf16, #tpu.memory_space<vmem>>, %arg2: memref<64x128xbf16, #tpu.memory_space<vmem>>, %arg3: memref<1x128xf32, #tpu.memory_space<vmem>>, %arg4: memref<16x128xbf16, #tpu.memory_space<vmem>>) attributes {dimension_semantics = [#tpu.dimension_semantics<parallel>], iteration_bounds = array<i64: 1>, scalar_prefetch = 0 : i64, scratch_operands = 0 : i64, tpu.core_type = #tpu.core_type<tc>, window_params = [{transform_indices = @transform_0, window_bounds = array<i64: 16, 64>}, {pipeline_mode = #tpu.pipeline_mode<synchronous>, transform_indices = @transform_1, window_bounds = array<i64: 64, 128>}, {pipeline_mode = #tpu.pipeline_mode<synchronous>, transform_indices = @transform_2, window_bounds = array<i64: 1, 128>}, {transform_indices = @transform_3, window_bounds = array<i64: 16, 128>}]} {
    %c0 = arith.constant 0 : index
    %c0_0 = arith.constant 0 : index
    %0 = vector.load %arg1[%c0, %c0_0] : memref<16x64xbf16, #tpu.memory_space<vmem>>, vector<16x64xbf16>
    %c0_1 = arith.constant 0 : index
    %c0_2 = arith.constant 0 : index
    %1 = vector.load %arg2[%c0_1, %c0_2] : memref<64x128xbf16, #tpu.memory_space<vmem>>, vector<64x128xbf16>
    %cst = arith.constant dense<0.000000e+00> : vector<16x128xf32>
    %2 = tpu.matmul %0, %1, %cst {dimension_numbers = #tpu.dot_dimension_numbers<[1], [0], [0], [1], [0, 0, 1, 1], [], []>} : vector<16x64xbf16>, vector<64x128xbf16>, vector<16x128xf32> -> vector<16x128xf32>
    %c0_3 = arith.constant 0 : index
    %c0_4 = arith.constant 0 : index
    %3 = vector.load %arg3[%c0_3, %c0_4] : memref<1x128xf32, #tpu.memory_space<vmem>>, vector<1x128xf32>
    %4 = vector.broadcast %3 : vector<1x128xf32> to vector<16x128xf32>
    %5 = arith.addf %2, %4 : vector<16x128xf32>
    %6 = arith.truncf %5 : vector<16x128xf32> to vector<16x128xbf16>
    %c0_5 = arith.constant 0 : index
    %c0_6 = arith.constant 0 : index
    %7 = vector.load %arg4[%c0_5, %c0_6] : memref<16x128xbf16, #tpu.memory_space<vmem>>, vector<16x128xbf16>
    tpu.vector_store %arg4[%c0_5, %c0_6], %6 {strides = array<i32>} : memref<16x128xbf16, #tpu.memory_space<vmem>>, vector<16x128xbf16>,
    return
  }
  func.func @transform_0(%arg0: i32) -> (i32, i32) {
    %c0_i32 = arith.constant 0 : i32
    %c0_i32_0 = arith.constant 0 : i32
    return %arg0, %c0_i32 : i32, i32
  }
  func.func @transform_1(%arg0: i32) -> (i32, i32) {
    %c0_i32 = arith.constant 0 : i32
    %c0_i32_0 = arith.constant 0 : i32
    %c0_i32_1 = arith.constant 0 : i32
    return %c0_i32, %c0_i32_0 : i32, i32
  }
  func.func @transform_2(%arg0: i32) -> (i32, i32) {
    %c0_i32 = arith.constant 0 : i32
    %c0_i32_0 = arith.constant 0 : i32
    %c0_i32_1 = arith.constant 0 : i32
    return %c0_i32, %c0_i32_0 : i32, i32
  }
  func.func @transform_3(%arg0: i32) -> (i32, i32) {
    %c0_i32 = arith.constant 0 : i32
    %c0_i32_0 = arith.constant 0 : i32
    return %arg0, %c0_i32 : i32, i32
  }
}

module attributes {stable_mosaic.version = 11 : i64} {
  func.func @_fused_proj_kernel(%arg0: i32, %arg1: memref<16x64xbf16, #tpu.memory_space<vmem>>, %arg2: memref<16x64xbf16, #tpu.memory_space<vmem>>, %arg3: memref<1x64xf32, #tpu.memory_space<vmem>>, %arg4: memref<1x64xf32, #tpu.memory_space<vmem>>, %arg5: memref<64x64xbf16, #tpu.memory_space<vmem>>, %arg6: memref<1x64xf32, #tpu.memory_space<vmem>>, %arg7: memref<16x64xbf16, #tpu.memory_space<vmem>>, %arg8: memref<16x64xbf16, #tpu.memory_space<vmem>>) attributes {dimension_semantics = [#tpu.dimension_semantics<parallel>], iteration_bounds = array<i64: 1>, scalar_prefetch = 0 : i64, scratch_operands = 0 : i64, tpu.core_type = #tpu.core_type<tc>, window_params = [{transform_indices = @transform_0, window_bounds = array<i64: 16, 64>}, {transform_indices = @transform_1, window_bounds = array<i64: 16, 64>}, {pipeline_mode = #tpu.pipeline_mode<synchronous>, transform_indices = @transform_2, window_bounds = array<i64: 1, 64>}, {pipeline_mode = #tpu.pipeline_mode<synchronous>, transform_indices = @transform_3, window_bounds = array<i64: 1, 64>}, {pipeline_mode = #tpu.pipeline_mode<synchronous>, transform_indices = @transform_4, window_bounds = array<i64: 64, 64>}, {pipeline_mode = #tpu.pipeline_mode<synchronous>, transform_indices = @transform_5, window_bounds = array<i64: 1, 64>}, {transform_indices = @transform_6, window_bounds = array<i64: 16, 64>}, {transform_indices = @transform_7, window_bounds = array<i64: 16, 64>}]} {
    %c0 = arith.constant 0 : index
    %c0_0 = arith.constant 0 : index
    %0 = vector.load %arg1[%c0, %c0_0] : memref<16x64xbf16, #tpu.memory_space<vmem>>, vector<16x64xbf16>
    %1 = arith.extf %0 : vector<16x64xbf16> to vector<16x64xf32>
    %cst = arith.constant dense<0.000000e+00> : vector<16xf32>
    %2 = vector.multi_reduction <add>, %1, %cst [1] : vector<16x64xf32> to vector<16xf32>
    %3 = vector.shape_cast %2 : vector<16xf32> to vector<16x1xf32>
    %cst_1 = arith.constant 6.400000e+01 : f32
    %4 = vector.broadcast %cst_1 : f32 to vector<16x1xf32>
    %5 = arith.divf %3, %4 : vector<16x1xf32>
    %6 = vector.broadcast %5 : vector<16x1xf32> to vector<16x64xf32>
    %7 = arith.subf %1, %6 : vector<16x64xf32>
    %8 = arith.mulf %7, %7 : vector<16x64xf32>
    %cst_2 = arith.constant dense<0.000000e+00> : vector<16xf32>
    %9 = vector.multi_reduction <add>, %8, %cst_2 [1] : vector<16x64xf32> to vector<16xf32>
    %10 = vector.shape_cast %9 : vector<16xf32> to vector<16x1xf32>
    %cst_3 = arith.constant 6.400000e+01 : f32
    %11 = vector.broadcast %cst_3 : f32 to vector<16x1xf32>
    %12 = arith.divf %10, %11 : vector<16x1xf32>
    %cst_4 = arith.constant 9.99999974E-6 : f32
    %13 = vector.broadcast %cst_4 : f32 to vector<16x1xf32>
    %14 = arith.addf %12, %13 : vector<16x1xf32>
    %15 = math.rsqrt %14 : vector<16x1xf32>
    %16 = vector.broadcast %15 : vector<16x1xf32> to vector<16x64xf32>
    %17 = arith.mulf %7, %16 : vector<16x64xf32>
    %c0_5 = arith.constant 0 : index
    %c0_6 = arith.constant 0 : index
    %18 = vector.load %arg3[%c0_5, %c0_6] : memref<1x64xf32, #tpu.memory_space<vmem>>, vector<1x64xf32>
    %19 = vector.broadcast %18 : vector<1x64xf32> to vector<16x64xf32>
    %20 = arith.mulf %17, %19 : vector<16x64xf32>
    %c0_7 = arith.constant 0 : index
    %c0_8 = arith.constant 0 : index
    %21 = vector.load %arg4[%c0_7, %c0_8] : memref<1x64xf32, #tpu.memory_space<vmem>>, vector<1x64xf32>
    %22 = vector.broadcast %21 : vector<1x64xf32> to vector<16x64xf32>
    %23 = arith.addf %20, %22 : vector<16x64xf32>
    %24 = arith.truncf %23 : vector<16x64xf32> to vector<16x64xbf16>
    %c0_9 = arith.constant 0 : index
    %c0_10 = arith.constant 0 : index
    %25 = vector.load %arg7[%c0_9, %c0_10] : memref<16x64xbf16, #tpu.memory_space<vmem>>, vector<16x64xbf16>
    tpu.vector_store %arg7[%c0_9, %c0_10], %24 {strides = array<i32>} : memref<16x64xbf16, #tpu.memory_space<vmem>>, vector<16x64xbf16>,
    %c0_11 = arith.constant 0 : index
    %c0_12 = arith.constant 0 : index
    %26 = vector.load %arg2[%c0_11, %c0_12] : memref<16x64xbf16, #tpu.memory_space<vmem>>, vector<16x64xbf16>
    %27 = arith.extf %26 : vector<16x64xbf16> to vector<16x64xf32>
    %28 = arith.addf %23, %27 : vector<16x64xf32>
    %29 = arith.truncf %28 : vector<16x64xf32> to vector<16x64xbf16>
    %c0_13 = arith.constant 0 : index
    %c0_14 = arith.constant 0 : index
    %30 = vector.load %arg5[%c0_13, %c0_14] : memref<64x64xbf16, #tpu.memory_space<vmem>>, vector<64x64xbf16>
    %cst_15 = arith.constant dense<0.000000e+00> : vector<16x64xf32>
    %31 = tpu.matmul %29, %30, %cst_15 {dimension_numbers = #tpu.dot_dimension_numbers<[1], [0], [0], [1], [0, 0, 1, 1], [], []>} : vector<16x64xbf16>, vector<64x64xbf16>, vector<16x64xf32> -> vector<16x64xf32>
    %c0_16 = arith.constant 0 : index
    %c0_17 = arith.constant 0 : index
    %32 = vector.load %arg6[%c0_16, %c0_17] : memref<1x64xf32, #tpu.memory_space<vmem>>, vector<1x64xf32>
    %33 = vector.broadcast %32 : vector<1x64xf32> to vector<16x64xf32>
    %34 = arith.addf %31, %33 : vector<16x64xf32>
    %35 = arith.truncf %34 : vector<16x64xf32> to vector<16x64xbf16>
    %c0_18 = arith.constant 0 : index
    %c0_19 = arith.constant 0 : index
    %36 = vector.load %arg8[%c0_18, %c0_19] : memref<16x64xbf16, #tpu.memory_space<vmem>>, vector<16x64xbf16>
    tpu.vector_store %arg8[%c0_18, %c0_19], %35 {strides = array<i32>} : memref<16x64xbf16, #tpu.memory_space<vmem>>, vector<16x64xbf16>,
    return
  }
  func.func @transform_0(%arg0: i32) -> (i32, i32) {
    %c0_i32 = arith.constant 0 : i32
    %c0_i32_0 = arith.constant 0 : i32
    return %arg0, %c0_i32 : i32, i32
  }
  func.func @transform_1(%arg0: i32) -> (i32, i32) {
    %c0_i32 = arith.constant 0 : i32
    %c0_i32_0 = arith.constant 0 : i32
    return %arg0, %c0_i32 : i32, i32
  }
  func.func @transform_2(%arg0: i32) -> (i32, i32) {
    %c0_i32 = arith.constant 0 : i32
    %c0_i32_0 = arith.constant 0 : i32
    %c0_i32_1 = arith.constant 0 : i32
    return %c0_i32, %c0_i32_0 : i32, i32
  }
  func.func @transform_3(%arg0: i32) -> (i32, i32) {
    %c0_i32 = arith.constant 0 : i32
    %c0_i32_0 = arith.constant 0 : i32
    %c0_i32_1 = arith.constant 0 : i32
    return %c0_i32, %c0_i32_0 : i32, i32
  }
  func.func @transform_4(%arg0: i32) -> (i32, i32) {
    %c0_i32 = arith.constant 0 : i32
    %c0_i32_0 = arith.constant 0 : i32
    %c0_i32_1 = arith.constant 0 : i32
    return %c0_i32, %c0_i32_0 : i32, i32
  }
  func.func @transform_5(%arg0: i32) -> (i32, i32) {
    %c0_i32 = arith.constant 0 : i32
    %c0_i32_0 = arith.constant 0 : i32
    %c0_i32_1 = arith.constant 0 : i32
    return %c0_i32, %c0_i32_0 : i32, i32
  }
  func.func @transform_6(%arg0: i32) -> (i32, i32) {
    %c0_i32 = arith.constant 0 : i32
    %c0_i32_0 = arith.constant 0 : i32
    return %arg0, %c0_i32 : i32, i32
  }
  func.func @transform_7(%arg0: i32) -> (i32, i32) {
    %c0_i32 = arith.constant 0 : i32
    %c0_i32_0 = arith.constant 0 : i32
    return %arg0, %c0_i32 : i32, i32
  }
}

module attributes {stable_mosaic.version = 11 : i64} {
  func.func @_attn_kernel(%arg0: i32, %arg1: i32, %arg2: memref<1x8x64xbf16, #tpu.memory_space<vmem>>, %arg3: memref<1x64x64xbf16, #tpu.memory_space<vmem>>, %arg4: memref<1x64x64xbf16, #tpu.memory_space<vmem>>, %arg5: memref<2x32x64xbf16, #tpu.memory_space<vmem>>, %arg6: memref<1x64xf32, #tpu.memory_space<vmem>>, %arg7: memref<1x8x64xbf16, #tpu.memory_space<vmem>>, %arg8: memref<1x1x64xf32, #tpu.memory_space<vmem>>, %arg9: memref<1x8x64xbf16, #tpu.memory_space<vmem>>) attributes {dimension_semantics = [#tpu.dimension_semantics<parallel>, #tpu.dimension_semantics<parallel>], iteration_bounds = array<i64: 2, 1>, scalar_prefetch = 0 : i64, scratch_operands = 0 : i64, tpu.core_type = #tpu.core_type<tc>, window_params = [{transform_indices = @transform_0, window_bounds = array<i64: 1, 8, 64>}, {transform_indices = @transform_1, window_bounds = array<i64: 1, 64, 64>}, {transform_indices = @transform_2, window_bounds = array<i64: 1, 64, 64>}, {pipeline_mode = #tpu.pipeline_mode<synchronous>, transform_indices = @transform_3, window_bounds = array<i64: 2, 32, 64>}, {pipeline_mode = #tpu.pipeline_mode<synchronous>, transform_indices = @transform_4, window_bounds = array<i64: 1, 64>}, {transform_indices = @transform_5, window_bounds = array<i64: 1, 8, 64>}, {transform_indices = @transform_6, window_bounds = array<i64: 1, 1, 64>}, {transform_indices = @transform_7, window_bounds = array<i64: 1, 8, 64>}]} {
    %c0 = arith.constant 0 : index
    %c0_0 = arith.constant 0 : index
    %c0_1 = arith.constant 0 : index
    %0 = vector.load %arg2[%c0, %c0_0, %c0_1] : memref<1x8x64xbf16, #tpu.memory_space<vmem>>, vector<1x8x64xbf16>
    %1 = vector.shape_cast %0 : vector<1x8x64xbf16> to vector<8x64xbf16>
    %c0_2 = arith.constant 0 : index
    %c0_3 = arith.constant 0 : index
    %c0_4 = arith.constant 0 : index
    %2 = vector.load %arg3[%c0_2, %c0_3, %c0_4] : memref<1x64x64xbf16, #tpu.memory_space<vmem>>, vector<1x64x64xbf16>
    %3 = vector.shape_cast %2 : vector<1x64x64xbf16> to vector<64x64xbf16>
    %c0_5 = arith.constant 0 : index
    %c0_6 = arith.constant 0 : index
    %c0_7 = arith.constant 0 : index
    %4 = vector.load %arg4[%c0_5, %c0_6, %c0_7] : memref<1x64x64xbf16, #tpu.memory_space<vmem>>, vector<1x64x64xbf16>
    %5 = vector.shape_cast %4 : vector<1x64x64xbf16> to vector<64x64xbf16>
    %c0_8 = arith.constant 0 : index
    %c0_9 = arith.constant 0 : index
    %c0_10 = arith.constant 0 : index
    %6 = vector.load %arg8[%c0_8, %c0_9, %c0_10] : memref<1x1x64xf32, #tpu.memory_space<vmem>>, vector<1x1x64xf32>
    %7 = vector.shape_cast %6 : vector<1x1x64xf32> to vector<1x64xf32>
    %cst = arith.constant dense<0.000000e+00> : vector<1xf32>
    %8 = vector.multi_reduction <add>, %7, %cst [1] : vector<1x64xf32> to vector<1xf32>
    %9 = vector.shape_cast %8 : vector<1xf32> to vector<1x1xf32>
    %cst_11 = arith.constant 6.400000e+01 : f32
    %10 = vector.broadcast %cst_11 : f32 to vector<1x1xf32>
    %11 = arith.subf %10, %9 : vector<1x1xf32>
    %cst_12 = arith.constant 5.000000e-01 : f32
    %12 = vector.broadcast %cst_12 : f32 to vector<1x1xf32>
    %13 = arith.cmpf ogt, %9, %12 : vector<1x1xf32>
    %cst_13 = arith.constant 1.000000e+00 : f32
    %cst_14 = arith.constant 0.000000e+00 : f32
    %14 = vector.broadcast %cst_13 : f32 to vector<1x1xf32>
    %15 = vector.broadcast %cst_14 : f32 to vector<1x1xf32>
    %16 = arith.select %13, %14, %15 : vector<1x1xi1>, vector<1x1xf32>
    %cst_15 = arith.constant 5.000000e-01 : f32
    %17 = vector.broadcast %cst_15 : f32 to vector<1x1xf32>
    %18 = arith.cmpf ogt, %11, %17 : vector<1x1xf32>
    %cst_16 = arith.constant 1.000000e+00 : f32
    %cst_17 = arith.constant 0.000000e+00 : f32
    %19 = vector.broadcast %cst_16 : f32 to vector<1x1xf32>
    %20 = vector.broadcast %cst_17 : f32 to vector<1x1xf32>
    %21 = arith.select %18, %19, %20 : vector<1x1xi1>, vector<1x1xf32>
    %cst_18 = arith.constant 5.000000e-01 : f32
    %22 = vector.broadcast %cst_18 : f32 to vector<1x64xf32>
    %23 = arith.cmpf olt, %7, %22 : vector<1x64xf32>
    %cst_19 = arith.constant -1.000000e+09 : f32
    %cst_20 = arith.constant 0.000000e+00 : f32
    %24 = vector.broadcast %cst_19 : f32 to vector<1x64xf32>
    %25 = vector.broadcast %cst_20 : f32 to vector<1x64xf32>
    %26 = arith.select %23, %24, %25 : vector<1x64xi1>, vector<1x64xf32>
    %27 = vector.broadcast %16 : vector<1x1xf32> to vector<1x64xf32>
    %28 = arith.mulf %26, %27 : vector<1x64xf32>
    %cst_21 = arith.constant 5.000000e-01 : f32
    %29 = vector.broadcast %cst_21 : f32 to vector<1x64xf32>
    %30 = arith.cmpf ogt, %7, %29 : vector<1x64xf32>
    %cst_22 = arith.constant -1.000000e+09 : f32
    %cst_23 = arith.constant 0.000000e+00 : f32
    %31 = vector.broadcast %cst_22 : f32 to vector<1x64xf32>
    %32 = vector.broadcast %cst_23 : f32 to vector<1x64xf32>
    %33 = arith.select %30, %31, %32 : vector<1x64xi1>, vector<1x64xf32>
    %34 = vector.broadcast %21 : vector<1x1xf32> to vector<1x64xf32>
    %35 = arith.mulf %33, %34 : vector<1x64xf32>
    %36 = tpu.iota {dimensions = array<i32: 0>} : vector<8x1xi32>
    %c4_i32 = arith.constant 4 : i32
    %37 = vector.broadcast %c4_i32 : i32 to vector<8x1xi32>
    %38 = arith.cmpi slt, %36, %37 : vector<8x1xi32>
    %39 = arith.extui %38 : vector<8x1xi1> to vector<8x1xi32>
    %40 = arith.sitofp %39 : vector<8x1xi32> to vector<8x1xf32>
    %41 = vector.broadcast %40 : vector<8x1xf32> to vector<8x64xf32>
    %42 = vector.broadcast %28 : vector<1x64xf32> to vector<8x64xf32>
    %43 = arith.mulf %41, %42 : vector<8x64xf32>
    %cst_24 = arith.constant 1.000000e+00 : f32
    %44 = vector.broadcast %cst_24 : f32 to vector<8x1xf32>
    %45 = arith.subf %44, %40 : vector<8x1xf32>
    %46 = vector.broadcast %45 : vector<8x1xf32> to vector<8x64xf32>
    %47 = vector.broadcast %35 : vector<1x64xf32> to vector<8x64xf32>
    %48 = arith.mulf %46, %47 : vector<8x64xf32>
    %49 = arith.addf %43, %48 : vector<8x64xf32>
    %cst_25 = arith.constant 0.000000e+00 : f32
    %50 = vector.broadcast %cst_25 : f32 to vector<8x64xf32>
    %51 = vector.extract_strided_slice %1 {offsets = [0, 0], sizes = [8, 32], strides = [1, 1]} : vector<8x64xbf16> to vector<8x32xbf16>
    %52 = vector.extract_strided_slice %3 {offsets = [0, 0], sizes = [64, 32], strides = [1, 1]} : vector<64x64xbf16> to vector<64x32xbf16>
    %cst_26 = arith.constant dense<0.000000e+00> : vector<8x64xf32>
    %53 = tpu.matmul %51, %52, %cst_26 {dimension_numbers = #tpu.dot_dimension_numbers<[1], [1], [0], [0], [0, 0, 1, 0], [], []>} : vector<8x32xbf16>, vector<64x32xbf16>, vector<8x64xf32> -> vector<8x64xf32>
    %cst_27 = arith.constant 0.176776692 : f32
    %54 = vector.broadcast %cst_27 : f32 to vector<8x64xf32>
    %55 = arith.mulf %53, %54 : vector<8x64xf32>
    %56 = arith.addf %55, %49 : vector<8x64xf32>
    %cst_28 = arith.constant dense<0xFF800000> : vector<8xf32>
    %57 = vector.multi_reduction <maximumf>, %56, %cst_28 [1] : vector<8x64xf32> to vector<8xf32>
    %58 = vector.shape_cast %57 : vector<8xf32> to vector<8x1xf32>
    %59 = vector.broadcast %58 : vector<8x1xf32> to vector<8x64xf32>
    %60 = arith.subf %56, %59 : vector<8x64xf32>
    %61 = math.exp %60 : vector<8x64xf32>
    %cst_29 = arith.constant dense<0.000000e+00> : vector<8xf32>
    %62 = vector.multi_reduction <add>, %61, %cst_29 [1] : vector<8x64xf32> to vector<8xf32>
    %63 = vector.shape_cast %62 : vector<8xf32> to vector<8x1xf32>
    %64 = tpu.reciprocal %63 {approx = true} : vector<8x1xf32> -> vector<8x1xf32>
    %65 = vector.broadcast %64 : vector<8x1xf32> to vector<8x64xf32>
    %66 = arith.mulf %61, %65 : vector<8x64xf32>
    %67 = arith.truncf %66 : vector<8x64xf32> to vector<8x64xbf16>
    %68 = vector.extract_strided_slice %5 {offsets = [0, 0], sizes = [64, 32], strides = [1, 1]} : vector<64x64xbf16> to vector<64x32xbf16>
    %cst_30 = arith.constant dense<0.000000e+00> : vector<8x32xf32>
    %69 = tpu.matmul %67, %68, %cst_30 {dimension_numbers = #tpu.dot_dimension_numbers<[1], [0], [0], [1], [0, 0, 1, 1], [], []>} : vector<8x64xbf16>, vector<64x32xbf16>, vector<8x32xf32> -> vector<8x32xf32>
    %70 = arith.truncf %69 : vector<8x32xf32> to vector<8x32xbf16>
    %c0_31 = arith.constant 0 : index
    %c0_32 = arith.constant 0 : index
    %c0_33 = arith.constant 0 : index
    %71 = vector.load %arg5[%c0_31, %c0_32, %c0_33] : memref<2x32x64xbf16, #tpu.memory_space<vmem>>, vector<1x32x64xbf16>
    %72 = vector.shape_cast %71 : vector<1x32x64xbf16> to vector<32x64xbf16>
    %cst_34 = arith.constant dense<0.000000e+00> : vector<8x64xf32>
    %73 = tpu.matmul %70, %72, %cst_34 {dimension_numbers = #tpu.dot_dimension_numbers<[1], [0], [0], [1], [0, 0, 1, 1], [], []>} : vector<8x32xbf16>, vector<32x64xbf16>, vector<8x64xf32> -> vector<8x64xf32>
    %74 = arith.addf %50, %73 : vector<8x64xf32>
    %75 = vector.extract_strided_slice %1 {offsets = [0, 32], sizes = [8, 32], strides = [1, 1]} : vector<8x64xbf16> to vector<8x32xbf16>
    %76 = vector.extract_strided_slice %3 {offsets = [0, 32], sizes = [64, 32], strides = [1, 1]} : vector<64x64xbf16> to vector<64x32xbf16>
    %cst_35 = arith.constant dense<0.000000e+00> : vector<8x64xf32>
    %77 = tpu.matmul %75, %76, %cst_35 {dimension_numbers = #tpu.dot_dimension_numbers<[1], [1], [0], [0], [0, 0, 1, 0], [], []>} : vector<8x32xbf16>, vector<64x32xbf16>, vector<8x64xf32> -> vector<8x64xf32>
    %cst_36 = arith.constant 0.176776692 : f32
    %78 = vector.broadcast %cst_36 : f32 to vector<8x64xf32>
    %79 = arith.mulf %77, %78 : vector<8x64xf32>
    %80 = arith.addf %79, %49 : vector<8x64xf32>
    %cst_37 = arith.constant dense<0xFF800000> : vector<8xf32>
    %81 = vector.multi_reduction <maximumf>, %80, %cst_37 [1] : vector<8x64xf32> to vector<8xf32>
    %82 = vector.shape_cast %81 : vector<8xf32> to vector<8x1xf32>
    %83 = vector.broadcast %82 : vector<8x1xf32> to vector<8x64xf32>
    %84 = arith.subf %80, %83 : vector<8x64xf32>
    %85 = math.exp %84 : vector<8x64xf32>
    %cst_38 = arith.constant dense<0.000000e+00> : vector<8xf32>
    %86 = vector.multi_reduction <add>, %85, %cst_38 [1] : vector<8x64xf32> to vector<8xf32>
    %87 = vector.shape_cast %86 : vector<8xf32> to vector<8x1xf32>
    %88 = tpu.reciprocal %87 {approx = true} : vector<8x1xf32> -> vector<8x1xf32>
    %89 = vector.broadcast %88 : vector<8x1xf32> to vector<8x64xf32>
    %90 = arith.mulf %85, %89 : vector<8x64xf32>
    %91 = arith.truncf %90 : vector<8x64xf32> to vector<8x64xbf16>
    %92 = vector.extract_strided_slice %5 {offsets = [0, 32], sizes = [64, 32], strides = [1, 1]} : vector<64x64xbf16> to vector<64x32xbf16>
    %cst_39 = arith.constant dense<0.000000e+00> : vector<8x32xf32>
    %93 = tpu.matmul %91, %92, %cst_39 {dimension_numbers = #tpu.dot_dimension_numbers<[1], [0], [0], [1], [0, 0, 1, 1], [], []>} : vector<8x64xbf16>, vector<64x32xbf16>, vector<8x32xf32> -> vector<8x32xf32>
    %94 = arith.truncf %93 : vector<8x32xf32> to vector<8x32xbf16>
    %c1 = arith.constant 1 : index
    %c0_40 = arith.constant 0 : index
    %c0_41 = arith.constant 0 : index
    %95 = vector.load %arg5[%c1, %c0_40, %c0_41] : memref<2x32x64xbf16, #tpu.memory_space<vmem>>, vector<1x32x64xbf16>
    %96 = vector.shape_cast %95 : vector<1x32x64xbf16> to vector<32x64xbf16>
    %cst_42 = arith.constant dense<0.000000e+00> : vector<8x64xf32>
    %97 = tpu.matmul %94, %96, %cst_42 {dimension_numbers = #tpu.dot_dimension_numbers<[1], [0], [0], [1], [0, 0, 1, 1], [], []>} : vector<8x32xbf16>, vector<32x64xbf16>, vector<8x64xf32> -> vector<8x64xf32>
    %98 = arith.addf %74, %97 : vector<8x64xf32>
    %c0_43 = arith.constant 0 : index
    %c0_44 = arith.constant 0 : index
    %99 = vector.load %arg6[%c0_43, %c0_44] : memref<1x64xf32, #tpu.memory_space<vmem>>, vector<1x64xf32>
    %100 = vector.broadcast %99 : vector<1x64xf32> to vector<8x64xf32>
    %101 = arith.addf %98, %100 : vector<8x64xf32>
    %c0_45 = arith.constant 0 : index
    %c0_46 = arith.constant 0 : index
    %c0_47 = arith.constant 0 : index
    %102 = vector.load %arg7[%c0_45, %c0_46, %c0_47] : memref<1x8x64xbf16, #tpu.memory_space<vmem>>, vector<1x8x64xbf16>
    %103 = vector.shape_cast %102 : vector<1x8x64xbf16> to vector<8x64xbf16>
    %104 = arith.extf %103 : vector<8x64xbf16> to vector<8x64xf32>
    %105 = arith.addf %101, %104 : vector<8x64xf32>
    %106 = arith.truncf %105 : vector<8x64xf32> to vector<8x64xbf16>
    %c0_48 = arith.constant 0 : index
    %c0_49 = arith.constant 0 : index
    %c0_50 = arith.constant 0 : index
    %107 = vector.load %arg9[%c0_48, %c0_49, %c0_50] : memref<1x8x64xbf16, #tpu.memory_space<vmem>>, vector<1x8x64xbf16>
    %108 = vector.shape_cast %107 : vector<1x8x64xbf16> to vector<8x64xbf16>
    %109 = vector.shape_cast %106 : vector<8x64xbf16> to vector<1x8x64xbf16>
    tpu.vector_store %arg9[%c0_48, %c0_49, %c0_50], %109 {strides = array<i32>} : memref<1x8x64xbf16, #tpu.memory_space<vmem>>, vector<1x8x64xbf16>,
    return
  }
  func.func @transform_0(%arg0: i32, %arg1: i32) -> (i32, i32, i32) {
    %c0_i32 = arith.constant 0 : i32
    %c0_i32_0 = arith.constant 0 : i32
    return %arg0, %arg1, %c0_i32 : i32, i32, i32
  }
  func.func @transform_1(%arg0: i32, %arg1: i32) -> (i32, i32, i32) {
    %c0_i32 = arith.constant 0 : i32
    %c0_i32_0 = arith.constant 0 : i32
    %c0_i32_1 = arith.constant 0 : i32
    return %arg0, %c0_i32, %c0_i32_0 : i32, i32, i32
  }
  func.func @transform_2(%arg0: i32, %arg1: i32) -> (i32, i32, i32) {
    %c0_i32 = arith.constant 0 : i32
    %c0_i32_0 = arith.constant 0 : i32
    %c0_i32_1 = arith.constant 0 : i32
    return %arg0, %c0_i32, %c0_i32_0 : i32, i32, i32
  }
  func.func @transform_3(%arg0: i32, %arg1: i32) -> (i32, i32, i32) {
    %c0_i32 = arith.constant 0 : i32
    %c0_i32_0 = arith.constant 0 : i32
    %c0_i32_1 = arith.constant 0 : i32
    %c0_i32_2 = arith.constant 0 : i32
    return %c0_i32, %c0_i32_0, %c0_i32_1 : i32, i32, i32
  }
  func.func @transform_4(%arg0: i32, %arg1: i32) -> (i32, i32) {
    %c0_i32 = arith.constant 0 : i32
    %c0_i32_0 = arith.constant 0 : i32
    %c0_i32_1 = arith.constant 0 : i32
    return %c0_i32, %c0_i32_0 : i32, i32
  }
  func.func @transform_5(%arg0: i32, %arg1: i32) -> (i32, i32, i32) {
    %c0_i32 = arith.constant 0 : i32
    %c0_i32_0 = arith.constant 0 : i32
    return %arg0, %arg1, %c0_i32 : i32, i32, i32
  }
  func.func @transform_6(%arg0: i32, %arg1: i32) -> (i32, i32, i32) {
    %c0_i32 = arith.constant 0 : i32
    %c0_i32_0 = arith.constant 0 : i32
    %c0_i32_1 = arith.constant 0 : i32
    return %arg0, %c0_i32, %c0_i32_0 : i32, i32, i32
  }
  func.func @transform_7(%arg0: i32, %arg1: i32) -> (i32, i32, i32) {
    %c0_i32 = arith.constant 0 : i32
    %c0_i32_0 = arith.constant 0 : i32
    return %arg0, %arg1, %c0_i32 : i32, i32, i32
  }
}

module attributes {stable_mosaic.version = 11 : i64} {
  func.func @_fused_proj_kernel(%arg0: i32, %arg1: memref<16x64xbf16, #tpu.memory_space<vmem>>, %arg2: memref<16x64xbf16, #tpu.memory_space<vmem>>, %arg3: memref<1x64xf32, #tpu.memory_space<vmem>>, %arg4: memref<1x64xf32, #tpu.memory_space<vmem>>, %arg5: memref<64x128xbf16, #tpu.memory_space<vmem>>, %arg6: memref<1x128xf32, #tpu.memory_space<vmem>>, %arg7: memref<64x64xbf16, #tpu.memory_space<vmem>>, %arg8: memref<1x64xf32, #tpu.memory_space<vmem>>, %arg9: memref<16x64xbf16, #tpu.memory_space<vmem>>, %arg10: memref<16x128xbf16, #tpu.memory_space<vmem>>, %arg11: memref<16x64xbf16, #tpu.memory_space<vmem>>) attributes {dimension_semantics = [#tpu.dimension_semantics<parallel>], iteration_bounds = array<i64: 1>, scalar_prefetch = 0 : i64, scratch_operands = 0 : i64, tpu.core_type = #tpu.core_type<tc>, window_params = [{transform_indices = @transform_0, window_bounds = array<i64: 16, 64>}, {transform_indices = @transform_1, window_bounds = array<i64: 16, 64>}, {pipeline_mode = #tpu.pipeline_mode<synchronous>, transform_indices = @transform_2, window_bounds = array<i64: 1, 64>}, {pipeline_mode = #tpu.pipeline_mode<synchronous>, transform_indices = @transform_3, window_bounds = array<i64: 1, 64>}, {pipeline_mode = #tpu.pipeline_mode<synchronous>, transform_indices = @transform_4, window_bounds = array<i64: 64, 128>}, {pipeline_mode = #tpu.pipeline_mode<synchronous>, transform_indices = @transform_5, window_bounds = array<i64: 1, 128>}, {pipeline_mode = #tpu.pipeline_mode<synchronous>, transform_indices = @transform_6, window_bounds = array<i64: 64, 64>}, {pipeline_mode = #tpu.pipeline_mode<synchronous>, transform_indices = @transform_7, window_bounds = array<i64: 1, 64>}, {transform_indices = @transform_8, window_bounds = array<i64: 16, 64>}, {transform_indices = @transform_9, window_bounds = array<i64: 16, 128>}, {transform_indices = @transform_10, window_bounds = array<i64: 16, 64>}]} {
    %c0 = arith.constant 0 : index
    %c0_0 = arith.constant 0 : index
    %0 = vector.load %arg1[%c0, %c0_0] : memref<16x64xbf16, #tpu.memory_space<vmem>>, vector<16x64xbf16>
    %1 = arith.extf %0 : vector<16x64xbf16> to vector<16x64xf32>
    %cst = arith.constant dense<0.000000e+00> : vector<16xf32>
    %2 = vector.multi_reduction <add>, %1, %cst [1] : vector<16x64xf32> to vector<16xf32>
    %3 = vector.shape_cast %2 : vector<16xf32> to vector<16x1xf32>
    %cst_1 = arith.constant 6.400000e+01 : f32
    %4 = vector.broadcast %cst_1 : f32 to vector<16x1xf32>
    %5 = arith.divf %3, %4 : vector<16x1xf32>
    %6 = vector.broadcast %5 : vector<16x1xf32> to vector<16x64xf32>
    %7 = arith.subf %1, %6 : vector<16x64xf32>
    %8 = arith.mulf %7, %7 : vector<16x64xf32>
    %cst_2 = arith.constant dense<0.000000e+00> : vector<16xf32>
    %9 = vector.multi_reduction <add>, %8, %cst_2 [1] : vector<16x64xf32> to vector<16xf32>
    %10 = vector.shape_cast %9 : vector<16xf32> to vector<16x1xf32>
    %cst_3 = arith.constant 6.400000e+01 : f32
    %11 = vector.broadcast %cst_3 : f32 to vector<16x1xf32>
    %12 = arith.divf %10, %11 : vector<16x1xf32>
    %cst_4 = arith.constant 9.99999974E-6 : f32
    %13 = vector.broadcast %cst_4 : f32 to vector<16x1xf32>
    %14 = arith.addf %12, %13 : vector<16x1xf32>
    %15 = math.rsqrt %14 : vector<16x1xf32>
    %16 = vector.broadcast %15 : vector<16x1xf32> to vector<16x64xf32>
    %17 = arith.mulf %7, %16 : vector<16x64xf32>
    %c0_5 = arith.constant 0 : index
    %c0_6 = arith.constant 0 : index
    %18 = vector.load %arg3[%c0_5, %c0_6] : memref<1x64xf32, #tpu.memory_space<vmem>>, vector<1x64xf32>
    %19 = vector.broadcast %18 : vector<1x64xf32> to vector<16x64xf32>
    %20 = arith.mulf %17, %19 : vector<16x64xf32>
    %c0_7 = arith.constant 0 : index
    %c0_8 = arith.constant 0 : index
    %21 = vector.load %arg4[%c0_7, %c0_8] : memref<1x64xf32, #tpu.memory_space<vmem>>, vector<1x64xf32>
    %22 = vector.broadcast %21 : vector<1x64xf32> to vector<16x64xf32>
    %23 = arith.addf %20, %22 : vector<16x64xf32>
    %24 = arith.truncf %23 : vector<16x64xf32> to vector<16x64xbf16>
    %c0_9 = arith.constant 0 : index
    %c0_10 = arith.constant 0 : index
    %25 = vector.load %arg9[%c0_9, %c0_10] : memref<16x64xbf16, #tpu.memory_space<vmem>>, vector<16x64xbf16>
    tpu.vector_store %arg9[%c0_9, %c0_10], %24 {strides = array<i32>} : memref<16x64xbf16, #tpu.memory_space<vmem>>, vector<16x64xbf16>,
    %26 = arith.truncf %23 : vector<16x64xf32> to vector<16x64xbf16>
    %c0_11 = arith.constant 0 : index
    %c0_12 = arith.constant 0 : index
    %27 = vector.load %arg2[%c0_11, %c0_12] : memref<16x64xbf16, #tpu.memory_space<vmem>>, vector<16x64xbf16>
    %28 = arith.extf %27 : vector<16x64xbf16> to vector<16x64xf32>
    %29 = arith.addf %23, %28 : vector<16x64xf32>
    %30 = arith.truncf %29 : vector<16x64xf32> to vector<16x64xbf16>
    %c0_13 = arith.constant 0 : index
    %c0_14 = arith.constant 0 : index
    %31 = vector.load %arg5[%c0_13, %c0_14] : memref<64x128xbf16, #tpu.memory_space<vmem>>, vector<64x128xbf16>
    %cst_15 = arith.constant dense<0.000000e+00> : vector<16x128xf32>
    %32 = tpu.matmul %30, %31, %cst_15 {dimension_numbers = #tpu.dot_dimension_numbers<[1], [0], [0], [1], [0, 0, 1, 1], [], []>} : vector<16x64xbf16>, vector<64x128xbf16>, vector<16x128xf32> -> vector<16x128xf32>
    %c0_16 = arith.constant 0 : index
    %c0_17 = arith.constant 0 : index
    %33 = vector.load %arg6[%c0_16, %c0_17] : memref<1x128xf32, #tpu.memory_space<vmem>>, vector<1x128xf32>
    %34 = vector.broadcast %33 : vector<1x128xf32> to vector<16x128xf32>
    %35 = arith.addf %32, %34 : vector<16x128xf32>
    %36 = arith.truncf %35 : vector<16x128xf32> to vector<16x128xbf16>
    %c0_18 = arith.constant 0 : index
    %c0_19 = arith.constant 0 : index
    %37 = vector.load %arg10[%c0_18, %c0_19] : memref<16x128xbf16, #tpu.memory_space<vmem>>, vector<16x128xbf16>
    tpu.vector_store %arg10[%c0_18, %c0_19], %36 {strides = array<i32>} : memref<16x128xbf16, #tpu.memory_space<vmem>>, vector<16x128xbf16>,
    %c0_20 = arith.constant 0 : index
    %c0_21 = arith.constant 0 : index
    %38 = vector.load %arg7[%c0_20, %c0_21] : memref<64x64xbf16, #tpu.memory_space<vmem>>, vector<64x64xbf16>
    %cst_22 = arith.constant dense<0.000000e+00> : vector<16x64xf32>
    %39 = tpu.matmul %26, %38, %cst_22 {dimension_numbers = #tpu.dot_dimension_numbers<[1], [0], [0], [1], [0, 0, 1, 1], [], []>} : vector<16x64xbf16>, vector<64x64xbf16>, vector<16x64xf32> -> vector<16x64xf32>
    %c0_23 = arith.constant 0 : index
    %c0_24 = arith.constant 0 : index
    %40 = vector.load %arg8[%c0_23, %c0_24] : memref<1x64xf32, #tpu.memory_space<vmem>>, vector<1x64xf32>
    %41 = vector.broadcast %40 : vector<1x64xf32> to vector<16x64xf32>
    %42 = arith.addf %39, %41 : vector<16x64xf32>
    %43 = arith.truncf %42 : vector<16x64xf32> to vector<16x64xbf16>
    %c0_25 = arith.constant 0 : index
    %c0_26 = arith.constant 0 : index
    %44 = vector.load %arg11[%c0_25, %c0_26] : memref<16x64xbf16, #tpu.memory_space<vmem>>, vector<16x64xbf16>
    tpu.vector_store %arg11[%c0_25, %c0_26], %43 {strides = array<i32>} : memref<16x64xbf16, #tpu.memory_space<vmem>>, vector<16x64xbf16>,
    return
  }
  func.func @transform_0(%arg0: i32) -> (i32, i32) {
    %c0_i32 = arith.constant 0 : i32
    %c0_i32_0 = arith.constant 0 : i32
    return %arg0, %c0_i32 : i32, i32
  }
  func.func @transform_1(%arg0: i32) -> (i32, i32) {
    %c0_i32 = arith.constant 0 : i32
    %c0_i32_0 = arith.constant 0 : i32
    return %arg0, %c0_i32 : i32, i32
  }
  func.func @transform_2(%arg0: i32) -> (i32, i32) {
    %c0_i32 = arith.constant 0 : i32
    %c0_i32_0 = arith.constant 0 : i32
    %c0_i32_1 = arith.constant 0 : i32
    return %c0_i32, %c0_i32_0 : i32, i32
  }
  func.func @transform_3(%arg0: i32) -> (i32, i32) {
    %c0_i32 = arith.constant 0 : i32
    %c0_i32_0 = arith.constant 0 : i32
    %c0_i32_1 = arith.constant 0 : i32
    return %c0_i32, %c0_i32_0 : i32, i32
  }
  func.func @transform_4(%arg0: i32) -> (i32, i32) {
    %c0_i32 = arith.constant 0 : i32
    %c0_i32_0 = arith.constant 0 : i32
    %c0_i32_1 = arith.constant 0 : i32
    return %c0_i32, %c0_i32_0 : i32, i32
  }
  func.func @transform_5(%arg0: i32) -> (i32, i32) {
    %c0_i32 = arith.constant 0 : i32
    %c0_i32_0 = arith.constant 0 : i32
    %c0_i32_1 = arith.constant 0 : i32
    return %c0_i32, %c0_i32_0 : i32, i32
  }
  func.func @transform_6(%arg0: i32) -> (i32, i32) {
    %c0_i32 = arith.constant 0 : i32
    %c0_i32_0 = arith.constant 0 : i32
    %c0_i32_1 = arith.constant 0 : i32
    return %c0_i32, %c0_i32_0 : i32, i32
  }
  func.func @transform_7(%arg0: i32) -> (i32, i32) {
    %c0_i32 = arith.constant 0 : i32
    %c0_i32_0 = arith.constant 0 : i32
    %c0_i32_1 = arith.constant 0 : i32
    return %c0_i32, %c0_i32_0 : i32, i32
  }
  func.func @transform_8(%arg0: i32) -> (i32, i32) {
    %c0_i32 = arith.constant 0 : i32
    %c0_i32_0 = arith.constant 0 : i32
    return %arg0, %c0_i32 : i32, i32
  }
  func.func @transform_9(%arg0: i32) -> (i32, i32) {
    %c0_i32 = arith.constant 0 : i32
    %c0_i32_0 = arith.constant 0 : i32
    return %arg0, %c0_i32 : i32, i32
  }
  func.func @transform_10(%arg0: i32) -> (i32, i32) {
    %c0_i32 = arith.constant 0 : i32
    %c0_i32_0 = arith.constant 0 : i32
    return %arg0, %c0_i32 : i32, i32
  }
}

module attributes {stable_mosaic.version = 11 : i64} {
  func.func @_fused_proj_kernel(%arg0: i32, %arg1: memref<16x64xbf16, #tpu.memory_space<vmem>>, %arg2: memref<1x64xf32, #tpu.memory_space<vmem>>, %arg3: memref<1x64xf32, #tpu.memory_space<vmem>>, %arg4: memref<64x64xbf16, #tpu.memory_space<vmem>>, %arg5: memref<1x64xf32, #tpu.memory_space<vmem>>, %arg6: memref<16x64xbf16, #tpu.memory_space<vmem>>) attributes {dimension_semantics = [#tpu.dimension_semantics<parallel>], iteration_bounds = array<i64: 1>, scalar_prefetch = 0 : i64, scratch_operands = 0 : i64, tpu.core_type = #tpu.core_type<tc>, window_params = [{transform_indices = @transform_0, window_bounds = array<i64: 16, 64>}, {pipeline_mode = #tpu.pipeline_mode<synchronous>, transform_indices = @transform_1, window_bounds = array<i64: 1, 64>}, {pipeline_mode = #tpu.pipeline_mode<synchronous>, transform_indices = @transform_2, window_bounds = array<i64: 1, 64>}, {pipeline_mode = #tpu.pipeline_mode<synchronous>, transform_indices = @transform_3, window_bounds = array<i64: 64, 64>}, {pipeline_mode = #tpu.pipeline_mode<synchronous>, transform_indices = @transform_4, window_bounds = array<i64: 1, 64>}, {transform_indices = @transform_5, window_bounds = array<i64: 16, 64>}]} {
    %c0 = arith.constant 0 : index
    %c0_0 = arith.constant 0 : index
    %0 = vector.load %arg1[%c0, %c0_0] : memref<16x64xbf16, #tpu.memory_space<vmem>>, vector<16x64xbf16>
    %1 = arith.extf %0 : vector<16x64xbf16> to vector<16x64xf32>
    %cst = arith.constant dense<0.000000e+00> : vector<16xf32>
    %2 = vector.multi_reduction <add>, %1, %cst [1] : vector<16x64xf32> to vector<16xf32>
    %3 = vector.shape_cast %2 : vector<16xf32> to vector<16x1xf32>
    %cst_1 = arith.constant 6.400000e+01 : f32
    %4 = vector.broadcast %cst_1 : f32 to vector<16x1xf32>
    %5 = arith.divf %3, %4 : vector<16x1xf32>
    %6 = vector.broadcast %5 : vector<16x1xf32> to vector<16x64xf32>
    %7 = arith.subf %1, %6 : vector<16x64xf32>
    %8 = arith.mulf %7, %7 : vector<16x64xf32>
    %cst_2 = arith.constant dense<0.000000e+00> : vector<16xf32>
    %9 = vector.multi_reduction <add>, %8, %cst_2 [1] : vector<16x64xf32> to vector<16xf32>
    %10 = vector.shape_cast %9 : vector<16xf32> to vector<16x1xf32>
    %cst_3 = arith.constant 6.400000e+01 : f32
    %11 = vector.broadcast %cst_3 : f32 to vector<16x1xf32>
    %12 = arith.divf %10, %11 : vector<16x1xf32>
    %cst_4 = arith.constant 9.99999974E-6 : f32
    %13 = vector.broadcast %cst_4 : f32 to vector<16x1xf32>
    %14 = arith.addf %12, %13 : vector<16x1xf32>
    %15 = math.rsqrt %14 : vector<16x1xf32>
    %16 = vector.broadcast %15 : vector<16x1xf32> to vector<16x64xf32>
    %17 = arith.mulf %7, %16 : vector<16x64xf32>
    %c0_5 = arith.constant 0 : index
    %c0_6 = arith.constant 0 : index
    %18 = vector.load %arg2[%c0_5, %c0_6] : memref<1x64xf32, #tpu.memory_space<vmem>>, vector<1x64xf32>
    %19 = vector.broadcast %18 : vector<1x64xf32> to vector<16x64xf32>
    %20 = arith.mulf %17, %19 : vector<16x64xf32>
    %c0_7 = arith.constant 0 : index
    %c0_8 = arith.constant 0 : index
    %21 = vector.load %arg3[%c0_7, %c0_8] : memref<1x64xf32, #tpu.memory_space<vmem>>, vector<1x64xf32>
    %22 = vector.broadcast %21 : vector<1x64xf32> to vector<16x64xf32>
    %23 = arith.addf %20, %22 : vector<16x64xf32>
    %24 = arith.truncf %23 : vector<16x64xf32> to vector<16x64xbf16>
    %c0_9 = arith.constant 0 : index
    %c0_10 = arith.constant 0 : index
    %25 = vector.load %arg4[%c0_9, %c0_10] : memref<64x64xbf16, #tpu.memory_space<vmem>>, vector<64x64xbf16>
    %cst_11 = arith.constant dense<0.000000e+00> : vector<16x64xf32>
    %26 = tpu.matmul %24, %25, %cst_11 {dimension_numbers = #tpu.dot_dimension_numbers<[1], [0], [0], [1], [0, 0, 1, 1], [], []>} : vector<16x64xbf16>, vector<64x64xbf16>, vector<16x64xf32> -> vector<16x64xf32>
    %c0_12 = arith.constant 0 : index
    %c0_13 = arith.constant 0 : index
    %27 = vector.load %arg5[%c0_12, %c0_13] : memref<1x64xf32, #tpu.memory_space<vmem>>, vector<1x64xf32>
    %28 = vector.broadcast %27 : vector<1x64xf32> to vector<16x64xf32>
    %29 = arith.addf %26, %28 : vector<16x64xf32>
    %cst_14 = arith.constant 0.000000e+00 : f32
    %30 = vector.broadcast %cst_14 : f32 to vector<16x64xf32>
    %31 = arith.maximumf %29, %30 : vector<16x64xf32>
    %32 = arith.truncf %31 : vector<16x64xf32> to vector<16x64xbf16>
    %c0_15 = arith.constant 0 : index
    %c0_16 = arith.constant 0 : index
    %33 = vector.load %arg6[%c0_15, %c0_16] : memref<16x64xbf16, #tpu.memory_space<vmem>>, vector<16x64xbf16>
    tpu.vector_store %arg6[%c0_15, %c0_16], %32 {strides = array<i32>} : memref<16x64xbf16, #tpu.memory_space<vmem>>, vector<16x64xbf16>,
    return
  }
  func.func @transform_0(%arg0: i32) -> (i32, i32) {
    %c0_i32 = arith.constant 0 : i32
    %c0_i32_0 = arith.constant 0 : i32
    return %arg0, %c0_i32 : i32, i32
  }
  func.func @transform_1(%arg0: i32) -> (i32, i32) {
    %c0_i32 = arith.constant 0 : i32
    %c0_i32_0 = arith.constant 0 : i32
    %c0_i32_1 = arith.constant 0 : i32
    return %c0_i32, %c0_i32_0 : i32, i32
  }
  func.func @transform_2(%arg0: i32) -> (i32, i32) {
    %c0_i32 = arith.constant 0 : i32
    %c0_i32_0 = arith.constant 0 : i32
    %c0_i32_1 = arith.constant 0 : i32
    return %c0_i32, %c0_i32_0 : i32, i32
  }
  func.func @transform_3(%arg0: i32) -> (i32, i32) {
    %c0_i32 = arith.constant 0 : i32
    %c0_i32_0 = arith.constant 0 : i32
    %c0_i32_1 = arith.constant 0 : i32
    return %c0_i32, %c0_i32_0 : i32, i32
  }
  func.func @transform_4(%arg0: i32) -> (i32, i32) {
    %c0_i32 = arith.constant 0 : i32
    %c0_i32_0 = arith.constant 0 : i32
    %c0_i32_1 = arith.constant 0 : i32
    return %c0_i32, %c0_i32_0 : i32, i32
  }
  func.func @transform_5(%arg0: i32) -> (i32, i32) {
    %c0_i32 = arith.constant 0 : i32
    %c0_i32_0 = arith.constant 0 : i32
    return %arg0, %c0_i32 : i32, i32
  }
}

module attributes {stable_mosaic.version = 11 : i64} {
  func.func @_attn_kernel(%arg0: i32, %arg1: i32, %arg2: memref<1x8x64xbf16, #tpu.memory_space<vmem>>, %arg3: memref<1x8x64xbf16, #tpu.memory_space<vmem>>, %arg4: memref<1x8x64xbf16, #tpu.memory_space<vmem>>, %arg5: memref<2x32x64xbf16, #tpu.memory_space<vmem>>, %arg6: memref<1x64xf32, #tpu.memory_space<vmem>>, %arg7: memref<1x8x64xbf16, #tpu.memory_space<vmem>>, %arg8: memref<1x8x64xbf16, #tpu.memory_space<vmem>>) attributes {dimension_semantics = [#tpu.dimension_semantics<parallel>, #tpu.dimension_semantics<parallel>], iteration_bounds = array<i64: 2, 1>, scalar_prefetch = 0 : i64, scratch_operands = 0 : i64, tpu.core_type = #tpu.core_type<tc>, window_params = [{transform_indices = @transform_0, window_bounds = array<i64: 1, 8, 64>}, {transform_indices = @transform_1, window_bounds = array<i64: 1, 8, 64>}, {transform_indices = @transform_2, window_bounds = array<i64: 1, 8, 64>}, {pipeline_mode = #tpu.pipeline_mode<synchronous>, transform_indices = @transform_3, window_bounds = array<i64: 2, 32, 64>}, {pipeline_mode = #tpu.pipeline_mode<synchronous>, transform_indices = @transform_4, window_bounds = array<i64: 1, 64>}, {transform_indices = @transform_5, window_bounds = array<i64: 1, 8, 64>}, {transform_indices = @transform_6, window_bounds = array<i64: 1, 8, 64>}]} {
    %c0 = arith.constant 0 : index
    %c0_0 = arith.constant 0 : index
    %c0_1 = arith.constant 0 : index
    %0 = vector.load %arg2[%c0, %c0_0, %c0_1] : memref<1x8x64xbf16, #tpu.memory_space<vmem>>, vector<1x8x64xbf16>
    %1 = vector.shape_cast %0 : vector<1x8x64xbf16> to vector<8x64xbf16>
    %c0_2 = arith.constant 0 : index
    %c0_3 = arith.constant 0 : index
    %c0_4 = arith.constant 0 : index
    %2 = vector.load %arg3[%c0_2, %c0_3, %c0_4] : memref<1x8x64xbf16, #tpu.memory_space<vmem>>, vector<1x8x64xbf16>
    %3 = vector.shape_cast %2 : vector<1x8x64xbf16> to vector<8x64xbf16>
    %c0_5 = arith.constant 0 : index
    %c0_6 = arith.constant 0 : index
    %c0_7 = arith.constant 0 : index
    %4 = vector.load %arg4[%c0_5, %c0_6, %c0_7] : memref<1x8x64xbf16, #tpu.memory_space<vmem>>, vector<1x8x64xbf16>
    %5 = vector.shape_cast %4 : vector<1x8x64xbf16> to vector<8x64xbf16>
    %cst = arith.constant 0.000000e+00 : f32
    %6 = vector.broadcast %cst : f32 to vector<8x64xf32>
    %7 = vector.extract_strided_slice %1 {offsets = [0, 0], sizes = [8, 32], strides = [1, 1]} : vector<8x64xbf16> to vector<8x32xbf16>
    %8 = vector.extract_strided_slice %3 {offsets = [0, 0], sizes = [8, 32], strides = [1, 1]} : vector<8x64xbf16> to vector<8x32xbf16>
    %cst_8 = arith.constant dense<0.000000e+00> : vector<8x8xf32>
    %9 = tpu.matmul %7, %8, %cst_8 {dimension_numbers = #tpu.dot_dimension_numbers<[1], [1], [0], [0], [0, 0, 1, 0], [], []>} : vector<8x32xbf16>, vector<8x32xbf16>, vector<8x8xf32> -> vector<8x8xf32>
    %cst_9 = arith.constant 0.176776692 : f32
    %10 = vector.broadcast %cst_9 : f32 to vector<8x8xf32>
    %11 = arith.mulf %9, %10 : vector<8x8xf32>
    %cst_10 = arith.constant dense<0xFF800000> : vector<8xf32>
    %12 = vector.multi_reduction <maximumf>, %11, %cst_10 [1] : vector<8x8xf32> to vector<8xf32>
    %13 = vector.shape_cast %12 : vector<8xf32> to vector<8x1xf32>
    %14 = vector.broadcast %13 : vector<8x1xf32> to vector<8x8xf32>
    %15 = arith.subf %11, %14 : vector<8x8xf32>
    %16 = math.exp %15 : vector<8x8xf32>
    %cst_11 = arith.constant dense<0.000000e+00> : vector<8xf32>
    %17 = vector.multi_reduction <add>, %16, %cst_11 [1] : vector<8x8xf32> to vector<8xf32>
    %18 = vector.shape_cast %17 : vector<8xf32> to vector<8x1xf32>
    %19 = tpu.reciprocal %18 {approx = true} : vector<8x1xf32> -> vector<8x1xf32>
    %20 = vector.broadcast %19 : vector<8x1xf32> to vector<8x8xf32>
    %21 = arith.mulf %16, %20 : vector<8x8xf32>
    %22 = arith.truncf %21 : vector<8x8xf32> to vector<8x8xbf16>
    %23 = vector.extract_strided_slice %5 {offsets = [0, 0], sizes = [8, 32], strides = [1, 1]} : vector<8x64xbf16> to vector<8x32xbf16>
    %cst_12 = arith.constant dense<0.000000e+00> : vector<8x32xf32>
    %24 = tpu.matmul %22, %23, %cst_12 {dimension_numbers = #tpu.dot_dimension_numbers<[1], [0], [0], [1], [0, 0, 1, 1], [], []>} : vector<8x8xbf16>, vector<8x32xbf16>, vector<8x32xf32> -> vector<8x32xf32>
    %25 = arith.truncf %24 : vector<8x32xf32> to vector<8x32xbf16>
    %c0_13 = arith.constant 0 : index
    %c0_14 = arith.constant 0 : index
    %c0_15 = arith.constant 0 : index
    %26 = vector.load %arg5[%c0_13, %c0_14, %c0_15] : memref<2x32x64xbf16, #tpu.memory_space<vmem>>, vector<1x32x64xbf16>
    %27 = vector.shape_cast %26 : vector<1x32x64xbf16> to vector<32x64xbf16>
    %cst_16 = arith.constant dense<0.000000e+00> : vector<8x64xf32>
    %28 = tpu.matmul %25, %27, %cst_16 {dimension_numbers = #tpu.dot_dimension_numbers<[1], [0], [0], [1], [0, 0, 1, 1], [], []>} : vector<8x32xbf16>, vector<32x64xbf16>, vector<8x64xf32> -> vector<8x64xf32>
    %29 = arith.addf %6, %28 : vector<8x64xf32>
    %30 = vector.extract_strided_slice %1 {offsets = [0, 32], sizes = [8, 32], strides = [1, 1]} : vector<8x64xbf16> to vector<8x32xbf16>
    %31 = vector.extract_strided_slice %3 {offsets = [0, 32], sizes = [8, 32], strides = [1, 1]} : vector<8x64xbf16> to vector<8x32xbf16>
    %cst_17 = arith.constant dense<0.000000e+00> : vector<8x8xf32>
    %32 = tpu.matmul %30, %31, %cst_17 {dimension_numbers = #tpu.dot_dimension_numbers<[1], [1], [0], [0], [0, 0, 1, 0], [], []>} : vector<8x32xbf16>, vector<8x32xbf16>, vector<8x8xf32> -> vector<8x8xf32>
    %cst_18 = arith.constant 0.176776692 : f32
    %33 = vector.broadcast %cst_18 : f32 to vector<8x8xf32>
    %34 = arith.mulf %32, %33 : vector<8x8xf32>
    %cst_19 = arith.constant dense<0xFF800000> : vector<8xf32>
    %35 = vector.multi_reduction <maximumf>, %34, %cst_19 [1] : vector<8x8xf32> to vector<8xf32>
    %36 = vector.shape_cast %35 : vector<8xf32> to vector<8x1xf32>
    %37 = vector.broadcast %36 : vector<8x1xf32> to vector<8x8xf32>
    %38 = arith.subf %34, %37 : vector<8x8xf32>
    %39 = math.exp %38 : vector<8x8xf32>
    %cst_20 = arith.constant dense<0.000000e+00> : vector<8xf32>
    %40 = vector.multi_reduction <add>, %39, %cst_20 [1] : vector<8x8xf32> to vector<8xf32>
    %41 = vector.shape_cast %40 : vector<8xf32> to vector<8x1xf32>
    %42 = tpu.reciprocal %41 {approx = true} : vector<8x1xf32> -> vector<8x1xf32>
    %43 = vector.broadcast %42 : vector<8x1xf32> to vector<8x8xf32>
    %44 = arith.mulf %39, %43 : vector<8x8xf32>
    %45 = arith.truncf %44 : vector<8x8xf32> to vector<8x8xbf16>
    %46 = vector.extract_strided_slice %5 {offsets = [0, 32], sizes = [8, 32], strides = [1, 1]} : vector<8x64xbf16> to vector<8x32xbf16>
    %cst_21 = arith.constant dense<0.000000e+00> : vector<8x32xf32>
    %47 = tpu.matmul %45, %46, %cst_21 {dimension_numbers = #tpu.dot_dimension_numbers<[1], [0], [0], [1], [0, 0, 1, 1], [], []>} : vector<8x8xbf16>, vector<8x32xbf16>, vector<8x32xf32> -> vector<8x32xf32>
    %48 = arith.truncf %47 : vector<8x32xf32> to vector<8x32xbf16>
    %c1 = arith.constant 1 : index
    %c0_22 = arith.constant 0 : index
    %c0_23 = arith.constant 0 : index
    %49 = vector.load %arg5[%c1, %c0_22, %c0_23] : memref<2x32x64xbf16, #tpu.memory_space<vmem>>, vector<1x32x64xbf16>
    %50 = vector.shape_cast %49 : vector<1x32x64xbf16> to vector<32x64xbf16>
    %cst_24 = arith.constant dense<0.000000e+00> : vector<8x64xf32>
    %51 = tpu.matmul %48, %50, %cst_24 {dimension_numbers = #tpu.dot_dimension_numbers<[1], [0], [0], [1], [0, 0, 1, 1], [], []>} : vector<8x32xbf16>, vector<32x64xbf16>, vector<8x64xf32> -> vector<8x64xf32>
    %52 = arith.addf %29, %51 : vector<8x64xf32>
    %c0_25 = arith.constant 0 : index
    %c0_26 = arith.constant 0 : index
    %53 = vector.load %arg6[%c0_25, %c0_26] : memref<1x64xf32, #tpu.memory_space<vmem>>, vector<1x64xf32>
    %54 = vector.broadcast %53 : vector<1x64xf32> to vector<8x64xf32>
    %55 = arith.addf %52, %54 : vector<8x64xf32>
    %c0_27 = arith.constant 0 : index
    %c0_28 = arith.constant 0 : index
    %c0_29 = arith.constant 0 : index
    %56 = vector.load %arg7[%c0_27, %c0_28, %c0_29] : memref<1x8x64xbf16, #tpu.memory_space<vmem>>, vector<1x8x64xbf16>
    %57 = vector.shape_cast %56 : vector<1x8x64xbf16> to vector<8x64xbf16>
    %58 = arith.extf %57 : vector<8x64xbf16> to vector<8x64xf32>
    %59 = arith.addf %55, %58 : vector<8x64xf32>
    %60 = arith.truncf %59 : vector<8x64xf32> to vector<8x64xbf16>
    %c0_30 = arith.constant 0 : index
    %c0_31 = arith.constant 0 : index
    %c0_32 = arith.constant 0 : index
    %61 = vector.load %arg8[%c0_30, %c0_31, %c0_32] : memref<1x8x64xbf16, #tpu.memory_space<vmem>>, vector<1x8x64xbf16>
    %62 = vector.shape_cast %61 : vector<1x8x64xbf16> to vector<8x64xbf16>
    %63 = vector.shape_cast %60 : vector<8x64xbf16> to vector<1x8x64xbf16>
    tpu.vector_store %arg8[%c0_30, %c0_31, %c0_32], %63 {strides = array<i32>} : memref<1x8x64xbf16, #tpu.memory_space<vmem>>, vector<1x8x64xbf16>,
    return
  }
  func.func @transform_0(%arg0: i32, %arg1: i32) -> (i32, i32, i32) {
    %c0_i32 = arith.constant 0 : i32
    %c0_i32_0 = arith.constant 0 : i32
    return %arg0, %arg1, %c0_i32 : i32, i32, i32
  }
  func.func @transform_1(%arg0: i32, %arg1: i32) -> (i32, i32, i32) {
    %c0_i32 = arith.constant 0 : i32
    %c0_i32_0 = arith.constant 0 : i32
    %c0_i32_1 = arith.constant 0 : i32
    return %arg0, %c0_i32, %c0_i32_0 : i32, i32, i32
  }
  func.func @transform_2(%arg0: i32, %arg1: i32) -> (i32, i32, i32) {
    %c0_i32 = arith.constant 0 : i32
    %c0_i32_0 = arith.constant 0 : i32
    %c0_i32_1 = arith.constant 0 : i32
    return %arg0, %c0_i32, %c0_i32_0 : i32, i32, i32
  }
  func.func @transform_3(%arg0: i32, %arg1: i32) -> (i32, i32, i32) {
    %c0_i32 = arith.constant 0 : i32
    %c0_i32_0 = arith.constant 0 : i32
    %c0_i32_1 = arith.constant 0 : i32
    %c0_i32_2 = arith.constant 0 : i32
    return %c0_i32, %c0_i32_0, %c0_i32_1 : i32, i32, i32
  }
  func.func @transform_4(%arg0: i32, %arg1: i32) -> (i32, i32) {
    %c0_i32 = arith.constant 0 : i32
    %c0_i32_0 = arith.constant 0 : i32
    %c0_i32_1 = arith.constant 0 : i32
    return %c0_i32, %c0_i32_0 : i32, i32
  }
  func.func @transform_5(%arg0: i32, %arg1: i32) -> (i32, i32, i32) {
    %c0_i32 = arith.constant 0 : i32
    %c0_i32_0 = arith.constant 0 : i32
    return %arg0, %arg1, %c0_i32 : i32, i32, i32
  }
  func.func @transform_6(%arg0: i32, %arg1: i32) -> (i32, i32, i32) {
    %c0_i32 = arith.constant 0 : i32
    %c0_i32_0 = arith.constant 0 : i32
    return %arg0, %arg1, %c0_i32 : i32, i32, i32
  }
}

module attributes {stable_mosaic.version = 11 : i64} {
  func.func @_fused_proj_kernel(%arg0: i32, %arg1: memref<16x64xbf16, #tpu.memory_space<vmem>>, %arg2: memref<16x64xbf16, #tpu.memory_space<vmem>>, %arg3: memref<64x64xbf16, #tpu.memory_space<vmem>>, %arg4: memref<1x64xf32, #tpu.memory_space<vmem>>, %arg5: memref<16x64xbf16, #tpu.memory_space<vmem>>) attributes {dimension_semantics = [#tpu.dimension_semantics<parallel>], iteration_bounds = array<i64: 1>, scalar_prefetch = 0 : i64, scratch_operands = 0 : i64, tpu.core_type = #tpu.core_type<tc>, window_params = [{transform_indices = @transform_0, window_bounds = array<i64: 16, 64>}, {transform_indices = @transform_1, window_bounds = array<i64: 16, 64>}, {pipeline_mode = #tpu.pipeline_mode<synchronous>, transform_indices = @transform_2, window_bounds = array<i64: 64, 64>}, {pipeline_mode = #tpu.pipeline_mode<synchronous>, transform_indices = @transform_3, window_bounds = array<i64: 1, 64>}, {transform_indices = @transform_4, window_bounds = array<i64: 16, 64>}]} {
    %c0 = arith.constant 0 : index
    %c0_0 = arith.constant 0 : index
    %0 = vector.load %arg1[%c0, %c0_0] : memref<16x64xbf16, #tpu.memory_space<vmem>>, vector<16x64xbf16>
    %c0_1 = arith.constant 0 : index
    %c0_2 = arith.constant 0 : index
    %1 = vector.load %arg3[%c0_1, %c0_2] : memref<64x64xbf16, #tpu.memory_space<vmem>>, vector<64x64xbf16>
    %cst = arith.constant dense<0.000000e+00> : vector<16x64xf32>
    %2 = tpu.matmul %0, %1, %cst {dimension_numbers = #tpu.dot_dimension_numbers<[1], [0], [0], [1], [0, 0, 1, 1], [], []>} : vector<16x64xbf16>, vector<64x64xbf16>, vector<16x64xf32> -> vector<16x64xf32>
    %c0_3 = arith.constant 0 : index
    %c0_4 = arith.constant 0 : index
    %3 = vector.load %arg4[%c0_3, %c0_4] : memref<1x64xf32, #tpu.memory_space<vmem>>, vector<1x64xf32>
    %4 = vector.broadcast %3 : vector<1x64xf32> to vector<16x64xf32>
    %5 = arith.addf %2, %4 : vector<16x64xf32>
    %c0_5 = arith.constant 0 : index
    %c0_6 = arith.constant 0 : index
    %6 = vector.load %arg2[%c0_5, %c0_6] : memref<16x64xbf16, #tpu.memory_space<vmem>>, vector<16x64xbf16>
    %7 = arith.extf %6 : vector<16x64xbf16> to vector<16x64xf32>
    %8 = arith.addf %5, %7 : vector<16x64xf32>
    %9 = arith.truncf %8 : vector<16x64xf32> to vector<16x64xbf16>
    %c0_7 = arith.constant 0 : index
    %c0_8 = arith.constant 0 : index
    %10 = vector.load %arg5[%c0_7, %c0_8] : memref<16x64xbf16, #tpu.memory_space<vmem>>, vector<16x64xbf16>
    tpu.vector_store %arg5[%c0_7, %c0_8], %9 {strides = array<i32>} : memref<16x64xbf16, #tpu.memory_space<vmem>>, vector<16x64xbf16>,
    return
  }
  func.func @transform_0(%arg0: i32) -> (i32, i32) {
    %c0_i32 = arith.constant 0 : i32
    %c0_i32_0 = arith.constant 0 : i32
    return %arg0, %c0_i32 : i32, i32
  }
  func.func @transform_1(%arg0: i32) -> (i32, i32) {
    %c0_i32 = arith.constant 0 : i32
    %c0_i32_0 = arith.constant 0 : i32
    return %arg0, %c0_i32 : i32, i32
  }
  func.func @transform_2(%arg0: i32) -> (i32, i32) {
    %c0_i32 = arith.constant 0 : i32
    %c0_i32_0 = arith.constant 0 : i32
    %c0_i32_1 = arith.constant 0 : i32
    return %c0_i32, %c0_i32_0 : i32, i32
  }
  func.func @transform_3(%arg0: i32) -> (i32, i32) {
    %c0_i32 = arith.constant 0 : i32
    %c0_i32_0 = arith.constant 0 : i32
    %c0_i32_1 = arith.constant 0 : i32
    return %c0_i32, %c0_i32_0 : i32, i32
  }
  func.func @transform_4(%arg0: i32) -> (i32, i32) {
    %c0_i32 = arith.constant 0 : i32
    %c0_i32_0 = arith.constant 0 : i32
    return %arg0, %c0_i32 : i32, i32
  }
}

module attributes {stable_mosaic.version = 11 : i64} {
  func.func @_fused_proj_kernel(%arg0: i32, %arg1: memref<16x64xbf16, #tpu.memory_space<vmem>>, %arg2: memref<16x64xbf16, #tpu.memory_space<vmem>>, %arg3: memref<64x64xbf16, #tpu.memory_space<vmem>>, %arg4: memref<1x64xf32, #tpu.memory_space<vmem>>, %arg5: memref<64x64xbf16, #tpu.memory_space<vmem>>, %arg6: memref<1x64xf32, #tpu.memory_space<vmem>>, %arg7: memref<16x64xbf16, #tpu.memory_space<vmem>>, %arg8: memref<16x64xbf16, #tpu.memory_space<vmem>>) attributes {dimension_semantics = [#tpu.dimension_semantics<parallel>], iteration_bounds = array<i64: 1>, scalar_prefetch = 0 : i64, scratch_operands = 0 : i64, tpu.core_type = #tpu.core_type<tc>, window_params = [{transform_indices = @transform_0, window_bounds = array<i64: 16, 64>}, {transform_indices = @transform_1, window_bounds = array<i64: 16, 64>}, {pipeline_mode = #tpu.pipeline_mode<synchronous>, transform_indices = @transform_2, window_bounds = array<i64: 64, 64>}, {pipeline_mode = #tpu.pipeline_mode<synchronous>, transform_indices = @transform_3, window_bounds = array<i64: 1, 64>}, {pipeline_mode = #tpu.pipeline_mode<synchronous>, transform_indices = @transform_4, window_bounds = array<i64: 64, 64>}, {pipeline_mode = #tpu.pipeline_mode<synchronous>, transform_indices = @transform_5, window_bounds = array<i64: 1, 64>}, {transform_indices = @transform_6, window_bounds = array<i64: 16, 64>}, {transform_indices = @transform_7, window_bounds = array<i64: 16, 64>}]} {
    %c0 = arith.constant 0 : index
    %c0_0 = arith.constant 0 : index
    %0 = vector.load %arg1[%c0, %c0_0] : memref<16x64xbf16, #tpu.memory_space<vmem>>, vector<16x64xbf16>
    %1 = arith.extf %0 : vector<16x64xbf16> to vector<16x64xf32>
    %c0_1 = arith.constant 0 : index
    %c0_2 = arith.constant 0 : index
    %2 = vector.load %arg2[%c0_1, %c0_2] : memref<16x64xbf16, #tpu.memory_space<vmem>>, vector<16x64xbf16>
    %3 = arith.extf %2 : vector<16x64xbf16> to vector<16x64xf32>
    %4 = arith.addf %1, %3 : vector<16x64xf32>
    %5 = arith.truncf %4 : vector<16x64xf32> to vector<16x64xbf16>
    %c0_3 = arith.constant 0 : index
    %c0_4 = arith.constant 0 : index
    %6 = vector.load %arg3[%c0_3, %c0_4] : memref<64x64xbf16, #tpu.memory_space<vmem>>, vector<64x64xbf16>
    %cst = arith.constant dense<0.000000e+00> : vector<16x64xf32>
    %7 = tpu.matmul %5, %6, %cst {dimension_numbers = #tpu.dot_dimension_numbers<[1], [0], [0], [1], [0, 0, 1, 1], [], []>} : vector<16x64xbf16>, vector<64x64xbf16>, vector<16x64xf32> -> vector<16x64xf32>
    %c0_5 = arith.constant 0 : index
    %c0_6 = arith.constant 0 : index
    %8 = vector.load %arg4[%c0_5, %c0_6] : memref<1x64xf32, #tpu.memory_space<vmem>>, vector<1x64xf32>
    %9 = vector.broadcast %8 : vector<1x64xf32> to vector<16x64xf32>
    %10 = arith.addf %7, %9 : vector<16x64xf32>
    %11 = arith.truncf %10 : vector<16x64xf32> to vector<16x64xbf16>
    %c0_7 = arith.constant 0 : index
    %c0_8 = arith.constant 0 : index
    %12 = vector.load %arg7[%c0_7, %c0_8] : memref<16x64xbf16, #tpu.memory_space<vmem>>, vector<16x64xbf16>
    tpu.vector_store %arg7[%c0_7, %c0_8], %11 {strides = array<i32>} : memref<16x64xbf16, #tpu.memory_space<vmem>>, vector<16x64xbf16>,
    %c0_9 = arith.constant 0 : index
    %c0_10 = arith.constant 0 : index
    %13 = vector.load %arg5[%c0_9, %c0_10] : memref<64x64xbf16, #tpu.memory_space<vmem>>, vector<64x64xbf16>
    %cst_11 = arith.constant dense<0.000000e+00> : vector<16x64xf32>
    %14 = tpu.matmul %0, %13, %cst_11 {dimension_numbers = #tpu.dot_dimension_numbers<[1], [0], [0], [1], [0, 0, 1, 1], [], []>} : vector<16x64xbf16>, vector<64x64xbf16>, vector<16x64xf32> -> vector<16x64xf32>
    %c0_12 = arith.constant 0 : index
    %c0_13 = arith.constant 0 : index
    %15 = vector.load %arg6[%c0_12, %c0_13] : memref<1x64xf32, #tpu.memory_space<vmem>>, vector<1x64xf32>
    %16 = vector.broadcast %15 : vector<1x64xf32> to vector<16x64xf32>
    %17 = arith.addf %14, %16 : vector<16x64xf32>
    %18 = arith.truncf %17 : vector<16x64xf32> to vector<16x64xbf16>
    %c0_14 = arith.constant 0 : index
    %c0_15 = arith.constant 0 : index
    %19 = vector.load %arg8[%c0_14, %c0_15] : memref<16x64xbf16, #tpu.memory_space<vmem>>, vector<16x64xbf16>
    tpu.vector_store %arg8[%c0_14, %c0_15], %18 {strides = array<i32>} : memref<16x64xbf16, #tpu.memory_space<vmem>>, vector<16x64xbf16>,
    return
  }
  func.func @transform_0(%arg0: i32) -> (i32, i32) {
    %c0_i32 = arith.constant 0 : i32
    %c0_i32_0 = arith.constant 0 : i32
    return %arg0, %c0_i32 : i32, i32
  }
  func.func @transform_1(%arg0: i32) -> (i32, i32) {
    %c0_i32 = arith.constant 0 : i32
    %c0_i32_0 = arith.constant 0 : i32
    return %arg0, %c0_i32 : i32, i32
  }
  func.func @transform_2(%arg0: i32) -> (i32, i32) {
    %c0_i32 = arith.constant 0 : i32
    %c0_i32_0 = arith.constant 0 : i32
    %c0_i32_1 = arith.constant 0 : i32
    return %c0_i32, %c0_i32_0 : i32, i32
  }
  func.func @transform_3(%arg0: i32) -> (i32, i32) {
    %c0_i32 = arith.constant 0 : i32
    %c0_i32_0 = arith.constant 0 : i32
    %c0_i32_1 = arith.constant 0 : i32
    return %c0_i32, %c0_i32_0 : i32, i32
  }
  func.func @transform_4(%arg0: i32) -> (i32, i32) {
    %c0_i32 = arith.constant 0 : i32
    %c0_i32_0 = arith.constant 0 : i32
    %c0_i32_1 = arith.constant 0 : i32
    return %c0_i32, %c0_i32_0 : i32, i32
  }
  func.func @transform_5(%arg0: i32) -> (i32, i32) {
    %c0_i32 = arith.constant 0 : i32
    %c0_i32_0 = arith.constant 0 : i32
    %c0_i32_1 = arith.constant 0 : i32
    return %c0_i32, %c0_i32_0 : i32, i32
  }
  func.func @transform_6(%arg0: i32) -> (i32, i32) {
    %c0_i32 = arith.constant 0 : i32
    %c0_i32_0 = arith.constant 0 : i32
    return %arg0, %c0_i32 : i32, i32
  }
  func.func @transform_7(%arg0: i32) -> (i32, i32) {
    %c0_i32 = arith.constant 0 : i32
    %c0_i32_0 = arith.constant 0 : i32
    return %arg0, %c0_i32 : i32, i32
  }
}

module attributes {stable_mosaic.version = 11 : i64} {
  func.func @_fused_proj_kernel(%arg0: i32, %arg1: memref<128x64xbf16, #tpu.memory_space<vmem>>, %arg2: memref<128x64xbf16, #tpu.memory_space<vmem>>, %arg3: memref<64x64xbf16, #tpu.memory_space<vmem>>, %arg4: memref<1x64xf32, #tpu.memory_space<vmem>>, %arg5: memref<128x64xbf16, #tpu.memory_space<vmem>>) attributes {dimension_semantics = [#tpu.dimension_semantics<parallel>], iteration_bounds = array<i64: 1>, scalar_prefetch = 0 : i64, scratch_operands = 0 : i64, tpu.core_type = #tpu.core_type<tc>, window_params = [{transform_indices = @transform_0, window_bounds = array<i64: 128, 64>}, {transform_indices = @transform_1, window_bounds = array<i64: 128, 64>}, {pipeline_mode = #tpu.pipeline_mode<synchronous>, transform_indices = @transform_2, window_bounds = array<i64: 64, 64>}, {pipeline_mode = #tpu.pipeline_mode<synchronous>, transform_indices = @transform_3, window_bounds = array<i64: 1, 64>}, {transform_indices = @transform_4, window_bounds = array<i64: 128, 64>}]} {
    %c0 = arith.constant 0 : index
    %c0_0 = arith.constant 0 : index
    %0 = vector.load %arg1[%c0, %c0_0] : memref<128x64xbf16, #tpu.memory_space<vmem>>, vector<128x64xbf16>
    %1 = arith.extf %0 : vector<128x64xbf16> to vector<128x64xf32>
    %c0_1 = arith.constant 0 : index
    %c0_2 = arith.constant 0 : index
    %2 = vector.load %arg2[%c0_1, %c0_2] : memref<128x64xbf16, #tpu.memory_space<vmem>>, vector<128x64xbf16>
    %3 = arith.extf %2 : vector<128x64xbf16> to vector<128x64xf32>
    %4 = arith.addf %1, %3 : vector<128x64xf32>
    %5 = arith.truncf %4 : vector<128x64xf32> to vector<128x64xbf16>
    %c0_3 = arith.constant 0 : index
    %c0_4 = arith.constant 0 : index
    %6 = vector.load %arg3[%c0_3, %c0_4] : memref<64x64xbf16, #tpu.memory_space<vmem>>, vector<64x64xbf16>
    %cst = arith.constant dense<0.000000e+00> : vector<128x64xf32>
    %7 = tpu.matmul %5, %6, %cst {dimension_numbers = #tpu.dot_dimension_numbers<[1], [0], [0], [1], [0, 0, 1, 1], [], []>} : vector<128x64xbf16>, vector<64x64xbf16>, vector<128x64xf32> -> vector<128x64xf32>
    %c0_5 = arith.constant 0 : index
    %c0_6 = arith.constant 0 : index
    %8 = vector.load %arg4[%c0_5, %c0_6] : memref<1x64xf32, #tpu.memory_space<vmem>>, vector<1x64xf32>
    %9 = vector.broadcast %8 : vector<1x64xf32> to vector<128x64xf32>
    %10 = arith.addf %7, %9 : vector<128x64xf32>
    %11 = arith.truncf %10 : vector<128x64xf32> to vector<128x64xbf16>
    %c0_7 = arith.constant 0 : index
    %c0_8 = arith.constant 0 : index
    %12 = vector.load %arg5[%c0_7, %c0_8] : memref<128x64xbf16, #tpu.memory_space<vmem>>, vector<128x64xbf16>
    tpu.vector_store %arg5[%c0_7, %c0_8], %11 {strides = array<i32>} : memref<128x64xbf16, #tpu.memory_space<vmem>>, vector<128x64xbf16>,
    return
  }
  func.func @transform_0(%arg0: i32) -> (i32, i32) {
    %c0_i32 = arith.constant 0 : i32
    %c0_i32_0 = arith.constant 0 : i32
    return %arg0, %c0_i32 : i32, i32
  }
  func.func @transform_1(%arg0: i32) -> (i32, i32) {
    %c0_i32 = arith.constant 0 : i32
    %c0_i32_0 = arith.constant 0 : i32
    return %arg0, %c0_i32 : i32, i32
  }
  func.func @transform_2(%arg0: i32) -> (i32, i32) {
    %c0_i32 = arith.constant 0 : i32
    %c0_i32_0 = arith.constant 0 : i32
    %c0_i32_1 = arith.constant 0 : i32
    return %c0_i32, %c0_i32_0 : i32, i32
  }
  func.func @transform_3(%arg0: i32) -> (i32, i32) {
    %c0_i32 = arith.constant 0 : i32
    %c0_i32_0 = arith.constant 0 : i32
    %c0_i32_1 = arith.constant 0 : i32
    return %c0_i32, %c0_i32_0 : i32, i32
  }
  func.func @transform_4(%arg0: i32) -> (i32, i32) {
    %c0_i32 = arith.constant 0 : i32
    %c0_i32_0 = arith.constant 0 : i32
    return %arg0, %c0_i32 : i32, i32
  }
}

module attributes {stable_mosaic.version = 11 : i64} {
  func.func @_attn_kernel(%arg0: i32, %arg1: i32, %arg2: memref<1x64x64xbf16, #tpu.memory_space<vmem>>, %arg3: memref<1x8x64xbf16, #tpu.memory_space<vmem>>, %arg4: memref<1x8x64xbf16, #tpu.memory_space<vmem>>, %arg5: memref<2x32x64xbf16, #tpu.memory_space<vmem>>, %arg6: memref<1x64xf32, #tpu.memory_space<vmem>>, %arg7: memref<1x64x64xbf16, #tpu.memory_space<vmem>>, %arg8: memref<1x64x64xbf16, #tpu.memory_space<vmem>>) attributes {dimension_semantics = [#tpu.dimension_semantics<parallel>, #tpu.dimension_semantics<parallel>], iteration_bounds = array<i64: 2, 1>, scalar_prefetch = 0 : i64, scratch_operands = 0 : i64, tpu.core_type = #tpu.core_type<tc>, window_params = [{transform_indices = @transform_0, window_bounds = array<i64: 1, 64, 64>}, {transform_indices = @transform_1, window_bounds = array<i64: 1, 8, 64>}, {transform_indices = @transform_2, window_bounds = array<i64: 1, 8, 64>}, {pipeline_mode = #tpu.pipeline_mode<synchronous>, transform_indices = @transform_3, window_bounds = array<i64: 2, 32, 64>}, {pipeline_mode = #tpu.pipeline_mode<synchronous>, transform_indices = @transform_4, window_bounds = array<i64: 1, 64>}, {transform_indices = @transform_5, window_bounds = array<i64: 1, 64, 64>}, {transform_indices = @transform_6, window_bounds = array<i64: 1, 64, 64>}]} {
    %c0 = arith.constant 0 : index
    %c0_0 = arith.constant 0 : index
    %c0_1 = arith.constant 0 : index
    %0 = vector.load %arg2[%c0, %c0_0, %c0_1] : memref<1x64x64xbf16, #tpu.memory_space<vmem>>, vector<1x64x64xbf16>
    %1 = vector.shape_cast %0 : vector<1x64x64xbf16> to vector<64x64xbf16>
    %c0_2 = arith.constant 0 : index
    %c0_3 = arith.constant 0 : index
    %c0_4 = arith.constant 0 : index
    %2 = vector.load %arg3[%c0_2, %c0_3, %c0_4] : memref<1x8x64xbf16, #tpu.memory_space<vmem>>, vector<1x8x64xbf16>
    %3 = vector.shape_cast %2 : vector<1x8x64xbf16> to vector<8x64xbf16>
    %c0_5 = arith.constant 0 : index
    %c0_6 = arith.constant 0 : index
    %c0_7 = arith.constant 0 : index
    %4 = vector.load %arg4[%c0_5, %c0_6, %c0_7] : memref<1x8x64xbf16, #tpu.memory_space<vmem>>, vector<1x8x64xbf16>
    %5 = vector.shape_cast %4 : vector<1x8x64xbf16> to vector<8x64xbf16>
    %cst = arith.constant 0.000000e+00 : f32
    %6 = vector.broadcast %cst : f32 to vector<64x64xf32>
    %7 = vector.extract_strided_slice %1 {offsets = [0, 0], sizes = [64, 32], strides = [1, 1]} : vector<64x64xbf16> to vector<64x32xbf16>
    %8 = vector.extract_strided_slice %3 {offsets = [0, 0], sizes = [8, 32], strides = [1, 1]} : vector<8x64xbf16> to vector<8x32xbf16>
    %cst_8 = arith.constant dense<0.000000e+00> : vector<64x8xf32>
    %9 = tpu.matmul %7, %8, %cst_8 {dimension_numbers = #tpu.dot_dimension_numbers<[1], [1], [0], [0], [0, 0, 1, 0], [], []>} : vector<64x32xbf16>, vector<8x32xbf16>, vector<64x8xf32> -> vector<64x8xf32>
    %cst_9 = arith.constant 0.176776692 : f32
    %10 = vector.broadcast %cst_9 : f32 to vector<64x8xf32>
    %11 = arith.mulf %9, %10 : vector<64x8xf32>
    %cst_10 = arith.constant dense<0xFF800000> : vector<64xf32>
    %12 = vector.multi_reduction <maximumf>, %11, %cst_10 [1] : vector<64x8xf32> to vector<64xf32>
    %13 = vector.shape_cast %12 : vector<64xf32> to vector<64x1xf32>
    %14 = vector.broadcast %13 : vector<64x1xf32> to vector<64x8xf32>
    %15 = arith.subf %11, %14 : vector<64x8xf32>
    %16 = math.exp %15 : vector<64x8xf32>
    %cst_11 = arith.constant dense<0.000000e+00> : vector<64xf32>
    %17 = vector.multi_reduction <add>, %16, %cst_11 [1] : vector<64x8xf32> to vector<64xf32>
    %18 = vector.shape_cast %17 : vector<64xf32> to vector<64x1xf32>
    %19 = tpu.reciprocal %18 {approx = true} : vector<64x1xf32> -> vector<64x1xf32>
    %20 = vector.broadcast %19 : vector<64x1xf32> to vector<64x8xf32>
    %21 = arith.mulf %16, %20 : vector<64x8xf32>
    %22 = arith.truncf %21 : vector<64x8xf32> to vector<64x8xbf16>
    %23 = vector.extract_strided_slice %5 {offsets = [0, 0], sizes = [8, 32], strides = [1, 1]} : vector<8x64xbf16> to vector<8x32xbf16>
    %cst_12 = arith.constant dense<0.000000e+00> : vector<64x32xf32>
    %24 = tpu.matmul %22, %23, %cst_12 {dimension_numbers = #tpu.dot_dimension_numbers<[1], [0], [0], [1], [0, 0, 1, 1], [], []>} : vector<64x8xbf16>, vector<8x32xbf16>, vector<64x32xf32> -> vector<64x32xf32>
    %25 = arith.truncf %24 : vector<64x32xf32> to vector<64x32xbf16>
    %c0_13 = arith.constant 0 : index
    %c0_14 = arith.constant 0 : index
    %c0_15 = arith.constant 0 : index
    %26 = vector.load %arg5[%c0_13, %c0_14, %c0_15] : memref<2x32x64xbf16, #tpu.memory_space<vmem>>, vector<1x32x64xbf16>
    %27 = vector.shape_cast %26 : vector<1x32x64xbf16> to vector<32x64xbf16>
    %cst_16 = arith.constant dense<0.000000e+00> : vector<64x64xf32>
    %28 = tpu.matmul %25, %27, %cst_16 {dimension_numbers = #tpu.dot_dimension_numbers<[1], [0], [0], [1], [0, 0, 1, 1], [], []>} : vector<64x32xbf16>, vector<32x64xbf16>, vector<64x64xf32> -> vector<64x64xf32>
    %29 = arith.addf %6, %28 : vector<64x64xf32>
    %30 = vector.extract_strided_slice %1 {offsets = [0, 32], sizes = [64, 32], strides = [1, 1]} : vector<64x64xbf16> to vector<64x32xbf16>
    %31 = vector.extract_strided_slice %3 {offsets = [0, 32], sizes = [8, 32], strides = [1, 1]} : vector<8x64xbf16> to vector<8x32xbf16>
    %cst_17 = arith.constant dense<0.000000e+00> : vector<64x8xf32>
    %32 = tpu.matmul %30, %31, %cst_17 {dimension_numbers = #tpu.dot_dimension_numbers<[1], [1], [0], [0], [0, 0, 1, 0], [], []>} : vector<64x32xbf16>, vector<8x32xbf16>, vector<64x8xf32> -> vector<64x8xf32>
    %cst_18 = arith.constant 0.176776692 : f32
    %33 = vector.broadcast %cst_18 : f32 to vector<64x8xf32>
    %34 = arith.mulf %32, %33 : vector<64x8xf32>
    %cst_19 = arith.constant dense<0xFF800000> : vector<64xf32>
    %35 = vector.multi_reduction <maximumf>, %34, %cst_19 [1] : vector<64x8xf32> to vector<64xf32>
    %36 = vector.shape_cast %35 : vector<64xf32> to vector<64x1xf32>
    %37 = vector.broadcast %36 : vector<64x1xf32> to vector<64x8xf32>
    %38 = arith.subf %34, %37 : vector<64x8xf32>
    %39 = math.exp %38 : vector<64x8xf32>
    %cst_20 = arith.constant dense<0.000000e+00> : vector<64xf32>
    %40 = vector.multi_reduction <add>, %39, %cst_20 [1] : vector<64x8xf32> to vector<64xf32>
    %41 = vector.shape_cast %40 : vector<64xf32> to vector<64x1xf32>
    %42 = tpu.reciprocal %41 {approx = true} : vector<64x1xf32> -> vector<64x1xf32>
    %43 = vector.broadcast %42 : vector<64x1xf32> to vector<64x8xf32>
    %44 = arith.mulf %39, %43 : vector<64x8xf32>
    %45 = arith.truncf %44 : vector<64x8xf32> to vector<64x8xbf16>
    %46 = vector.extract_strided_slice %5 {offsets = [0, 32], sizes = [8, 32], strides = [1, 1]} : vector<8x64xbf16> to vector<8x32xbf16>
    %cst_21 = arith.constant dense<0.000000e+00> : vector<64x32xf32>
    %47 = tpu.matmul %45, %46, %cst_21 {dimension_numbers = #tpu.dot_dimension_numbers<[1], [0], [0], [1], [0, 0, 1, 1], [], []>} : vector<64x8xbf16>, vector<8x32xbf16>, vector<64x32xf32> -> vector<64x32xf32>
    %48 = arith.truncf %47 : vector<64x32xf32> to vector<64x32xbf16>
    %c1 = arith.constant 1 : index
    %c0_22 = arith.constant 0 : index
    %c0_23 = arith.constant 0 : index
    %49 = vector.load %arg5[%c1, %c0_22, %c0_23] : memref<2x32x64xbf16, #tpu.memory_space<vmem>>, vector<1x32x64xbf16>
    %50 = vector.shape_cast %49 : vector<1x32x64xbf16> to vector<32x64xbf16>
    %cst_24 = arith.constant dense<0.000000e+00> : vector<64x64xf32>
    %51 = tpu.matmul %48, %50, %cst_24 {dimension_numbers = #tpu.dot_dimension_numbers<[1], [0], [0], [1], [0, 0, 1, 1], [], []>} : vector<64x32xbf16>, vector<32x64xbf16>, vector<64x64xf32> -> vector<64x64xf32>
    %52 = arith.addf %29, %51 : vector<64x64xf32>
    %c0_25 = arith.constant 0 : index
    %c0_26 = arith.constant 0 : index
    %53 = vector.load %arg6[%c0_25, %c0_26] : memref<1x64xf32, #tpu.memory_space<vmem>>, vector<1x64xf32>
    %54 = vector.broadcast %53 : vector<1x64xf32> to vector<64x64xf32>
    %55 = arith.addf %52, %54 : vector<64x64xf32>
    %c0_27 = arith.constant 0 : index
    %c0_28 = arith.constant 0 : index
    %c0_29 = arith.constant 0 : index
    %56 = vector.load %arg7[%c0_27, %c0_28, %c0_29] : memref<1x64x64xbf16, #tpu.memory_space<vmem>>, vector<1x64x64xbf16>
    %57 = vector.shape_cast %56 : vector<1x64x64xbf16> to vector<64x64xbf16>
    %58 = arith.extf %57 : vector<64x64xbf16> to vector<64x64xf32>
    %59 = arith.addf %55, %58 : vector<64x64xf32>
    %60 = arith.truncf %59 : vector<64x64xf32> to vector<64x64xbf16>
    %c0_30 = arith.constant 0 : index
    %c0_31 = arith.constant 0 : index
    %c0_32 = arith.constant 0 : index
    %61 = vector.load %arg8[%c0_30, %c0_31, %c0_32] : memref<1x64x64xbf16, #tpu.memory_space<vmem>>, vector<1x64x64xbf16>
    %62 = vector.shape_cast %61 : vector<1x64x64xbf16> to vector<64x64xbf16>
    %63 = vector.shape_cast %60 : vector<64x64xbf16> to vector<1x64x64xbf16>
    tpu.vector_store %arg8[%c0_30, %c0_31, %c0_32], %63 {strides = array<i32>} : memref<1x64x64xbf16, #tpu.memory_space<vmem>>, vector<1x64x64xbf16>,
    return
  }
  func.func @transform_0(%arg0: i32, %arg1: i32) -> (i32, i32, i32) {
    %c0_i32 = arith.constant 0 : i32
    %c0_i32_0 = arith.constant 0 : i32
    return %arg0, %arg1, %c0_i32 : i32, i32, i32
  }
  func.func @transform_1(%arg0: i32, %arg1: i32) -> (i32, i32, i32) {
    %c0_i32 = arith.constant 0 : i32
    %c0_i32_0 = arith.constant 0 : i32
    %c0_i32_1 = arith.constant 0 : i32
    return %arg0, %c0_i32, %c0_i32_0 : i32, i32, i32
  }
  func.func @transform_2(%arg0: i32, %arg1: i32) -> (i32, i32, i32) {
    %c0_i32 = arith.constant 0 : i32
    %c0_i32_0 = arith.constant 0 : i32
    %c0_i32_1 = arith.constant 0 : i32
    return %arg0, %c0_i32, %c0_i32_0 : i32, i32, i32
  }
  func.func @transform_3(%arg0: i32, %arg1: i32) -> (i32, i32, i32) {
    %c0_i32 = arith.constant 0 : i32
    %c0_i32_0 = arith.constant 0 : i32
    %c0_i32_1 = arith.constant 0 : i32
    %c0_i32_2 = arith.constant 0 : i32
    return %c0_i32, %c0_i32_0, %c0_i32_1 : i32, i32, i32
  }
  func.func @transform_4(%arg0: i32, %arg1: i32) -> (i32, i32) {
    %c0_i32 = arith.constant 0 : i32
    %c0_i32_0 = arith.constant 0 : i32
    %c0_i32_1 = arith.constant 0 : i32
    return %c0_i32, %c0_i32_0 : i32, i32
  }
  func.func @transform_5(%arg0: i32, %arg1: i32) -> (i32, i32, i32) {
    %c0_i32 = arith.constant 0 : i32
    %c0_i32_0 = arith.constant 0 : i32
    return %arg0, %arg1, %c0_i32 : i32, i32, i32
  }
  func.func @transform_6(%arg0: i32, %arg1: i32) -> (i32, i32, i32) {
    %c0_i32 = arith.constant 0 : i32
    %c0_i32_0 = arith.constant 0 : i32
    return %arg0, %arg1, %c0_i32 : i32, i32, i32
  }
}

module attributes {stable_mosaic.version = 11 : i64} {
  func.func @_conv3x3_kernel(%arg0: i32, %arg1: memref<1x176x64xbf16, #tpu.memory_space<vmem>>, %arg2: memref<9x64x64xbf16, #tpu.memory_space<vmem>>, %arg3: memref<1x64xf32, #tpu.memory_space<vmem>>, %arg4: memref<1x128x64xbf16, #tpu.memory_space<vmem>>) attributes {dimension_semantics = [#tpu.dimension_semantics<parallel>], iteration_bounds = array<i64: 2>, scalar_prefetch = 0 : i64, scratch_operands = 0 : i64, tpu.core_type = #tpu.core_type<tc>, window_params = [{transform_indices = @transform_0, window_bounds = array<i64: 1, 176, 64>}, {pipeline_mode = #tpu.pipeline_mode<synchronous>, transform_indices = @transform_1, window_bounds = array<i64: 9, 64, 64>}, {pipeline_mode = #tpu.pipeline_mode<synchronous>, transform_indices = @transform_2, window_bounds = array<i64: 1, 64>}, {transform_indices = @transform_3, window_bounds = array<i64: 1, 128, 64>}]} {
    %c0 = arith.constant 0 : index
    %c0_0 = arith.constant 0 : index
    %c0_1 = arith.constant 0 : index
    %0 = vector.load %arg1[%c0, %c0_0, %c0_1] : memref<1x176x64xbf16, #tpu.memory_space<vmem>>, vector<1x176x64xbf16>
    %1 = vector.shape_cast %0 : vector<1x176x64xbf16> to vector<176x64xbf16>
    %2 = arith.extf %1 : vector<176x64xbf16> to vector<176x64xf32>
    %cst = arith.constant 0.000000e+00 : f32
    %3 = vector.broadcast %cst : f32 to vector<176x64xf32>
    %4 = arith.maximumf %2, %3 : vector<176x64xf32>
    %c1_i32 = arith.constant 1 : i32
    %5 = tpu.dynamic_rotate %4 by %c1_i32 dim 0 : vector<176x64xf32>, i32 -> vector<176x64xf32>
    %c175_i32 = arith.constant 175 : i32
    %6 = tpu.dynamic_rotate %4 by %c175_i32 dim 0 : vector<176x64xf32>, i32 -> vector<176x64xf32>
    %7 = arith.truncf %5 : vector<176x64xf32> to vector<176x64xbf16>
    %8 = arith.truncf %4 : vector<176x64xf32> to vector<176x64xbf16>
    %9 = arith.truncf %6 : vector<176x64xf32> to vector<176x64xbf16>
    %cst_2 = arith.constant 0.000000e+00 : f32
    %10 = vector.broadcast %cst_2 : f32 to vector<128x64xf32>
    %11 = vector.extract_strided_slice %7 {offsets = [8, 0], sizes = [128, 64], strides = [1, 1]} : vector<176x64xbf16> to vector<128x64xbf16>
    %c0_3 = arith.constant 0 : index
    %c0_4 = arith.constant 0 : index
    %c0_5 = arith.constant 0 : index
    %12 = vector.load %arg2[%c0_3, %c0_4, %c0_5] : memref<9x64x64xbf16, #tpu.memory_space<vmem>>, vector<1x64x64xbf16>
    %13 = vector.shape_cast %12 : vector<1x64x64xbf16> to vector<64x64xbf16>
    %cst_6 = arith.constant dense<0.000000e+00> : vector<128x64xf32>
    %14 = tpu.matmul %11, %13, %cst_6 {dimension_numbers = #tpu.dot_dimension_numbers<[1], [0], [0], [1], [0, 0, 1, 1], [], []>} : vector<128x64xbf16>, vector<64x64xbf16>, vector<128x64xf32> -> vector<128x64xf32>
    %15 = arith.addf %10, %14 : vector<128x64xf32>
    %16 = vector.extract_strided_slice %8 {offsets = [8, 0], sizes = [128, 64], strides = [1, 1]} : vector<176x64xbf16> to vector<128x64xbf16>
    %c1 = arith.constant 1 : index
    %c0_7 = arith.constant 0 : index
    %c0_8 = arith.constant 0 : index
    %17 = vector.load %arg2[%c1, %c0_7, %c0_8] : memref<9x64x64xbf16, #tpu.memory_space<vmem>>, vector<1x64x64xbf16>
    %18 = vector.shape_cast %17 : vector<1x64x64xbf16> to vector<64x64xbf16>
    %cst_9 = arith.constant dense<0.000000e+00> : vector<128x64xf32>
    %19 = tpu.matmul %16, %18, %cst_9 {dimension_numbers = #tpu.dot_dimension_numbers<[1], [0], [0], [1], [0, 0, 1, 1], [], []>} : vector<128x64xbf16>, vector<64x64xbf16>, vector<128x64xf32> -> vector<128x64xf32>
    %20 = arith.addf %15, %19 : vector<128x64xf32>
    %21 = vector.extract_strided_slice %9 {offsets = [8, 0], sizes = [128, 64], strides = [1, 1]} : vector<176x64xbf16> to vector<128x64xbf16>
    %c2 = arith.constant 2 : index
    %c0_10 = arith.constant 0 : index
    %c0_11 = arith.constant 0 : index
    %22 = vector.load %arg2[%c2, %c0_10, %c0_11] : memref<9x64x64xbf16, #tpu.memory_space<vmem>>, vector<1x64x64xbf16>
    %23 = vector.shape_cast %22 : vector<1x64x64xbf16> to vector<64x64xbf16>
    %cst_12 = arith.constant dense<0.000000e+00> : vector<128x64xf32>
    %24 = tpu.matmul %21, %23, %cst_12 {dimension_numbers = #tpu.dot_dimension_numbers<[1], [0], [0], [1], [0, 0, 1, 1], [], []>} : vector<128x64xbf16>, vector<64x64xbf16>, vector<128x64xf32> -> vector<128x64xf32>
    %25 = arith.addf %20, %24 : vector<128x64xf32>
    %26 = vector.extract_strided_slice %7 {offsets = [24, 0], sizes = [128, 64], strides = [1, 1]} : vector<176x64xbf16> to vector<128x64xbf16>
    %c3 = arith.constant 3 : index
    %c0_13 = arith.constant 0 : index
    %c0_14 = arith.constant 0 : index
    %27 = vector.load %arg2[%c3, %c0_13, %c0_14] : memref<9x64x64xbf16, #tpu.memory_space<vmem>>, vector<1x64x64xbf16>
    %28 = vector.shape_cast %27 : vector<1x64x64xbf16> to vector<64x64xbf16>
    %cst_15 = arith.constant dense<0.000000e+00> : vector<128x64xf32>
    %29 = tpu.matmul %26, %28, %cst_15 {dimension_numbers = #tpu.dot_dimension_numbers<[1], [0], [0], [1], [0, 0, 1, 1], [], []>} : vector<128x64xbf16>, vector<64x64xbf16>, vector<128x64xf32> -> vector<128x64xf32>
    %30 = arith.addf %25, %29 : vector<128x64xf32>
    %31 = vector.extract_strided_slice %8 {offsets = [24, 0], sizes = [128, 64], strides = [1, 1]} : vector<176x64xbf16> to vector<128x64xbf16>
    %c4 = arith.constant 4 : index
    %c0_16 = arith.constant 0 : index
    %c0_17 = arith.constant 0 : index
    %32 = vector.load %arg2[%c4, %c0_16, %c0_17] : memref<9x64x64xbf16, #tpu.memory_space<vmem>>, vector<1x64x64xbf16>
    %33 = vector.shape_cast %32 : vector<1x64x64xbf16> to vector<64x64xbf16>
    %cst_18 = arith.constant dense<0.000000e+00> : vector<128x64xf32>
    %34 = tpu.matmul %31, %33, %cst_18 {dimension_numbers = #tpu.dot_dimension_numbers<[1], [0], [0], [1], [0, 0, 1, 1], [], []>} : vector<128x64xbf16>, vector<64x64xbf16>, vector<128x64xf32> -> vector<128x64xf32>
    %35 = arith.addf %30, %34 : vector<128x64xf32>
    %36 = vector.extract_strided_slice %9 {offsets = [24, 0], sizes = [128, 64], strides = [1, 1]} : vector<176x64xbf16> to vector<128x64xbf16>
    %c5 = arith.constant 5 : index
    %c0_19 = arith.constant 0 : index
    %c0_20 = arith.constant 0 : index
    %37 = vector.load %arg2[%c5, %c0_19, %c0_20] : memref<9x64x64xbf16, #tpu.memory_space<vmem>>, vector<1x64x64xbf16>
    %38 = vector.shape_cast %37 : vector<1x64x64xbf16> to vector<64x64xbf16>
    %cst_21 = arith.constant dense<0.000000e+00> : vector<128x64xf32>
    %39 = tpu.matmul %36, %38, %cst_21 {dimension_numbers = #tpu.dot_dimension_numbers<[1], [0], [0], [1], [0, 0, 1, 1], [], []>} : vector<128x64xbf16>, vector<64x64xbf16>, vector<128x64xf32> -> vector<128x64xf32>
    %40 = arith.addf %35, %39 : vector<128x64xf32>
    %41 = vector.extract_strided_slice %7 {offsets = [40, 0], sizes = [128, 64], strides = [1, 1]} : vector<176x64xbf16> to vector<128x64xbf16>
    %c6 = arith.constant 6 : index
    %c0_22 = arith.constant 0 : index
    %c0_23 = arith.constant 0 : index
    %42 = vector.load %arg2[%c6, %c0_22, %c0_23] : memref<9x64x64xbf16, #tpu.memory_space<vmem>>, vector<1x64x64xbf16>
    %43 = vector.shape_cast %42 : vector<1x64x64xbf16> to vector<64x64xbf16>
    %cst_24 = arith.constant dense<0.000000e+00> : vector<128x64xf32>
    %44 = tpu.matmul %41, %43, %cst_24 {dimension_numbers = #tpu.dot_dimension_numbers<[1], [0], [0], [1], [0, 0, 1, 1], [], []>} : vector<128x64xbf16>, vector<64x64xbf16>, vector<128x64xf32> -> vector<128x64xf32>
    %45 = arith.addf %40, %44 : vector<128x64xf32>
    %46 = vector.extract_strided_slice %8 {offsets = [40, 0], sizes = [128, 64], strides = [1, 1]} : vector<176x64xbf16> to vector<128x64xbf16>
    %c7 = arith.constant 7 : index
    %c0_25 = arith.constant 0 : index
    %c0_26 = arith.constant 0 : index
    %47 = vector.load %arg2[%c7, %c0_25, %c0_26] : memref<9x64x64xbf16, #tpu.memory_space<vmem>>, vector<1x64x64xbf16>
    %48 = vector.shape_cast %47 : vector<1x64x64xbf16> to vector<64x64xbf16>
    %cst_27 = arith.constant dense<0.000000e+00> : vector<128x64xf32>
    %49 = tpu.matmul %46, %48, %cst_27 {dimension_numbers = #tpu.dot_dimension_numbers<[1], [0], [0], [1], [0, 0, 1, 1], [], []>} : vector<128x64xbf16>, vector<64x64xbf16>, vector<128x64xf32> -> vector<128x64xf32>
    %50 = arith.addf %45, %49 : vector<128x64xf32>
    %51 = vector.extract_strided_slice %9 {offsets = [40, 0], sizes = [128, 64], strides = [1, 1]} : vector<176x64xbf16> to vector<128x64xbf16>
    %c8 = arith.constant 8 : index
    %c0_28 = arith.constant 0 : index
    %c0_29 = arith.constant 0 : index
    %52 = vector.load %arg2[%c8, %c0_28, %c0_29] : memref<9x64x64xbf16, #tpu.memory_space<vmem>>, vector<1x64x64xbf16>
    %53 = vector.shape_cast %52 : vector<1x64x64xbf16> to vector<64x64xbf16>
    %cst_30 = arith.constant dense<0.000000e+00> : vector<128x64xf32>
    %54 = tpu.matmul %51, %53, %cst_30 {dimension_numbers = #tpu.dot_dimension_numbers<[1], [0], [0], [1], [0, 0, 1, 1], [], []>} : vector<128x64xbf16>, vector<64x64xbf16>, vector<128x64xf32> -> vector<128x64xf32>
    %55 = arith.addf %50, %54 : vector<128x64xf32>
    %c0_31 = arith.constant 0 : index
    %c0_32 = arith.constant 0 : index
    %56 = vector.load %arg3[%c0_31, %c0_32] : memref<1x64xf32, #tpu.memory_space<vmem>>, vector<1x64xf32>
    %57 = vector.broadcast %56 : vector<1x64xf32> to vector<128x64xf32>
    %58 = arith.addf %55, %57 : vector<128x64xf32>
    %59 = arith.truncf %58 : vector<128x64xf32> to vector<128x64xbf16>
    %c0_33 = arith.constant 0 : index
    %c0_34 = arith.constant 0 : index
    %c0_35 = arith.constant 0 : index
    %60 = vector.load %arg4[%c0_33, %c0_34, %c0_35] : memref<1x128x64xbf16, #tpu.memory_space<vmem>>, vector<1x128x64xbf16>
    %61 = vector.shape_cast %60 : vector<1x128x64xbf16> to vector<128x64xbf16>
    %62 = vector.shape_cast %59 : vector<128x64xbf16> to vector<1x128x64xbf16>
    tpu.vector_store %arg4[%c0_33, %c0_34, %c0_35], %62 {strides = array<i32>} : memref<1x128x64xbf16, #tpu.memory_space<vmem>>, vector<1x128x64xbf16>,
    return
  }
  func.func @transform_0(%arg0: i32) -> (i32, i32, i32) {
    %c0_i32 = arith.constant 0 : i32
    %c0_i32_0 = arith.constant 0 : i32
    %c0_i32_1 = arith.constant 0 : i32
    return %arg0, %c0_i32, %c0_i32_0 : i32, i32, i32
  }
  func.func @transform_1(%arg0: i32) -> (i32, i32, i32) {
    %c0_i32 = arith.constant 0 : i32
    %c0_i32_0 = arith.constant 0 : i32
    %c0_i32_1 = arith.constant 0 : i32
    %c0_i32_2 = arith.constant 0 : i32
    return %c0_i32, %c0_i32_0, %c0_i32_1 : i32, i32, i32
  }
  func.func @transform_2(%arg0: i32) -> (i32, i32) {
    %c0_i32 = arith.constant 0 : i32
    %c0_i32_0 = arith.constant 0 : i32
    %c0_i32_1 = arith.constant 0 : i32
    return %c0_i32, %c0_i32_0 : i32, i32
  }
  func.func @transform_3(%arg0: i32) -> (i32, i32, i32) {
    %c0_i32 = arith.constant 0 : i32
    %c0_i32_0 = arith.constant 0 : i32
    %c0_i32_1 = arith.constant 0 : i32
    return %arg0, %c0_i32, %c0_i32_0 : i32, i32, i32
  }
}

</mosaic_0001>

<llo_original>
// kernel: query_transformer_forward.15
$region0: #{query_transformer_forward.15}
  #allocation0 [shape = 'u32[]', space=smem, size = 0x4, offset = 0x4, fixed_abs, tag = 'smem constant byte address 0x4 - core index']
  #allocation1 [shape = 'u32[72,128]{1,0:T(1,128)}', space=vmem, size = 0x9000, scoped, tag = 'internal scratch']
  %s0 = inlined_call_operand.vmem [shape: bf16[128,64], index: 0, kind: input, shape index: {}]
  %s1 = inlined_call_operand.vmem [shape: bf16[64,64], index: 1, kind: input, shape index: {}]
  %s2 = inlined_call_operand.vmem [shape: f32[1,64], index: 2, kind: input, shape index: {}]
  %s3 = inlined_call_operand.vmem [shape: bf16[64,64], index: 3, kind: input, shape index: {}]
  %s4 = inlined_call_operand.vmem [shape: f32[1,64], index: 4, kind: input, shape index: {}]
  %s5 = inlined_call_operand.vmem [shape: bf16[128,64], index: 5, kind: output, shape index: {0}]
  %s6 = inlined_call_operand.vmem [shape: bf16[128,64], index: 6, kind: output, shape index: {1}]
  %7 = xla_tuple %s5, %s6
  %s8 = sld [smem:[#allocation0]]
  $region38: #{query_transformer_forward.15} parent=0
    _
  %s10 = ssub.s32 1, %s8
  %s11 = scalar_select 0, %s10, %s8
  // Predicated region
  $region2: #{query_transformer_forward.15} parent=0 // pred_check
    _
  $region3: #{query_transformer_forward.15} parent=0 // pred_check_branch
    %13 = sbr.rel (0) target = $region5
  $region4: #{query_transformer_forward.15} parent=0 // pred_region
    _
  $region5: #{query_transformer_forward.15} parent=0 // pred_fallthru
    _
  // Predicated region
  $region6: #{query_transformer_forward.15} parent=0 // pred_check
    _
  $region7: #{query_transformer_forward.15} parent=0 // pred_check_branch
    %15 = sbr.rel (0) target = $region9
  $region8: #{query_transformer_forward.15} parent=0 // pred_region
    _
  $region9: #{query_transformer_forward.15} parent=0 // pred_fallthru
    _
  // Predicated region
  $region10: #{query_transformer_forward.15} parent=0 // pred_check
    _
  $region11: #{query_transformer_forward.15} parent=0 // pred_check_branch
    %17 = sbr.rel (0) target = $region13
  $region12: #{query_transformer_forward.15} parent=0 // pred_region
    _
  $region13: #{query_transformer_forward.15} parent=0 // pred_fallthru
    _
  // Predicated region
  $region14: #{query_transformer_forward.15} parent=0 // pred_check
    _
  $region15: #{query_transformer_forward.15} parent=0 // pred_check_branch
    %19 = sbr.rel (0) target = $region17
  $region16: #{query_transformer_forward.15} parent=0 // pred_region
    _
  $region17: #{query_transformer_forward.15} parent=0 // pred_fallthru
    _
  // Predicated region
  $region18: #{query_transformer_forward.15} parent=0 // pred_check
    _
  $region19: #{query_transformer_forward.15} parent=0 // pred_check_branch
    %21 = sbr.rel (0) target = $region21
  $region20: #{query_transformer_forward.15} parent=0 // pred_region
    _
  $region21: #{query_transformer_forward.15} parent=0 // pred_fallthru
    _
  %v23 = vld [vmem:[%s0] sm:$0xf]
  %v24 = vld [vmem:[%s0 + $0x4] sm:$0xf]
  %v25 = vld [vmem:[%s0 + $0x8] sm:$0xf]
  %v26 = vld [vmem:[%s0 + $0xc] sm:$0xf]
  %v27 = vld [vmem:[%s0 + $0x10] sm:$0xf]
  %v28 = vld [vmem:[%s0 + $0x14] sm:$0xf]
  %v29 = vld [vmem:[%s0 + $0x18] sm:$0xf]
  %v30 = vld [vmem:[%s0 + $0x1c] sm:$0xf]
  %v31 = vld [vmem:[%s0 + $0x20] sm:$0xf]
  %v32 = vld [vmem:[%s0 + $0x24] sm:$0xf]
  %v33 = vld [vmem:[%s0 + $0x28] sm:$0xf]
  %v34 = vld [vmem:[%s0 + $0x2c] sm:$0xf]
  %v35 = vld [vmem:[%s0 + $0x30] sm:$0xf]
  %v36 = vld [vmem:[%s0 + $0x34] sm:$0xf]
  %v37 = vld [vmem:[%s0 + $0x38] sm:$0xf]
  %v38 = vld [vmem:[%s0 + $0x3c] sm:$0xf]
  %v39 = vld [vmem:[%s1] sm:$0xf]
  %v40 = vld [vmem:[%s1 + $0x4] sm:$0xf]
  %v41 = vld [vmem:[%s1 + $0x8] sm:$0xf]
  %v42 = vld [vmem:[%s1 + $0xc] sm:$0xf]
  %v43 = vld [vmem:[%s1 + $0x10] sm:$0xf]
  %v44 = vld [vmem:[%s1 + $0x14] sm:$0xf]
  %v45 = vld [vmem:[%s1 + $0x18] sm:$0xf]
  %v46 = vld [vmem:[%s1 + $0x1c] sm:$0xf]
  %v47 = vld [vmem:[%s2] sm:$0x1]
  %v49 = vperm.slane %v47, 0
  %v67 = vunpack.c.l.b16 %v23
  %v68 = vunpack.c.l.b16 %v24
  %v69 = vunpack.c.l.b16 %v25
  %v70 = vunpack.c.l.b16 %v26
  %v71 = vunpack.c.l.b16 %v27
  %v72 = vunpack.c.l.b16 %v28
  %v73 = vunpack.c.l.b16 %v29
  %v74 = vunpack.c.l.b16 %v30
  %v75 = vunpack.c.l.b16 %v31
  %v76 = vunpack.c.l.b16 %v32
  %v77 = vunpack.c.l.b16 %v33
  %v78 = vunpack.c.l.b16 %v34
  %v79 = vunpack.c.l.b16 %v35
  %v80 = vunpack.c.l.b16 %v36
  %v81 = vunpack.c.l.b16 %v37
  %v82 = vunpack.c.l.b16 %v38
  %v83 = vpack.c.b16 %v68, %v67
  %v84 = vpack.c.b16 %v70, %v69
  %v85 = vpack.c.b16 %v72, %v71
  %v86 = vpack.c.b16 %v74, %v73
  %v87 = vpack.c.b16 %v76, %v75
  %v88 = vpack.c.b16 %v78, %v77
  %v89 = vpack.c.b16 %v80, %v79
  %v90 = vpack.c.b16 %v82, %v81
  %v99 = vunpack.c.l.b16 %v39
  %v100 = vunpack.c.l.b16 %v40
  %v101 = vunpack.c.l.b16 %v41
  %v102 = vunpack.c.l.b16 %v42
  %v103 = vunpack.c.l.b16 %v43
  %v104 = vunpack.c.l.b16 %v44
  %v105 = vunpack.c.l.b16 %v45
  %v106 = vunpack.c.l.b16 %v46
  %v107 = vpack.c.b16 %v100, %v99
  %v108 = vpack.c.b16 %v102, %v101
  %v109 = vpack.c.b16 %v104, %v103
  %v110 = vpack.c.b16 %v106, %v105
  %vm115 = vcmask 523264
  %v117 = vsel %vm115, %v83, 0
  %v120 = vsel %vm115, %v84, 0
  %v123 = vsel %vm115, %v85, 0
  %v126 = vsel %vm115, %v86, 0
  %v129 = vsel %vm115, %v87, 0
  %v132 = vsel %vm115, %v88, 0
  %v135 = vsel %vm115, %v89, 0
  %v138 = vsel %vm115, %v90, 0
  %140 = vmatpush.bf16.msra.mxu0 0
  %141 = vmatpush.bf16.msra.mxu0 0
  %142 = vmatpush.bf16.msra.mxu0 0
  %143 = vmatpush.bf16.msra.mxu0 0
  %144 = vmatpush.bf16.msra.mxu0 %v110
  %145 = vmatpush.bf16.msra.mxu0 %v109
  %146 = vmatpush.bf16.msra.mxu0 %v108
  %147 = vmatpush.bf16.msra.mxu0 %v107
  %148 = vmatmul.bf16.gmra.mxu0 %v117
  %v149 = vpop.f32.mrf.mxu0
  %v150 = vadd.f32 %v49, %v149
  %v151 = vpop.f32.mrf.mxu0
  %v152 = vadd.f32 %v49, %v151
  %153 = vmatmul.bf16.gmra.mxu0 %v120
  %v154 = vpop.f32.mrf.mxu0
  %v155 = vadd.f32 %v49, %v154
  %v156 = vpop.f32.mrf.mxu0
  %v157 = vadd.f32 %v49, %v156
  %158 = vmatmul.bf16.gmra.mxu0 %v123
  %v159 = vpop.f32.mrf.mxu0
  %v160 = vadd.f32 %v49, %v159
  %v161 = vpop.f32.mrf.mxu0
  %v162 = vadd.f32 %v49, %v161
  %163 = vmatmul.bf16.gmra.mxu0 %v126
  %v164 = vpop.f32.mrf.mxu0
  %v165 = vadd.f32 %v49, %v164
  %v166 = vpop.f32.mrf.mxu0
  %v167 = vadd.f32 %v49, %v166
  %168 = vmatmul.bf16.gmra.mxu0 %v129
  %v169 = vpop.f32.mrf.mxu0
  %v170 = vadd.f32 %v49, %v169
  %v171 = vpop.f32.mrf.mxu0
  %v172 = vadd.f32 %v49, %v171
  %173 = vmatmul.bf16.gmra.mxu0 %v132
  %v174 = vpop.f32.mrf.mxu0
  %v175 = vadd.f32 %v49, %v174
  %v176 = vpop.f32.mrf.mxu0
  %v177 = vadd.f32 %v49, %v176
  %178 = vmatmul.bf16.gmra.mxu0 %v135
  %v179 = vpop.f32.mrf.mxu0
  %v180 = vadd.f32 %v49, %v179
  %v181 = vpop.f32.mrf.mxu0
  %v182 = vadd.f32 %v49, %v181
  %183 = vmatmul.bf16.gmra.mxu0 %v138
  %v184 = vpop.f32.mrf.mxu0
  %v185 = vadd.f32 %v49, %v184
  %v186 = vpop.f32.mrf.mxu0
  %v187 = vadd.f32 %v49, %v186
  %188 = vdwg.mxu0
  %v189 = vpack.c.bf16 %v150, %v150
  %v190 = vpack.c.bf16 %v152, %v152
  %v191 = vpack.c.bf16 %v155, %v155
  %v192 = vpack.c.bf16 %v157, %v157
  %v193 = vpack.c.bf16 %v160, %v160
  %v194 = vpack.c.bf16 %v162, %v162
  %v195 = vpack.c.bf16 %v165, %v165
  %v196 = vpack.c.bf16 %v167, %v167
  %v197 = vpack.c.bf16 %v170, %v170
  %v198 = vpack.c.bf16 %v172, %v172
  %v199 = vpack.c.bf16 %v175, %v175
  %v200 = vpack.c.bf16 %v177, %v177
  %v201 = vpack.c.bf16 %v180, %v180
  %v202 = vpack.c.bf16 %v182, %v182
  %v203 = vpack.c.bf16 %v185, %v185
  %v204 = vpack.c.bf16 %v187, %v187
  %vm205 = vcmask 519168
  %206 = vst.msk [vmem:[%s5] sm:$0xf] %vm205, %v189
  %207 = vst.msk [vmem:[%s5 + $0x4] sm:$0xf] %vm205, %v190
  %208 = vst.msk [vmem:[%s5 + $0x8] sm:$0xf] %vm205, %v191
  %209 = vst.msk [vmem:[%s5 + $0xc] sm:$0xf] %vm205, %v192
  %210 = vst.msk [vmem:[%s5 + $0x10] sm:$0xf] %vm205, %v193
  %211 = vst.msk [vmem:[%s5 + $0x14] sm:$0xf] %vm205, %v194
  %212 = vst.msk [vmem:[%s5 + $0x18] sm:$0xf] %vm205, %v195
  %213 = vst.msk [vmem:[%s5 + $0x1c] sm:$0xf] %vm205, %v196
  %214 = vst.msk [vmem:[%s5 + $0x20] sm:$0xf] %vm205, %v197
  %215 = vst.msk [vmem:[%s5 + $0x24] sm:$0xf] %vm205, %v198
  %216 = vst.msk [vmem:[%s5 + $0x28] sm:$0xf] %vm205, %v199
  %217 = vst.msk [vmem:[%s5 + $0x2c] sm:$0xf] %vm205, %v200
  %218 = vst.msk [vmem:[%s5 + $0x30] sm:$0xf] %vm205, %v201
  %219 = vst.msk [vmem:[%s5 + $0x34] sm:$0xf] %vm205, %v202
  %220 = vst.msk [vmem:[%s5 + $0x38] sm:$0xf] %vm205, %v203
  %221 = vst.msk [vmem:[%s5 + $0x3c] sm:$0xf] %vm205, %v204
  %v222 = vld [vmem:[%s3] sm:$0xf]
  %v223 = vld [vmem:[%s3 + $0x4] sm:$0xf]
  %v224 = vld [vmem:[%s3 + $0x8] sm:$0xf]
  %v225 = vld [vmem:[%s3 + $0xc] sm:$0xf]
  %v226 = vld [vmem:[%s3 + $0x10] sm:$0xf]
  %v227 = vld [vmem:[%s3 + $0x14] sm:$0xf]
  %v228 = vld [vmem:[%s3 + $0x18] sm:$0xf]
  %v229 = vld [vmem:[%s3 + $0x1c] sm:$0xf]
  %v230 = vld [vmem:[%s4] sm:$0x1]
  %v232 = vperm.slane %v230, 0
  %v242 = vunpack.c.l.b16 %v222
  %v243 = vunpack.c.l.b16 %v223
  %v244 = vunpack.c.l.b16 %v224
  %v245 = vunpack.c.l.b16 %v225
  %v246 = vunpack.c.l.b16 %v226
  %v247 = vunpack.c.l.b16 %v227
  %v248 = vunpack.c.l.b16 %v228
  %v249 = vunpack.c.l.b16 %v229
  %v250 = vpack.c.b16 %v243, %v242
  %v251 = vpack.c.b16 %v245, %v244
  %v252 = vpack.c.b16 %v247, %v246
  %v253 = vpack.c.b16 %v249, %v248
  %258 = vmatpush.bf16.msra.mxu0 0
  %259 = vmatpush.bf16.msra.mxu0 0
  %260 = vmatpush.bf16.msra.mxu0 0
  %261 = vmatpush.bf16.msra.mxu0 0
  %262 = vmatpush.bf16.msra.mxu0 %v253
  %263 = vmatpush.bf16.msra.mxu0 %v252
  %264 = vmatpush.bf16.msra.mxu0 %v251
  %265 = vmatpush.bf16.msra.mxu0 %v250
  %266 = vmatmul.bf16.gmra.mxu0 %v117
  %v267 = vpop.f32.mrf.mxu0
  %v268 = vadd.f32 %v232, %v267
  %v269 = vpop.f32.mrf.mxu0
  %v270 = vadd.f32 %v232, %v269
  %271 = vmatmul.bf16.gmra.mxu0 %v120
  %v272 = vpop.f32.mrf.mxu0
  %v273 = vadd.f32 %v232, %v272
  %v274 = vpop.f32.mrf.mxu0
  %v275 = vadd.f32 %v232, %v274
  %276 = vmatmul.bf16.gmra.mxu0 %v123
  %v277 = vpop.f32.mrf.mxu0
  %v278 = vadd.f32 %v232, %v277
  %v279 = vpop.f32.mrf.mxu0
  %v280 = vadd.f32 %v232, %v279
  %281 = vmatmul.bf16.gmra.mxu0 %v126
  %v282 = vpop.f32.mrf.mxu0
  %v283 = vadd.f32 %v232, %v282
  %v284 = vpop.f32.mrf.mxu0
  %v285 = vadd.f32 %v232, %v284
  %286 = vmatmul.bf16.gmra.mxu0 %v129
  %v287 = vpop.f32.mrf.mxu0
  %v288 = vadd.f32 %v232, %v287
  %v289 = vpop.f32.mrf.mxu0
  %v290 = vadd.f32 %v232, %v289
  %291 = vmatmul.bf16.gmra.mxu0 %v132
  %v292 = vpop.f32.mrf.mxu0
  %v293 = vadd.f32 %v232, %v292
  %v294 = vpop.f32.mrf.mxu0
  %v295 = vadd.f32 %v232, %v294
  %296 = vmatmul.bf16.gmra.mxu0 %v135
  %v297 = vpop.f32.mrf.mxu0
  %v298 = vadd.f32 %v232, %v297
  %v299 = vpop.f32.mrf.mxu0
  %v300 = vadd.f32 %v232, %v299
  %301 = vmatmul.bf16.gmra.mxu0 %v138
  %v302 = vpop.f32.mrf.mxu0
  %v303 = vadd.f32 %v232, %v302
  %v304 = vpop.f32.mrf.mxu0
  %v305 = vadd.f32 %v232, %v304
  %306 = vdwg.mxu0
  %v307 = vpack.c.bf16 %v268, %v268
  %v308 = vpack.c.bf16 %v270, %v270
  %v309 = vpack.c.bf16 %v273, %v273
  %v310 = vpack.c.bf16 %v275, %v275
  %v311 = vpack.c.bf16 %v278, %v278
  %v312 = vpack.c.bf16 %v280, %v280
  %v313 = vpack.c.bf16 %v283, %v283
  %v314 = vpack.c.bf16 %v285, %v285
  %v315 = vpack.c.bf16 %v288, %v288
  %v316 = vpack.c.bf16 %v290, %v290
  %v317 = vpack.c.bf16 %v293, %v293
  %v318 = vpack.c.bf16 %v295, %v295
  %v319 = vpack.c.bf16 %v298, %v298
  %v320 = vpack.c.bf16 %v300, %v300
  %v321 = vpack.c.bf16 %v303, %v303
  %v322 = vpack.c.bf16 %v305, %v305
  %323 = vst.msk [vmem:[%s6] sm:$0xf] %vm205, %v307
  %324 = vst.msk [vmem:[%s6 + $0x4] sm:$0xf] %vm205, %v308
  %325 = vst.msk [vmem:[%s6 + $0x8] sm:$0xf] %vm205, %v309
  %326 = vst.msk [vmem:[%s6 + $0xc] sm:$0xf] %vm205, %v310
  %327 = vst.msk [vmem:[%s6 + $0x10] sm:$0xf] %vm205, %v311
  %328 = vst.msk [vmem:[%s6 + $0x14] sm:$0xf] %vm205, %v312
  %329 = vst.msk [vmem:[%s6 + $0x18] sm:$0xf] %vm205, %v313
  %330 = vst.msk [vmem:[%s6 + $0x1c] sm:$0xf] %vm205, %v314
  %331 = vst.msk [vmem:[%s6 + $0x20] sm:$0xf] %vm205, %v315
  %332 = vst.msk [vmem:[%s6 + $0x24] sm:$0xf] %vm205, %v316
  %333 = vst.msk [vmem:[%s6 + $0x28] sm:$0xf] %vm205, %v317
  %334 = vst.msk [vmem:[%s6 + $0x2c] sm:$0xf] %vm205, %v318
  %335 = vst.msk [vmem:[%s6 + $0x30] sm:$0xf] %vm205, %v319
  %336 = vst.msk [vmem:[%s6 + $0x34] sm:$0xf] %vm205, %v320
  %337 = vst.msk [vmem:[%s6 + $0x38] sm:$0xf] %vm205, %v321
  %338 = vst.msk [vmem:[%s6 + $0x3c] sm:$0xf] %vm205, %v322
  // Predicated region
  $region22: #{query_transformer_forward.15} parent=0 // pred_check
    _
  $region23: #{query_transformer_forward.15} parent=0 // pred_check_branch
    %340 = sbr.rel (0) target = $region25
  $region24: #{query_transformer_forward.15} parent=0 // pred_region
    _
  $region25: #{query_transformer_forward.15} parent=0 // pred_fallthru
    _
  // Predicated region
  $region26: #{query_transformer_forward.15} parent=0 // pred_check
    _
  $region27: #{query_transformer_forward.15} parent=0 // pred_check_branch
    %342 = sbr.rel (0) target = $region29
  $region28: #{query_transformer_forward.15} parent=0 // pred_region
    _
  $region29: #{query_transformer_forward.15} parent=0 // pred_fallthru
    _
  // Predicated region
  $region30: #{query_transformer_forward.15} parent=0 // pred_check
    _
  $region31: #{query_transformer_forward.15} parent=0 // pred_check_branch
    %344 = sbr.rel (0) target = $region33
  $region32: #{query_transformer_forward.15} parent=0 // pred_region
    _
  $region33: #{query_transformer_forward.15} parent=0 // pred_fallthru
    _
  // Predicated region
  $region34: #{query_transformer_forward.15} parent=0 // pred_check
    _
  $region35: #{query_transformer_forward.15} parent=0 // pred_check_branch
    %346 = sbr.rel (0) target = $region37
  $region36: #{query_transformer_forward.15} parent=0 // pred_region
    _
  $region37: #{query_transformer_forward.15} parent=0 // pred_fallthru
    _

// kernel: query_transformer_forward.17
$region0: #{query_transformer_forward.17}
  #allocation0 [shape = 'u32[]', space=smem, size = 0x4, offset = 0x4, fixed_abs, tag = 'smem constant byte address 0x4 - core index']
  #allocation1 [shape = 'u32[72,128]{1,0:T(1,128)}', space=vmem, size = 0x9000, scoped, tag = 'internal scratch']
  %s0 = inlined_call_operand.vmem [shape: bf16[128,64], index: 0, kind: input, shape index: {}]
  %s1 = inlined_call_operand.vmem [shape: bf16[128,64], index: 1, kind: input, shape index: {}]
  %s2 = inlined_call_operand.vmem [shape: bf16[64,64], index: 2, kind: input, shape index: {}]
  %s3 = inlined_call_operand.vmem [shape: f32[1,64], index: 3, kind: input, shape index: {}]
  %s4 = inlined_call_operand.vmem [shape: bf16[64,64], index: 4, kind: input, shape index: {}]
  %s5 = inlined_call_operand.vmem [shape: f32[1,64], index: 5, kind: input, shape index: {}]
  %s6 = inlined_call_operand.vmem [shape: bf16[128,64], index: 6, kind: output, shape index: {0}]
  %s7 = inlined_call_operand.vmem [shape: bf16[128,64], index: 7, kind: output, shape index: {1}]
  %8 = xla_tuple %s6, %s7
  %s9 = sld [smem:[#allocation0]]
  $region42: #{query_transformer_forward.17} parent=0
    _
  %s11 = ssub.s32 1, %s9
  %s12 = scalar_select 0, %s11, %s9
  // Predicated region
  $region2: #{query_transformer_forward.17} parent=0 // pred_check
    _
  $region3: #{query_transformer_forward.17} parent=0 // pred_check_branch
    %14 = sbr.rel (0) target = $region5
  $region4: #{query_transformer_forward.17} parent=0 // pred_region
    _
  $region5: #{query_transformer_forward.17} parent=0 // pred_fallthru
    _
  // Predicated region
  $region6: #{query_transformer_forward.17} parent=0 // pred_check
    _
  $region7: #{query_transformer_forward.17} parent=0 // pred_check_branch
    %16 = sbr.rel (0) target = $region9
  $region8: #{query_transformer_forward.17} parent=0 // pred_region
    _
  $region9: #{query_transformer_forward.17} parent=0 // pred_fallthru
    _
  // Predicated region
  $region10: #{query_transformer_forward.17} parent=0 // pred_check
    _
  $region11: #{query_transformer_forward.17} parent=0 // pred_check_branch
    %18 = sbr.rel (0) target = $region13
  $region12: #{query_transformer_forward.17} parent=0 // pred_region
    _
  $region13: #{query_transformer_forward.17} parent=0 // pred_fallthru
    _
  // Predicated region
  $region14: #{query_transformer_forward.17} parent=0 // pred_check
    _
  $region15: #{query_transformer_forward.17} parent=0 // pred_check_branch
    %20 = sbr.rel (0) target = $region17
  $region16: #{query_transformer_forward.17} parent=0 // pred_region
    _
  $region17: #{query_transformer_forward.17} parent=0 // pred_fallthru
    _
  // Predicated region
  $region18: #{query_transformer_forward.17} parent=0 // pred_check
    _
  $region19: #{query_transformer_forward.17} parent=0 // pred_check_branch
    %22 = sbr.rel (0) target = $region21
  $region20: #{query_transformer_forward.17} parent=0 // pred_region
    _
  $region21: #{query_transformer_forward.17} parent=0 // pred_fallthru
    _
  // Predicated region
  $region22: #{query_transformer_forward.17} parent=0 // pred_check
    _
  $region23: #{query_transformer_forward.17} parent=0 // pred_check_branch
    %24 = sbr.rel (0) target = $region25
  $region24: #{query_transformer_forward.17} parent=0 // pred_region
    _
  $region25: #{query_transformer_forward.17} parent=0 // pred_fallthru
    _
  %v26 = vld [vmem:[%s0] sm:$0xf]
  %v27 = vld [vmem:[%s0 + $0x4] sm:$0xf]
  %v28 = vld [vmem:[%s0 + $0x8] sm:$0xf]
  %v29 = vld [vmem:[%s0 + $0xc] sm:$0xf]
  %v30 = vld [vmem:[%s0 + $0x10] sm:$0xf]
  %v31 = vld [vmem:[%s0 + $0x14] sm:$0xf]
  %v32 = vld [vmem:[%s0 + $0x18] sm:$0xf]
  %v33 = vld [vmem:[%s0 + $0x1c] sm:$0xf]
  %v34 = vld [vmem:[%s0 + $0x20] sm:$0xf]
  %v35 = vld [vmem:[%s0 + $0x24] sm:$0xf]
  %v36 = vld [vmem:[%s0 + $0x28] sm:$0xf]
  %v37 = vld [vmem:[%s0 + $0x2c] sm:$0xf]
  %v38 = vld [vmem:[%s0 + $0x30] sm:$0xf]
  %v39 = vld [vmem:[%s0 + $0x34] sm:$0xf]
  %v40 = vld [vmem:[%s0 + $0x38] sm:$0xf]
  %v41 = vld [vmem:[%s0 + $0x3c] sm:$0xf]
  %v42 = vunpack.c.l.bf16 %v26
  %v43 = vunpack.c.l.bf16 %v27
  %v44 = vunpack.c.l.bf16 %v28
  %v45 = vunpack.c.l.bf16 %v29
  %v46 = vunpack.c.l.bf16 %v30
  %v47 = vunpack.c.l.bf16 %v31
  %v48 = vunpack.c.l.bf16 %v32
  %v49 = vunpack.c.l.bf16 %v33
  %v50 = vunpack.c.l.bf16 %v34
  %v51 = vunpack.c.l.bf16 %v35
  %v52 = vunpack.c.l.bf16 %v36
  %v53 = vunpack.c.l.bf16 %v37
  %v54 = vunpack.c.l.bf16 %v38
  %v55 = vunpack.c.l.bf16 %v39
  %v56 = vunpack.c.l.bf16 %v40
  %v57 = vunpack.c.l.bf16 %v41
  %v58 = vld [vmem:[%s1] sm:$0xf]
  %v59 = vld [vmem:[%s1 + $0x4] sm:$0xf]
  %v60 = vld [vmem:[%s1 + $0x8] sm:$0xf]
  %v61 = vld [vmem:[%s1 + $0xc] sm:$0xf]
  %v62 = vld [vmem:[%s1 + $0x10] sm:$0xf]
  %v63 = vld [vmem:[%s1 + $0x14] sm:$0xf]
  %v64 = vld [vmem:[%s1 + $0x18] sm:$0xf]
  %v65 = vld [vmem:[%s1 + $0x1c] sm:$0xf]
  %v66 = vld [vmem:[%s1 + $0x20] sm:$0xf]
  %v67 = vld [vmem:[%s1 + $0x24] sm:$0xf]
  %v68 = vld [vmem:[%s1 + $0x28] sm:$0xf]
  %v69 = vld [vmem:[%s1 + $0x2c] sm:$0xf]
  %v70 = vld [vmem:[%s1 + $0x30] sm:$0xf]
  %v71 = vld [vmem:[%s1 + $0x34] sm:$0xf]
  %v72 = vld [vmem:[%s1 + $0x38] sm:$0xf]
  %v73 = vld [vmem:[%s1 + $0x3c] sm:$0xf]
  %v74 = vunpack.c.l.bf16 %v58
  %v75 = vunpack.c.l.bf16 %v59
  %v76 = vunpack.c.l.bf16 %v60
  %v77 = vunpack.c.l.bf16 %v61
  %v78 = vunpack.c.l.bf16 %v62
  %v79 = vunpack.c.l.bf16 %v63
  %v80 = vunpack.c.l.bf16 %v64
  %v81 = vunpack.c.l.bf16 %v65
  %v82 = vunpack.c.l.bf16 %v66
  %v83 = vunpack.c.l.bf16 %v67
  %v84 = vunpack.c.l.bf16 %v68
  %v85 = vunpack.c.l.bf16 %v69
  %v86 = vunpack.c.l.bf16 %v70
  %v87 = vunpack.c.l.bf16 %v71
  %v88 = vunpack.c.l.bf16 %v72
  %v89 = vunpack.c.l.bf16 %v73
  %v90 = vadd.f32 %v42, %v74
  %v91 = vadd.f32 %v43, %v75
  %v92 = vadd.f32 %v44, %v76
  %v93 = vadd.f32 %v45, %v77
  %v94 = vadd.f32 %v46, %v78
  %v95 = vadd.f32 %v47, %v79
  %v96 = vadd.f32 %v48, %v80
  %v97 = vadd.f32 %v49, %v81
  %v98 = vadd.f32 %v50, %v82
  %v99 = vadd.f32 %v51, %v83
  %v100 = vadd.f32 %v52, %v84
  %v101 = vadd.f32 %v53, %v85
  %v102 = vadd.f32 %v54, %v86
  %v103 = vadd.f32 %v55, %v87
  %v104 = vadd.f32 %v56, %v88
  %v105 = vadd.f32 %v57, %v89
  %v106 = vpack.c.bf16 %v91, %v90
  %v107 = vpack.c.bf16 %v93, %v92
  %v108 = vpack.c.bf16 %v95, %v94
  %v109 = vpack.c.bf16 %v97, %v96
  %v110 = vpack.c.bf16 %v99, %v98
  %v111 = vpack.c.bf16 %v101, %v100
  %v112 = vpack.c.bf16 %v103, %v102
  %v113 = vpack.c.bf16 %v105, %v104
  %v114 = vld [vmem:[%s2] sm:$0xf]
  %v115 = vld [vmem:[%s2 + $0x4] sm:$0xf]
  %v116 = vld [vmem:[%s2 + $0x8] sm:$0xf]
  %v117 = vld [vmem:[%s2 + $0xc] sm:$0xf]
  %v118 = vld [vmem:[%s2 + $0x10] sm:$0xf]
  %v119 = vld [vmem:[%s2 + $0x14] sm:$0xf]
  %v120 = vld [vmem:[%s2 + $0x18] sm:$0xf]
  %v121 = vld [vmem:[%s2 + $0x1c] sm:$0xf]
  %v122 = vld [vmem:[%s3] sm:$0x1]
  %v124 = vperm.slane %v122, 0
  %v134 = vunpack.c.l.b16 %v114
  %v135 = vunpack.c.l.b16 %v115
  %v136 = vunpack.c.l.b16 %v116
  %v137 = vunpack.c.l.b16 %v117
  %v138 = vunpack.c.l.b16 %v118
  %v139 = vunpack.c.l.b16 %v119
  %v140 = vunpack.c.l.b16 %v120
  %v141 = vunpack.c.l.b16 %v121
  %v142 = vpack.c.b16 %v135, %v134
  %v143 = vpack.c.b16 %v137, %v136
  %v144 = vpack.c.b16 %v139, %v138
  %v145 = vpack.c.b16 %v141, %v140
  %vm150 = vcmask 523264
  %v152 = vsel %vm150, %v106, 0
  %v155 = vsel %vm150, %v107, 0
  %v158 = vsel %vm150, %v108, 0
  %v161 = vsel %vm150, %v109, 0
  %v164 = vsel %vm150, %v110, 0
  %v167 = vsel %vm150, %v111, 0
  %v170 = vsel %vm150, %v112, 0
  %v173 = vsel %vm150, %v113, 0
  %175 = vmatpush.bf16.msra.mxu0 0
  %176 = vmatpush.bf16.msra.mxu0 0
  %177 = vmatpush.bf16.msra.mxu0 0
  %178 = vmatpush.bf16.msra.mxu0 0
  %179 = vmatpush.bf16.msra.mxu0 %v145
  %180 = vmatpush.bf16.msra.mxu0 %v144
  %181 = vmatpush.bf16.msra.mxu0 %v143
  %182 = vmatpush.bf16.msra.mxu0 %v142
  %183 = vmatmul.bf16.gmra.mxu0 %v152
  %v184 = vpop.f32.mrf.mxu0
  %v185 = vadd.f32 %v124, %v184
  %v186 = vpop.f32.mrf.mxu0
  %v187 = vadd.f32 %v124, %v186
  %188 = vmatmul.bf16.gmra.mxu0 %v155
  %v189 = vpop.f32.mrf.mxu0
  %v190 = vadd.f32 %v124, %v189
  %v191 = vpop.f32.mrf.mxu0
  %v192 = vadd.f32 %v124, %v191
  %193 = vmatmul.bf16.gmra.mxu0 %v158
  %v194 = vpop.f32.mrf.mxu0
  %v195 = vadd.f32 %v124, %v194
  %v196 = vpop.f32.mrf.mxu0
  %v197 = vadd.f32 %v124, %v196
  %198 = vmatmul.bf16.gmra.mxu0 %v161
  %v199 = vpop.f32.mrf.mxu0
  %v200 = vadd.f32 %v124, %v199
  %v201 = vpop.f32.mrf.mxu0
  %v202 = vadd.f32 %v124, %v201
  %203 = vmatmul.bf16.gmra.mxu0 %v164
  %v204 = vpop.f32.mrf.mxu0
  %v205 = vadd.f32 %v124, %v204
  %v206 = vpop.f32.mrf.mxu0
  %v207 = vadd.f32 %v124, %v206
  %208 = vmatmul.bf16.gmra.mxu0 %v167
  %v209 = vpop.f32.mrf.mxu0
  %v210 = vadd.f32 %v124, %v209
  %v211 = vpop.f32.mrf.mxu0
  %v212 = vadd.f32 %v124, %v211
  %213 = vmatmul.bf16.gmra.mxu0 %v170
  %v214 = vpop.f32.mrf.mxu0
  %v215 = vadd.f32 %v124, %v214
  %v216 = vpop.f32.mrf.mxu0
  %v217 = vadd.f32 %v124, %v216
  %218 = vmatmul.bf16.gmra.mxu0 %v173
  %v219 = vpop.f32.mrf.mxu0
  %v220 = vadd.f32 %v124, %v219
  %v221 = vpop.f32.mrf.mxu0
  %v222 = vadd.f32 %v124, %v221
  %223 = vdwg.mxu0
  %v224 = vpack.c.bf16 %v185, %v185
  %v225 = vpack.c.bf16 %v187, %v187
  %v226 = vpack.c.bf16 %v190, %v190
  %v227 = vpack.c.bf16 %v192, %v192
  %v228 = vpack.c.bf16 %v195, %v195
  %v229 = vpack.c.bf16 %v197, %v197
  %v230 = vpack.c.bf16 %v200, %v200
  %v231 = vpack.c.bf16 %v202, %v202
  %v232 = vpack.c.bf16 %v205, %v205
  %v233 = vpack.c.bf16 %v207, %v207
  %v234 = vpack.c.bf16 %v210, %v210
  %v235 = vpack.c.bf16 %v212, %v212
  %v236 = vpack.c.bf16 %v215, %v215
  %v237 = vpack.c.bf16 %v217, %v217
  %v238 = vpack.c.bf16 %v220, %v220
  %v239 = vpack.c.bf16 %v222, %v222
  %vm240 = vcmask 519168
  %241 = vst.msk [vmem:[%s6] sm:$0xf] %vm240, %v224
  %242 = vst.msk [vmem:[%s6 + $0x4] sm:$0xf] %vm240, %v225
  %243 = vst.msk [vmem:[%s6 + $0x8] sm:$0xf] %vm240, %v226
  %244 = vst.msk [vmem:[%s6 + $0xc] sm:$0xf] %vm240, %v227
  %245 = vst.msk [vmem:[%s6 + $0x10] sm:$0xf] %vm240, %v228
  %246 = vst.msk [vmem:[%s6 + $0x14] sm:$0xf] %vm240, %v229
  %247 = vst.msk [vmem:[%s6 + $0x18] sm:$0xf] %vm240, %v230
  %248 = vst.msk [vmem:[%s6 + $0x1c] sm:$0xf] %vm240, %v231
  %249 = vst.msk [vmem:[%s6 + $0x20] sm:$0xf] %vm240, %v232
  %250 = vst.msk [vmem:[%s6 + $0x24] sm:$0xf] %vm240, %v233
  %251 = vst.msk [vmem:[%s6 + $0x28] sm:$0xf] %vm240, %v234
  %252 = vst.msk [vmem:[%s6 + $0x2c] sm:$0xf] %vm240, %v235
  %253 = vst.msk [vmem:[%s6 + $0x30] sm:$0xf] %vm240, %v236
  %254 = vst.msk [vmem:[%s6 + $0x34] sm:$0xf] %vm240, %v237
  %255 = vst.msk [vmem:[%s6 + $0x38] sm:$0xf] %vm240, %v238
  %256 = vst.msk [vmem:[%s6 + $0x3c] sm:$0xf] %vm240, %v239
  %v257 = vld [vmem:[%s4] sm:$0xf]
  %v258 = vld [vmem:[%s4 + $0x4] sm:$0xf]
  %v259 = vld [vmem:[%s4 + $0x8] sm:$0xf]
  %v260 = vld [vmem:[%s4 + $0xc] sm:$0xf]
  %v261 = vld [vmem:[%s4 + $0x10] sm:$0xf]
  %v262 = vld [vmem:[%s4 + $0x14] sm:$0xf]
  %v263 = vld [vmem:[%s4 + $0x18] sm:$0xf]
  %v264 = vld [vmem:[%s4 + $0x1c] sm:$0xf]
  %v265 = vld [vmem:[%s5] sm:$0x1]
  %v267 = vperm.slane %v265, 0
  %v285 = vunpack.c.l.b16 %v26
  %v286 = vunpack.c.l.b16 %v27
  %v287 = vunpack.c.l.b16 %v28
  %v288 = vunpack.c.l.b16 %v29
  %v289 = vunpack.c.l.b16 %v30
  %v290 = vunpack.c.l.b16 %v31
  %v291 = vunpack.c.l.b16 %v32
  %v292 = vunpack.c.l.b16 %v33
  %v293 = vunpack.c.l.b16 %v34
  %v294 = vunpack.c.l.b16 %v35
  %v295 = vunpack.c.l.b16 %v36
  %v296 = vunpack.c.l.b16 %v37
  %v297 = vunpack.c.l.b16 %v38
  %v298 = vunpack.c.l.b16 %v39
  %v299 = vunpack.c.l.b16 %v40
  %v300 = vunpack.c.l.b16 %v41
  %v301 = vpack.c.b16 %v286, %v285
  %v302 = vpack.c.b16 %v288, %v287
  %v303 = vpack.c.b16 %v290, %v289
  %v304 = vpack.c.b16 %v292, %v291
  %v305 = vpack.c.b16 %v294, %v293
  %v306 = vpack.c.b16 %v296, %v295
  %v307 = vpack.c.b16 %v298, %v297
  %v308 = vpack.c.b16 %v300, %v299
  %v317 = vunpack.c.l.b16 %v257
  %v318 = vunpack.c.l.b16 %v258
  %v319 = vunpack.c.l.b16 %v259
  %v320 = vunpack.c.l.b16 %v260
  %v321 = vunpack.c.l.b16 %v261
  %v322 = vunpack.c.l.b16 %v262
  %v323 = vunpack.c.l.b16 %v263
  %v324 = vunpack.c.l.b16 %v264
  %v325 = vpack.c.b16 %v318, %v317
  %v326 = vpack.c.b16 %v320, %v319
  %v327 = vpack.c.b16 %v322, %v321
  %v328 = vpack.c.b16 %v324, %v323
  %v334 = vsel %vm150, %v301, 0
  %v337 = vsel %vm150, %v302, 0
  %v340 = vsel %vm150, %v303, 0
  %v343 = vsel %vm150, %v304, 0
  %v346 = vsel %vm150, %v305, 0
  %v349 = vsel %vm150, %v306, 0
  %v352 = vsel %vm150, %v307, 0
  %v355 = vsel %vm150, %v308, 0
  %357 = vmatpush.bf16.msra.mxu0 0
  %358 = vmatpush.bf16.msra.mxu0 0
  %359 = vmatpush.bf16.msra.mxu0 0
  %360 = vmatpush.bf16.msra.mxu0 0
  %361 = vmatpush.bf16.msra.mxu0 %v328
  %362 = vmatpush.bf16.msra.mxu0 %v327
  %363 = vmatpush.bf16.msra.mxu0 %v326
  %364 = vmatpush.bf16.msra.mxu0 %v325
  %365 = vmatmul.bf16.gmra.mxu0 %v334
  %v366 = vpop.f32.mrf.mxu0
  %v367 = vadd.f32 %v267, %v366
  %v368 = vpop.f32.mrf.mxu0
  %v369 = vadd.f32 %v267, %v368
  %370 = vmatmul.bf16.gmra.mxu0 %v337
  %v371 = vpop.f32.mrf.mxu0
  %v372 = vadd.f32 %v267, %v371
  %v373 = vpop.f32.mrf.mxu0
  %v374 = vadd.f32 %v267, %v373
  %375 = vmatmul.bf16.gmra.mxu0 %v340
  %v376 = vpop.f32.mrf.mxu0
  %v377 = vadd.f32 %v267, %v376
  %v378 = vpop.f32.mrf.mxu0
  %v379 = vadd.f32 %v267, %v378
  %380 = vmatmul.bf16.gmra.mxu0 %v343
  %v381 = vpop.f32.mrf.mxu0
  %v382 = vadd.f32 %v267, %v381
  %v383 = vpop.f32.mrf.mxu0
  %v384 = vadd.f32 %v267, %v383
  %385 = vmatmul.bf16.gmra.mxu0 %v346
  %v386 = vpop.f32.mrf.mxu0
  %v387 = vadd.f32 %v267, %v386
  %v388 = vpop.f32.mrf.mxu0
  %v389 = vadd.f32 %v267, %v388
  %390 = vmatmul.bf16.gmra.mxu0 %v349
  %v391 = vpop.f32.mrf.mxu0
  %v392 = vadd.f32 %v267, %v391
  %v393 = vpop.f32.mrf.mxu0
  %v394 = vadd.f32 %v267, %v393
  %395 = vmatmul.bf16.gmra.mxu0 %v352
  %v396 = vpop.f32.mrf.mxu0
  %v397 = vadd.f32 %v267, %v396
  %v398 = vpop.f32.mrf.mxu0
  %v399 = vadd.f32 %v267, %v398
  %400 = vmatmul.bf16.gmra.mxu0 %v355
  %v401 = vpop.f32.mrf.mxu0
  %v402 = vadd.f32 %v267, %v401
  %v403 = vpop.f32.mrf.mxu0
  %v404 = vadd.f32 %v267, %v403
  %405 = vdwg.mxu0
  %v406 = vpack.c.bf16 %v367, %v367
  %v407 = vpack.c.bf16 %v369, %v369
  %v408 = vpack.c.bf16 %v372, %v372
  %v409 = vpack.c.bf16 %v374, %v374
  %v410 = vpack.c.bf16 %v377, %v377
  %v411 = vpack.c.bf16 %v379, %v379
  %v412 = vpack.c.bf16 %v382, %v382
  %v413 = vpack.c.bf16 %v384, %v384
  %v414 = vpack.c.bf16 %v387, %v387
  %v415 = vpack.c.bf16 %v389, %v389
  %v416 = vpack.c.bf16 %v392, %v392
  %v417 = vpack.c.bf16 %v394, %v394
  %v418 = vpack.c.bf16 %v397, %v397
  %v419 = vpack.c.bf16 %v399, %v399
  %v420 = vpack.c.bf16 %v402, %v402
  %v421 = vpack.c.bf16 %v404, %v404
  %422 = vst.msk [vmem:[%s7] sm:$0xf] %vm240, %v406
  %423 = vst.msk [vmem:[%s7 + $0x4] sm:$0xf] %vm240, %v407
  %424 = vst.msk [vmem:[%s7 + $0x8] sm:$0xf] %vm240, %v408
  %425 = vst.msk [vmem:[%s7 + $0xc] sm:$0xf] %vm240, %v409
  %426 = vst.msk [vmem:[%s7 + $0x10] sm:$0xf] %vm240, %v410
  %427 = vst.msk [vmem:[%s7 + $0x14] sm:$0xf] %vm240, %v411
  %428 = vst.msk [vmem:[%s7 + $0x18] sm:$0xf] %vm240, %v412
  %429 = vst.msk [vmem:[%s7 + $0x1c] sm:$0xf] %vm240, %v413
  %430 = vst.msk [vmem:[%s7 + $0x20] sm:$0xf] %vm240, %v414
  %431 = vst.msk [vmem:[%s7 + $0x24] sm:$0xf] %vm240, %v415
  %432 = vst.msk [vmem:[%s7 + $0x28] sm:$0xf] %vm240, %v416
  %433 = vst.msk [vmem:[%s7 + $0x2c] sm:$0xf] %vm240, %v417
  %434 = vst.msk [vmem:[%s7 + $0x30] sm:$0xf] %vm240, %v418
  %435 = vst.msk [vmem:[%s7 + $0x34] sm:$0xf] %vm240, %v419
  %436 = vst.msk [vmem:[%s7 + $0x38] sm:$0xf] %vm240, %v420
  %437 = vst.msk [vmem:[%s7 + $0x3c] sm:$0xf] %vm240, %v421
  // Predicated region
  $region26: #{query_transformer_forward.17} parent=0 // pred_check
    _
  $region27: #{query_transformer_forward.17} parent=0 // pred_check_branch
    %439 = sbr.rel (0) target = $region29
  $region28: #{query_transformer_forward.17} parent=0 // pred_region
    _
  $region29: #{query_transformer_forward.17} parent=0 // pred_fallthru
    _
  // Predicated region
  $region30: #{query_transformer_forward.17} parent=0 // pred_check
    _
  $region31: #{query_transformer_forward.17} parent=0 // pred_check_branch
    %441 = sbr.rel (0) target = $region33
  $region32: #{query_transformer_forward.17} parent=0 // pred_region
    _
  $region33: #{query_transformer_forward.17} parent=0 // pred_fallthru
    _
  // Predicated region
  $region34: #{query_transformer_forward.17} parent=0 // pred_check
    _
  $region35: #{query_transformer_forward.17} parent=0 // pred_check_branch
    %443 = sbr.rel (0) target = $region37
  $region36: #{query_transformer_forward.17} parent=0 // pred_region
    _
  $region37: #{query_transformer_forward.17} parent=0 // pred_fallthru
    _
  // Predicated region
  $region38: #{query_transformer_forward.17} parent=0 // pred_check
    _
  $region39: #{query_transformer_forward.17} parent=0 // pred_check_branch
    %445 = sbr.rel (0) target = $region41
  $region40: #{query_transformer_forward.17} parent=0 // pred_region
    _
  $region41: #{query_transformer_forward.17} parent=0 // pred_fallthru
    _

// kernel: query_transformer_forward.14
$region0: #{query_transformer_forward.14}
  #allocation0 [shape = 'u32[]', space=smem, size = 0x4, offset = 0x4, fixed_abs, tag = 'smem constant byte address 0x4 - core index']
  #allocation1 [shape = 'u32[72,128]{1,0:T(1,128)}', space=vmem, size = 0x9000, scoped, tag = 'internal scratch']
  %s0 = inlined_call_operand.vmem [shape: bf16[16,64], index: 0, kind: input, shape index: {}]
  %s1 = inlined_call_operand.vmem [shape: bf16[64,128], index: 1, kind: input, shape index: {}]
  %s2 = inlined_call_operand.vmem [shape: f32[1,128], index: 2, kind: input, shape index: {}]
  %s3 = inlined_call_operand.vmem [shape: bf16[16,128], index: 3, kind: output, shape index: {}]
  %s4 = sld [smem:[#allocation0]]
  $region22: #{query_transformer_forward.14} parent=0
    _
  %s6 = ssub.s32 1, %s4
  %s7 = scalar_select 0, %s6, %s4
  // Predicated region
  $region2: #{query_transformer_forward.14} parent=0 // pred_check
    _
  $region3: #{query_transformer_forward.14} parent=0 // pred_check_branch
    %9 = sbr.rel (0) target = $region5
  $region4: #{query_transformer_forward.14} parent=0 // pred_region
    _
  $region5: #{query_transformer_forward.14} parent=0 // pred_fallthru
    _
  // Predicated region
  $region6: #{query_transformer_forward.14} parent=0 // pred_check
    _
  $region7: #{query_transformer_forward.14} parent=0 // pred_check_branch
    %11 = sbr.rel (0) target = $region9
  $region8: #{query_transformer_forward.14} parent=0 // pred_region
    _
  $region9: #{query_transformer_forward.14} parent=0 // pred_fallthru
    _
  // Predicated region
  $region10: #{query_transformer_forward.14} parent=0 // pred_check
    _
  $region11: #{query_transformer_forward.14} parent=0 // pred_check_branch
    %13 = sbr.rel (0) target = $region13
  $region12: #{query_transformer_forward.14} parent=0 // pred_region
    _
  $region13: #{query_transformer_forward.14} parent=0 // pred_fallthru
    _
  %v15 = vld [vmem:[%s0] sm:$0xf]
  %v16 = vld [vmem:[%s0 + $0x4] sm:$0xf]
  %v17 = vld [vmem:[%s1] sm:$0xf]
  %v18 = vld [vmem:[%s1 + $0x4] sm:$0xf]
  %v19 = vld [vmem:[%s1 + $0x8] sm:$0xf]
  %v20 = vld [vmem:[%s1 + $0xc] sm:$0xf]
  %v21 = vld [vmem:[%s1 + $0x10] sm:$0xf]
  %v22 = vld [vmem:[%s1 + $0x14] sm:$0xf]
  %v23 = vld [vmem:[%s1 + $0x18] sm:$0xf]
  %v24 = vld [vmem:[%s1 + $0x1c] sm:$0xf]
  %v25 = vld [vmem:[%s2] sm:$0x1]
  %v27 = vperm.slane %v25, 0
  %v31 = vunpack.c.l.b16 %v15
  %v32 = vunpack.c.l.b16 %v16
  %v33 = vpack.c.b16 %v32, %v31
  %v42 = vunpack.c.l.b16 %v17
  %v43 = vunpack.c.l.b16 %v18
  %v44 = vunpack.c.l.b16 %v19
  %v45 = vunpack.c.l.b16 %v20
  %v46 = vunpack.c.l.b16 %v21
  %v47 = vunpack.c.l.b16 %v22
  %v48 = vunpack.c.l.b16 %v23
  %v49 = vunpack.c.l.b16 %v24
  %v50 = vpack.c.b16 %v43, %v42
  %v51 = vpack.c.b16 %v45, %v44
  %v52 = vpack.c.b16 %v47, %v46
  %v53 = vpack.c.b16 %v49, %v48
  %vm58 = vcmask 523264
  %v60 = vsel %vm58, %v33, 0
  %62 = vmatpush.bf16.msra.mxu0 0
  %63 = vmatpush.bf16.msra.mxu0 0
  %64 = vmatpush.bf16.msra.mxu0 0
  %65 = vmatpush.bf16.msra.mxu0 0
  %66 = vmatpush.bf16.msra.mxu0 %v53
  %67 = vmatpush.bf16.msra.mxu0 %v52
  %68 = vmatpush.bf16.msra.mxu0 %v51
  %69 = vmatpush.bf16.msra.mxu0 %v50
  %70 = vmatmul.bf16.gmra.mxu0 %v60
  %v71 = vpop.f32.mrf.mxu0
  %v72 = vadd.f32 %v27, %v71
  %v73 = vpop.f32.mrf.mxu0
  %v74 = vadd.f32 %v27, %v73
  %75 = vdwg.mxu0
  %v76 = vpack.c.bf16 %v72, %v72
  %v77 = vpack.c.bf16 %v74, %v74
  %78 = vst [vmem:[%s3] sm:$0xf] %v76
  %79 = vst [vmem:[%s3 + $0x4] sm:$0xf] %v77
  // Predicated region
  $region14: #{query_transformer_forward.14} parent=0 // pred_check
    _
  $region15: #{query_transformer_forward.14} parent=0 // pred_check_branch
    %81 = sbr.rel (0) target = $region17
  $region16: #{query_transformer_forward.14} parent=0 // pred_region
    _
  $region17: #{query_transformer_forward.14} parent=0 // pred_fallthru
    _
  // Predicated region
  $region18: #{query_transformer_forward.14} parent=0 // pred_check
    _
  $region19: #{query_transformer_forward.14} parent=0 // pred_check_branch
    %83 = sbr.rel (0) target = $region21
  $region20: #{query_transformer_forward.14} parent=0 // pred_region
    _
  $region21: #{query_transformer_forward.14} parent=0 // pred_fallthru
    _

// kernel: query_transformer_forward.16
$region0: #{query_transformer_forward.16}
  #allocation0 [shape = 'u32[]', space=smem, size = 0x4, offset = 0x4, fixed_abs, tag = 'smem constant byte address 0x4 - core index']
  #allocation1 [shape = 'u32[72,128]{1,0:T(1,128)}', space=vmem, size = 0x9000, scoped, tag = 'internal scratch']
  %s0 = inlined_call_operand.vmem [shape: bf16[16,64], index: 0, kind: input, shape index: {}]
  %s1 = inlined_call_operand.vmem [shape: bf16[16,64], index: 1, kind: input, shape index: {}]
  %s2 = inlined_call_operand.vmem [shape: f32[1,64], index: 2, kind: input, shape index: {}]
  %s3 = inlined_call_operand.vmem [shape: f32[1,64], index: 3, kind: input, shape index: {}]
  %s4 = inlined_call_operand.vmem [shape: bf16[64,64], index: 4, kind: input, shape index: {}]
  %s5 = inlined_call_operand.vmem [shape: f32[1,64], index: 5, kind: input, shape index: {}]
  %s6 = inlined_call_operand.vmem [shape: bf16[16,64], index: 6, kind: output, shape index: {0}]
  %s7 = inlined_call_operand.vmem [shape: bf16[16,64], index: 7, kind: output, shape index: {1}]
  %8 = xla_tuple %s6, %s7
  %s9 = sld [smem:[#allocation0]]
  $region42: #{query_transformer_forward.16} parent=0
    _
  %s11 = ssub.s32 1, %s9
  %s12 = scalar_select 0, %s11, %s9
  // Predicated region
  $region2: #{query_transformer_forward.16} parent=0 // pred_check
    _
  $region3: #{query_transformer_forward.16} parent=0 // pred_check_branch
    %14 = sbr.rel (0) target = $region5
  $region4: #{query_transformer_forward.16} parent=0 // pred_region
    _
  $region5: #{query_transformer_forward.16} parent=0 // pred_fallthru
    _
  // Predicated region
  $region6: #{query_transformer_forward.16} parent=0 // pred_check
    _
  $region7: #{query_transformer_forward.16} parent=0 // pred_check_branch
    %16 = sbr.rel (0) target = $region9
  $region8: #{query_transformer_forward.16} parent=0 // pred_region
    _
  $region9: #{query_transformer_forward.16} parent=0 // pred_fallthru
    _
  // Predicated region
  $region10: #{query_transformer_forward.16} parent=0 // pred_check
    _
  $region11: #{query_transformer_forward.16} parent=0 // pred_check_branch
    %18 = sbr.rel (0) target = $region13
  $region12: #{query_transformer_forward.16} parent=0 // pred_region
    _
  $region13: #{query_transformer_forward.16} parent=0 // pred_fallthru
    _
  // Predicated region
  $region14: #{query_transformer_forward.16} parent=0 // pred_check
    _
  $region15: #{query_transformer_forward.16} parent=0 // pred_check_branch
    %20 = sbr.rel (0) target = $region17
  $region16: #{query_transformer_forward.16} parent=0 // pred_region
    _
  $region17: #{query_transformer_forward.16} parent=0 // pred_fallthru
    _
  // Predicated region
  $region18: #{query_transformer_forward.16} parent=0 // pred_check
    _
  $region19: #{query_transformer_forward.16} parent=0 // pred_check_branch
    %22 = sbr.rel (0) target = $region21
  $region20: #{query_transformer_forward.16} parent=0 // pred_region
    _
  $region21: #{query_transformer_forward.16} parent=0 // pred_fallthru
    _
  // Predicated region
  $region22: #{query_transformer_forward.16} parent=0 // pred_check
    _
  $region23: #{query_transformer_forward.16} parent=0 // pred_check_branch
    %24 = sbr.rel (0) target = $region25
  $region24: #{query_transformer_forward.16} parent=0 // pred_region
    _
  $region25: #{query_transformer_forward.16} parent=0 // pred_fallthru
    _
  %v26 = vld [vmem:[%s0] sm:$0xf]
  %v27 = vld [vmem:[%s0 + $0x4] sm:$0xf]
  %v28 = vunpack.c.l.bf16 %v26
  %v29 = vunpack.c.l.bf16 %v27
  %vm30 = vcmask 523264
  %v31 = vsel %vm30, %v28, 0.0
  %32 = vadd.xlane.f32.xlu0 %v31
  %v33 = vpop.xlane.xlu0 %32
  %v34 = vsel %vm30, %v29, 0.0
  %35 = vadd.xlane.f32.xlu0 %v34
  %v36 = vpop.xlane.xlu0 %35
  %v37 = vrcp.pop 64.0
  %v38 = vmul.f32 64.0, %v37
  %v39 = vsub.f32 1.0, %v38
  %v40 = vmul.f32 %v37, %v39
  %v41 = vadd.f32 %v37, %v40
  %vm42 = vweird.f32 %v37
  %v43 = vsel %vm42, %v37, %v41
  %v44 = vmul.f32 %v33, %v43
  %v45 = vmul.f32 %v36, %v43
  %v46 = vsub.f32 %v28, %v44
  %v47 = vsub.f32 %v29, %v45
  %v48 = vmul.f32 %v46, %v46
  %v49 = vmul.f32 %v47, %v47
  %v50 = vsel %vm30, %v48, 0.0
  %51 = vadd.xlane.f32.xlu0 %v50
  %v52 = vpop.xlane.xlu0 %51
  %v53 = vsel %vm30, %v49, 0.0
  %54 = vadd.xlane.f32.xlu0 %v53
  %v55 = vpop.xlane.xlu0 %54
  %v56 = vmul.f32 %v52, %v43
  %v57 = vmul.f32 %v55, %v43
  %v58 = vadd.f32 %v56, 1e-05
  %v59 = vadd.f32 %v57, 1e-05
  %v60 = vrsqrt.pop %v58
  %v61 = vmul.f32 %v60, %v58
  %v62 = vmul.f32 %v61, %v60
  %v63 = vmul.f32 0.5, %v62
  %v64 = vsub.f32 1.5, %v63
  %v65 = vmul.f32 %v60, %v64
  %vm66 = vweird.f32 %v58
  %vm67 = vweird.f32 %v60
  %vm68 = vmor %vm66, %vm67
  %v69 = vsel %vm68, %v60, %v65
  %v70 = vrsqrt.pop %v59
  %v71 = vmul.f32 %v70, %v59
  %v72 = vmul.f32 %v71, %v70
  %v73 = vmul.f32 0.5, %v72
  %v74 = vsub.f32 1.5, %v73
  %v75 = vmul.f32 %v70, %v74
  %vm76 = vweird.f32 %v59
  %vm77 = vweird.f32 %v70
  %vm78 = vmor %vm76, %vm77
  %v79 = vsel %vm78, %v70, %v75
  %v80 = vmul.f32 %v46, %v69
  %v81 = vmul.f32 %v47, %v79
  %v82 = vld [vmem:[%s2] sm:$0x1]
  %v84 = vperm.slane %v82, 0
  %v86 = vmul.f32 %v80, %v84
  %v87 = vmul.f32 %v81, %v84
  %v88 = vld [vmem:[%s3] sm:$0x1]
  %v90 = vperm.slane %v88, 0
  %v92 = vadd.f32 %v86, %v90
  %v93 = vadd.f32 %v87, %v90
  %v94 = vpack.c.bf16 %v92, %v92
  %v95 = vpack.c.bf16 %v93, %v93
  %vm96 = vcmask 519168
  %97 = vst.msk [vmem:[%s6] sm:$0xf] %vm96, %v94
  %98 = vst.msk [vmem:[%s6 + $0x4] sm:$0xf] %vm96, %v95
  %v99 = vld [vmem:[%s1] sm:$0xf]
  %v100 = vld [vmem:[%s1 + $0x4] sm:$0xf]
  %v101 = vunpack.c.l.bf16 %v99
  %v102 = vunpack.c.l.bf16 %v100
  %v103 = vadd.f32 %v92, %v101
  %v104 = vadd.f32 %v93, %v102
  %v105 = vpack.c.bf16 %v104, %v103
  %v106 = vld [vmem:[%s4] sm:$0xf]
  %v107 = vld [vmem:[%s4 + $0x4] sm:$0xf]
  %v108 = vld [vmem:[%s4 + $0x8] sm:$0xf]
  %v109 = vld [vmem:[%s4 + $0xc] sm:$0xf]
  %v110 = vld [vmem:[%s4 + $0x10] sm:$0xf]
  %v111 = vld [vmem:[%s4 + $0x14] sm:$0xf]
  %v112 = vld [vmem:[%s4 + $0x18] sm:$0xf]
  %v113 = vld [vmem:[%s4 + $0x1c] sm:$0xf]
  %v114 = vld [vmem:[%s5] sm:$0x1]
  %v116 = vperm.slane %v114, 0
  %v126 = vunpack.c.l.b16 %v106
  %v127 = vunpack.c.l.b16 %v107
  %v128 = vunpack.c.l.b16 %v108
  %v129 = vunpack.c.l.b16 %v109
  %v130 = vunpack.c.l.b16 %v110
  %v131 = vunpack.c.l.b16 %v111
  %v132 = vunpack.c.l.b16 %v112
  %v133 = vunpack.c.l.b16 %v113
  %v134 = vpack.c.b16 %v127, %v126
  %v135 = vpack.c.b16 %v129, %v128
  %v136 = vpack.c.b16 %v131, %v130
  %v137 = vpack.c.b16 %v133, %v132
  %v143 = vsel %vm30, %v105, 0
  %145 = vmatpush.bf16.msra.mxu0 0
  %146 = vmatpush.bf16.msra.mxu0 0
  %147 = vmatpush.bf16.msra.mxu0 0
  %148 = vmatpush.bf16.msra.mxu0 0
  %149 = vmatpush.bf16.msra.mxu0 %v137
  %150 = vmatpush.bf16.msra.mxu0 %v136
  %151 = vmatpush.bf16.msra.mxu0 %v135
  %152 = vmatpush.bf16.msra.mxu0 %v134
  %153 = vmatmul.bf16.gmra.mxu0 %v143
  %v154 = vpop.f32.mrf.mxu0
  %v155 = vadd.f32 %v116, %v154
  %v156 = vpop.f32.mrf.mxu0
  %v157 = vadd.f32 %v116, %v156
  %158 = vdwg.mxu0
  %v159 = vpack.c.bf16 %v155, %v155
  %v160 = vpack.c.bf16 %v157, %v157
  %161 = vst.msk [vmem:[%s7] sm:$0xf] %vm96, %v159
  %162 = vst.msk [vmem:[%s7 + $0x4] sm:$0xf] %vm96, %v160
  // Predicated region
  $region26: #{query_transformer_forward.16} parent=0 // pred_check
    _
  $region27: #{query_transformer_forward.16} parent=0 // pred_check_branch
    %164 = sbr.rel (0) target = $region29
  $region28: #{query_transformer_forward.16} parent=0 // pred_region
    _
  $region29: #{query_transformer_forward.16} parent=0 // pred_fallthru
    _
  // Predicated region
  $region30: #{query_transformer_forward.16} parent=0 // pred_check
    _
  $region31: #{query_transformer_forward.16} parent=0 // pred_check_branch
    %166 = sbr.rel (0) target = $region33
  $region32: #{query_transformer_forward.16} parent=0 // pred_region
    _
  $region33: #{query_transformer_forward.16} parent=0 // pred_fallthru
    _
  // Predicated region
  $region34: #{query_transformer_forward.16} parent=0 // pred_check
    _
  $region35: #{query_transformer_forward.16} parent=0 // pred_check_branch
    %168 = sbr.rel (0) target = $region37
  $region36: #{query_transformer_forward.16} parent=0 // pred_region
    _
  $region37: #{query_transformer_forward.16} parent=0 // pred_fallthru
    _
  // Predicated region
  $region38: #{query_transformer_forward.16} parent=0 // pred_check
    _
  $region39: #{query_transformer_forward.16} parent=0 // pred_check_branch
    %170 = sbr.rel (0) target = $region41
  $region40: #{query_transformer_forward.16} parent=0 // pred_region
    _
  $region41: #{query_transformer_forward.16} parent=0 // pred_fallthru
    _

// kernel: query_transformer_forward.19
$region0: #{query_transformer_forward.19}
  #allocation0 [shape = 'u32[]', space=smem, size = 0x4, offset = 0x4, fixed_abs, tag = 'smem constant byte address 0x4 - core index']
  #allocation1 [shape = 'u32[72,128]{1,0:T(1,128)}', space=vmem, size = 0x9000, scoped, tag = 'internal scratch']
  %s0 = inlined_call_operand.vmem [shape: bf16[16,64], index: 0, kind: input, shape index: {}]
  %s1 = inlined_call_operand.vmem [shape: bf16[16,64], index: 1, kind: input, shape index: {}]
  %s2 = inlined_call_operand.vmem [shape: f32[1,64], index: 2, kind: input, shape index: {}]
  %s3 = inlined_call_operand.vmem [shape: f32[1,64], index: 3, kind: input, shape index: {}]
  %s4 = inlined_call_operand.vmem [shape: bf16[64,128], index: 4, kind: input, shape index: {}]
  %s5 = inlined_call_operand.vmem [shape: f32[1,128], index: 5, kind: input, shape index: {}]
  %s6 = inlined_call_operand.vmem [shape: bf16[64,64], index: 6, kind: input, shape index: {}]
  %s7 = inlined_call_operand.vmem [shape: f32[1,64], index: 7, kind: input, shape index: {}]
  %s8 = inlined_call_operand.vmem [shape: bf16[16,64], index: 8, kind: output, shape index: {0}]
  %s9 = inlined_call_operand.vmem [shape: bf16[16,128], index: 9, kind: output, shape index: {1}]
  %s10 = inlined_call_operand.vmem [shape: bf16[16,64], index: 10, kind: output, shape index: {2}]
  %11 = xla_tuple %s8, %s9, %s10
  %s12 = sld [smem:[#allocation0]]
  $region58: #{query_transformer_forward.19} parent=0
    _
  %s14 = ssub.s32 1, %s12
  %s15 = scalar_select 0, %s14, %s12
  // Predicated region
  $region2: #{query_transformer_forward.19} parent=0 // pred_check
    _
  $region3: #{query_transformer_forward.19} parent=0 // pred_check_branch
    %17 = sbr.rel (0) target = $region5
  $region4: #{query_transformer_forward.19} parent=0 // pred_region
    _
  $region5: #{query_transformer_forward.19} parent=0 // pred_fallthru
    _
  // Predicated region
  $region6: #{query_transformer_forward.19} parent=0 // pred_check
    _
  $region7: #{query_transformer_forward.19} parent=0 // pred_check_branch
    %19 = sbr.rel (0) target = $region9
  $region8: #{query_transformer_forward.19} parent=0 // pred_region
    _
  $region9: #{query_transformer_forward.19} parent=0 // pred_fallthru
    _
  // Predicated region
  $region10: #{query_transformer_forward.19} parent=0 // pred_check
    _
  $region11: #{query_transformer_forward.19} parent=0 // pred_check_branch
    %21 = sbr.rel (0) target = $region13
  $region12: #{query_transformer_forward.19} parent=0 // pred_region
    _
  $region13: #{query_transformer_forward.19} parent=0 // pred_fallthru
    _
  // Predicated region
  $region14: #{query_transformer_forward.19} parent=0 // pred_check
    _
  $region15: #{query_transformer_forward.19} parent=0 // pred_check_branch
    %23 = sbr.rel (0) target = $region17
  $region16: #{query_transformer_forward.19} parent=0 // pred_region
    _
  $region17: #{query_transformer_forward.19} parent=0 // pred_fallthru
    _
  // Predicated region
  $region18: #{query_transformer_forward.19} parent=0 // pred_check
    _
  $region19: #{query_transformer_forward.19} parent=0 // pred_check_branch
    %25 = sbr.rel (0) target = $region21
  $region20: #{query_transformer_forward.19} parent=0 // pred_region
    _
  $region21: #{query_transformer_forward.19} parent=0 // pred_fallthru
    _
  // Predicated region
  $region22: #{query_transformer_forward.19} parent=0 // pred_check
    _
  $region23: #{query_transformer_forward.19} parent=0 // pred_check_branch
    %27 = sbr.rel (0) target = $region25
  $region24: #{query_transformer_forward.19} parent=0 // pred_region
    _
  $region25: #{query_transformer_forward.19} parent=0 // pred_fallthru
    _
  // Predicated region
  $region26: #{query_transformer_forward.19} parent=0 // pred_check
    _
  $region27: #{query_transformer_forward.19} parent=0 // pred_check_branch
    %29 = sbr.rel (0) target = $region29
  $region28: #{query_transformer_forward.19} parent=0 // pred_region
    _
  $region29: #{query_transformer_forward.19} parent=0 // pred_fallthru
    _
  // Predicated region
  $region30: #{query_transformer_forward.19} parent=0 // pred_check
    _
  $region31: #{query_transformer_forward.19} parent=0 // pred_check_branch
    %31 = sbr.rel (0) target = $region33
  $region32: #{query_transformer_forward.19} parent=0 // pred_region
    _
  $region33: #{query_transformer_forward.19} parent=0 // pred_fallthru
    _
  %v33 = vld [vmem:[%s0] sm:$0xf]
  %v34 = vld [vmem:[%s0 + $0x4] sm:$0xf]
  %v35 = vunpack.c.l.bf16 %v33
  %v36 = vunpack.c.l.bf16 %v34
  %vm37 = vcmask 523264
  %v38 = vsel %vm37, %v35, 0.0
  %39 = vadd.xlane.f32.xlu0 %v38
  %v40 = vpop.xlane.xlu0 %39
  %v41 = vsel %vm37, %v36, 0.0
  %42 = vadd.xlane.f32.xlu0 %v41
  %v43 = vpop.xlane.xlu0 %42
  %v44 = vrcp.pop 64.0
  %v45 = vmul.f32 64.0, %v44
  %v46 = vsub.f32 1.0, %v45
  %v47 = vmul.f32 %v44, %v46
  %v48 = vadd.f32 %v44, %v47
  %vm49 = vweird.f32 %v44
  %v50 = vsel %vm49, %v44, %v48
  %v51 = vmul.f32 %v40, %v50
  %v52 = vmul.f32 %v43, %v50
  %v53 = vsub.f32 %v35, %v51
  %v54 = vsub.f32 %v36, %v52
  %v55 = vmul.f32 %v53, %v53
  %v56 = vmul.f32 %v54, %v54
  %v57 = vsel %vm37, %v55, 0.0
  %58 = vadd.xlane.f32.xlu0 %v57
  %v59 = vpop.xlane.xlu0 %58
  %v60 = vsel %vm37, %v56, 0.0
  %61 = vadd.xlane.f32.xlu0 %v60
  %v62 = vpop.xlane.xlu0 %61
  %v63 = vmul.f32 %v59, %v50
  %v64 = vmul.f32 %v62, %v50
  %v65 = vadd.f32 %v63, 1e-05
  %v66 = vadd.f32 %v64, 1e-05
  %v67 = vrsqrt.pop %v65
  %v68 = vmul.f32 %v67, %v65
  %v69 = vmul.f32 %v68, %v67
  %v70 = vmul.f32 0.5, %v69
  %v71 = vsub.f32 1.5, %v70
  %v72 = vmul.f32 %v67, %v71
  %vm73 = vweird.f32 %v65
  %vm74 = vweird.f32 %v67
  %vm75 = vmor %vm73, %vm74
  %v76 = vsel %vm75, %v67, %v72
  %v77 = vrsqrt.pop %v66
  %v78 = vmul.f32 %v77, %v66
  %v79 = vmul.f32 %v78, %v77
  %v80 = vmul.f32 0.5, %v79
  %v81 = vsub.f32 1.5, %v80
  %v82 = vmul.f32 %v77, %v81
  %vm83 = vweird.f32 %v66
  %vm84 = vweird.f32 %v77
  %vm85 = vmor %vm83, %vm84
  %v86 = vsel %vm85, %v77, %v82
  %v87 = vmul.f32 %v53, %v76
  %v88 = vmul.f32 %v54, %v86
  %v89 = vld [vmem:[%s2] sm:$0x1]
  %v91 = vperm.slane %v89, 0
  %v93 = vmul.f32 %v87, %v91
  %v94 = vmul.f32 %v88, %v91
  %v95 = vld [vmem:[%s3] sm:$0x1]
  %v97 = vperm.slane %v95, 0
  %v99 = vadd.f32 %v93, %v97
  %v100 = vadd.f32 %v94, %v97
  %v101 = vpack.c.bf16 %v99, %v99
  %v102 = vpack.c.bf16 %v100, %v100
  %vm103 = vcmask 519168
  %104 = vst.msk [vmem:[%s8] sm:$0xf] %vm103, %v101
  %105 = vst.msk [vmem:[%s8 + $0x4] sm:$0xf] %vm103, %v102
  %v106 = vld [vmem:[%s1] sm:$0xf]
  %v107 = vld [vmem:[%s1 + $0x4] sm:$0xf]
  %v108 = vunpack.c.l.bf16 %v106
  %v109 = vunpack.c.l.bf16 %v107
  %v110 = vadd.f32 %v99, %v108
  %v111 = vadd.f32 %v100, %v109
  %v112 = vpack.c.bf16 %v111, %v110
  %v113 = vld [vmem:[%s4] sm:$0xf]
  %v114 = vld [vmem:[%s4 + $0x4] sm:$0xf]
  %v115 = vld [vmem:[%s4 + $0x8] sm:$0xf]
  %v116 = vld [vmem:[%s4 + $0xc] sm:$0xf]
  %v117 = vld [vmem:[%s4 + $0x10] sm:$0xf]
  %v118 = vld [vmem:[%s4 + $0x14] sm:$0xf]
  %v119 = vld [vmem:[%s4 + $0x18] sm:$0xf]
  %v120 = vld [vmem:[%s4 + $0x1c] sm:$0xf]
  %v121 = vld [vmem:[%s5] sm:$0x1]
  %v123 = vperm.slane %v121, 0
  %v133 = vunpack.c.l.b16 %v113
  %v134 = vunpack.c.l.b16 %v114
  %v135 = vunpack.c.l.b16 %v115
  %v136 = vunpack.c.l.b16 %v116
  %v137 = vunpack.c.l.b16 %v117
  %v138 = vunpack.c.l.b16 %v118
  %v139 = vunpack.c.l.b16 %v119
  %v140 = vunpack.c.l.b16 %v120
  %v141 = vpack.c.b16 %v134, %v133
  %v142 = vpack.c.b16 %v136, %v135
  %v143 = vpack.c.b16 %v138, %v137
  %v144 = vpack.c.b16 %v140, %v139
  %v150 = vsel %vm37, %v112, 0
  %152 = vmatpush.bf16.msra.mxu0 0
  %153 = vmatpush.bf16.msra.mxu0 0
  %154 = vmatpush.bf16.msra.mxu0 0
  %155 = vmatpush.bf16.msra.mxu0 0
  %156 = vmatpush.bf16.msra.mxu0 %v144
  %157 = vmatpush.bf16.msra.mxu0 %v143
  %158 = vmatpush.bf16.msra.mxu0 %v142
  %159 = vmatpush.bf16.msra.mxu0 %v141
  %160 = vmatmul.bf16.gmra.mxu0 %v150
  %v161 = vpop.f32.mrf.mxu0
  %v162 = vadd.f32 %v123, %v161
  %v163 = vpop.f32.mrf.mxu0
  %v164 = vadd.f32 %v123, %v163
  %165 = vdwg.mxu0
  %v166 = vpack.c.bf16 %v162, %v162
  %v167 = vpack.c.bf16 %v164, %v164
  %168 = vst [vmem:[%s9] sm:$0xf] %v166
  %169 = vst [vmem:[%s9 + $0x4] sm:$0xf] %v167
  %v170 = vld [vmem:[%s6] sm:$0xf]
  %v171 = vld [vmem:[%s6 + $0x4] sm:$0xf]
  %v172 = vld [vmem:[%s6 + $0x8] sm:$0xf]
  %v173 = vld [vmem:[%s6 + $0xc] sm:$0xf]
  %v174 = vld [vmem:[%s6 + $0x10] sm:$0xf]
  %v175 = vld [vmem:[%s6 + $0x14] sm:$0xf]
  %v176 = vld [vmem:[%s6 + $0x18] sm:$0xf]
  %v177 = vld [vmem:[%s6 + $0x1c] sm:$0xf]
  %v178 = vld [vmem:[%s7] sm:$0x1]
  %v180 = vperm.slane %v178, 0
  %v184 = vunpack.c.l.b16 %v101
  %v185 = vunpack.c.l.b16 %v102
  %v186 = vpack.c.b16 %v185, %v184
  %v195 = vunpack.c.l.b16 %v170
  %v196 = vunpack.c.l.b16 %v171
  %v197 = vunpack.c.l.b16 %v172
  %v198 = vunpack.c.l.b16 %v173
  %v199 = vunpack.c.l.b16 %v174
  %v200 = vunpack.c.l.b16 %v175
  %v201 = vunpack.c.l.b16 %v176
  %v202 = vunpack.c.l.b16 %v177
  %v203 = vpack.c.b16 %v196, %v195
  %v204 = vpack.c.b16 %v198, %v197
  %v205 = vpack.c.b16 %v200, %v199
  %v206 = vpack.c.b16 %v202, %v201
  %v212 = vsel %vm37, %v186, 0
  %214 = vmatpush.bf16.msra.mxu0 0
  %215 = vmatpush.bf16.msra.mxu0 0
  %216 = vmatpush.bf16.msra.mxu0 0
  %217 = vmatpush.bf16.msra.mxu0 0
  %218 = vmatpush.bf16.msra.mxu0 %v206
  %219 = vmatpush.bf16.msra.mxu0 %v205
  %220 = vmatpush.bf16.msra.mxu0 %v204
  %221 = vmatpush.bf16.msra.mxu0 %v203
  %222 = vmatmul.bf16.gmra.mxu0 %v212
  %v223 = vpop.f32.mrf.mxu0
  %v224 = vadd.f32 %v180, %v223
  %v225 = vpop.f32.mrf.mxu0
  %v226 = vadd.f32 %v180, %v225
  %227 = vdwg.mxu0
  %v228 = vpack.c.bf16 %v224, %v224
  %v229 = vpack.c.bf16 %v226, %v226
  %230 = vst.msk [vmem:[%s10] sm:$0xf] %vm103, %v228
  %231 = vst.msk [vmem:[%s10 + $0x4] sm:$0xf] %vm103, %v229
  // Predicated region
  $region34: #{query_transformer_forward.19} parent=0 // pred_check
    _
  $region35: #{query_transformer_forward.19} parent=0 // pred_check_branch
    %233 = sbr.rel (0) target = $region37
  $region36: #{query_transformer_forward.19} parent=0 // pred_region
    _
  $region37: #{query_transformer_forward.19} parent=0 // pred_fallthru
    _
  // Predicated region
  $region38: #{query_transformer_forward.19} parent=0 // pred_check
    _
  $region39: #{query_transformer_forward.19} parent=0 // pred_check_branch
    %235 = sbr.rel (0) target = $region41
  $region40: #{query_transformer_forward.19} parent=0 // pred_region
    _
  $region41: #{query_transformer_forward.19} parent=0 // pred_fallthru
    _
  // Predicated region
  $region42: #{query_transformer_forward.19} parent=0 // pred_check
    _
  $region43: #{query_transformer_forward.19} parent=0 // pred_check_branch
    %237 = sbr.rel (0) target = $region45
  $region44: #{query_transformer_forward.19} parent=0 // pred_region
    _
  $region45: #{query_transformer_forward.19} parent=0 // pred_fallthru
    _
  // Predicated region
  $region46: #{query_transformer_forward.19} parent=0 // pred_check
    _
  $region47: #{query_transformer_forward.19} parent=0 // pred_check_branch
    %239 = sbr.rel (0) target = $region49
  $region48: #{query_transformer_forward.19} parent=0 // pred_region
    _
  $region49: #{query_transformer_forward.19} parent=0 // pred_fallthru
    _
  // Predicated region
  $region50: #{query_transformer_forward.19} parent=0 // pred_check
    _
  $region51: #{query_transformer_forward.19} parent=0 // pred_check_branch
    %241 = sbr.rel (0) target = $region53
  $region52: #{query_transformer_forward.19} parent=0 // pred_region
    _
  $region53: #{query_transformer_forward.19} parent=0 // pred_fallthru
    _
  // Predicated region
  $region54: #{query_transformer_forward.19} parent=0 // pred_check
    _
  $region55: #{query_transformer_forward.19} parent=0 // pred_check_branch
    %243 = sbr.rel (0) target = $region57
  $region56: #{query_transformer_forward.19} parent=0 // pred_region
    _
  $region57: #{query_transformer_forward.19} parent=0 // pred_fallthru
    _

// kernel: query_transformer_forward.21
$region0: #{query_transformer_forward.21}
  #allocation0 [shape = 'u32[]', space=smem, size = 0x4, offset = 0x4, fixed_abs, tag = 'smem constant byte address 0x4 - core index']
  #allocation1 [shape = 'u32[72,128]{1,0:T(1,128)}', space=vmem, size = 0x9000, scoped, tag = 'internal scratch']
  %s0 = inlined_call_operand.vmem [shape: bf16[16,64], index: 0, kind: input, shape index: {}]
  %s1 = inlined_call_operand.vmem [shape: f32[1,64], index: 1, kind: input, shape index: {}]
  %s2 = inlined_call_operand.vmem [shape: f32[1,64], index: 2, kind: input, shape index: {}]
  %s3 = inlined_call_operand.vmem [shape: bf16[64,64], index: 3, kind: input, shape index: {}]
  %s4 = inlined_call_operand.vmem [shape: f32[1,64], index: 4, kind: input, shape index: {}]
  %s5 = inlined_call_operand.vmem [shape: bf16[16,64], index: 5, kind: output, shape index: {}]
  %s6 = sld [smem:[#allocation0]]
  $region30: #{query_transformer_forward.21} parent=0
    _
  %s8 = ssub.s32 1, %s6
  %s9 = scalar_select 0, %s8, %s6
  // Predicated region
  $region2: #{query_transformer_forward.21} parent=0 // pred_check
    _
  $region3: #{query_transformer_forward.21} parent=0 // pred_check_branch
    %11 = sbr.rel (0) target = $region5
  $region4: #{query_transformer_forward.21} parent=0 // pred_region
    _
  $region5: #{query_transformer_forward.21} parent=0 // pred_fallthru
    _
  // Predicated region
  $region6: #{query_transformer_forward.21} parent=0 // pred_check
    _
  $region7: #{query_transformer_forward.21} parent=0 // pred_check_branch
    %13 = sbr.rel (0) target = $region9
  $region8: #{query_transformer_forward.21} parent=0 // pred_region
    _
  $region9: #{query_transformer_forward.21} parent=0 // pred_fallthru
    _
  // Predicated region
  $region10: #{query_transformer_forward.21} parent=0 // pred_check
    _
  $region11: #{query_transformer_forward.21} parent=0 // pred_check_branch
    %15 = sbr.rel (0) target = $region13
  $region12: #{query_transformer_forward.21} parent=0 // pred_region
    _
  $region13: #{query_transformer_forward.21} parent=0 // pred_fallthru
    _
  // Predicated region
  $region14: #{query_transformer_forward.21} parent=0 // pred_check
    _
  $region15: #{query_transformer_forward.21} parent=0 // pred_check_branch
    %17 = sbr.rel (0) target = $region17
  $region16: #{query_transformer_forward.21} parent=0 // pred_region
    _
  $region17: #{query_transformer_forward.21} parent=0 // pred_fallthru
    _
  // Predicated region
  $region18: #{query_transformer_forward.21} parent=0 // pred_check
    _
  $region19: #{query_transformer_forward.21} parent=0 // pred_check_branch
    %19 = sbr.rel (0) target = $region21
  $region20: #{query_transformer_forward.21} parent=0 // pred_region
    _
  $region21: #{query_transformer_forward.21} parent=0 // pred_fallthru
    _
  %v21 = vld [vmem:[%s0] sm:$0xf]
  %v22 = vld [vmem:[%s0 + $0x4] sm:$0xf]
  %v23 = vunpack.c.l.bf16 %v21
  %v24 = vunpack.c.l.bf16 %v22
  %vm25 = vcmask 523264
  %v26 = vsel %vm25, %v23, 0.0
  %27 = vadd.xlane.f32.xlu0 %v26
  %v28 = vpop.xlane.xlu0 %27
  %v29 = vsel %vm25, %v24, 0.0
  %30 = vadd.xlane.f32.xlu0 %v29
  %v31 = vpop.xlane.xlu0 %30
  %v32 = vrcp.pop 64.0
  %v33 = vmul.f32 64.0, %v32
  %v34 = vsub.f32 1.0, %v33
  %v35 = vmul.f32 %v32, %v34
  %v36 = vadd.f32 %v32, %v35
  %vm37 = vweird.f32 %v32
  %v38 = vsel %vm37, %v32, %v36
  %v39 = vmul.f32 %v28, %v38
  %v40 = vmul.f32 %v31, %v38
  %v41 = vsub.f32 %v23, %v39
  %v42 = vsub.f32 %v24, %v40
  %v43 = vmul.f32 %v41, %v41
  %v44 = vmul.f32 %v42, %v42
  %v45 = vsel %vm25, %v43, 0.0
  %46 = vadd.xlane.f32.xlu0 %v45
  %v47 = vpop.xlane.xlu0 %46
  %v48 = vsel %vm25, %v44, 0.0
  %49 = vadd.xlane.f32.xlu0 %v48
  %v50 = vpop.xlane.xlu0 %49
  %v51 = vmul.f32 %v47, %v38
  %v52 = vmul.f32 %v50, %v38
  %v53 = vadd.f32 %v51, 1e-05
  %v54 = vadd.f32 %v52, 1e-05
  %v55 = vrsqrt.pop %v53
  %v56 = vmul.f32 %v55, %v53
  %v57 = vmul.f32 %v56, %v55
  %v58 = vmul.f32 0.5, %v57
  %v59 = vsub.f32 1.5, %v58
  %v60 = vmul.f32 %v55, %v59
  %vm61 = vweird.f32 %v53
  %vm62 = vweird.f32 %v55
  %vm63 = vmor %vm61, %vm62
  %v64 = vsel %vm63, %v55, %v60
  %v65 = vrsqrt.pop %v54
  %v66 = vmul.f32 %v65, %v54
  %v67 = vmul.f32 %v66, %v65
  %v68 = vmul.f32 0.5, %v67
  %v69 = vsub.f32 1.5, %v68
  %v70 = vmul.f32 %v65, %v69
  %vm71 = vweird.f32 %v54
  %vm72 = vweird.f32 %v65
  %vm73 = vmor %vm71, %vm72
  %v74 = vsel %vm73, %v65, %v70
  %v75 = vmul.f32 %v41, %v64
  %v76 = vmul.f32 %v42, %v74
  %v77 = vld [vmem:[%s1] sm:$0x1]
  %v79 = vperm.slane %v77, 0
  %v81 = vmul.f32 %v75, %v79
  %v82 = vmul.f32 %v76, %v79
  %v83 = vld [vmem:[%s2] sm:$0x1]
  %v85 = vperm.slane %v83, 0
  %v87 = vadd.f32 %v81, %v85
  %v88 = vadd.f32 %v82, %v85
  %v89 = vpack.c.bf16 %v88, %v87
  %v90 = vld [vmem:[%s3] sm:$0xf]
  %v91 = vld [vmem:[%s3 + $0x4] sm:$0xf]
  %v92 = vld [vmem:[%s3 + $0x8] sm:$0xf]
  %v93 = vld [vmem:[%s3 + $0xc] sm:$0xf]
  %v94 = vld [vmem:[%s3 + $0x10] sm:$0xf]
  %v95 = vld [vmem:[%s3 + $0x14] sm:$0xf]
  %v96 = vld [vmem:[%s3 + $0x18] sm:$0xf]
  %v97 = vld [vmem:[%s3 + $0x1c] sm:$0xf]
  %v98 = vld [vmem:[%s4] sm:$0x1]
  %v100 = vperm.slane %v98, 0
  %v110 = vunpack.c.l.b16 %v90
  %v111 = vunpack.c.l.b16 %v91
  %v112 = vunpack.c.l.b16 %v92
  %v113 = vunpack.c.l.b16 %v93
  %v114 = vunpack.c.l.b16 %v94
  %v115 = vunpack.c.l.b16 %v95
  %v116 = vunpack.c.l.b16 %v96
  %v117 = vunpack.c.l.b16 %v97
  %v118 = vpack.c.b16 %v111, %v110
  %v119 = vpack.c.b16 %v113, %v112
  %v120 = vpack.c.b16 %v115, %v114
  %v121 = vpack.c.b16 %v117, %v116
  %v127 = vsel %vm25, %v89, 0
  %129 = vmatpush.bf16.msra.mxu0 0
  %130 = vmatpush.bf16.msra.mxu0 0
  %131 = vmatpush.bf16.msra.mxu0 0
  %132 = vmatpush.bf16.msra.mxu0 0
  %133 = vmatpush.bf16.msra.mxu0 %v121
  %134 = vmatpush.bf16.msra.mxu0 %v120
  %135 = vmatpush.bf16.msra.mxu0 %v119
  %136 = vmatpush.bf16.msra.mxu0 %v118
  %137 = vmatmul.bf16.gmra.mxu0 %v127
  %v138 = vpop.f32.mrf.mxu0
  %v139 = vadd.f32 %v100, %v138
  %v140 = vpop.f32.mrf.mxu0
  %v141 = vadd.f32 %v100, %v140
  %142 = vdwg.mxu0
  %v143 = vmax.f32 %v139, 0.0
  %v144 = vmax.f32 %v141, 0.0
  %v145 = vpack.c.bf16 %v143, %v143
  %v146 = vpack.c.bf16 %v144, %v144
  %vm147 = vcmask 519168
  %148 = vst.msk [vmem:[%s5] sm:$0xf] %vm147, %v145
  %149 = vst.msk [vmem:[%s5 + $0x4] sm:$0xf] %vm147, %v146
  // Predicated region
  $region22: #{query_transformer_forward.21} parent=0 // pred_check
    _
  $region23: #{query_transformer_forward.21} parent=0 // pred_check_branch
    %151 = sbr.rel (0) target = $region25
  $region24: #{query_transformer_forward.21} parent=0 // pred_region
    _
  $region25: #{query_transformer_forward.21} parent=0 // pred_fallthru
    _
  // Predicated region
  $region26: #{query_transformer_forward.21} parent=0 // pred_check
    _
  $region27: #{query_transformer_forward.21} parent=0 // pred_check_branch
    %153 = sbr.rel (0) target = $region29
  $region28: #{query_transformer_forward.21} parent=0 // pred_region
    _
  $region29: #{query_transformer_forward.21} parent=0 // pred_fallthru
    _

// kernel: query_transformer_forward.18
$region0: #{query_transformer_forward.18}
  #allocation0 [shape = 'u32[]', space=smem, size = 0x4, offset = 0x4, fixed_abs, tag = 'smem constant byte address 0x4 - core index']
  #allocation1 [shape = 'u32[72,128]{1,0:T(1,128)}', space=vmem, size = 0x9000, scoped, tag = 'internal scratch']
  %s0 = inlined_call_operand.vmem [shape: bf16[2,8,64], index: 0, kind: input, shape index: {}]
  %s1 = inlined_call_operand.vmem [shape: bf16[2,64,64], index: 1, kind: input, shape index: {}]
  %s2 = inlined_call_operand.vmem [shape: bf16[2,64,64], index: 2, kind: input, shape index: {}]
  %s3 = inlined_call_operand.vmem [shape: bf16[2,32,64], index: 3, kind: input, shape index: {}]
  %s4 = inlined_call_operand.vmem [shape: f32[1,64], index: 4, kind: input, shape index: {}]
  %s5 = inlined_call_operand.vmem [shape: bf16[2,8,64], index: 5, kind: input, shape index: {}]
  %s6 = inlined_call_operand.vmem [shape: f32[2,1,64], index: 6, kind: input, shape index: {}]
  %s7 = inlined_call_operand.vmem [shape: bf16[2,8,64], index: 7, kind: output, shape index: {}]
  %s8 = sld [smem:[#allocation0]]
  $region61: #{query_transformer_forward.18} parent=0
    _
  %s10 = ssub.s32 1, %s8
  %s11 = scalar_select 0, %s10, %s8
  loop: start=0, step=1, limit=4
  $region2: #{query_transformer_forward.18} parent=0 // loop_pre_header
    _
  $region3: #{query_transformer_forward.18} parent=0 // loop_header
    %s13 = sphi 0, %s17
    %p14 = scmp.ge.s32.totalorder %s13, 4
    %s20 = sphi 0, %s32
    %s21 = sphi 0, %s28
    %s22 = sphi 0, %s20
    %s23 = sphi 0, %s21
    %s24 = sphi 0, %s22
    %s25 = sphi 0, %s23
    %s37 = sphi 0, %s39
    %s40 = sphi 0, %s37
    %s41 = sphi 0, %s40
    %s57 = sphi 0, %s41
    %s63 = sphi 0, %s65
    %s66 = sphi 0, %s63
    %s67 = sphi 0, %s66
    %s83 = sphi 0, %s67
    %s89 = sphi 0, %s91
    %s92 = sphi 0, %s89
    %s93 = sphi 0, %s92
    %s109 = sphi 0, %s93
    %s113 = sphi 0, %s113
    %s115 = sphi 0, %s113
    %s116 = sphi 0, %s115
    %s130 = sphi 0, %s116
    %s134 = sphi 0, %s134
    %s136 = sphi 0, %s134
    %s137 = sphi 0, %s136
    %s151 = sphi 0, %s137
    %s159 = sphi 0, %s161
    %s162 = sphi 0, %s159
    %s163 = sphi 0, %s162
    %s179 = sphi 0, %s163
    %s185 = sphi 0, %s187
    %s188 = sphi 0, %s185
    %s189 = sphi 0, %s188
    %s205 = sphi 0, %s189
    %s213 = sphi 0, %s215
    %s216 = sphi 0, %s213
    %s217 = sphi 0, %s216
    %s233 = sphi 0, %s217
  $region4: #{query_transformer_forward.18} parent=0 // loop_header_branch
    %16 = sbr.rel (%p14) target = $region8
  $region5: #{query_transformer_forward.18} parent=0 // loop_body
    %s18 = ssub.s32 %s13, 1
    %s19 = ssub.s32 %s13, 2
    %s26 = sadd.s32 1, %s21
    %p27 = scmp.ge.s32.totalorder %s26, 1
    %s28 = scalar_select %p27, 0, %s26
    %s29 = sadd.s32 1, %s20
    %s30 = scalar_select %p27, %s29, %s20
    %p31 = scmp.ge.s32.totalorder %s30, 2
    %s32 = scalar_select %p31, 0, %s30
    %s33 = ssub.s32 %s20, %s32
    %s34 = ssub.s32 %s21, %s28
    %s35 = sor.u32 %s33, %s34
    %p36 = scmp.eq.s32.totalorder %s35, 0
    %s38 = sadd.s32 %s37, 1
    %s39 = scalar_select %p36, %s37, %s38
    %p42 = pneg %p36
    %p43 = scmp.eq.s32.totalorder %s13, 1
    %p44 = por %p42, %p43
    %p45 = scmp.ne.s32.totalorder %s37, %s40
    %p46 = scmp.eq.s32.totalorder %s13, 0
    %p47 = por %p45, %p46
    %p48 = scmp.ne.s32.totalorder %s37, %s40
    %p49 = scmp.eq.s32.totalorder %s18, 1
    %p50 = por %p48, %p49
    %p51 = scmp.ne.s32.totalorder %s40, %s41
    %p52 = scmp.eq.s32.totalorder %s18, 0
    %p53 = por %p51, %p52
    %p54 = scmp.ne.s32.totalorder %s40, %s41
    %p55 = scmp.eq.s32.totalorder %s19, 1
    %p56 = por %p54, %p55
    %p58 = scmp.ne.s32.totalorder %s41, %s57
    %p59 = scmp.eq.s32.totalorder %s19, 0
    %p60 = por %p58, %p59
    %s61 = ssub.s32 %s20, %s32
    %p62 = scmp.eq.s32.totalorder %s61, 0
    %s64 = sadd.s32 %s63, 1
    %s65 = scalar_select %p62, %s63, %s64
    %p68 = pneg %p62
    %p69 = scmp.eq.s32.totalorder %s13, 1
    %p70 = por %p68, %p69
    %p71 = scmp.ne.s32.totalorder %s63, %s66
    %p72 = scmp.eq.s32.totalorder %s13, 0
    %p73 = por %p71, %p72
    %p74 = scmp.ne.s32.totalorder %s63, %s66
    %p75 = scmp.eq.s32.totalorder %s18, 1
    %p76 = por %p74, %p75
    %p77 = scmp.ne.s32.totalorder %s66, %s67
    %p78 = scmp.eq.s32.totalorder %s18, 0
    %p79 = por %p77, %p78
    %p80 = scmp.ne.s32.totalorder %s66, %s67
    %p81 = scmp.eq.s32.totalorder %s19, 1
    %p82 = por %p80, %p81
    %p84 = scmp.ne.s32.totalorder %s67, %s83
    %p85 = scmp.eq.s32.totalorder %s19, 0
    %p86 = por %p84, %p85
    %s87 = ssub.s32 %s20, %s32
    %p88 = scmp.eq.s32.totalorder %s87, 0
    %s90 = sadd.s32 %s89, 1
    %s91 = scalar_select %p88, %s89, %s90
    %p94 = pneg %p88
    %p95 = scmp.eq.s32.totalorder %s13, 1
    %p96 = por %p94, %p95
    %p97 = scmp.ne.s32.totalorder %s89, %s92
    %p98 = scmp.eq.s32.totalorder %s13, 0
    %p99 = por %p97, %p98
    %p100 = scmp.ne.s32.totalorder %s89, %s92
    %p101 = scmp.eq.s32.totalorder %s18, 1
    %p102 = por %p100, %p101
    %p103 = scmp.ne.s32.totalorder %s92, %s93
    %p104 = scmp.eq.s32.totalorder %s18, 0
    %p105 = por %p103, %p104
    %p106 = scmp.ne.s32.totalorder %s92, %s93
    %p107 = scmp.eq.s32.totalorder %s19, 1
    %p108 = por %p106, %p107
    %p110 = scmp.ne.s32.totalorder %s93, %s109
    %p111 = scmp.eq.s32.totalorder %s19, 0
    %p112 = por %p110, %p111
    %s114 = sadd.s32 %s113, 1
    %p117 = scmp.eq.s32.totalorder %s13, 1
    %p118 = scmp.ne.s32.totalorder %s113, %s115
    %p119 = scmp.eq.s32.totalorder %s13, 0
    %p120 = por %p118, %p119
    %p121 = scmp.ne.s32.totalorder %s113, %s115
    %p122 = scmp.eq.s32.totalorder %s18, 1
    %p123 = por %p121, %p122
    %p124 = scmp.ne.s32.totalorder %s115, %s116
    %p125 = scmp.eq.s32.totalorder %s18, 0
    %p126 = por %p124, %p125
    %p127 = scmp.ne.s32.totalorder %s115, %s116
    %p128 = scmp.eq.s32.totalorder %s19, 1
    %p129 = por %p127, %p128
    %p131 = scmp.ne.s32.totalorder %s116, %s130
    %p132 = scmp.eq.s32.totalorder %s19, 0
    %p133 = por %p131, %p132
    %s135 = sadd.s32 %s134, 1
    %p138 = scmp.eq.s32.totalorder %s13, 1
    %p139 = scmp.ne.s32.totalorder %s134, %s136
    %p140 = scmp.eq.s32.totalorder %s13, 0
    %p141 = por %p139, %p140
    %p142 = scmp.ne.s32.totalorder %s134, %s136
    %p143 = scmp.eq.s32.totalorder %s18, 1
    %p144 = por %p142, %p143
    %p145 = scmp.ne.s32.totalorder %s136, %s137
    %p146 = scmp.eq.s32.totalorder %s18, 0
    %p147 = por %p145, %p146
    %p148 = scmp.ne.s32.totalorder %s136, %s137
    %p149 = scmp.eq.s32.totalorder %s19, 1
    %p150 = por %p148, %p149
    %p152 = scmp.ne.s32.totalorder %s137, %s151
    %p153 = scmp.eq.s32.totalorder %s19, 0
    %p154 = por %p152, %p153
    %s155 = ssub.s32 %s20, %s32
    %s156 = ssub.s32 %s21, %s28
    %s157 = sor.u32 %s155, %s156
    %p158 = scmp.eq.s32.totalorder %s157, 0
    %s160 = sadd.s32 %s159, 1
    %s161 = scalar_select %p158, %s159, %s160
    %p164 = pneg %p158
    %p165 = scmp.eq.s32.totalorder %s13, 1
    %p166 = por %p164, %p165
    %p167 = scmp.ne.s32.totalorder %s159, %s162
    %p168 = scmp.eq.s32.totalorder %s13, 0
    %p169 = por %p167, %p168
    %p170 = scmp.ne.s32.totalorder %s159, %s162
    %p171 = scmp.eq.s32.totalorder %s18, 1
    %p172 = por %p170, %p171
    %p173 = scmp.ne.s32.totalorder %s162, %s163
    %p174 = scmp.eq.s32.totalorder %s18, 0
    %p175 = por %p173, %p174
    %p176 = scmp.ne.s32.totalorder %s162, %s163
    %p177 = scmp.eq.s32.totalorder %s19, 1
    %p178 = por %p176, %p177
    %p180 = scmp.ne.s32.totalorder %s163, %s179
    %p181 = scmp.eq.s32.totalorder %s19, 0
    %p182 = por %p180, %p181
    %s183 = ssub.s32 %s20, %s32
    %p184 = scmp.eq.s32.totalorder %s183, 0
    %s186 = sadd.s32 %s185, 1
    %s187 = scalar_select %p184, %s185, %s186
    %p190 = pneg %p184
    %p191 = scmp.eq.s32.totalorder %s13, 1
    %p192 = por %p190, %p191
    %p193 = scmp.ne.s32.totalorder %s185, %s188
    %p194 = scmp.eq.s32.totalorder %s13, 0
    %p195 = por %p193, %p194
    %p196 = scmp.ne.s32.totalorder %s185, %s188
    %p197 = scmp.eq.s32.totalorder %s18, 1
    %p198 = por %p196, %p197
    %p199 = scmp.ne.s32.totalorder %s188, %s189
    %p200 = scmp.eq.s32.totalorder %s18, 0
    %p201 = por %p199, %p200
    %p202 = scmp.ne.s32.totalorder %s188, %s189
    %p203 = scmp.eq.s32.totalorder %s19, 1
    %p204 = por %p202, %p203
    %p206 = scmp.ne.s32.totalorder %s189, %s205
    %p207 = scmp.eq.s32.totalorder %s19, 0
    %p208 = por %p206, %p207
    %s209 = ssub.s32 %s20, %s32
    %s210 = ssub.s32 %s21, %s28
    %s211 = sor.u32 %s209, %s210
    %p212 = scmp.eq.s32.totalorder %s211, 0
    %s214 = sadd.s32 %s213, 1
    %s215 = scalar_select %p212, %s213, %s214
    %p218 = pneg %p212
    %p219 = scmp.eq.s32.totalorder %s13, 1
    %p220 = por %p218, %p219
    %p221 = scmp.ne.s32.totalorder %s213, %s216
    %p222 = scmp.eq.s32.totalorder %s13, 0
    %p223 = por %p221, %p222
    %p224 = scmp.ne.s32.totalorder %s213, %s216
    %p225 = scmp.eq.s32.totalorder %s18, 1
    %p226 = por %p224, %p225
    %p227 = scmp.ne.s32.totalorder %s216, %s217
    %p228 = scmp.eq.s32.totalorder %s18, 0
    %p229 = por %p227, %p228
    %p230 = scmp.ne.s32.totalorder %s216, %s217
    %p231 = scmp.eq.s32.totalorder %s19, 1
    %p232 = por %p230, %p231
    %p234 = scmp.ne.s32.totalorder %s217, %s233
    %p235 = scmp.eq.s32.totalorder %s19, 0
    %p236 = por %p234, %p235
    %p237 = scmp.le.s32.totalorder 1, %s13
    %p238 = scmp.lt.s32.totalorder %s13, 3
    %p239 = pnand %p237, %p238
    %p240 = pneg %p239
    // Predicated region
    $region9: #{query_transformer_forward.18} parent=5 // pred_check
      _
    $region10: #{query_transformer_forward.18} parent=5 // pred_check_branch
      %242 = sbr.rel (%p239) target = $region12
    $region11: #{query_transformer_forward.18} parent=5 // pred_region
      %s243 = ssub.s32 %s13, 1
      // Predicated region
      $region13: #{query_transformer_forward.18} parent=11 // pred_check
        %p244 = pneg %p126
      $region14: #{query_transformer_forward.18} parent=11 // pred_check_branch
        %246 = sbr.rel (%p244) target = $region16
      $region15: #{query_transformer_forward.18} parent=11 // pred_region
        _
      $region16: #{query_transformer_forward.18} parent=11 // pred_fallthru
        _
      // Predicated region
      $region17: #{query_transformer_forward.18} parent=11 // pred_check
        %p247 = pneg %p147
      $region18: #{query_transformer_forward.18} parent=11 // pred_check_branch
        %249 = sbr.rel (%p247) target = $region20
      $region19: #{query_transformer_forward.18} parent=11 // pred_region
        _
      $region20: #{query_transformer_forward.18} parent=11 // pred_fallthru
        _
    $region12: #{query_transformer_forward.18} parent=5 // pred_fallthru
      _
    %p250 = scmp.lt.s32.totalorder %s13, 2
    // Predicated region
    $region21: #{query_transformer_forward.18} parent=5 // pred_check
      %p251 = pneg %p250
    $region22: #{query_transformer_forward.18} parent=5 // pred_check_branch
      %253 = sbr.rel (%p251) target = $region24
    $region23: #{query_transformer_forward.18} parent=5 // pred_region
      // Predicated region
      $region25: #{query_transformer_forward.18} parent=23 // pred_check
        %p254 = pneg %p47
      $region26: #{query_transformer_forward.18} parent=23 // pred_check_branch
        %256 = sbr.rel (%p254) target = $region28
      $region27: #{query_transformer_forward.18} parent=23 // pred_region
        %p257 = scmp.lt.s32.totalorder %s20, 1
        %s258 = scalar_select %p257, %s20, 1
        %p259 = scmp.lt.s32.totalorder %s21, 0
        %s260 = scalar_select %p259, %s21, 0
        %s261 = sadd.s32 %s260, %s258
        %s262 = smul.addr %s261, 4
        %s263 = scalar_lea.vmem %s0, %s262
      $region28: #{query_transformer_forward.18} parent=23 // pred_fallthru
        _
      // Predicated region
      $region29: #{query_transformer_forward.18} parent=23 // pred_check
        %p264 = pneg %p73
      $region30: #{query_transformer_forward.18} parent=23 // pred_check_branch
        %266 = sbr.rel (%p264) target = $region32
      $region31: #{query_transformer_forward.18} parent=23 // pred_region
        %p267 = scmp.lt.s32.totalorder %s20, 1
        %s268 = scalar_select %p267, %s20, 1
        %s269 = smul.addr %s268, 8
        %s270 = smul.addr %s269, 4
        %s271 = scalar_lea.vmem %s1, %s270
      $region32: #{query_transformer_forward.18} parent=23 // pred_fallthru
        _
      // Predicated region
      $region33: #{query_transformer_forward.18} parent=23 // pred_check
        %p272 = pneg %p99
      $region34: #{query_transformer_forward.18} parent=23 // pred_check_branch
        %274 = sbr.rel (%p272) target = $region36
      $region35: #{query_transformer_forward.18} parent=23 // pred_region
        %p275 = scmp.lt.s32.totalorder %s20, 1
        %s276 = scalar_select %p275, %s20, 1
        %s277 = smul.addr %s276, 8
        %s278 = smul.addr %s277, 4
        %s279 = scalar_lea.vmem %s2, %s278
      $region36: #{query_transformer_forward.18} parent=23 // pred_fallthru
        _
      // Predicated region
      $region37: #{query_transformer_forward.18} parent=23 // pred_check
        %p280 = pneg %p169
      $region38: #{query_transformer_forward.18} parent=23 // pred_check_branch
        %282 = sbr.rel (%p280) target = $region40
      $region39: #{query_transformer_forward.18} parent=23 // pred_region
        %p283 = scmp.lt.s32.totalorder %s20, 1
        %s284 = scalar_select %p283, %s20, 1
        %p285 = scmp.lt.s32.totalorder %s21, 0
        %s286 = scalar_select %p285, %s21, 0
        %s287 = sadd.s32 %s286, %s284
        %s288 = smul.addr %s287, 4
        %s289 = scalar_lea.vmem %s5, %s288
      $region40: #{query_transformer_forward.18} parent=23 // pred_fallthru
        _
      // Predicated region
      $region41: #{query_transformer_forward.18} parent=23 // pred_check
        %p290 = pneg %p195
      $region42: #{query_transformer_forward.18} parent=23 // pred_check_branch
        %292 = sbr.rel (%p290) target = $region44
      $region43: #{query_transformer_forward.18} parent=23 // pred_region
        %p293 = scmp.lt.s32.totalorder %s20, 1
        %s294 = scalar_select %p293, %s20, 1
        %s295 = scalar_lea.vmem %s6, %s294
      $region44: #{query_transformer_forward.18} parent=23 // pred_fallthru
        _
    $region24: #{query_transformer_forward.18} parent=5 // pred_fallthru
      _
    %p296 = scmp.le.s32.totalorder 1, %s13
    %p297 = scmp.lt.s32.totalorder %s13, 3
    %p298 = pnand %p296, %p297
    %p299 = pneg %p298
    // Predicated region
    $region45: #{query_transformer_forward.18} parent=5 // pred_check
      _
    $region46: #{query_transformer_forward.18} parent=5 // pred_check_branch
      %301 = sbr.rel (%p298) target = $region48
    $region47: #{query_transformer_forward.18} parent=5 // pred_region
      %s302 = ssub.s32 %s13, 1
      %p303 = scmp.lt.s32.totalorder %s22, 1
      %s304 = scalar_select %p303, %s22, 1
      %p305 = scmp.lt.s32.totalorder %s23, 0
      %s306 = scalar_select %p305, %s23, 0
      %s307 = sadd.s32 %s306, %s304
      %s308 = smul.addr %s307, 4
      %s309 = scalar_lea.vmem %s0, %s308
      %p310 = pneg %p53
      %p311 = pneg %p50
      %p312 = scmp.lt.s32.totalorder %s22, 1
      %s313 = scalar_select %p312, %s22, 1
      %s314 = smul.addr %s313, 8
      %s315 = smul.addr %s314, 4
      %s316 = scalar_lea.vmem %s1, %s315
      %p317 = pneg %p79
      %p318 = pneg %p76
      %p319 = scmp.lt.s32.totalorder %s22, 1
      %s320 = scalar_select %p319, %s22, 1
      %s321 = smul.addr %s320, 8
      %s322 = smul.addr %s321, 4
      %s323 = scalar_lea.vmem %s2, %s322
      %p324 = pneg %p105
      %p325 = pneg %p102
      %p326 = pneg %p126
      %p327 = pneg %p123
      %p328 = pneg %p147
      %p329 = pneg %p144
      %p330 = scmp.lt.s32.totalorder %s22, 1
      %s331 = scalar_select %p330, %s22, 1
      %p332 = scmp.lt.s32.totalorder %s23, 0
      %s333 = scalar_select %p332, %s23, 0
      %s334 = sadd.s32 %s333, %s331
      %s335 = smul.addr %s334, 4
      %s336 = scalar_lea.vmem %s5, %s335
      %p337 = pneg %p175
      %p338 = pneg %p172
      %p339 = scmp.lt.s32.totalorder %s22, 1
      %s340 = scalar_select %p339, %s22, 1
      %s341 = scalar_lea.vmem %s6, %s340
      %p342 = pneg %p201
      %p343 = pneg %p198
      %p344 = pneg %p229
      %p345 = pneg %p226
      %p346 = scmp.lt.s32.totalorder %s22, 1
      %s347 = scalar_select %p346, %s22, 1
      %p348 = scmp.lt.s32.totalorder %s23, 0
      %s349 = scalar_select %p348, %s23, 0
      %s350 = sadd.s32 %s349, %s347
      %s351 = smul.addr %s350, 4
      %s352 = scalar_lea.vmem %s7, %s351
      %p353 = scmp.lt.s32.totalorder %s22, 1
      %s354 = scalar_select %p353, %s22, 1
      %p355 = scmp.lt.s32.totalorder %s23, 0
      %s356 = scalar_select %p355, %s23, 0
      %s357 = sadd.s32 %s356, %s354
      %s358 = smul.addr %s357, 4
      %s359 = scalar_lea.vmem %s0, %s358
      %p360 = scmp.lt.s32.totalorder %s22, 1
      %s361 = scalar_select %p360, %s22, 1
      %s362 = smul.addr %s361, 8
      %s363 = smul.addr %s362, 4
      %s364 = scalar_lea.vmem %s1, %s363
      %p365 = scmp.lt.s32.totalorder %s22, 1
      %s366 = scalar_select %p365, %s22, 1
      %s367 = smul.addr %s366, 8
      %s368 = smul.addr %s367, 4
      %s369 = scalar_lea.vmem %s2, %s368
      %p370 = scmp.lt.s32.totalorder %s22, 1
      %s371 = scalar_select %p370, %s22, 1
      %p372 = scmp.lt.s32.totalorder %s23, 0
      %s373 = scalar_select %p372, %s23, 0
      %s374 = sadd.s32 %s373, %s371
      %s375 = smul.addr %s374, 4
      %s376 = scalar_lea.vmem %s5, %s375
      %p377 = scmp.lt.s32.totalorder %s22, 1
      %s378 = scalar_select %p377, %s22, 1
      %s379 = scalar_lea.vmem %s6, %s378
      %p380 = scmp.lt.s32.totalorder %s22, 1
      %s381 = scalar_select %p380, %s22, 1
      %p382 = scmp.lt.s32.totalorder %s23, 0
      %s383 = scalar_select %p382, %s23, 0
      %s384 = sadd.s32 %s383, %s381
      %s385 = smul.addr %s384, 4
      %s386 = scalar_lea.vmem %s7, %s385
      %v388 = vld [vmem:[%s359] sm:$0xf]
      %v389 = vld [vmem:[%s364] sm:$0xf]
      %v390 = vld [vmem:[%s364 + $0x4] sm:$0xf]
      %v391 = vld [vmem:[%s364 + $0x8] sm:$0xf]
      %v392 = vld [vmem:[%s364 + $0xc] sm:$0xf]
      %v393 = vld [vmem:[%s364 + $0x10] sm:$0xf]
      %v394 = vld [vmem:[%s364 + $0x14] sm:$0xf]
      %v395 = vld [vmem:[%s364 + $0x18] sm:$0xf]
      %v396 = vld [vmem:[%s364 + $0x1c] sm:$0xf]
      %v397 = vld [vmem:[%s369] sm:$0xf]
      %v398 = vld [vmem:[%s369 + $0x4] sm:$0xf]
      %v399 = vld [vmem:[%s369 + $0x8] sm:$0xf]
      %v400 = vld [vmem:[%s369 + $0xc] sm:$0xf]
      %v401 = vld [vmem:[%s369 + $0x10] sm:$0xf]
      %v402 = vld [vmem:[%s369 + $0x14] sm:$0xf]
      %v403 = vld [vmem:[%s369 + $0x18] sm:$0xf]
      %v404 = vld [vmem:[%s369 + $0x1c] sm:$0xf]
      %v405 = vld [vmem:[%s379] sm:$0x1]
      %vm406 = vcmask 516096
      %v407 = vsel %vm406, %v405, 0.0
      %408 = vadd.xlane.f32.xlu0 %v407
      %v409 = vpop.xlane.xlu0 %408
      %v410 = vsub.f32 64.0, %v409
      %vm411 = vcmp.gt.f32.partialorder %v409, 0.5
      %v412 = vsel %vm411, 1.0, 0.0
      %vm413 = vcmp.gt.f32.partialorder %v410, 0.5
      %v414 = vsel %vm413, 1.0, 0.0
      %vm415 = vcmp.lt.f32.partialorder %v405, 0.5
      %v416 = vsel %vm415, -1e+09, 0.0
      %v417 = vmul.f32 %v416, %v412
      %vm418 = vcmp.gt.f32.partialorder %v405, 0.5
      %v419 = vsel %vm418, -1e+09, 0.0
      %v420 = vmul.f32 %v419, %v414
      %v421 = vlaneseq
      %v422 = vshrl.u32 %v421, 7
      %vm423 = vcmp.lt.s32.totalorder %v422, 4
      %v424 = vsel %vm423, 1, 0
      %v425 = vcvt.s32.f32 %v424
      %v427 = vperm.slane %v417, 0
      %v429 = vmul.f32 %v425, %v427
      %v430 = vsub.f32 1.0, %v425
      %v432 = vperm.slane %v420, 0
      %v434 = vmul.f32 %v430, %v432
      %v435 = vadd.f32 %v429, %v434
      %v444 = vunpack.c.l.b16 %v389
      %v445 = vunpack.c.l.b16 %v390
      %v446 = vunpack.c.l.b16 %v391
      %v447 = vunpack.c.l.b16 %v392
      %v448 = vunpack.c.l.b16 %v393
      %v449 = vunpack.c.l.b16 %v394
      %v450 = vunpack.c.l.b16 %v395
      %v451 = vunpack.c.l.b16 %v396
      %v452 = vpack.c.b16 %v445, %v444
      %v453 = vpack.c.b16 %v447, %v446
      %v454 = vpack.c.b16 %v449, %v448
      %v455 = vpack.c.b16 %v451, %v450
      %vm456 = vcmask 261120
      %v458 = vsel %vm456, %v388, 0
      %v461 = vsel %vm456, %v452, 0
      %v464 = vsel %vm456, %v453, 0
      %v467 = vsel %vm456, %v454, 0
      %v470 = vsel %vm456, %v455, 0
      %472 = vmatpush.bf16.xpose.msra.mxu0 0
      %473 = vmatpush.bf16.xpose.msra.mxu0 0
      %474 = vmatpush.bf16.xpose.msra.mxu0 0
      %475 = vmatpush.bf16.xpose.msra.mxu0 0
      %476 = vmatpush.bf16.xpose.msra.mxu0 %v470
      %477 = vmatpush.bf16.xpose.msra.mxu0 %v467
      %478 = vmatpush.bf16.xpose.msra.mxu0 %v464
      %479 = vmatpush.bf16.xpose.msra.mxu0 %v461
      %480 = vmatmul.bf16.gmra.mxu0 %v458
      %v481 = vpop.f32.mrf.mxu0
      %v482 = vadd.f32 0.0, %v481
      %v483 = vpop.f32.mrf.mxu0
      %484 = vdwg.mxu0
      %v485 = vmul.f32 %v482, 0.17677669
      %v486 = vadd.f32 %v485, %v435
      %vm487 = vcmask 523264
      %v488 = vsel %vm487, %v486, -inf
      %489 = vmax.xlane.f32.xlu0 %v488
      %v490 = vpop.xlane.xlu0 %489
      %v491 = vsub.f32 %v486, %v490
      %v492 = vmul.f32 %v491, 1.442695
      %v493 = vpow.pop %v492
      %v494 = vsel %vm487, %v493, 0.0
      %495 = vadd.xlane.f32.xlu0 %v494
      %v496 = vpop.xlane.xlu0 %495
      %v497 = vrcp.pop %v496
      %v498 = vmul.f32 %v493, %v497
      %v499 = vpack.c.bf16 %v498, %v498
      %v508 = vunpack.c.l.b16 %v397
      %v509 = vunpack.c.l.b16 %v398
      %v510 = vunpack.c.l.b16 %v399
      %v511 = vunpack.c.l.b16 %v400
      %v512 = vunpack.c.l.b16 %v401
      %v513 = vunpack.c.l.b16 %v402
      %v514 = vunpack.c.l.b16 %v403
      %v515 = vunpack.c.l.b16 %v404
      %v516 = vpack.c.b16 %v509, %v508
      %v517 = vpack.c.b16 %v511, %v510
      %v518 = vpack.c.b16 %v513, %v512
      %v519 = vpack.c.b16 %v515, %v514
      %v525 = vsel %vm487, %v499, 0
      %527 = vmatpush.bf16.msra.mxu0 0
      %528 = vmatpush.bf16.msra.mxu0 0
      %529 = vmatpush.bf16.msra.mxu0 0
      %530 = vmatpush.bf16.msra.mxu0 0
      %531 = vmatpush.bf16.msra.mxu0 %v519
      %532 = vmatpush.bf16.msra.mxu0 %v518
      %533 = vmatpush.bf16.msra.mxu0 %v517
      %534 = vmatpush.bf16.msra.mxu0 %v516
      %535 = vmatmul.bf16.gmra.mxu0 %v525
      %v536 = vpop.f32.mrf.mxu0
      %v537 = vadd.f32 0.0, %v536
      %v538 = vpop.f32.mrf.mxu0
      %539 = vdwg.mxu0
      %v540 = vpack.c.bf16 %v537, %v537
      %v541 = vld [vmem:[%s3] sm:$0xf]
      %v542 = vld [vmem:[%s3 + $0x4] sm:$0xf]
      %v543 = vld [vmem:[%s3 + $0x8] sm:$0xf]
      %v544 = vld [vmem:[%s3 + $0xc] sm:$0xf]
      %v546 = vunpack.c.l.b16 %v388
      %v547 = vpack.c.b16 %v546, %v546
      %548 = vrot.lane.b32.xlu0 %v547, 96
      %v549 = vpop.permute.xlu0 %548
      %550 = vrot.lane.b32.xlu0 %v452, 96
      %v551 = vpop.permute.xlu0 %550
      %552 = vrot.lane.b32.xlu0 %v453, 96
      %v553 = vpop.permute.xlu0 %552
      %554 = vrot.lane.b32.xlu0 %v454, 96
      %v555 = vpop.permute.xlu0 %554
      %556 = vrot.lane.b32.xlu0 %v455, 96
      %v557 = vpop.permute.xlu0 %556
      %v559 = vsel %vm456, %v549, 0
      %v562 = vsel %vm456, %v551, 0
      %v565 = vsel %vm456, %v553, 0
      %v568 = vsel %vm456, %v555, 0
      %v571 = vsel %vm456, %v557, 0
      %573 = vmatpush.bf16.xpose.msra.mxu0 0
      %574 = vmatpush.bf16.xpose.msra.mxu0 0
      %575 = vmatpush.bf16.xpose.msra.mxu0 0
      %576 = vmatpush.bf16.xpose.msra.mxu0 0
      %577 = vmatpush.bf16.xpose.msra.mxu0 %v571
      %578 = vmatpush.bf16.xpose.msra.mxu0 %v568
      %579 = vmatpush.bf16.xpose.msra.mxu0 %v565
      %580 = vmatpush.bf16.xpose.msra.mxu0 %v562
      %581 = vmatmul.bf16.gmra.mxu0 %v559
      %v582 = vpop.f32.mrf.mxu0
      %v583 = vadd.f32 0.0, %v582
      %v584 = vpop.f32.mrf.mxu0
      %585 = vdwg.mxu0
      %v586 = vmul.f32 %v583, 0.17677669
      %v587 = vadd.f32 %v586, %v435
      %v588 = vsel %vm487, %v587, -inf
      %589 = vmax.xlane.f32.xlu0 %v588
      %v590 = vpop.xlane.xlu0 %589
      %v591 = vsub.f32 %v587, %v590
      %v592 = vmul.f32 %v591, 1.442695
      %v593 = vpow.pop %v592
      %v594 = vsel %vm487, %v593, 0.0
      %595 = vadd.xlane.f32.xlu0 %v594
      %v596 = vpop.xlane.xlu0 %595
      %v597 = vrcp.pop %v596
      %v598 = vmul.f32 %v593, %v597
      %v599 = vpack.c.bf16 %v598, %v598
      %600 = vrot.lane.b32.xlu0 %v516, 96
      %v601 = vpop.permute.xlu0 %600
      %602 = vrot.lane.b32.xlu0 %v517, 96
      %v603 = vpop.permute.xlu0 %602
      %604 = vrot.lane.b32.xlu0 %v518, 96
      %v605 = vpop.permute.xlu0 %604
      %606 = vrot.lane.b32.xlu0 %v519, 96
      %v607 = vpop.permute.xlu0 %606
      %v613 = vsel %vm487, %v599, 0
      %615 = vmatpush.bf16.msra.mxu0 0
      %616 = vmatpush.bf16.msra.mxu0 0
      %617 = vmatpush.bf16.msra.mxu0 0
      %618 = vmatpush.bf16.msra.mxu0 0
      %619 = vmatpush.bf16.msra.mxu0 %v607
      %620 = vmatpush.bf16.msra.mxu0 %v605
      %621 = vmatpush.bf16.msra.mxu0 %v603
      %622 = vmatpush.bf16.msra.mxu0 %v601
      %623 = vmatmul.bf16.gmra.mxu0 %v613
      %v624 = vpop.f32.mrf.mxu0
      %v625 = vadd.f32 0.0, %v624
      %v626 = vpop.f32.mrf.mxu0
      %627 = vdwg.mxu0
      %v628 = vpack.c.bf16 %v625, %v625
      %s629 = scalar_lea.vmem %s3, 16
      %v630 = vld [vmem:[%s629] sm:$0xf]
      %v631 = vld [vmem:[%s629 + $0x4] sm:$0xf]
      %v632 = vld [vmem:[%s629 + $0x8] sm:$0xf]
      %v633 = vld [vmem:[%s629 + $0xc] sm:$0xf]
      %v638 = vunpack.c.l.b16 %v630
      %v639 = vunpack.c.l.b16 %v631
      %v640 = vunpack.c.l.b16 %v632
      %v641 = vunpack.c.l.b16 %v633
      %v642 = vpack.c.b16 %v639, %v638
      %v643 = vpack.c.b16 %v641, %v640
      %v647 = vsel %vm456, %v628, 0
      %649 = vmatpush.bf16.msra.mxu0 0
      %650 = vmatpush.bf16.msra.mxu0 0
      %651 = vmatpush.bf16.msra.mxu0 0
      %652 = vmatpush.bf16.msra.mxu0 0
      %653 = vmatpush.bf16.msra.mxu0 0
      %654 = vmatpush.bf16.msra.mxu0 0
      %655 = vmatpush.bf16.msra.mxu0 %v643
      %656 = vmatpush.bf16.msra.mxu0 %v642
      %657 = vmatmul.bf16.gmra.mxu0 %v647
      %v658 = vpop.f32.mrf.mxu0
      %v659 = vadd.f32 0.0, %v658
      %v660 = vpop.f32.mrf.mxu0
      %661 = vdwg.mxu0
      %v666 = vunpack.c.l.b16 %v541
      %v667 = vunpack.c.l.b16 %v542
      %v668 = vunpack.c.l.b16 %v543
      %v669 = vunpack.c.l.b16 %v544
      %v670 = vpack.c.b16 %v667, %v666
      %v671 = vpack.c.b16 %v669, %v668
      %v675 = vsel %vm456, %v540, 0
      %677 = vmatpush.bf16.msra.mxu0 0
      %678 = vmatpush.bf16.msra.mxu0 0
      %679 = vmatpush.bf16.msra.mxu0 0
      %680 = vmatpush.bf16.msra.mxu0 0
      %681 = vmatpush.bf16.msra.mxu0 0
      %682 = vmatpush.bf16.msra.mxu0 0
      %683 = vmatpush.bf16.msra.mxu0 %v671
      %684 = vmatpush.bf16.msra.mxu0 %v670
      %685 = vmatmul.bf16.gmra.mxu0 %v675
      %v686 = vpop.f32.mrf.mxu0
      %v687 = vadd.f32 %v659, %v686
      %v688 = vpop.f32.mrf.mxu0
      %689 = vdwg.mxu0
      %v690 = vld [vmem:[%s4] sm:$0x1]
      %v692 = vperm.slane %v690, 0
      %v694 = vadd.f32 %v687, %v692
      %v695 = vld [vmem:[%s376] sm:$0xf]
      %v696 = vunpack.c.l.bf16 %v695
      %v697 = vadd.f32 %v694, %v696
      %v698 = vpack.c.bf16 %v697, %v697
      %vm699 = vcmask 519168
      %700 = vst.msk [vmem:[%s386] sm:$0xf] %vm699, %v698
      %p701 = scmp.lt.s32.totalorder %s22, 1
      %s702 = scalar_select %p701, %s22, 1
      %p703 = scmp.lt.s32.totalorder %s23, 0
      %s704 = scalar_select %p703, %s23, 0
      %s705 = sadd.s32 %s704, %s702
      %s706 = smul.addr %s705, 4
      %s707 = scalar_lea.vmem %s7, %s706
      // Predicated region
      $region49: #{query_transformer_forward.18} parent=47 // pred_check
        %p708 = pneg %p226
      $region50: #{query_transformer_forward.18} parent=47 // pred_check_branch
        %710 = sbr.rel (%p708) target = $region52
      $region51: #{query_transformer_forward.18} parent=47 // pred_region
        _
      $region52: #{query_transformer_forward.18} parent=47 // pred_fallthru
        _
    $region48: #{query_transformer_forward.18} parent=5 // pred_fallthru
      _
    %p711 = scmp.le.s32.totalorder 2, %s13
    // Predicated region
    $region53: #{query_transformer_forward.18} parent=5 // pred_check
      %p712 = pneg %p711
    $region54: #{query_transformer_forward.18} parent=5 // pred_check_branch
      %714 = sbr.rel (%p712) target = $region56
    $region55: #{query_transformer_forward.18} parent=5 // pred_region
      %s715 = ssub.s32 %s13, 2
      // Predicated region
      $region57: #{query_transformer_forward.18} parent=55 // pred_check
        %p716 = pneg %p232
      $region58: #{query_transformer_forward.18} parent=55 // pred_check_branch
        %718 = sbr.rel (%p716) target = $region60
      $region59: #{query_transformer_forward.18} parent=55 // pred_region
        %p719 = scmp.lt.s32.totalorder %s24, 1
        %s720 = scalar_select %p719, %s24, 1
        %p721 = scmp.lt.s32.totalorder %s25, 0
        %s722 = scalar_select %p721, %s25, 0
        %s723 = sadd.s32 %s722, %s720
        %s724 = smul.addr %s723, 4
        %s725 = scalar_lea.vmem %s7, %s724
      $region60: #{query_transformer_forward.18} parent=55 // pred_fallthru
        _
    $region56: #{query_transformer_forward.18} parent=5 // pred_fallthru
      _
  $region6: #{query_transformer_forward.18} parent=0 // loop_footer
    %s17 = sadd.s32 1, %s13
  $region7: #{query_transformer_forward.18} parent=0 // loop_footer_branch
    %12 = sbr.rel target = $region3
  $region8: #{query_transformer_forward.18} parent=0 // loop_exit
    _

// kernel: query_transformer_forward.20
$region0: #{query_transformer_forward.20}
  #allocation0 [shape = 'u32[]', space=smem, size = 0x4, offset = 0x4, fixed_abs, tag = 'smem constant byte address 0x4 - core index']
  #allocation1 [shape = 'u32[72,128]{1,0:T(1,128)}', space=vmem, size = 0x9000, scoped, tag = 'internal scratch']
  %s0 = inlined_call_operand.vmem [shape: bf16[2,8,64], index: 0, kind: input, shape index: {}]
  %s1 = inlined_call_operand.vmem [shape: bf16[2,8,64], index: 1, kind: input, shape index: {}]
  %s2 = inlined_call_operand.vmem [shape: bf16[2,8,64], index: 2, kind: input, shape index: {}]
  %s3 = inlined_call_operand.vmem [shape: bf16[2,32,64], index: 3, kind: input, shape index: {}]
  %s4 = inlined_call_operand.vmem [shape: f32[1,64], index: 4, kind: input, shape index: {}]
  %s5 = inlined_call_operand.vmem [shape: bf16[2,8,64], index: 5, kind: input, shape index: {}]
  %s6 = inlined_call_operand.vmem [shape: bf16[2,8,64], index: 6, kind: output, shape index: {}]
  %s7 = sld [smem:[#allocation0]]
  $region57: #{query_transformer_forward.20} parent=0
    _
  %s9 = ssub.s32 1, %s7
  %s10 = scalar_select 0, %s9, %s7
  loop: start=0, step=1, limit=4
  $region2: #{query_transformer_forward.20} parent=0 // loop_pre_header
    _
  $region3: #{query_transformer_forward.20} parent=0 // loop_header
    %s12 = sphi 0, %s16
    %p13 = scmp.ge.s32.totalorder %s12, 4
    %s19 = sphi 0, %s31
    %s20 = sphi 0, %s27
    %s21 = sphi 0, %s19
    %s22 = sphi 0, %s20
    %s23 = sphi 0, %s21
    %s24 = sphi 0, %s22
    %s36 = sphi 0, %s38
    %s39 = sphi 0, %s36
    %s40 = sphi 0, %s39
    %s56 = sphi 0, %s40
    %s62 = sphi 0, %s64
    %s65 = sphi 0, %s62
    %s66 = sphi 0, %s65
    %s82 = sphi 0, %s66
    %s88 = sphi 0, %s90
    %s91 = sphi 0, %s88
    %s92 = sphi 0, %s91
    %s108 = sphi 0, %s92
    %s112 = sphi 0, %s112
    %s114 = sphi 0, %s112
    %s115 = sphi 0, %s114
    %s129 = sphi 0, %s115
    %s133 = sphi 0, %s133
    %s135 = sphi 0, %s133
    %s136 = sphi 0, %s135
    %s150 = sphi 0, %s136
    %s158 = sphi 0, %s160
    %s161 = sphi 0, %s158
    %s162 = sphi 0, %s161
    %s178 = sphi 0, %s162
    %s186 = sphi 0, %s188
    %s189 = sphi 0, %s186
    %s190 = sphi 0, %s189
    %s206 = sphi 0, %s190
  $region4: #{query_transformer_forward.20} parent=0 // loop_header_branch
    %15 = sbr.rel (%p13) target = $region8
  $region5: #{query_transformer_forward.20} parent=0 // loop_body
    %s17 = ssub.s32 %s12, 1
    %s18 = ssub.s32 %s12, 2
    %s25 = sadd.s32 1, %s20
    %p26 = scmp.ge.s32.totalorder %s25, 1
    %s27 = scalar_select %p26, 0, %s25
    %s28 = sadd.s32 1, %s19
    %s29 = scalar_select %p26, %s28, %s19
    %p30 = scmp.ge.s32.totalorder %s29, 2
    %s31 = scalar_select %p30, 0, %s29
    %s32 = ssub.s32 %s19, %s31
    %s33 = ssub.s32 %s20, %s27
    %s34 = sor.u32 %s32, %s33
    %p35 = scmp.eq.s32.totalorder %s34, 0
    %s37 = sadd.s32 %s36, 1
    %s38 = scalar_select %p35, %s36, %s37
    %p41 = pneg %p35
    %p42 = scmp.eq.s32.totalorder %s12, 1
    %p43 = por %p41, %p42
    %p44 = scmp.ne.s32.totalorder %s36, %s39
    %p45 = scmp.eq.s32.totalorder %s12, 0
    %p46 = por %p44, %p45
    %p47 = scmp.ne.s32.totalorder %s36, %s39
    %p48 = scmp.eq.s32.totalorder %s17, 1
    %p49 = por %p47, %p48
    %p50 = scmp.ne.s32.totalorder %s39, %s40
    %p51 = scmp.eq.s32.totalorder %s17, 0
    %p52 = por %p50, %p51
    %p53 = scmp.ne.s32.totalorder %s39, %s40
    %p54 = scmp.eq.s32.totalorder %s18, 1
    %p55 = por %p53, %p54
    %p57 = scmp.ne.s32.totalorder %s40, %s56
    %p58 = scmp.eq.s32.totalorder %s18, 0
    %p59 = por %p57, %p58
    %s60 = ssub.s32 %s19, %s31
    %p61 = scmp.eq.s32.totalorder %s60, 0
    %s63 = sadd.s32 %s62, 1
    %s64 = scalar_select %p61, %s62, %s63
    %p67 = pneg %p61
    %p68 = scmp.eq.s32.totalorder %s12, 1
    %p69 = por %p67, %p68
    %p70 = scmp.ne.s32.totalorder %s62, %s65
    %p71 = scmp.eq.s32.totalorder %s12, 0
    %p72 = por %p70, %p71
    %p73 = scmp.ne.s32.totalorder %s62, %s65
    %p74 = scmp.eq.s32.totalorder %s17, 1
    %p75 = por %p73, %p74
    %p76 = scmp.ne.s32.totalorder %s65, %s66
    %p77 = scmp.eq.s32.totalorder %s17, 0
    %p78 = por %p76, %p77
    %p79 = scmp.ne.s32.totalorder %s65, %s66
    %p80 = scmp.eq.s32.totalorder %s18, 1
    %p81 = por %p79, %p80
    %p83 = scmp.ne.s32.totalorder %s66, %s82
    %p84 = scmp.eq.s32.totalorder %s18, 0
    %p85 = por %p83, %p84
    %s86 = ssub.s32 %s19, %s31
    %p87 = scmp.eq.s32.totalorder %s86, 0
    %s89 = sadd.s32 %s88, 1
    %s90 = scalar_select %p87, %s88, %s89
    %p93 = pneg %p87
    %p94 = scmp.eq.s32.totalorder %s12, 1
    %p95 = por %p93, %p94
    %p96 = scmp.ne.s32.totalorder %s88, %s91
    %p97 = scmp.eq.s32.totalorder %s12, 0
    %p98 = por %p96, %p97
    %p99 = scmp.ne.s32.totalorder %s88, %s91
    %p100 = scmp.eq.s32.totalorder %s17, 1
    %p101 = por %p99, %p100
    %p102 = scmp.ne.s32.totalorder %s91, %s92
    %p103 = scmp.eq.s32.totalorder %s17, 0
    %p104 = por %p102, %p103
    %p105 = scmp.ne.s32.totalorder %s91, %s92
    %p106 = scmp.eq.s32.totalorder %s18, 1
    %p107 = por %p105, %p106
    %p109 = scmp.ne.s32.totalorder %s92, %s108
    %p110 = scmp.eq.s32.totalorder %s18, 0
    %p111 = por %p109, %p110
    %s113 = sadd.s32 %s112, 1
    %p116 = scmp.eq.s32.totalorder %s12, 1
    %p117 = scmp.ne.s32.totalorder %s112, %s114
    %p118 = scmp.eq.s32.totalorder %s12, 0
    %p119 = por %p117, %p118
    %p120 = scmp.ne.s32.totalorder %s112, %s114
    %p121 = scmp.eq.s32.totalorder %s17, 1
    %p122 = por %p120, %p121
    %p123 = scmp.ne.s32.totalorder %s114, %s115
    %p124 = scmp.eq.s32.totalorder %s17, 0
    %p125 = por %p123, %p124
    %p126 = scmp.ne.s32.totalorder %s114, %s115
    %p127 = scmp.eq.s32.totalorder %s18, 1
    %p128 = por %p126, %p127
    %p130 = scmp.ne.s32.totalorder %s115, %s129
    %p131 = scmp.eq.s32.totalorder %s18, 0
    %p132 = por %p130, %p131
    %s134 = sadd.s32 %s133, 1
    %p137 = scmp.eq.s32.totalorder %s12, 1
    %p138 = scmp.ne.s32.totalorder %s133, %s135
    %p139 = scmp.eq.s32.totalorder %s12, 0
    %p140 = por %p138, %p139
    %p141 = scmp.ne.s32.totalorder %s133, %s135
    %p142 = scmp.eq.s32.totalorder %s17, 1
    %p143 = por %p141, %p142
    %p144 = scmp.ne.s32.totalorder %s135, %s136
    %p145 = scmp.eq.s32.totalorder %s17, 0
    %p146 = por %p144, %p145
    %p147 = scmp.ne.s32.totalorder %s135, %s136
    %p148 = scmp.eq.s32.totalorder %s18, 1
    %p149 = por %p147, %p148
    %p151 = scmp.ne.s32.totalorder %s136, %s150
    %p152 = scmp.eq.s32.totalorder %s18, 0
    %p153 = por %p151, %p152
    %s154 = ssub.s32 %s19, %s31
    %s155 = ssub.s32 %s20, %s27
    %s156 = sor.u32 %s154, %s155
    %p157 = scmp.eq.s32.totalorder %s156, 0
    %s159 = sadd.s32 %s158, 1
    %s160 = scalar_select %p157, %s158, %s159
    %p163 = pneg %p157
    %p164 = scmp.eq.s32.totalorder %s12, 1
    %p165 = por %p163, %p164
    %p166 = scmp.ne.s32.totalorder %s158, %s161
    %p167 = scmp.eq.s32.totalorder %s12, 0
    %p168 = por %p166, %p167
    %p169 = scmp.ne.s32.totalorder %s158, %s161
    %p170 = scmp.eq.s32.totalorder %s17, 1
    %p171 = por %p169, %p170
    %p172 = scmp.ne.s32.totalorder %s161, %s162
    %p173 = scmp.eq.s32.totalorder %s17, 0
    %p174 = por %p172, %p173
    %p175 = scmp.ne.s32.totalorder %s161, %s162
    %p176 = scmp.eq.s32.totalorder %s18, 1
    %p177 = por %p175, %p176
    %p179 = scmp.ne.s32.totalorder %s162, %s178
    %p180 = scmp.eq.s32.totalorder %s18, 0
    %p181 = por %p179, %p180
    %s182 = ssub.s32 %s19, %s31
    %s183 = ssub.s32 %s20, %s27
    %s184 = sor.u32 %s182, %s183
    %p185 = scmp.eq.s32.totalorder %s184, 0
    %s187 = sadd.s32 %s186, 1
    %s188 = scalar_select %p185, %s186, %s187
    %p191 = pneg %p185
    %p192 = scmp.eq.s32.totalorder %s12, 1
    %p193 = por %p191, %p192
    %p194 = scmp.ne.s32.totalorder %s186, %s189
    %p195 = scmp.eq.s32.totalorder %s12, 0
    %p196 = por %p194, %p195
    %p197 = scmp.ne.s32.totalorder %s186, %s189
    %p198 = scmp.eq.s32.totalorder %s17, 1
    %p199 = por %p197, %p198
    %p200 = scmp.ne.s32.totalorder %s189, %s190
    %p201 = scmp.eq.s32.totalorder %s17, 0
    %p202 = por %p200, %p201
    %p203 = scmp.ne.s32.totalorder %s189, %s190
    %p204 = scmp.eq.s32.totalorder %s18, 1
    %p205 = por %p203, %p204
    %p207 = scmp.ne.s32.totalorder %s190, %s206
    %p208 = scmp.eq.s32.totalorder %s18, 0
    %p209 = por %p207, %p208
    %p210 = scmp.le.s32.totalorder 1, %s12
    %p211 = scmp.lt.s32.totalorder %s12, 3
    %p212 = pnand %p210, %p211
    %p213 = pneg %p212
    // Predicated region
    $region9: #{query_transformer_forward.20} parent=5 // pred_check
      _
    $region10: #{query_transformer_forward.20} parent=5 // pred_check_branch
      %215 = sbr.rel (%p212) target = $region12
    $region11: #{query_transformer_forward.20} parent=5 // pred_region
      %s216 = ssub.s32 %s12, 1
      // Predicated region
      $region13: #{query_transformer_forward.20} parent=11 // pred_check
        %p217 = pneg %p125
      $region14: #{query_transformer_forward.20} parent=11 // pred_check_branch
        %219 = sbr.rel (%p217) target = $region16
      $region15: #{query_transformer_forward.20} parent=11 // pred_region
        _
      $region16: #{query_transformer_forward.20} parent=11 // pred_fallthru
        _
      // Predicated region
      $region17: #{query_transformer_forward.20} parent=11 // pred_check
        %p220 = pneg %p146
      $region18: #{query_transformer_forward.20} parent=11 // pred_check_branch
        %222 = sbr.rel (%p220) target = $region20
      $region19: #{query_transformer_forward.20} parent=11 // pred_region
        _
      $region20: #{query_transformer_forward.20} parent=11 // pred_fallthru
        _
    $region12: #{query_transformer_forward.20} parent=5 // pred_fallthru
      _
    %p223 = scmp.lt.s32.totalorder %s12, 2
    // Predicated region
    $region21: #{query_transformer_forward.20} parent=5 // pred_check
      %p224 = pneg %p223
    $region22: #{query_transformer_forward.20} parent=5 // pred_check_branch
      %226 = sbr.rel (%p224) target = $region24
    $region23: #{query_transformer_forward.20} parent=5 // pred_region
      // Predicated region
      $region25: #{query_transformer_forward.20} parent=23 // pred_check
        %p227 = pneg %p46
      $region26: #{query_transformer_forward.20} parent=23 // pred_check_branch
        %229 = sbr.rel (%p227) target = $region28
      $region27: #{query_transformer_forward.20} parent=23 // pred_region
        %p230 = scmp.lt.s32.totalorder %s19, 1
        %s231 = scalar_select %p230, %s19, 1
        %p232 = scmp.lt.s32.totalorder %s20, 0
        %s233 = scalar_select %p232, %s20, 0
        %s234 = sadd.s32 %s233, %s231
        %s235 = smul.addr %s234, 4
        %s236 = scalar_lea.vmem %s0, %s235
      $region28: #{query_transformer_forward.20} parent=23 // pred_fallthru
        _
      // Predicated region
      $region29: #{query_transformer_forward.20} parent=23 // pred_check
        %p237 = pneg %p72
      $region30: #{query_transformer_forward.20} parent=23 // pred_check_branch
        %239 = sbr.rel (%p237) target = $region32
      $region31: #{query_transformer_forward.20} parent=23 // pred_region
        %p240 = scmp.lt.s32.totalorder %s19, 1
        %s241 = scalar_select %p240, %s19, 1
        %s242 = smul.addr %s241, 4
        %s243 = scalar_lea.vmem %s1, %s242
      $region32: #{query_transformer_forward.20} parent=23 // pred_fallthru
        _
      // Predicated region
      $region33: #{query_transformer_forward.20} parent=23 // pred_check
        %p244 = pneg %p98
      $region34: #{query_transformer_forward.20} parent=23 // pred_check_branch
        %246 = sbr.rel (%p244) target = $region36
      $region35: #{query_transformer_forward.20} parent=23 // pred_region
        %p247 = scmp.lt.s32.totalorder %s19, 1
        %s248 = scalar_select %p247, %s19, 1
        %s249 = smul.addr %s248, 4
        %s250 = scalar_lea.vmem %s2, %s249
      $region36: #{query_transformer_forward.20} parent=23 // pred_fallthru
        _
      // Predicated region
      $region37: #{query_transformer_forward.20} parent=23 // pred_check
        %p251 = pneg %p168
      $region38: #{query_transformer_forward.20} parent=23 // pred_check_branch
        %253 = sbr.rel (%p251) target = $region40
      $region39: #{query_transformer_forward.20} parent=23 // pred_region
        %p254 = scmp.lt.s32.totalorder %s19, 1
        %s255 = scalar_select %p254, %s19, 1
        %p256 = scmp.lt.s32.totalorder %s20, 0
        %s257 = scalar_select %p256, %s20, 0
        %s258 = sadd.s32 %s257, %s255
        %s259 = smul.addr %s258, 4
        %s260 = scalar_lea.vmem %s5, %s259
      $region40: #{query_transformer_forward.20} parent=23 // pred_fallthru
        _
    $region24: #{query_transformer_forward.20} parent=5 // pred_fallthru
      _
    %p261 = scmp.le.s32.totalorder 1, %s12
    %p262 = scmp.lt.s32.totalorder %s12, 3
    %p263 = pnand %p261, %p262
    %p264 = pneg %p263
    // Predicated region
    $region41: #{query_transformer_forward.20} parent=5 // pred_check
      _
    $region42: #{query_transformer_forward.20} parent=5 // pred_check_branch
      %266 = sbr.rel (%p263) target = $region44
    $region43: #{query_transformer_forward.20} parent=5 // pred_region
      %s267 = ssub.s32 %s12, 1
      %p268 = scmp.lt.s32.totalorder %s21, 1
      %s269 = scalar_select %p268, %s21, 1
      %p270 = scmp.lt.s32.totalorder %s22, 0
      %s271 = scalar_select %p270, %s22, 0
      %s272 = sadd.s32 %s271, %s269
      %s273 = smul.addr %s272, 4
      %s274 = scalar_lea.vmem %s0, %s273
      %p275 = pneg %p52
      %p276 = pneg %p49
      %p277 = scmp.lt.s32.totalorder %s21, 1
      %s278 = scalar_select %p277, %s21, 1
      %s279 = smul.addr %s278, 4
      %s280 = scalar_lea.vmem %s1, %s279
      %p281 = pneg %p78
      %p282 = pneg %p75
      %p283 = scmp.lt.s32.totalorder %s21, 1
      %s284 = scalar_select %p283, %s21, 1
      %s285 = smul.addr %s284, 4
      %s286 = scalar_lea.vmem %s2, %s285
      %p287 = pneg %p104
      %p288 = pneg %p101
      %p289 = pneg %p125
      %p290 = pneg %p122
      %p291 = pneg %p146
      %p292 = pneg %p143
      %p293 = scmp.lt.s32.totalorder %s21, 1
      %s294 = scalar_select %p293, %s21, 1
      %p295 = scmp.lt.s32.totalorder %s22, 0
      %s296 = scalar_select %p295, %s22, 0
      %s297 = sadd.s32 %s296, %s294
      %s298 = smul.addr %s297, 4
      %s299 = scalar_lea.vmem %s5, %s298
      %p300 = pneg %p174
      %p301 = pneg %p171
      %p302 = pneg %p202
      %p303 = pneg %p199
      %p304 = scmp.lt.s32.totalorder %s21, 1
      %s305 = scalar_select %p304, %s21, 1
      %p306 = scmp.lt.s32.totalorder %s22, 0
      %s307 = scalar_select %p306, %s22, 0
      %s308 = sadd.s32 %s307, %s305
      %s309 = smul.addr %s308, 4
      %s310 = scalar_lea.vmem %s6, %s309
      %p311 = scmp.lt.s32.totalorder %s21, 1
      %s312 = scalar_select %p311, %s21, 1
      %p313 = scmp.lt.s32.totalorder %s22, 0
      %s314 = scalar_select %p313, %s22, 0
      %s315 = sadd.s32 %s314, %s312
      %s316 = smul.addr %s315, 4
      %s317 = scalar_lea.vmem %s0, %s316
      %p318 = scmp.lt.s32.totalorder %s21, 1
      %s319 = scalar_select %p318, %s21, 1
      %s320 = smul.addr %s319, 4
      %s321 = scalar_lea.vmem %s1, %s320
      %p322 = scmp.lt.s32.totalorder %s21, 1
      %s323 = scalar_select %p322, %s21, 1
      %s324 = smul.addr %s323, 4
      %s325 = scalar_lea.vmem %s2, %s324
      %p326 = scmp.lt.s32.totalorder %s21, 1
      %s327 = scalar_select %p326, %s21, 1
      %p328 = scmp.lt.s32.totalorder %s22, 0
      %s329 = scalar_select %p328, %s22, 0
      %s330 = sadd.s32 %s329, %s327
      %s331 = smul.addr %s330, 4
      %s332 = scalar_lea.vmem %s5, %s331
      %p333 = scmp.lt.s32.totalorder %s21, 1
      %s334 = scalar_select %p333, %s21, 1
      %p335 = scmp.lt.s32.totalorder %s22, 0
      %s336 = scalar_select %p335, %s22, 0
      %s337 = sadd.s32 %s336, %s334
      %s338 = smul.addr %s337, 4
      %s339 = scalar_lea.vmem %s6, %s338
      %v341 = vld [vmem:[%s317] sm:$0xf]
      %v342 = vld [vmem:[%s321] sm:$0xf]
      %v343 = vld [vmem:[%s325] sm:$0xf]
      %vm344 = vcmask 261120
      %v346 = vsel %vm344, %v341, 0
      %v349 = vsel %vm344, %v342, 0
      %351 = vmatpush.bf16.xpose.msra.mxu0 0
      %352 = vmatpush.bf16.xpose.msra.mxu0 0
      %353 = vmatpush.bf16.xpose.msra.mxu0 0
      %354 = vmatpush.bf16.xpose.msra.mxu0 0
      %355 = vmatpush.bf16.xpose.msra.mxu0 0
      %356 = vmatpush.bf16.xpose.msra.mxu0 0
      %357 = vmatpush.bf16.xpose.msra.mxu0 0
      %358 = vmatpush.bf16.xpose.msra.mxu0 %v349
      %359 = vmatmul.bf16.gmra.mxu0 %v346
      %v360 = vpop.f32.mrf.mxu0
      %v361 = vadd.f32 0.0, %v360
      %v362 = vpop.f32.mrf.mxu0
      %363 = vdwg.mxu0
      %v364 = vmul.f32 %v361, 0.17677669
      %vm365 = vcmask 64512
      %v366 = vsel %vm365, %v364, -inf
      %367 = vmax.xlane.f32.xlu0 %v366
      %v368 = vpop.xlane.xlu0 %367
      %v369 = vsub.f32 %v364, %v368
      %v370 = vmul.f32 %v369, 1.442695
      %v371 = vpow.pop %v370
      %v372 = vsel %vm365, %v371, 0.0
      %373 = vadd.xlane.f32.xlu0 %v372
      %v374 = vpop.xlane.xlu0 %373
      %v375 = vrcp.pop %v374
      %v376 = vmul.f32 %v371, %v375
      %v377 = vpack.c.bf16 %v376, %v376
      %v379 = vsel %vm365, %v377, 0
      %vm381 = vcmask 1043456
      %v383 = vsel %vm381, %v343, 0
      %385 = vmatpush.bf16.msra.mxu0 0
      %386 = vmatpush.bf16.msra.mxu0 0
      %387 = vmatpush.bf16.msra.mxu0 0
      %388 = vmatpush.bf16.msra.mxu0 0
      %389 = vmatpush.bf16.msra.mxu0 0
      %390 = vmatpush.bf16.msra.mxu0 0
      %391 = vmatpush.bf16.msra.mxu0 0
      %392 = vmatpush.bf16.msra.mxu0 %v383
      %393 = vmatmul.bf16.gmra.mxu0 %v379
      %v394 = vpop.f32.mrf.mxu0
      %v395 = vadd.f32 0.0, %v394
      %v396 = vpop.f32.mrf.mxu0
      %397 = vdwg.mxu0
      %v398 = vpack.c.bf16 %v395, %v395
      %v399 = vld [vmem:[%s3] sm:$0xf]
      %v400 = vld [vmem:[%s3 + $0x4] sm:$0xf]
      %v401 = vld [vmem:[%s3 + $0x8] sm:$0xf]
      %v402 = vld [vmem:[%s3 + $0xc] sm:$0xf]
      %v404 = vunpack.c.l.b16 %v341
      %v405 = vpack.c.b16 %v404, %v404
      %406 = vrot.lane.b32.xlu0 %v405, 96
      %v407 = vpop.permute.xlu0 %406
      %v409 = vunpack.c.l.b16 %v342
      %v410 = vpack.c.b16 %v409, %v409
      %411 = vrot.lane.b32.xlu0 %v410, 96
      %v412 = vpop.permute.xlu0 %411
      %v414 = vsel %vm344, %v407, 0
      %v417 = vsel %vm344, %v412, 0
      %419 = vmatpush.bf16.xpose.msra.mxu0 0
      %420 = vmatpush.bf16.xpose.msra.mxu0 0
      %421 = vmatpush.bf16.xpose.msra.mxu0 0
      %422 = vmatpush.bf16.xpose.msra.mxu0 0
      %423 = vmatpush.bf16.xpose.msra.mxu0 0
      %424 = vmatpush.bf16.xpose.msra.mxu0 0
      %425 = vmatpush.bf16.xpose.msra.mxu0 0
      %426 = vmatpush.bf16.xpose.msra.mxu0 %v417
      %427 = vmatmul.bf16.gmra.mxu0 %v414
      %v428 = vpop.f32.mrf.mxu0
      %v429 = vadd.f32 0.0, %v428
      %v430 = vpop.f32.mrf.mxu0
      %431 = vdwg.mxu0
      %v432 = vmul.f32 %v429, 0.17677669
      %v433 = vsel %vm365, %v432, -inf
      %434 = vmax.xlane.f32.xlu0 %v433
      %v435 = vpop.xlane.xlu0 %434
      %v436 = vsub.f32 %v432, %v435
      %v437 = vmul.f32 %v436, 1.442695
      %v438 = vpow.pop %v437
      %v439 = vsel %vm365, %v438, 0.0
      %440 = vadd.xlane.f32.xlu0 %v439
      %v441 = vpop.xlane.xlu0 %440
      %v442 = vrcp.pop %v441
      %v443 = vmul.f32 %v438, %v442
      %v444 = vpack.c.bf16 %v443, %v443
      %v446 = vunpack.c.l.b16 %v343
      %v447 = vpack.c.b16 %v446, %v446
      %448 = vrot.lane.b32.xlu0 %v447, 96
      %v449 = vpop.permute.xlu0 %448
      %v451 = vsel %vm365, %v444, 0
      %v454 = vsel %vm381, %v449, 0
      %456 = vmatpush.bf16.msra.mxu0 0
      %457 = vmatpush.bf16.msra.mxu0 0
      %458 = vmatpush.bf16.msra.mxu0 0
      %459 = vmatpush.bf16.msra.mxu0 0
      %460 = vmatpush.bf16.msra.mxu0 0
      %461 = vmatpush.bf16.msra.mxu0 0
      %462 = vmatpush.bf16.msra.mxu0 0
      %463 = vmatpush.bf16.msra.mxu0 %v454
      %464 = vmatmul.bf16.gmra.mxu0 %v451
      %v465 = vpop.f32.mrf.mxu0
      %v466 = vadd.f32 0.0, %v465
      %v467 = vpop.f32.mrf.mxu0
      %468 = vdwg.mxu0
      %v469 = vpack.c.bf16 %v466, %v466
      %s470 = scalar_lea.vmem %s3, 16
      %v471 = vld [vmem:[%s470] sm:$0xf]
      %v472 = vld [vmem:[%s470 + $0x4] sm:$0xf]
      %v473 = vld [vmem:[%s470 + $0x8] sm:$0xf]
      %v474 = vld [vmem:[%s470 + $0xc] sm:$0xf]
      %v479 = vunpack.c.l.b16 %v471
      %v480 = vunpack.c.l.b16 %v472
      %v481 = vunpack.c.l.b16 %v473
      %v482 = vunpack.c.l.b16 %v474
      %v483 = vpack.c.b16 %v480, %v479
      %v484 = vpack.c.b16 %v482, %v481
      %v488 = vsel %vm344, %v469, 0
      %490 = vmatpush.bf16.msra.mxu0 0
      %491 = vmatpush.bf16.msra.mxu0 0
      %492 = vmatpush.bf16.msra.mxu0 0
      %493 = vmatpush.bf16.msra.mxu0 0
      %494 = vmatpush.bf16.msra.mxu0 0
      %495 = vmatpush.bf16.msra.mxu0 0
      %496 = vmatpush.bf16.msra.mxu0 %v484
      %497 = vmatpush.bf16.msra.mxu0 %v483
      %498 = vmatmul.bf16.gmra.mxu0 %v488
      %v499 = vpop.f32.mrf.mxu0
      %v500 = vadd.f32 0.0, %v499
      %v501 = vpop.f32.mrf.mxu0
      %502 = vdwg.mxu0
      %v507 = vunpack.c.l.b16 %v399
      %v508 = vunpack.c.l.b16 %v400
      %v509 = vunpack.c.l.b16 %v401
      %v510 = vunpack.c.l.b16 %v402
      %v511 = vpack.c.b16 %v508, %v507
      %v512 = vpack.c.b16 %v510, %v509
      %v516 = vsel %vm344, %v398, 0
      %518 = vmatpush.bf16.msra.mxu0 0
      %519 = vmatpush.bf16.msra.mxu0 0
      %520 = vmatpush.bf16.msra.mxu0 0
      %521 = vmatpush.bf16.msra.mxu0 0
      %522 = vmatpush.bf16.msra.mxu0 0
      %523 = vmatpush.bf16.msra.mxu0 0
      %524 = vmatpush.bf16.msra.mxu0 %v512
      %525 = vmatpush.bf16.msra.mxu0 %v511
      %526 = vmatmul.bf16.gmra.mxu0 %v516
      %v527 = vpop.f32.mrf.mxu0
      %v528 = vadd.f32 %v500, %v527
      %v529 = vpop.f32.mrf.mxu0
      %530 = vdwg.mxu0
      %v531 = vld [vmem:[%s4] sm:$0x1]
      %v533 = vperm.slane %v531, 0
      %v535 = vadd.f32 %v528, %v533
      %v536 = vld [vmem:[%s332] sm:$0xf]
      %v537 = vunpack.c.l.bf16 %v536
      %v538 = vadd.f32 %v535, %v537
      %v539 = vpack.c.bf16 %v538, %v538
      %vm540 = vcmask 519168
      %541 = vst.msk [vmem:[%s339] sm:$0xf] %vm540, %v539
      %p542 = scmp.lt.s32.totalorder %s21, 1
      %s543 = scalar_select %p542, %s21, 1
      %p544 = scmp.lt.s32.totalorder %s22, 0
      %s545 = scalar_select %p544, %s22, 0
      %s546 = sadd.s32 %s545, %s543
      %s547 = smul.addr %s546, 4
      %s548 = scalar_lea.vmem %s6, %s547
      // Predicated region
      $region45: #{query_transformer_forward.20} parent=43 // pred_check
        %p549 = pneg %p199
      $region46: #{query_transformer_forward.20} parent=43 // pred_check_branch
        %551 = sbr.rel (%p549) target = $region48
      $region47: #{query_transformer_forward.20} parent=43 // pred_region
        _
      $region48: #{query_transformer_forward.20} parent=43 // pred_fallthru
        _
    $region44: #{query_transformer_forward.20} parent=5 // pred_fallthru
      _
    %p552 = scmp.le.s32.totalorder 2, %s12
    // Predicated region
    $region49: #{query_transformer_forward.20} parent=5 // pred_check
      %p553 = pneg %p552
    $region50: #{query_transformer_forward.20} parent=5 // pred_check_branch
      %555 = sbr.rel (%p553) target = $region52
    $region51: #{query_transformer_forward.20} parent=5 // pred_region
      %s556 = ssub.s32 %s12, 2
      // Predicated region
      $region53: #{query_transformer_forward.20} parent=51 // pred_check
        %p557 = pneg %p205
      $region54: #{query_transformer_forward.20} parent=51 // pred_check_branch
        %559 = sbr.rel (%p557) target = $region56
      $region55: #{query_transformer_forward.20} parent=51 // pred_region
        %p560 = scmp.lt.s32.totalorder %s23, 1
        %s561 = scalar_select %p560, %s23, 1
        %p562 = scmp.lt.s32.totalorder %s24, 0
        %s563 = scalar_select %p562, %s24, 0
        %s564 = sadd.s32 %s563, %s561
        %s565 = smul.addr %s564, 4
        %s566 = scalar_lea.vmem %s6, %s565
      $region56: #{query_transformer_forward.20} parent=51 // pred_fallthru
        _
    $region52: #{query_transformer_forward.20} parent=5 // pred_fallthru
      _
  $region6: #{query_transformer_forward.20} parent=0 // loop_footer
    %s16 = sadd.s32 1, %s12
  $region7: #{query_transformer_forward.20} parent=0 // loop_footer_branch
    %11 = sbr.rel target = $region3
  $region8: #{query_transformer_forward.20} parent=0 // loop_exit
    _

// kernel: query_transformer_forward.22
$region0: #{query_transformer_forward.22}
  #allocation0 [shape = 'u32[]', space=smem, size = 0x4, offset = 0x4, fixed_abs, tag = 'smem constant byte address 0x4 - core index']
  #allocation1 [shape = 'u32[72,128]{1,0:T(1,128)}', space=vmem, size = 0x9000, scoped, tag = 'internal scratch']
  %s0 = inlined_call_operand.vmem [shape: bf16[16,64], index: 0, kind: input, shape index: {}]
  %s1 = inlined_call_operand.vmem [shape: bf16[16,64], index: 1, kind: input, shape index: {}]
  %s2 = inlined_call_operand.vmem [shape: bf16[64,64], index: 2, kind: input, shape index: {}]
  %s3 = inlined_call_operand.vmem [shape: f32[1,64], index: 3, kind: input, shape index: {}]
  %s4 = inlined_call_operand.vmem [shape: bf16[16,64], index: 4, kind: output, shape index: {}]
  %s5 = sld [smem:[#allocation0]]
  $region26: #{query_transformer_forward.22} parent=0
    _
  %s7 = ssub.s32 1, %s5
  %s8 = scalar_select 0, %s7, %s5
  // Predicated region
  $region2: #{query_transformer_forward.22} parent=0 // pred_check
    _
  $region3: #{query_transformer_forward.22} parent=0 // pred_check_branch
    %10 = sbr.rel (0) target = $region5
  $region4: #{query_transformer_forward.22} parent=0 // pred_region
    _
  $region5: #{query_transformer_forward.22} parent=0 // pred_fallthru
    _
  // Predicated region
  $region6: #{query_transformer_forward.22} parent=0 // pred_check
    _
  $region7: #{query_transformer_forward.22} parent=0 // pred_check_branch
    %12 = sbr.rel (0) target = $region9
  $region8: #{query_transformer_forward.22} parent=0 // pred_region
    _
  $region9: #{query_transformer_forward.22} parent=0 // pred_fallthru
    _
  // Predicated region
  $region10: #{query_transformer_forward.22} parent=0 // pred_check
    _
  $region11: #{query_transformer_forward.22} parent=0 // pred_check_branch
    %14 = sbr.rel (0) target = $region13
  $region12: #{query_transformer_forward.22} parent=0 // pred_region
    _
  $region13: #{query_transformer_forward.22} parent=0 // pred_fallthru
    _
  // Predicated region
  $region14: #{query_transformer_forward.22} parent=0 // pred_check
    _
  $region15: #{query_transformer_forward.22} parent=0 // pred_check_branch
    %16 = sbr.rel (0) target = $region17
  $region16: #{query_transformer_forward.22} parent=0 // pred_region
    _
  $region17: #{query_transformer_forward.22} parent=0 // pred_fallthru
    _
  %v18 = vld [vmem:[%s0] sm:$0xf]
  %v19 = vld [vmem:[%s0 + $0x4] sm:$0xf]
  %v20 = vld [vmem:[%s2] sm:$0xf]
  %v21 = vld [vmem:[%s2 + $0x4] sm:$0xf]
  %v22 = vld [vmem:[%s2 + $0x8] sm:$0xf]
  %v23 = vld [vmem:[%s2 + $0xc] sm:$0xf]
  %v24 = vld [vmem:[%s2 + $0x10] sm:$0xf]
  %v25 = vld [vmem:[%s2 + $0x14] sm:$0xf]
  %v26 = vld [vmem:[%s2 + $0x18] sm:$0xf]
  %v27 = vld [vmem:[%s2 + $0x1c] sm:$0xf]
  %v28 = vld [vmem:[%s3] sm:$0x1]
  %v30 = vperm.slane %v28, 0
  %v34 = vunpack.c.l.b16 %v18
  %v35 = vunpack.c.l.b16 %v19
  %v36 = vpack.c.b16 %v35, %v34
  %v45 = vunpack.c.l.b16 %v20
  %v46 = vunpack.c.l.b16 %v21
  %v47 = vunpack.c.l.b16 %v22
  %v48 = vunpack.c.l.b16 %v23
  %v49 = vunpack.c.l.b16 %v24
  %v50 = vunpack.c.l.b16 %v25
  %v51 = vunpack.c.l.b16 %v26
  %v52 = vunpack.c.l.b16 %v27
  %v53 = vpack.c.b16 %v46, %v45
  %v54 = vpack.c.b16 %v48, %v47
  %v55 = vpack.c.b16 %v50, %v49
  %v56 = vpack.c.b16 %v52, %v51
  %vm61 = vcmask 523264
  %v63 = vsel %vm61, %v36, 0
  %65 = vmatpush.bf16.msra.mxu0 0
  %66 = vmatpush.bf16.msra.mxu0 0
  %67 = vmatpush.bf16.msra.mxu0 0
  %68 = vmatpush.bf16.msra.mxu0 0
  %69 = vmatpush.bf16.msra.mxu0 %v56
  %70 = vmatpush.bf16.msra.mxu0 %v55
  %71 = vmatpush.bf16.msra.mxu0 %v54
  %72 = vmatpush.bf16.msra.mxu0 %v53
  %73 = vmatmul.bf16.gmra.mxu0 %v63
  %v74 = vpop.f32.mrf.mxu0
  %v75 = vadd.f32 %v30, %v74
  %v76 = vpop.f32.mrf.mxu0
  %v77 = vadd.f32 %v30, %v76
  %78 = vdwg.mxu0
  %v79 = vld [vmem:[%s1] sm:$0xf]
  %v80 = vld [vmem:[%s1 + $0x4] sm:$0xf]
  %v81 = vunpack.c.l.bf16 %v79
  %v82 = vunpack.c.l.bf16 %v80
  %v83 = vadd.f32 %v75, %v81
  %v84 = vadd.f32 %v77, %v82
  %v85 = vpack.c.bf16 %v83, %v83
  %v86 = vpack.c.bf16 %v84, %v84
  %vm87 = vcmask 519168
  %88 = vst.msk [vmem:[%s4] sm:$0xf] %vm87, %v85
  %89 = vst.msk [vmem:[%s4 + $0x4] sm:$0xf] %vm87, %v86
  // Predicated region
  $region18: #{query_transformer_forward.22} parent=0 // pred_check
    _
  $region19: #{query_transformer_forward.22} parent=0 // pred_check_branch
    %91 = sbr.rel (0) target = $region21
  $region20: #{query_transformer_forward.22} parent=0 // pred_region
    _
  $region21: #{query_transformer_forward.22} parent=0 // pred_fallthru
    _
  // Predicated region
  $region22: #{query_transformer_forward.22} parent=0 // pred_check
    _
  $region23: #{query_transformer_forward.22} parent=0 // pred_check_branch
    %93 = sbr.rel (0) target = $region25
  $region24: #{query_transformer_forward.22} parent=0 // pred_region
    _
  $region25: #{query_transformer_forward.22} parent=0 // pred_fallthru
    _

// kernel: query_transformer_forward.24
$region0: #{query_transformer_forward.24}
  #allocation0 [shape = 'u32[]', space=smem, size = 0x4, offset = 0x4, fixed_abs, tag = 'smem constant byte address 0x4 - core index']
  #allocation1 [shape = 'u32[72,128]{1,0:T(1,128)}', space=vmem, size = 0x9000, scoped, tag = 'internal scratch']
  %s0 = inlined_call_operand.vmem [shape: bf16[16,64], index: 0, kind: input, shape index: {}]
  %s1 = inlined_call_operand.vmem [shape: bf16[16,64], index: 1, kind: input, shape index: {}]
  %s2 = inlined_call_operand.vmem [shape: bf16[64,64], index: 2, kind: input, shape index: {}]
  %s3 = inlined_call_operand.vmem [shape: f32[1,64], index: 3, kind: input, shape index: {}]
  %s4 = inlined_call_operand.vmem [shape: bf16[64,64], index: 4, kind: input, shape index: {}]
  %s5 = inlined_call_operand.vmem [shape: f32[1,64], index: 5, kind: input, shape index: {}]
  %s6 = inlined_call_operand.vmem [shape: bf16[16,64], index: 6, kind: output, shape index: {0}]
  %s7 = inlined_call_operand.vmem [shape: bf16[16,64], index: 7, kind: output, shape index: {1}]
  %8 = xla_tuple %s6, %s7
  %s9 = sld [smem:[#allocation0]]
  $region42: #{query_transformer_forward.24} parent=0
    _
  %s11 = ssub.s32 1, %s9
  %s12 = scalar_select 0, %s11, %s9
  // Predicated region
  $region2: #{query_transformer_forward.24} parent=0 // pred_check
    _
  $region3: #{query_transformer_forward.24} parent=0 // pred_check_branch
    %14 = sbr.rel (0) target = $region5
  $region4: #{query_transformer_forward.24} parent=0 // pred_region
    _
  $region5: #{query_transformer_forward.24} parent=0 // pred_fallthru
    _
  // Predicated region
  $region6: #{query_transformer_forward.24} parent=0 // pred_check
    _
  $region7: #{query_transformer_forward.24} parent=0 // pred_check_branch
    %16 = sbr.rel (0) target = $region9
  $region8: #{query_transformer_forward.24} parent=0 // pred_region
    _
  $region9: #{query_transformer_forward.24} parent=0 // pred_fallthru
    _
  // Predicated region
  $region10: #{query_transformer_forward.24} parent=0 // pred_check
    _
  $region11: #{query_transformer_forward.24} parent=0 // pred_check_branch
    %18 = sbr.rel (0) target = $region13
  $region12: #{query_transformer_forward.24} parent=0 // pred_region
    _
  $region13: #{query_transformer_forward.24} parent=0 // pred_fallthru
    _
  // Predicated region
  $region14: #{query_transformer_forward.24} parent=0 // pred_check
    _
  $region15: #{query_transformer_forward.24} parent=0 // pred_check_branch
    %20 = sbr.rel (0) target = $region17
  $region16: #{query_transformer_forward.24} parent=0 // pred_region
    _
  $region17: #{query_transformer_forward.24} parent=0 // pred_fallthru
    _
  // Predicated region
  $region18: #{query_transformer_forward.24} parent=0 // pred_check
    _
  $region19: #{query_transformer_forward.24} parent=0 // pred_check_branch
    %22 = sbr.rel (0) target = $region21
  $region20: #{query_transformer_forward.24} parent=0 // pred_region
    _
  $region21: #{query_transformer_forward.24} parent=0 // pred_fallthru
    _
  // Predicated region
  $region22: #{query_transformer_forward.24} parent=0 // pred_check
    _
  $region23: #{query_transformer_forward.24} parent=0 // pred_check_branch
    %24 = sbr.rel (0) target = $region25
  $region24: #{query_transformer_forward.24} parent=0 // pred_region
    _
  $region25: #{query_transformer_forward.24} parent=0 // pred_fallthru
    _
  %v26 = vld [vmem:[%s0] sm:$0xf]
  %v27 = vld [vmem:[%s0 + $0x4] sm:$0xf]
  %v28 = vunpack.c.l.bf16 %v26
  %v29 = vunpack.c.l.bf16 %v27
  %v30 = vld [vmem:[%s1] sm:$0xf]
  %v31 = vld [vmem:[%s1 + $0x4] sm:$0xf]
  %v32 = vunpack.c.l.bf16 %v30
  %v33 = vunpack.c.l.bf16 %v31
  %v34 = vadd.f32 %v28, %v32
  %v35 = vadd.f32 %v29, %v33
  %v36 = vpack.c.bf16 %v35, %v34
  %v37 = vld [vmem:[%s2] sm:$0xf]
  %v38 = vld [vmem:[%s2 + $0x4] sm:$0xf]
  %v39 = vld [vmem:[%s2 + $0x8] sm:$0xf]
  %v40 = vld [vmem:[%s2 + $0xc] sm:$0xf]
  %v41 = vld [vmem:[%s2 + $0x10] sm:$0xf]
  %v42 = vld [vmem:[%s2 + $0x14] sm:$0xf]
  %v43 = vld [vmem:[%s2 + $0x18] sm:$0xf]
  %v44 = vld [vmem:[%s2 + $0x1c] sm:$0xf]
  %v45 = vld [vmem:[%s3] sm:$0x1]
  %v47 = vperm.slane %v45, 0
  %v57 = vunpack.c.l.b16 %v37
  %v58 = vunpack.c.l.b16 %v38
  %v59 = vunpack.c.l.b16 %v39
  %v60 = vunpack.c.l.b16 %v40
  %v61 = vunpack.c.l.b16 %v41
  %v62 = vunpack.c.l.b16 %v42
  %v63 = vunpack.c.l.b16 %v43
  %v64 = vunpack.c.l.b16 %v44
  %v65 = vpack.c.b16 %v58, %v57
  %v66 = vpack.c.b16 %v60, %v59
  %v67 = vpack.c.b16 %v62, %v61
  %v68 = vpack.c.b16 %v64, %v63
  %vm73 = vcmask 523264
  %v75 = vsel %vm73, %v36, 0
  %77 = vmatpush.bf16.msra.mxu0 0
  %78 = vmatpush.bf16.msra.mxu0 0
  %79 = vmatpush.bf16.msra.mxu0 0
  %80 = vmatpush.bf16.msra.mxu0 0
  %81 = vmatpush.bf16.msra.mxu0 %v68
  %82 = vmatpush.bf16.msra.mxu0 %v67
  %83 = vmatpush.bf16.msra.mxu0 %v66
  %84 = vmatpush.bf16.msra.mxu0 %v65
  %85 = vmatmul.bf16.gmra.mxu0 %v75
  %v86 = vpop.f32.mrf.mxu0
  %v87 = vadd.f32 %v47, %v86
  %v88 = vpop.f32.mrf.mxu0
  %v89 = vadd.f32 %v47, %v88
  %90 = vdwg.mxu0
  %v91 = vpack.c.bf16 %v87, %v87
  %v92 = vpack.c.bf16 %v89, %v89
  %vm93 = vcmask 519168
  %94 = vst.msk [vmem:[%s6] sm:$0xf] %vm93, %v91
  %95 = vst.msk [vmem:[%s6 + $0x4] sm:$0xf] %vm93, %v92
  %v96 = vld [vmem:[%s4] sm:$0xf]
  %v97 = vld [vmem:[%s4 + $0x4] sm:$0xf]
  %v98 = vld [vmem:[%s4 + $0x8] sm:$0xf]
  %v99 = vld [vmem:[%s4 + $0xc] sm:$0xf]
  %v100 = vld [vmem:[%s4 + $0x10] sm:$0xf]
  %v101 = vld [vmem:[%s4 + $0x14] sm:$0xf]
  %v102 = vld [vmem:[%s4 + $0x18] sm:$0xf]
  %v103 = vld [vmem:[%s4 + $0x1c] sm:$0xf]
  %v104 = vld [vmem:[%s5] sm:$0x1]
  %v106 = vperm.slane %v104, 0
  %v110 = vunpack.c.l.b16 %v26
  %v111 = vunpack.c.l.b16 %v27
  %v112 = vpack.c.b16 %v111, %v110
  %v121 = vunpack.c.l.b16 %v96
  %v122 = vunpack.c.l.b16 %v97
  %v123 = vunpack.c.l.b16 %v98
  %v124 = vunpack.c.l.b16 %v99
  %v125 = vunpack.c.l.b16 %v100
  %v126 = vunpack.c.l.b16 %v101
  %v127 = vunpack.c.l.b16 %v102
  %v128 = vunpack.c.l.b16 %v103
  %v129 = vpack.c.b16 %v122, %v121
  %v130 = vpack.c.b16 %v124, %v123
  %v131 = vpack.c.b16 %v126, %v125
  %v132 = vpack.c.b16 %v128, %v127
  %v138 = vsel %vm73, %v112, 0
  %140 = vmatpush.bf16.msra.mxu0 0
  %141 = vmatpush.bf16.msra.mxu0 0
  %142 = vmatpush.bf16.msra.mxu0 0
  %143 = vmatpush.bf16.msra.mxu0 0
  %144 = vmatpush.bf16.msra.mxu0 %v132
  %145 = vmatpush.bf16.msra.mxu0 %v131
  %146 = vmatpush.bf16.msra.mxu0 %v130
  %147 = vmatpush.bf16.msra.mxu0 %v129
  %148 = vmatmul.bf16.gmra.mxu0 %v138
  %v149 = vpop.f32.mrf.mxu0
  %v150 = vadd.f32 %v106, %v149
  %v151 = vpop.f32.mrf.mxu0
  %v152 = vadd.f32 %v106, %v151
  %153 = vdwg.mxu0
  %v154 = vpack.c.bf16 %v150, %v150
  %v155 = vpack.c.bf16 %v152, %v152
  %156 = vst.msk [vmem:[%s7] sm:$0xf] %vm93, %v154
  %157 = vst.msk [vmem:[%s7 + $0x4] sm:$0xf] %vm93, %v155
  // Predicated region
  $region26: #{query_transformer_forward.24} parent=0 // pred_check
    _
  $region27: #{query_transformer_forward.24} parent=0 // pred_check_branch
    %159 = sbr.rel (0) target = $region29
  $region28: #{query_transformer_forward.24} parent=0 // pred_region
    _
  $region29: #{query_transformer_forward.24} parent=0 // pred_fallthru
    _
  // Predicated region
  $region30: #{query_transformer_forward.24} parent=0 // pred_check
    _
  $region31: #{query_transformer_forward.24} parent=0 // pred_check_branch
    %161 = sbr.rel (0) target = $region33
  $region32: #{query_transformer_forward.24} parent=0 // pred_region
    _
  $region33: #{query_transformer_forward.24} parent=0 // pred_fallthru
    _
  // Predicated region
  $region34: #{query_transformer_forward.24} parent=0 // pred_check
    _
  $region35: #{query_transformer_forward.24} parent=0 // pred_check_branch
    %163 = sbr.rel (0) target = $region37
  $region36: #{query_transformer_forward.24} parent=0 // pred_region
    _
  $region37: #{query_transformer_forward.24} parent=0 // pred_fallthru
    _
  // Predicated region
  $region38: #{query_transformer_forward.24} parent=0 // pred_check
    _
  $region39: #{query_transformer_forward.24} parent=0 // pred_check_branch
    %165 = sbr.rel (0) target = $region41
  $region40: #{query_transformer_forward.24} parent=0 // pred_region
    _
  $region41: #{query_transformer_forward.24} parent=0 // pred_fallthru
    _

// kernel: query_transformer_forward.23
$region0: #{query_transformer_forward.23}
  #allocation0 [shape = 'u32[]', space=smem, size = 0x4, offset = 0x4, fixed_abs, tag = 'smem constant byte address 0x4 - core index']
  #allocation1 [shape = 'u32[72,128]{1,0:T(1,128)}', space=vmem, size = 0x9000, scoped, tag = 'internal scratch']
  %s0 = inlined_call_operand.vmem [shape: bf16[128,64], index: 0, kind: input, shape index: {}]
  %s1 = inlined_call_operand.vmem [shape: bf16[128,64], index: 1, kind: input, shape index: {}]
  %s2 = inlined_call_operand.vmem [shape: bf16[64,64], index: 2, kind: input, shape index: {}]
  %s3 = inlined_call_operand.hbm [shape: f32[1,64], index: 3, kind: input, shape index: {}]
  %s4 = inlined_call_operand.vmem [shape: bf16[128,64], index: 4, kind: output, shape index: {}]
  %s5 = sld [smem:[#allocation0]]
  $region30: #{query_transformer_forward.23} parent=0
    _
  %s7 = ssub.s32 1, %s5
  %s8 = scalar_select 0, %s7, %s5
  $region1: #{query_transformer_forward.23} parent=0
    #allocation2 [shape = 'u8[512]{0}', space=vmem, size = 0x400, scoped, tag = 'input window, operand 3, single buffered']
    #allocation3 [shape = 's32[1]{0}', space=sflag, size = 0x4, scoped, tag = 'scoped memory for query_transformer_forward.23']
    %9 = vsyncpa [#allocation3], 0
    // Predicated region
    $region2: #{query_transformer_forward.23} parent=1 // pred_check
      _
    $region3: #{query_transformer_forward.23} parent=1 // pred_check_branch
      %11 = sbr.rel (0) target = $region5
    $region4: #{query_transformer_forward.23} parent=1 // pred_region
      _
    $region5: #{query_transformer_forward.23} parent=1 // pred_fallthru
      _
    // Predicated region
    $region6: #{query_transformer_forward.23} parent=1 // pred_check
      _
    $region7: #{query_transformer_forward.23} parent=1 // pred_check_branch
      %13 = sbr.rel (0) target = $region9
    $region8: #{query_transformer_forward.23} parent=1 // pred_region
      _
    $region9: #{query_transformer_forward.23} parent=1 // pred_fallthru
      _
    // Predicated region
    $region10: #{query_transformer_forward.23} parent=1 // pred_check
      _
    $region11: #{query_transformer_forward.23} parent=1 // pred_check_branch
      %15 = sbr.rel (0) target = $region13
    $region12: #{query_transformer_forward.23} parent=1 // pred_region
      _
    $region13: #{query_transformer_forward.23} parent=1 // pred_fallthru
      _
    // Predicated region
    $region14: #{query_transformer_forward.23} parent=1 // pred_check
      _
    $region15: #{query_transformer_forward.23} parent=1 // pred_check_branch
      %17 = sbr.rel (0) target = $region17
    $region16: #{query_transformer_forward.23} parent=1 // pred_region
      %19 = vsyncadd [#allocation3], 0
      %s21 = sshll.u32 %s3, 4
      %s22 = int_to_ptr.hbm [resolvable:$true] %s21
      %s23 = sshll.u32 [#allocation2], 4
      %s24 = int_to_ptr.vmem [resolvable:$true] %s23
      %26 = dma.hbm_to_vmem [thread:$0]  %s22, 16, %s24, [#allocation3]
    $region17: #{query_transformer_forward.23} parent=1 // pred_fallthru
      _
    // Predicated region
    $region18: #{query_transformer_forward.23} parent=1 // pred_check
      _
    $region19: #{query_transformer_forward.23} parent=1 // pred_check_branch
      %28 = sbr.rel (0) target = $region21
    $region20: #{query_transformer_forward.23} parent=1 // pred_region
      %30 = dma.done [#allocation3], 16
    $region21: #{query_transformer_forward.23} parent=1 // pred_fallthru
      _
    %v32 = vld [vmem:[%s0] sm:$0xf]
    %v33 = vld [vmem:[%s0 + $0x4] sm:$0xf]
    %v34 = vld [vmem:[%s0 + $0x8] sm:$0xf]
    %v35 = vld [vmem:[%s0 + $0xc] sm:$0xf]
    %v36 = vld [vmem:[%s0 + $0x10] sm:$0xf]
    %v37 = vld [vmem:[%s0 + $0x14] sm:$0xf]
    %v38 = vld [vmem:[%s0 + $0x18] sm:$0xf]
    %v39 = vld [vmem:[%s0 + $0x1c] sm:$0xf]
    %v40 = vld [vmem:[%s0 + $0x20] sm:$0xf]
    %v41 = vld [vmem:[%s0 + $0x24] sm:$0xf]
    %v42 = vld [vmem:[%s0 + $0x28] sm:$0xf]
    %v43 = vld [vmem:[%s0 + $0x2c] sm:$0xf]
    %v44 = vld [vmem:[%s0 + $0x30] sm:$0xf]
    %v45 = vld [vmem:[%s0 + $0x34] sm:$0xf]
    %v46 = vld [vmem:[%s0 + $0x38] sm:$0xf]
    %v47 = vld [vmem:[%s0 + $0x3c] sm:$0xf]
    %v48 = vunpack.c.l.bf16 %v32
    %v49 = vunpack.c.l.bf16 %v33
    %v50 = vunpack.c.l.bf16 %v34
    %v51 = vunpack.c.l.bf16 %v35
    %v52 = vunpack.c.l.bf16 %v36
    %v53 = vunpack.c.l.bf16 %v37
    %v54 = vunpack.c.l.bf16 %v38
    %v55 = vunpack.c.l.bf16 %v39
    %v56 = vunpack.c.l.bf16 %v40
    %v57 = vunpack.c.l.bf16 %v41
    %v58 = vunpack.c.l.bf16 %v42
    %v59 = vunpack.c.l.bf16 %v43
    %v60 = vunpack.c.l.bf16 %v44
    %v61 = vunpack.c.l.bf16 %v45
    %v62 = vunpack.c.l.bf16 %v46
    %v63 = vunpack.c.l.bf16 %v47
    %v64 = vld [vmem:[%s1] sm:$0xf]
    %v65 = vld [vmem:[%s1 + $0x4] sm:$0xf]
    %v66 = vld [vmem:[%s1 + $0x8] sm:$0xf]
    %v67 = vld [vmem:[%s1 + $0xc] sm:$0xf]
    %v68 = vld [vmem:[%s1 + $0x10] sm:$0xf]
    %v69 = vld [vmem:[%s1 + $0x14] sm:$0xf]
    %v70 = vld [vmem:[%s1 + $0x18] sm:$0xf]
    %v71 = vld [vmem:[%s1 + $0x1c] sm:$0xf]
    %v72 = vld [vmem:[%s1 + $0x20] sm:$0xf]
    %v73 = vld [vmem:[%s1 + $0x24] sm:$0xf]
    %v74 = vld [vmem:[%s1 + $0x28] sm:$0xf]
    %v75 = vld [vmem:[%s1 + $0x2c] sm:$0xf]
    %v76 = vld [vmem:[%s1 + $0x30] sm:$0xf]
    %v77 = vld [vmem:[%s1 + $0x34] sm:$0xf]
    %v78 = vld [vmem:[%s1 + $0x38] sm:$0xf]
    %v79 = vld [vmem:[%s1 + $0x3c] sm:$0xf]
    %v80 = vunpack.c.l.bf16 %v64
    %v81 = vunpack.c.l.bf16 %v65
    %v82 = vunpack.c.l.bf16 %v66
    %v83 = vunpack.c.l.bf16 %v67
    %v84 = vunpack.c.l.bf16 %v68
    %v85 = vunpack.c.l.bf16 %v69
    %v86 = vunpack.c.l.bf16 %v70
    %v87 = vunpack.c.l.bf16 %v71
    %v88 = vunpack.c.l.bf16 %v72
    %v89 = vunpack.c.l.bf16 %v73
    %v90 = vunpack.c.l.bf16 %v74
    %v91 = vunpack.c.l.bf16 %v75
    %v92 = vunpack.c.l.bf16 %v76
    %v93 = vunpack.c.l.bf16 %v77
    %v94 = vunpack.c.l.bf16 %v78
    %v95 = vunpack.c.l.bf16 %v79
    %v96 = vadd.f32 %v48, %v80
    %v97 = vadd.f32 %v49, %v81
    %v98 = vadd.f32 %v50, %v82
    %v99 = vadd.f32 %v51, %v83
    %v100 = vadd.f32 %v52, %v84
    %v101 = vadd.f32 %v53, %v85
    %v102 = vadd.f32 %v54, %v86
    %v103 = vadd.f32 %v55, %v87
    %v104 = vadd.f32 %v56, %v88
    %v105 = vadd.f32 %v57, %v89
    %v106 = vadd.f32 %v58, %v90
    %v107 = vadd.f32 %v59, %v91
    %v108 = vadd.f32 %v60, %v92
    %v109 = vadd.f32 %v61, %v93
    %v110 = vadd.f32 %v62, %v94
    %v111 = vadd.f32 %v63, %v95
    %v112 = vpack.c.bf16 %v97, %v96
    %v113 = vpack.c.bf16 %v99, %v98
    %v114 = vpack.c.bf16 %v101, %v100
    %v115 = vpack.c.bf16 %v103, %v102
    %v116 = vpack.c.bf16 %v105, %v104
    %v117 = vpack.c.bf16 %v107, %v106
    %v118 = vpack.c.bf16 %v109, %v108
    %v119 = vpack.c.bf16 %v111, %v110
    %v120 = vld [vmem:[%s2] sm:$0xf]
    %v121 = vld [vmem:[%s2 + $0x4] sm:$0xf]
    %v122 = vld [vmem:[%s2 + $0x8] sm:$0xf]
    %v123 = vld [vmem:[%s2 + $0xc] sm:$0xf]
    %v124 = vld [vmem:[%s2 + $0x10] sm:$0xf]
    %v125 = vld [vmem:[%s2 + $0x14] sm:$0xf]
    %v126 = vld [vmem:[%s2 + $0x18] sm:$0xf]
    %v127 = vld [vmem:[%s2 + $0x1c] sm:$0xf]
    %v128 = vld [vmem:[#allocation2] sm:$0x1]
    %v130 = vperm.slane %v128, 0
    %v140 = vunpack.c.l.b16 %v120
    %v141 = vunpack.c.l.b16 %v121
    %v142 = vunpack.c.l.b16 %v122
    %v143 = vunpack.c.l.b16 %v123
    %v144 = vunpack.c.l.b16 %v124
    %v145 = vunpack.c.l.b16 %v125
    %v146 = vunpack.c.l.b16 %v126
    %v147 = vunpack.c.l.b16 %v127
    %v148 = vpack.c.b16 %v141, %v140
    %v149 = vpack.c.b16 %v143, %v142
    %v150 = vpack.c.b16 %v145, %v144
    %v151 = vpack.c.b16 %v147, %v146
    %vm156 = vcmask 523264
    %v158 = vsel %vm156, %v112, 0
    %v161 = vsel %vm156, %v113, 0
    %v164 = vsel %vm156, %v114, 0
    %v167 = vsel %vm156, %v115, 0
    %v170 = vsel %vm156, %v116, 0
    %v173 = vsel %vm156, %v117, 0
    %v176 = vsel %vm156, %v118, 0
    %v179 = vsel %vm156, %v119, 0
    %181 = vmatpush.bf16.msra.mxu0 0
    %182 = vmatpush.bf16.msra.mxu0 0
    %183 = vmatpush.bf16.msra.mxu0 0
    %184 = vmatpush.bf16.msra.mxu0 0
    %185 = vmatpush.bf16.msra.mxu0 %v151
    %186 = vmatpush.bf16.msra.mxu0 %v150
    %187 = vmatpush.bf16.msra.mxu0 %v149
    %188 = vmatpush.bf16.msra.mxu0 %v148
    %189 = vmatmul.bf16.gmra.mxu0 %v158
    %v190 = vpop.f32.mrf.mxu0
    %v191 = vadd.f32 %v130, %v190
    %v192 = vpop.f32.mrf.mxu0
    %v193 = vadd.f32 %v130, %v192
    %194 = vmatmul.bf16.gmra.mxu0 %v161
    %v195 = vpop.f32.mrf.mxu0
    %v196 = vadd.f32 %v130, %v195
    %v197 = vpop.f32.mrf.mxu0
    %v198 = vadd.f32 %v130, %v197
    %199 = vmatmul.bf16.gmra.mxu0 %v164
    %v200 = vpop.f32.mrf.mxu0
    %v201 = vadd.f32 %v130, %v200
    %v202 = vpop.f32.mrf.mxu0
    %v203 = vadd.f32 %v130, %v202
    %204 = vmatmul.bf16.gmra.mxu0 %v167
    %v205 = vpop.f32.mrf.mxu0
    %v206 = vadd.f32 %v130, %v205
    %v207 = vpop.f32.mrf.mxu0
    %v208 = vadd.f32 %v130, %v207
    %209 = vmatmul.bf16.gmra.mxu0 %v170
    %v210 = vpop.f32.mrf.mxu0
    %v211 = vadd.f32 %v130, %v210
    %v212 = vpop.f32.mrf.mxu0
    %v213 = vadd.f32 %v130, %v212
    %214 = vmatmul.bf16.gmra.mxu0 %v173
    %v215 = vpop.f32.mrf.mxu0
    %v216 = vadd.f32 %v130, %v215
    %v217 = vpop.f32.mrf.mxu0
    %v218 = vadd.f32 %v130, %v217
    %219 = vmatmul.bf16.gmra.mxu0 %v176
    %v220 = vpop.f32.mrf.mxu0
    %v221 = vadd.f32 %v130, %v220
    %v222 = vpop.f32.mrf.mxu0
    %v223 = vadd.f32 %v130, %v222
    %224 = vmatmul.bf16.gmra.mxu0 %v179
    %v225 = vpop.f32.mrf.mxu0
    %v226 = vadd.f32 %v130, %v225
    %v227 = vpop.f32.mrf.mxu0
    %v228 = vadd.f32 %v130, %v227
    %229 = vdwg.mxu0
    %v230 = vpack.c.bf16 %v191, %v191
    %v231 = vpack.c.bf16 %v193, %v193
    %v232 = vpack.c.bf16 %v196, %v196
    %v233 = vpack.c.bf16 %v198, %v198
    %v234 = vpack.c.bf16 %v201, %v201
    %v235 = vpack.c.bf16 %v203, %v203
    %v236 = vpack.c.bf16 %v206, %v206
    %v237 = vpack.c.bf16 %v208, %v208
    %v238 = vpack.c.bf16 %v211, %v211
    %v239 = vpack.c.bf16 %v213, %v213
    %v240 = vpack.c.bf16 %v216, %v216
    %v241 = vpack.c.bf16 %v218, %v218
    %v242 = vpack.c.bf16 %v221, %v221
    %v243 = vpack.c.bf16 %v223, %v223
    %v244 = vpack.c.bf16 %v226, %v226
    %v245 = vpack.c.bf16 %v228, %v228
    %vm246 = vcmask 519168
    %247 = vst.msk [vmem:[%s4] sm:$0xf] %vm246, %v230
    %248 = vst.msk [vmem:[%s4 + $0x4] sm:$0xf] %vm246, %v231
    %249 = vst.msk [vmem:[%s4 + $0x8] sm:$0xf] %vm246, %v232
    %250 = vst.msk [vmem:[%s4 + $0xc] sm:$0xf] %vm246, %v233
    %251 = vst.msk [vmem:[%s4 + $0x10] sm:$0xf] %vm246, %v234
    %252 = vst.msk [vmem:[%s4 + $0x14] sm:$0xf] %vm246, %v235
    %253 = vst.msk [vmem:[%s4 + $0x18] sm:$0xf] %vm246, %v236
    %254 = vst.msk [vmem:[%s4 + $0x1c] sm:$0xf] %vm246, %v237
    %255 = vst.msk [vmem:[%s4 + $0x20] sm:$0xf] %vm246, %v238
    %256 = vst.msk [vmem:[%s4 + $0x24] sm:$0xf] %vm246, %v239
    %257 = vst.msk [vmem:[%s4 + $0x28] sm:$0xf] %vm246, %v240
    %258 = vst.msk [vmem:[%s4 + $0x2c] sm:$0xf] %vm246, %v241
    %259 = vst.msk [vmem:[%s4 + $0x30] sm:$0xf] %vm246, %v242
    %260 = vst.msk [vmem:[%s4 + $0x34] sm:$0xf] %vm246, %v243
    %261 = vst.msk [vmem:[%s4 + $0x38] sm:$0xf] %vm246, %v244
    %262 = vst.msk [vmem:[%s4 + $0x3c] sm:$0xf] %vm246, %v245
    // Predicated region
    $region22: #{query_transformer_forward.23} parent=1 // pred_check
      _
    $region23: #{query_transformer_forward.23} parent=1 // pred_check_branch
      %264 = sbr.rel (0) target = $region25
    $region24: #{query_transformer_forward.23} parent=1 // pred_region
      _
    $region25: #{query_transformer_forward.23} parent=1 // pred_fallthru
      _
    // Predicated region
    $region26: #{query_transformer_forward.23} parent=1 // pred_check
      _
    $region27: #{query_transformer_forward.23} parent=1 // pred_check_branch
      %266 = sbr.rel (0) target = $region29
    $region28: #{query_transformer_forward.23} parent=1 // pred_region
      _
    $region29: #{query_transformer_forward.23} parent=1 // pred_fallthru
      _
    %267 = vsyncpa [#allocation3], 1

// kernel: query_transformer_forward.25
$region0: #{query_transformer_forward.25}
  #allocation0 [shape = 'u32[]', space=smem, size = 0x4, offset = 0x4, fixed_abs, tag = 'smem constant byte address 0x4 - core index']
  #allocation1 [shape = 'u32[72,128]{1,0:T(1,128)}', space=vmem, size = 0x9000, scoped, tag = 'internal scratch']
  %s0 = inlined_call_operand.vmem [shape: bf16[2,64,64], index: 0, kind: input, shape index: {}]
  %s1 = inlined_call_operand.vmem [shape: bf16[2,8,64], index: 1, kind: input, shape index: {}]
  %s2 = inlined_call_operand.vmem [shape: bf16[2,8,64], index: 2, kind: input, shape index: {}]
  %s3 = inlined_call_operand.vmem [shape: bf16[2,32,64], index: 3, kind: input, shape index: {}]
  %s4 = inlined_call_operand.hbm [shape: f32[1,64], index: 4, kind: input, shape index: {}]
  %s5 = inlined_call_operand.vmem [shape: bf16[2,64,64], index: 5, kind: input, shape index: {}]
  %s6 = inlined_call_operand.vmem [shape: bf16[2,64,64], index: 6, kind: output, shape index: {}]
  %s7 = sld [smem:[#allocation0]]
  $region61: #{query_transformer_forward.25} parent=0
    _
  %s9 = ssub.s32 1, %s7
  %s10 = scalar_select 0, %s9, %s7
  $region1: #{query_transformer_forward.25} parent=0
    #allocation2 [shape = 'u8[512]{0}', space=vmem, size = 0x400, scoped, tag = 'input window, operand 4, single buffered']
    #allocation3 [shape = 's32[2]{0}', space=sflag, size = 0x8, scoped, tag = 'scoped memory for query_transformer_forward.25']
    %11 = vsyncpa [#allocation3], 0
    loop: start=0, step=1, limit=4
    $region2: #{query_transformer_forward.25} parent=1 // loop_pre_header
      _
    $region3: #{query_transformer_forward.25} parent=1 // loop_header
      %s13 = sphi 0, %s17
      %p14 = scmp.ge.s32.totalorder %s13, 4
      %s20 = sphi 0, %s32
      %s21 = sphi 0, %s28
      %s22 = sphi 0, %s20
      %s23 = sphi 0, %s21
      %s24 = sphi 0, %s22
      %s25 = sphi 0, %s23
      %s37 = sphi 0, %s39
      %s40 = sphi 0, %s37
      %s41 = sphi 0, %s40
      %s57 = sphi 0, %s41
      %s63 = sphi 0, %s65
      %s66 = sphi 0, %s63
      %s67 = sphi 0, %s66
      %s83 = sphi 0, %s67
      %s89 = sphi 0, %s91
      %s92 = sphi 0, %s89
      %s93 = sphi 0, %s92
      %s109 = sphi 0, %s93
      %s113 = sphi 0, %s113
      %s115 = sphi 0, %s113
      %s116 = sphi 0, %s115
      %s130 = sphi 0, %s116
      %s134 = sphi 0, %s134
      %s136 = sphi 0, %s134
      %s137 = sphi 0, %s136
      %s151 = sphi 0, %s137
      %s159 = sphi 0, %s161
      %s162 = sphi 0, %s159
      %s163 = sphi 0, %s162
      %s179 = sphi 0, %s163
      %s187 = sphi 0, %s189
      %s190 = sphi 0, %s187
      %s191 = sphi 0, %s190
      %s207 = sphi 0, %s191
    $region4: #{query_transformer_forward.25} parent=1 // loop_header_branch
      %16 = sbr.rel (%p14) target = $region8
    $region5: #{query_transformer_forward.25} parent=1 // loop_body
      %s18 = ssub.s32 %s13, 1
      %s19 = ssub.s32 %s13, 2
      %s26 = sadd.s32 1, %s21
      %p27 = scmp.ge.s32.totalorder %s26, 1
      %s28 = scalar_select %p27, 0, %s26
      %s29 = sadd.s32 1, %s20
      %s30 = scalar_select %p27, %s29, %s20
      %p31 = scmp.ge.s32.totalorder %s30, 2
      %s32 = scalar_select %p31, 0, %s30
      %s33 = ssub.s32 %s20, %s32
      %s34 = ssub.s32 %s21, %s28
      %s35 = sor.u32 %s33, %s34
      %p36 = scmp.eq.s32.totalorder %s35, 0
      %s38 = sadd.s32 %s37, 1
      %s39 = scalar_select %p36, %s37, %s38
      %p42 = pneg %p36
      %p43 = scmp.eq.s32.totalorder %s13, 1
      %p44 = por %p42, %p43
      %p45 = scmp.ne.s32.totalorder %s37, %s40
      %p46 = scmp.eq.s32.totalorder %s13, 0
      %p47 = por %p45, %p46
      %p48 = scmp.ne.s32.totalorder %s37, %s40
      %p49 = scmp.eq.s32.totalorder %s18, 1
      %p50 = por %p48, %p49
      %p51 = scmp.ne.s32.totalorder %s40, %s41
      %p52 = scmp.eq.s32.totalorder %s18, 0
      %p53 = por %p51, %p52
      %p54 = scmp.ne.s32.totalorder %s40, %s41
      %p55 = scmp.eq.s32.totalorder %s19, 1
      %p56 = por %p54, %p55
      %p58 = scmp.ne.s32.totalorder %s41, %s57
      %p59 = scmp.eq.s32.totalorder %s19, 0
      %p60 = por %p58, %p59
      %s61 = ssub.s32 %s20, %s32
      %p62 = scmp.eq.s32.totalorder %s61, 0
      %s64 = sadd.s32 %s63, 1
      %s65 = scalar_select %p62, %s63, %s64
      %p68 = pneg %p62
      %p69 = scmp.eq.s32.totalorder %s13, 1
      %p70 = por %p68, %p69
      %p71 = scmp.ne.s32.totalorder %s63, %s66
      %p72 = scmp.eq.s32.totalorder %s13, 0
      %p73 = por %p71, %p72
      %p74 = scmp.ne.s32.totalorder %s63, %s66
      %p75 = scmp.eq.s32.totalorder %s18, 1
      %p76 = por %p74, %p75
      %p77 = scmp.ne.s32.totalorder %s66, %s67
      %p78 = scmp.eq.s32.totalorder %s18, 0
      %p79 = por %p77, %p78
      %p80 = scmp.ne.s32.totalorder %s66, %s67
      %p81 = scmp.eq.s32.totalorder %s19, 1
      %p82 = por %p80, %p81
      %p84 = scmp.ne.s32.totalorder %s67, %s83
      %p85 = scmp.eq.s32.totalorder %s19, 0
      %p86 = por %p84, %p85
      %s87 = ssub.s32 %s20, %s32
      %p88 = scmp.eq.s32.totalorder %s87, 0
      %s90 = sadd.s32 %s89, 1
      %s91 = scalar_select %p88, %s89, %s90
      %p94 = pneg %p88
      %p95 = scmp.eq.s32.totalorder %s13, 1
      %p96 = por %p94, %p95
      %p97 = scmp.ne.s32.totalorder %s89, %s92
      %p98 = scmp.eq.s32.totalorder %s13, 0
      %p99 = por %p97, %p98
      %p100 = scmp.ne.s32.totalorder %s89, %s92
      %p101 = scmp.eq.s32.totalorder %s18, 1
      %p102 = por %p100, %p101
      %p103 = scmp.ne.s32.totalorder %s92, %s93
      %p104 = scmp.eq.s32.totalorder %s18, 0
      %p105 = por %p103, %p104
      %p106 = scmp.ne.s32.totalorder %s92, %s93
      %p107 = scmp.eq.s32.totalorder %s19, 1
      %p108 = por %p106, %p107
      %p110 = scmp.ne.s32.totalorder %s93, %s109
      %p111 = scmp.eq.s32.totalorder %s19, 0
      %p112 = por %p110, %p111
      %s114 = sadd.s32 %s113, 1
      %p117 = scmp.eq.s32.totalorder %s13, 1
      %p118 = scmp.ne.s32.totalorder %s113, %s115
      %p119 = scmp.eq.s32.totalorder %s13, 0
      %p120 = por %p118, %p119
      %p121 = scmp.ne.s32.totalorder %s113, %s115
      %p122 = scmp.eq.s32.totalorder %s18, 1
      %p123 = por %p121, %p122
      %p124 = scmp.ne.s32.totalorder %s115, %s116
      %p125 = scmp.eq.s32.totalorder %s18, 0
      %p126 = por %p124, %p125
      %p127 = scmp.ne.s32.totalorder %s115, %s116
      %p128 = scmp.eq.s32.totalorder %s19, 1
      %p129 = por %p127, %p128
      %p131 = scmp.ne.s32.totalorder %s116, %s130
      %p132 = scmp.eq.s32.totalorder %s19, 0
      %p133 = por %p131, %p132
      %s135 = sadd.s32 %s134, 1
      %p138 = scmp.eq.s32.totalorder %s13, 1
      %p139 = scmp.ne.s32.totalorder %s134, %s136
      %p140 = scmp.eq.s32.totalorder %s13, 0
      %p141 = por %p139, %p140
      %p142 = scmp.ne.s32.totalorder %s134, %s136
      %p143 = scmp.eq.s32.totalorder %s18, 1
      %p144 = por %p142, %p143
      %p145 = scmp.ne.s32.totalorder %s136, %s137
      %p146 = scmp.eq.s32.totalorder %s18, 0
      %p147 = por %p145, %p146
      %p148 = scmp.ne.s32.totalorder %s136, %s137
      %p149 = scmp.eq.s32.totalorder %s19, 1
      %p150 = por %p148, %p149
      %p152 = scmp.ne.s32.totalorder %s137, %s151
      %p153 = scmp.eq.s32.totalorder %s19, 0
      %p154 = por %p152, %p153
      %s155 = ssub.s32 %s20, %s32
      %s156 = ssub.s32 %s21, %s28
      %s157 = sor.u32 %s155, %s156
      %p158 = scmp.eq.s32.totalorder %s157, 0
      %s160 = sadd.s32 %s159, 1
      %s161 = scalar_select %p158, %s159, %s160
      %p164 = pneg %p158
      %p165 = scmp.eq.s32.totalorder %s13, 1
      %p166 = por %p164, %p165
      %p167 = scmp.ne.s32.totalorder %s159, %s162
      %p168 = scmp.eq.s32.totalorder %s13, 0
      %p169 = por %p167, %p168
      %p170 = scmp.ne.s32.totalorder %s159, %s162
      %p171 = scmp.eq.s32.totalorder %s18, 1
      %p172 = por %p170, %p171
      %p173 = scmp.ne.s32.totalorder %s162, %s163
      %p174 = scmp.eq.s32.totalorder %s18, 0
      %p175 = por %p173, %p174
      %p176 = scmp.ne.s32.totalorder %s162, %s163
      %p177 = scmp.eq.s32.totalorder %s19, 1
      %p178 = por %p176, %p177
      %p180 = scmp.ne.s32.totalorder %s163, %s179
      %p181 = scmp.eq.s32.totalorder %s19, 0
      %p182 = por %p180, %p181
      %s183 = ssub.s32 %s20, %s32
      %s184 = ssub.s32 %s21, %s28
      %s185 = sor.u32 %s183, %s184
      %p186 = scmp.eq.s32.totalorder %s185, 0
      %s188 = sadd.s32 %s187, 1
      %s189 = scalar_select %p186, %s187, %s188
      %p192 = pneg %p186
      %p193 = scmp.eq.s32.totalorder %s13, 1
      %p194 = por %p192, %p193
      %p195 = scmp.ne.s32.totalorder %s187, %s190
      %p196 = scmp.eq.s32.totalorder %s13, 0
      %p197 = por %p195, %p196
      %p198 = scmp.ne.s32.totalorder %s187, %s190
      %p199 = scmp.eq.s32.totalorder %s18, 1
      %p200 = por %p198, %p199
      %p201 = scmp.ne.s32.totalorder %s190, %s191
      %p202 = scmp.eq.s32.totalorder %s18, 0
      %p203 = por %p201, %p202
      %p204 = scmp.ne.s32.totalorder %s190, %s191
      %p205 = scmp.eq.s32.totalorder %s19, 1
      %p206 = por %p204, %p205
      %p208 = scmp.ne.s32.totalorder %s191, %s207
      %p209 = scmp.eq.s32.totalorder %s19, 0
      %p210 = por %p208, %p209
      %p211 = scmp.le.s32.totalorder 1, %s13
      %p212 = scmp.lt.s32.totalorder %s13, 3
      %p213 = pnand %p211, %p212
      %p214 = pneg %p213
      // Predicated region
      $region9: #{query_transformer_forward.25} parent=5 // pred_check
        _
      $region10: #{query_transformer_forward.25} parent=5 // pred_check_branch
        %216 = sbr.rel (%p213) target = $region12
      $region11: #{query_transformer_forward.25} parent=5 // pred_region
        %s217 = ssub.s32 %s13, 1
        // Predicated region
        $region13: #{query_transformer_forward.25} parent=11 // pred_check
          %p218 = pneg %p126
        $region14: #{query_transformer_forward.25} parent=11 // pred_check_branch
          %220 = sbr.rel (%p218) target = $region16
        $region15: #{query_transformer_forward.25} parent=11 // pred_region
          _
        $region16: #{query_transformer_forward.25} parent=11 // pred_fallthru
          _
        // Predicated region
        $region17: #{query_transformer_forward.25} parent=11 // pred_check
          %p221 = pneg %p147
        $region18: #{query_transformer_forward.25} parent=11 // pred_check_branch
          %223 = sbr.rel (%p221) target = $region20
        $region19: #{query_transformer_forward.25} parent=11 // pred_region
          %225 = vsyncadd [#allocation3], 0
          %s227 = sshll.u32 %s4, 4
          %s228 = int_to_ptr.hbm [resolvable:$true] %s227
          %s229 = sshll.u32 [#allocation2], 4
          %s230 = int_to_ptr.vmem [resolvable:$true] %s229
          %232 = dma.hbm_to_vmem [thread:$0]  %s228, 16, %s230, [#allocation3]
        $region20: #{query_transformer_forward.25} parent=11 // pred_fallthru
          _
      $region12: #{query_transformer_forward.25} parent=5 // pred_fallthru
        _
      %p233 = scmp.lt.s32.totalorder %s13, 2
      // Predicated region
      $region21: #{query_transformer_forward.25} parent=5 // pred_check
        %p234 = pneg %p233
      $region22: #{query_transformer_forward.25} parent=5 // pred_check_branch
        %236 = sbr.rel (%p234) target = $region24
      $region23: #{query_transformer_forward.25} parent=5 // pred_region
        // Predicated region
        $region25: #{query_transformer_forward.25} parent=23 // pred_check
          %p237 = pneg %p47
        $region26: #{query_transformer_forward.25} parent=23 // pred_check_branch
          %239 = sbr.rel (%p237) target = $region28
        $region27: #{query_transformer_forward.25} parent=23 // pred_region
          %s240 = smul.u32 8, %s21
          %p241 = scmp.lt.s32.totalorder %s20, 1
          %s242 = scalar_select %p241, %s20, 1
          %p243 = scmp.lt.s32.totalorder %s240, 7
          %s244 = scalar_select %p243, %s240, 7
          %s245 = smul.addr %s242, 8
          %s246 = sadd.s32 %s244, %s245
          %s247 = smul.addr %s246, 4
          %s248 = scalar_lea.vmem %s0, %s247
          %s249 = smul.u32 8, %s21
        $region28: #{query_transformer_forward.25} parent=23 // pred_fallthru
          _
        // Predicated region
        $region29: #{query_transformer_forward.25} parent=23 // pred_check
          %p250 = pneg %p73
        $region30: #{query_transformer_forward.25} parent=23 // pred_check_branch
          %252 = sbr.rel (%p250) target = $region32
        $region31: #{query_transformer_forward.25} parent=23 // pred_region
          %p253 = scmp.lt.s32.totalorder %s20, 1
          %s254 = scalar_select %p253, %s20, 1
          %s255 = smul.addr %s254, 4
          %s256 = scalar_lea.vmem %s1, %s255
        $region32: #{query_transformer_forward.25} parent=23 // pred_fallthru
          _
        // Predicated region
        $region33: #{query_transformer_forward.25} parent=23 // pred_check
          %p257 = pneg %p99
        $region34: #{query_transformer_forward.25} parent=23 // pred_check_branch
          %259 = sbr.rel (%p257) target = $region36
        $region35: #{query_transformer_forward.25} parent=23 // pred_region
          %p260 = scmp.lt.s32.totalorder %s20, 1
          %s261 = scalar_select %p260, %s20, 1
          %s262 = smul.addr %s261, 4
          %s263 = scalar_lea.vmem %s2, %s262
        $region36: #{query_transformer_forward.25} parent=23 // pred_fallthru
          _
        // Predicated region
        $region37: #{query_transformer_forward.25} parent=23 // pred_check
          %p264 = pneg %p169
        $region38: #{query_transformer_forward.25} parent=23 // pred_check_branch
          %266 = sbr.rel (%p264) target = $region40
        $region39: #{query_transformer_forward.25} parent=23 // pred_region
          %s267 = smul.u32 8, %s21
          %p268 = scmp.lt.s32.totalorder %s20, 1
          %s269 = scalar_select %p268, %s20, 1
          %p270 = scmp.lt.s32.totalorder %s267, 7
          %s271 = scalar_select %p270, %s267, 7
          %s272 = smul.addr %s269, 8
          %s273 = sadd.s32 %s271, %s272
          %s274 = smul.addr %s273, 4
          %s275 = scalar_lea.vmem %s5, %s274
          %s276 = smul.u32 8, %s21
        $region40: #{query_transformer_forward.25} parent=23 // pred_fallthru
          _
      $region24: #{query_transformer_forward.25} parent=5 // pred_fallthru
        _
      %p277 = scmp.le.s32.totalorder 1, %s13
      %p278 = scmp.lt.s32.totalorder %s13, 3
      %p279 = pnand %p277, %p278
      %p280 = pneg %p279
      // Predicated region
      $region41: #{query_transformer_forward.25} parent=5 // pred_check
        _
      $region42: #{query_transformer_forward.25} parent=5 // pred_check_branch
        %282 = sbr.rel (%p279) target = $region44
      $region43: #{query_transformer_forward.25} parent=5 // pred_region
        %s283 = ssub.s32 %s13, 1
        // Predicated region
        $region45: #{query_transformer_forward.25} parent=43 // pred_check
          %p284 = pneg %p147
        $region46: #{query_transformer_forward.25} parent=43 // pred_check_branch
          %286 = sbr.rel (%p284) target = $region48
        $region47: #{query_transformer_forward.25} parent=43 // pred_region
          %288 = dma.done [#allocation3], 16
        $region48: #{query_transformer_forward.25} parent=43 // pred_fallthru
          _
        %s289 = smul.u32 8, %s23
        %p290 = scmp.lt.s32.totalorder %s22, 1
        %s291 = scalar_select %p290, %s22, 1
        %p292 = scmp.lt.s32.totalorder %s289, 7
        %s293 = scalar_select %p292, %s289, 7
        %s294 = smul.addr %s291, 8
        %s295 = sadd.s32 %s293, %s294
        %s296 = smul.addr %s295, 4
        %s297 = scalar_lea.vmem %s0, %s296
        %p298 = pneg %p53
        %p299 = pneg %p50
        %p300 = scmp.lt.s32.totalorder %s22, 1
        %s301 = scalar_select %p300, %s22, 1
        %s302 = smul.addr %s301, 4
        %s303 = scalar_lea.vmem %s1, %s302
        %p304 = pneg %p79
        %p305 = pneg %p76
        %p306 = scmp.lt.s32.totalorder %s22, 1
        %s307 = scalar_select %p306, %s22, 1
        %s308 = smul.addr %s307, 4
        %s309 = scalar_lea.vmem %s2, %s308
        %p310 = pneg %p105
        %p311 = pneg %p102
        %p312 = pneg %p126
        %p313 = pneg %p123
        %p314 = pneg %p147
        %p315 = pneg %p144
        %s316 = smul.u32 8, %s23
        %p317 = scmp.lt.s32.totalorder %s22, 1
        %s318 = scalar_select %p317, %s22, 1
        %p319 = scmp.lt.s32.totalorder %s316, 7
        %s320 = scalar_select %p319, %s316, 7
        %s321 = smul.addr %s318, 8
        %s322 = sadd.s32 %s320, %s321
        %s323 = smul.addr %s322, 4
        %s324 = scalar_lea.vmem %s5, %s323
        %p325 = pneg %p175
        %p326 = pneg %p172
        %p327 = pneg %p203
        %p328 = pneg %p200
        %s329 = smul.u32 8, %s23
        %p330 = scmp.lt.s32.totalorder %s22, 1
        %s331 = scalar_select %p330, %s22, 1
        %p332 = scmp.lt.s32.totalorder %s329, 7
        %s333 = scalar_select %p332, %s329, 7
        %s334 = smul.addr %s331, 8
        %s335 = sadd.s32 %s333, %s334
        %s336 = smul.addr %s335, 4
        %s337 = scalar_lea.vmem %s6, %s336
        %s338 = smul.u32 8, %s23
        %p339 = scmp.lt.s32.totalorder %s22, 1
        %s340 = scalar_select %p339, %s22, 1
        %p341 = scmp.lt.s32.totalorder %s338, 7
        %s342 = scalar_select %p341, %s338, 7
        %s343 = smul.addr %s340, 8
        %s344 = sadd.s32 %s342, %s343
        %s345 = smul.addr %s344, 4
        %s346 = scalar_lea.vmem %s0, %s345
        %s347 = smul.u32 8, %s23
        %p348 = scmp.lt.s32.totalorder %s22, 1
        %s349 = scalar_select %p348, %s22, 1
        %s350 = smul.addr %s349, 4
        %s351 = scalar_lea.vmem %s1, %s350
        %p352 = scmp.lt.s32.totalorder %s22, 1
        %s353 = scalar_select %p352, %s22, 1
        %s354 = smul.addr %s353, 4
        %s355 = scalar_lea.vmem %s2, %s354
        %s356 = smul.u32 8, %s23
        %p357 = scmp.lt.s32.totalorder %s22, 1
        %s358 = scalar_select %p357, %s22, 1
        %p359 = scmp.lt.s32.totalorder %s356, 7
        %s360 = scalar_select %p359, %s356, 7
        %s361 = smul.addr %s358, 8
        %s362 = sadd.s32 %s360, %s361
        %s363 = smul.addr %s362, 4
        %s364 = scalar_lea.vmem %s5, %s363
        %s365 = smul.u32 8, %s23
        %s366 = smul.u32 8, %s23
        %p367 = scmp.lt.s32.totalorder %s22, 1
        %s368 = scalar_select %p367, %s22, 1
        %p369 = scmp.lt.s32.totalorder %s366, 7
        %s370 = scalar_select %p369, %s366, 7
        %s371 = smul.addr %s368, 8
        %s372 = sadd.s32 %s370, %s371
        %s373 = smul.addr %s372, 4
        %s374 = scalar_lea.vmem %s6, %s373
        %s375 = smul.u32 8, %s23
        %v377 = vld [vmem:[%s346] sm:$0xf]
        %v378 = vld [vmem:[%s346 + $0x4] sm:$0xf]
        %v379 = vld [vmem:[%s346 + $0x8] sm:$0xf]
        %v380 = vld [vmem:[%s346 + $0xc] sm:$0xf]
        %v381 = vld [vmem:[%s346 + $0x10] sm:$0xf]
        %v382 = vld [vmem:[%s346 + $0x14] sm:$0xf]
        %v383 = vld [vmem:[%s346 + $0x18] sm:$0xf]
        %v384 = vld [vmem:[%s346 + $0x1c] sm:$0xf]
        %v385 = vld [vmem:[%s351] sm:$0xf]
        %v386 = vld [vmem:[%s355] sm:$0xf]
        %v395 = vunpack.c.l.b16 %v377
        %v396 = vunpack.c.l.b16 %v378
        %v397 = vunpack.c.l.b16 %v379
        %v398 = vunpack.c.l.b16 %v380
        %v399 = vunpack.c.l.b16 %v381
        %v400 = vunpack.c.l.b16 %v382
        %v401 = vunpack.c.l.b16 %v383
        %v402 = vunpack.c.l.b16 %v384
        %v403 = vpack.c.b16 %v396, %v395
        %v404 = vpack.c.b16 %v398, %v397
        %v405 = vpack.c.b16 %v400, %v399
        %v406 = vpack.c.b16 %v402, %v401
        %vm407 = vcmask 261120
        %v409 = vsel %vm407, %v403, 0
        %v412 = vsel %vm407, %v404, 0
        %v415 = vsel %vm407, %v405, 0
        %v418 = vsel %vm407, %v406, 0
        %v421 = vsel %vm407, %v385, 0
        %423 = vmatpush.bf16.xpose.msra.mxu0 0
        %424 = vmatpush.bf16.xpose.msra.mxu0 0
        %425 = vmatpush.bf16.xpose.msra.mxu0 0
        %426 = vmatpush.bf16.xpose.msra.mxu0 0
        %427 = vmatpush.bf16.xpose.msra.mxu0 0
        %428 = vmatpush.bf16.xpose.msra.mxu0 0
        %429 = vmatpush.bf16.xpose.msra.mxu0 0
        %430 = vmatpush.bf16.xpose.msra.mxu0 %v421
        %431 = vmatmul.bf16.gmra.mxu0 %v409
        %v432 = vpop.f32.mrf.mxu0
        %v433 = vadd.f32 0.0, %v432
        %v434 = vpop.f32.mrf.mxu0
        %v435 = vadd.f32 0.0, %v434
        %436 = vmatmul.bf16.gmra.mxu0 %v412
        %v437 = vpop.f32.mrf.mxu0
        %v438 = vadd.f32 0.0, %v437
        %v439 = vpop.f32.mrf.mxu0
        %v440 = vadd.f32 0.0, %v439
        %441 = vmatmul.bf16.gmra.mxu0 %v415
        %v442 = vpop.f32.mrf.mxu0
        %v443 = vadd.f32 0.0, %v442
        %v444 = vpop.f32.mrf.mxu0
        %v445 = vadd.f32 0.0, %v444
        %446 = vmatmul.bf16.gmra.mxu0 %v418
        %v447 = vpop.f32.mrf.mxu0
        %v448 = vadd.f32 0.0, %v447
        %v449 = vpop.f32.mrf.mxu0
        %v450 = vadd.f32 0.0, %v449
        %451 = vdwg.mxu0
        %v452 = vmul.f32 %v433, 0.17677669
        %v453 = vmul.f32 %v435, 0.17677669
        %v454 = vmul.f32 %v438, 0.17677669
        %v455 = vmul.f32 %v440, 0.17677669
        %v456 = vmul.f32 %v443, 0.17677669
        %v457 = vmul.f32 %v445, 0.17677669
        %v458 = vmul.f32 %v448, 0.17677669
        %v459 = vmul.f32 %v450, 0.17677669
        %vm460 = vcmask 64512
        %v461 = vsel %vm460, %v452, -inf
        %462 = vmax.xlane.f32.xlu0 %v461
        %v463 = vpop.xlane.xlu0 %462
        %v464 = vsel %vm460, %v453, -inf
        %465 = vmax.xlane.f32.xlu0 %v464
        %v466 = vpop.xlane.xlu0 %465
        %v467 = vsel %vm460, %v454, -inf
        %468 = vmax.xlane.f32.xlu0 %v467
        %v469 = vpop.xlane.xlu0 %468
        %v470 = vsel %vm460, %v455, -inf
        %471 = vmax.xlane.f32.xlu0 %v470
        %v472 = vpop.xlane.xlu0 %471
        %v473 = vsel %vm460, %v456, -inf
        %474 = vmax.xlane.f32.xlu0 %v473
        %v475 = vpop.xlane.xlu0 %474
        %v476 = vsel %vm460, %v457, -inf
        %477 = vmax.xlane.f32.xlu0 %v476
        %v478 = vpop.xlane.xlu0 %477
        %v479 = vsel %vm460, %v458, -inf
        %480 = vmax.xlane.f32.xlu0 %v479
        %v481 = vpop.xlane.xlu0 %480
        %v482 = vsel %vm460, %v459, -inf
        %483 = vmax.xlane.f32.xlu0 %v482
        %v484 = vpop.xlane.xlu0 %483
        %v485 = vsub.f32 %v452, %v463
        %v486 = vsub.f32 %v453, %v466
        %v487 = vsub.f32 %v454, %v469
        %v488 = vsub.f32 %v455, %v472
        %v489 = vsub.f32 %v456, %v475
        %v490 = vsub.f32 %v457, %v478
        %v491 = vsub.f32 %v458, %v481
        %v492 = vsub.f32 %v459, %v484
        %v493 = vmul.f32 %v485, 1.442695
        %v494 = vpow.pop %v493
        %v495 = vmul.f32 %v486, 1.442695
        %v496 = vpow.pop %v495
        %v497 = vmul.f32 %v487, 1.442695
        %v498 = vpow.pop %v497
        %v499 = vmul.f32 %v488, 1.442695
        %v500 = vpow.pop %v499
        %v501 = vmul.f32 %v489, 1.442695
        %v502 = vpow.pop %v501
        %v503 = vmul.f32 %v490, 1.442695
        %v504 = vpow.pop %v503
        %v505 = vmul.f32 %v491, 1.442695
        %v506 = vpow.pop %v505
        %v507 = vmul.f32 %v492, 1.442695
        %v508 = vpow.pop %v507
        %v509 = vsel %vm460, %v494, 0.0
        %510 = vadd.xlane.f32.xlu0 %v509
        %v511 = vpop.xlane.xlu0 %510
        %v512 = vsel %vm460, %v496, 0.0
        %513 = vadd.xlane.f32.xlu0 %v512
        %v514 = vpop.xlane.xlu0 %513
        %v515 = vsel %vm460, %v498, 0.0
        %516 = vadd.xlane.f32.xlu0 %v515
        %v517 = vpop.xlane.xlu0 %516
        %v518 = vsel %vm460, %v500, 0.0
        %519 = vadd.xlane.f32.xlu0 %v518
        %v520 = vpop.xlane.xlu0 %519
        %v521 = vsel %vm460, %v502, 0.0
        %522 = vadd.xlane.f32.xlu0 %v521
        %v523 = vpop.xlane.xlu0 %522
        %v524 = vsel %vm460, %v504, 0.0
        %525 = vadd.xlane.f32.xlu0 %v524
        %v526 = vpop.xlane.xlu0 %525
        %v527 = vsel %vm460, %v506, 0.0
        %528 = vadd.xlane.f32.xlu0 %v527
        %v529 = vpop.xlane.xlu0 %528
        %v530 = vsel %vm460, %v508, 0.0
        %531 = vadd.xlane.f32.xlu0 %v530
        %v532 = vpop.xlane.xlu0 %531
        %v533 = vrcp.pop %v511
        %v534 = vrcp.pop %v514
        %v535 = vrcp.pop %v517
        %v536 = vrcp.pop %v520
        %v537 = vrcp.pop %v523
        %v538 = vrcp.pop %v526
        %v539 = vrcp.pop %v529
        %v540 = vrcp.pop %v532
        %v541 = vmul.f32 %v494, %v533
        %v542 = vmul.f32 %v496, %v534
        %v543 = vmul.f32 %v498, %v535
        %v544 = vmul.f32 %v500, %v536
        %v545 = vmul.f32 %v502, %v537
        %v546 = vmul.f32 %v504, %v538
        %v547 = vmul.f32 %v506, %v539
        %v548 = vmul.f32 %v508, %v540
        %v549 = vpack.c.bf16 %v542, %v541
        %v550 = vpack.c.bf16 %v544, %v543
        %v551 = vpack.c.bf16 %v546, %v545
        %v552 = vpack.c.bf16 %v548, %v547
        %v554 = vsel %vm460, %v549, 0
        %v557 = vsel %vm460, %v550, 0
        %v560 = vsel %vm460, %v551, 0
        %v563 = vsel %vm460, %v552, 0
        %vm565 = vcmask 1043456
        %v567 = vsel %vm565, %v386, 0
        %569 = vmatpush.bf16.msra.mxu0 0
        %570 = vmatpush.bf16.msra.mxu0 0
        %571 = vmatpush.bf16.msra.mxu0 0
        %572 = vmatpush.bf16.msra.mxu0 0
        %573 = vmatpush.bf16.msra.mxu0 0
        %574 = vmatpush.bf16.msra.mxu0 0
        %575 = vmatpush.bf16.msra.mxu0 0
        %576 = vmatpush.bf16.msra.mxu0 %v567
        %577 = vmatmul.bf16.gmra.mxu0 %v554
        %v578 = vpop.f32.mrf.mxu0
        %v579 = vadd.f32 0.0, %v578
        %v580 = vpop.f32.mrf.mxu0
        %v581 = vadd.f32 0.0, %v580
        %582 = vmatmul.bf16.gmra.mxu0 %v557
        %v583 = vpop.f32.mrf.mxu0
        %v584 = vadd.f32 0.0, %v583
        %v585 = vpop.f32.mrf.mxu0
        %v586 = vadd.f32 0.0, %v585
        %587 = vmatmul.bf16.gmra.mxu0 %v560
        %v588 = vpop.f32.mrf.mxu0
        %v589 = vadd.f32 0.0, %v588
        %v590 = vpop.f32.mrf.mxu0
        %v591 = vadd.f32 0.0, %v590
        %592 = vmatmul.bf16.gmra.mxu0 %v563
        %v593 = vpop.f32.mrf.mxu0
        %v594 = vadd.f32 0.0, %v593
        %v595 = vpop.f32.mrf.mxu0
        %v596 = vadd.f32 0.0, %v595
        %597 = vdwg.mxu0
        %v598 = vpack.c.bf16 %v581, %v579
        %v599 = vpack.c.bf16 %v586, %v584
        %v600 = vpack.c.bf16 %v591, %v589
        %v601 = vpack.c.bf16 %v596, %v594
        %v602 = vld [vmem:[%s3] sm:$0xf]
        %v603 = vld [vmem:[%s3 + $0x4] sm:$0xf]
        %v604 = vld [vmem:[%s3 + $0x8] sm:$0xf]
        %v605 = vld [vmem:[%s3 + $0xc] sm:$0xf]
        %606 = vrot.lane.b32.xlu0 %v403, 96
        %v607 = vpop.permute.xlu0 %606
        %608 = vrot.lane.b32.xlu0 %v404, 96
        %v609 = vpop.permute.xlu0 %608
        %610 = vrot.lane.b32.xlu0 %v405, 96
        %v611 = vpop.permute.xlu0 %610
        %612 = vrot.lane.b32.xlu0 %v406, 96
        %v613 = vpop.permute.xlu0 %612
        %v615 = vunpack.c.l.b16 %v385
        %v616 = vpack.c.b16 %v615, %v615
        %617 = vrot.lane.b32.xlu0 %v616, 96
        %v618 = vpop.permute.xlu0 %617
        %v620 = vsel %vm407, %v607, 0
        %v623 = vsel %vm407, %v609, 0
        %v626 = vsel %vm407, %v611, 0
        %v629 = vsel %vm407, %v613, 0
        %v632 = vsel %vm407, %v618, 0
        %634 = vmatpush.bf16.xpose.msra.mxu0 0
        %635 = vmatpush.bf16.xpose.msra.mxu0 0
        %636 = vmatpush.bf16.xpose.msra.mxu0 0
        %637 = vmatpush.bf16.xpose.msra.mxu0 0
        %638 = vmatpush.bf16.xpose.msra.mxu0 0
        %639 = vmatpush.bf16.xpose.msra.mxu0 0
        %640 = vmatpush.bf16.xpose.msra.mxu0 0
        %641 = vmatpush.bf16.xpose.msra.mxu0 %v632
        %642 = vmatmul.bf16.gmra.mxu0 %v620
        %v643 = vpop.f32.mrf.mxu0
        %v644 = vadd.f32 0.0, %v643
        %v645 = vpop.f32.mrf.mxu0
        %v646 = vadd.f32 0.0, %v645
        %647 = vmatmul.bf16.gmra.mxu0 %v623
        %v648 = vpop.f32.mrf.mxu0
        %v649 = vadd.f32 0.0, %v648
        %v650 = vpop.f32.mrf.mxu0
        %v651 = vadd.f32 0.0, %v650
        %652 = vmatmul.bf16.gmra.mxu0 %v626
        %v653 = vpop.f32.mrf.mxu0
        %v654 = vadd.f32 0.0, %v653
        %v655 = vpop.f32.mrf.mxu0
        %v656 = vadd.f32 0.0, %v655
        %657 = vmatmul.bf16.gmra.mxu0 %v629
        %v658 = vpop.f32.mrf.mxu0
        %v659 = vadd.f32 0.0, %v658
        %v660 = vpop.f32.mrf.mxu0
        %v661 = vadd.f32 0.0, %v660
        %662 = vdwg.mxu0
        %v663 = vmul.f32 %v644, 0.17677669
        %v664 = vmul.f32 %v646, 0.17677669
        %v665 = vmul.f32 %v649, 0.17677669
        %v666 = vmul.f32 %v651, 0.17677669
        %v667 = vmul.f32 %v654, 0.17677669
        %v668 = vmul.f32 %v656, 0.17677669
        %v669 = vmul.f32 %v659, 0.17677669
        %v670 = vmul.f32 %v661, 0.17677669
        %v671 = vsel %vm460, %v663, -inf
        %672 = vmax.xlane.f32.xlu0 %v671
        %v673 = vpop.xlane.xlu0 %672
        %v674 = vsel %vm460, %v664, -inf
        %675 = vmax.xlane.f32.xlu0 %v674
        %v676 = vpop.xlane.xlu0 %675
        %v677 = vsel %vm460, %v665, -inf
        %678 = vmax.xlane.f32.xlu0 %v677
        %v679 = vpop.xlane.xlu0 %678
        %v680 = vsel %vm460, %v666, -inf
        %681 = vmax.xlane.f32.xlu0 %v680
        %v682 = vpop.xlane.xlu0 %681
        %v683 = vsel %vm460, %v667, -inf
        %684 = vmax.xlane.f32.xlu0 %v683
        %v685 = vpop.xlane.xlu0 %684
        %v686 = vsel %vm460, %v668, -inf
        %687 = vmax.xlane.f32.xlu0 %v686
        %v688 = vpop.xlane.xlu0 %687
        %v689 = vsel %vm460, %v669, -inf
        %690 = vmax.xlane.f32.xlu0 %v689
        %v691 = vpop.xlane.xlu0 %690
        %v692 = vsel %vm460, %v670, -inf
        %693 = vmax.xlane.f32.xlu0 %v692
        %v694 = vpop.xlane.xlu0 %693
        %v695 = vsub.f32 %v663, %v673
        %v696 = vsub.f32 %v664, %v676
        %v697 = vsub.f32 %v665, %v679
        %v698 = vsub.f32 %v666, %v682
        %v699 = vsub.f32 %v667, %v685
        %v700 = vsub.f32 %v668, %v688
        %v701 = vsub.f32 %v669, %v691
        %v702 = vsub.f32 %v670, %v694
        %v703 = vmul.f32 %v695, 1.442695
        %v704 = vpow.pop %v703
        %v705 = vmul.f32 %v696, 1.442695
        %v706 = vpow.pop %v705
        %v707 = vmul.f32 %v697, 1.442695
        %v708 = vpow.pop %v707
        %v709 = vmul.f32 %v698, 1.442695
        %v710 = vpow.pop %v709
        %v711 = vmul.f32 %v699, 1.442695
        %v712 = vpow.pop %v711
        %v713 = vmul.f32 %v700, 1.442695
        %v714 = vpow.pop %v713
        %v715 = vmul.f32 %v701, 1.442695
        %v716 = vpow.pop %v715
        %v717 = vmul.f32 %v702, 1.442695
        %v718 = vpow.pop %v717
        %v719 = vsel %vm460, %v704, 0.0
        %720 = vadd.xlane.f32.xlu0 %v719
        %v721 = vpop.xlane.xlu0 %720
        %v722 = vsel %vm460, %v706, 0.0
        %723 = vadd.xlane.f32.xlu0 %v722
        %v724 = vpop.xlane.xlu0 %723
        %v725 = vsel %vm460, %v708, 0.0
        %726 = vadd.xlane.f32.xlu0 %v725
        %v727 = vpop.xlane.xlu0 %726
        %v728 = vsel %vm460, %v710, 0.0
        %729 = vadd.xlane.f32.xlu0 %v728
        %v730 = vpop.xlane.xlu0 %729
        %v731 = vsel %vm460, %v712, 0.0
        %732 = vadd.xlane.f32.xlu0 %v731
        %v733 = vpop.xlane.xlu0 %732
        %v734 = vsel %vm460, %v714, 0.0
        %735 = vadd.xlane.f32.xlu0 %v734
        %v736 = vpop.xlane.xlu0 %735
        %v737 = vsel %vm460, %v716, 0.0
        %738 = vadd.xlane.f32.xlu0 %v737
        %v739 = vpop.xlane.xlu0 %738
        %v740 = vsel %vm460, %v718, 0.0
        %741 = vadd.xlane.f32.xlu0 %v740
        %v742 = vpop.xlane.xlu0 %741
        %v743 = vrcp.pop %v721
        %v744 = vrcp.pop %v724
        %v745 = vrcp.pop %v727
        %v746 = vrcp.pop %v730
        %v747 = vrcp.pop %v733
        %v748 = vrcp.pop %v736
        %v749 = vrcp.pop %v739
        %v750 = vrcp.pop %v742
        %v751 = vmul.f32 %v704, %v743
        %v752 = vmul.f32 %v706, %v744
        %v753 = vmul.f32 %v708, %v745
        %v754 = vmul.f32 %v710, %v746
        %v755 = vmul.f32 %v712, %v747
        %v756 = vmul.f32 %v714, %v748
        %v757 = vmul.f32 %v716, %v749
        %v758 = vmul.f32 %v718, %v750
        %v759 = vpack.c.bf16 %v752, %v751
        %v760 = vpack.c.bf16 %v754, %v753
        %v761 = vpack.c.bf16 %v756, %v755
        %v762 = vpack.c.bf16 %v758, %v757
        %v764 = vunpack.c.l.b16 %v386
        %v765 = vpack.c.b16 %v764, %v764
        %766 = vrot.lane.b32.xlu0 %v765, 96
        %v767 = vpop.permute.xlu0 %766
        %v769 = vsel %vm460, %v759, 0
        %v772 = vsel %vm460, %v760, 0
        %v775 = vsel %vm460, %v761, 0
        %v778 = vsel %vm460, %v762, 0
        %v781 = vsel %vm565, %v767, 0
        %783 = vmatpush.bf16.msra.mxu0 0
        %784 = vmatpush.bf16.msra.mxu0 0
        %785 = vmatpush.bf16.msra.mxu0 0
        %786 = vmatpush.bf16.msra.mxu0 0
        %787 = vmatpush.bf16.msra.mxu0 0
        %788 = vmatpush.bf16.msra.mxu0 0
        %789 = vmatpush.bf16.msra.mxu0 0
        %790 = vmatpush.bf16.msra.mxu0 %v781
        %791 = vmatmul.bf16.gmra.mxu0 %v769
        %v792 = vpop.f32.mrf.mxu0
        %v793 = vadd.f32 0.0, %v792
        %v794 = vpop.f32.mrf.mxu0
        %v795 = vadd.f32 0.0, %v794
        %796 = vmatmul.bf16.gmra.mxu0 %v772
        %v797 = vpop.f32.mrf.mxu0
        %v798 = vadd.f32 0.0, %v797
        %v799 = vpop.f32.mrf.mxu0
        %v800 = vadd.f32 0.0, %v799
        %801 = vmatmul.bf16.gmra.mxu0 %v775
        %v802 = vpop.f32.mrf.mxu0
        %v803 = vadd.f32 0.0, %v802
        %v804 = vpop.f32.mrf.mxu0
        %v805 = vadd.f32 0.0, %v804
        %806 = vmatmul.bf16.gmra.mxu0 %v778
        %v807 = vpop.f32.mrf.mxu0
        %v808 = vadd.f32 0.0, %v807
        %v809 = vpop.f32.mrf.mxu0
        %v810 = vadd.f32 0.0, %v809
        %811 = vdwg.mxu0
        %v812 = vpack.c.bf16 %v795, %v793
        %v813 = vpack.c.bf16 %v800, %v798
        %v814 = vpack.c.bf16 %v805, %v803
        %v815 = vpack.c.bf16 %v810, %v808
        %s816 = scalar_lea.vmem %s3, 16
        %v817 = vld [vmem:[%s816] sm:$0xf]
        %v818 = vld [vmem:[%s816 + $0x4] sm:$0xf]
        %v819 = vld [vmem:[%s816 + $0x8] sm:$0xf]
        %v820 = vld [vmem:[%s816 + $0xc] sm:$0xf]
        %v825 = vunpack.c.l.b16 %v817
        %v826 = vunpack.c.l.b16 %v818
        %v827 = vunpack.c.l.b16 %v819
        %v828 = vunpack.c.l.b16 %v820
        %v829 = vpack.c.b16 %v826, %v825
        %v830 = vpack.c.b16 %v828, %v827
        %v834 = vsel %vm407, %v812, 0
        %v837 = vsel %vm407, %v813, 0
        %v840 = vsel %vm407, %v814, 0
        %v843 = vsel %vm407, %v815, 0
        %845 = vmatpush.bf16.msra.mxu0 0
        %846 = vmatpush.bf16.msra.mxu0 0
        %847 = vmatpush.bf16.msra.mxu0 0
        %848 = vmatpush.bf16.msra.mxu0 0
        %849 = vmatpush.bf16.msra.mxu0 0
        %850 = vmatpush.bf16.msra.mxu0 0
        %851 = vmatpush.bf16.msra.mxu0 %v830
        %852 = vmatpush.bf16.msra.mxu0 %v829
        %853 = vmatmul.bf16.gmra.mxu0 %v834
        %v854 = vpop.f32.mrf.mxu0
        %v855 = vadd.f32 0.0, %v854
        %v856 = vpop.f32.mrf.mxu0
        %v857 = vadd.f32 0.0, %v856
        %858 = vmatmul.bf16.gmra.mxu0 %v837
        %v859 = vpop.f32.mrf.mxu0
        %v860 = vadd.f32 0.0, %v859
        %v861 = vpop.f32.mrf.mxu0
        %v862 = vadd.f32 0.0, %v861
        %863 = vmatmul.bf16.gmra.mxu0 %v840
        %v864 = vpop.f32.mrf.mxu0
        %v865 = vadd.f32 0.0, %v864
        %v866 = vpop.f32.mrf.mxu0
        %v867 = vadd.f32 0.0, %v866
        %868 = vmatmul.bf16.gmra.mxu0 %v843
        %v869 = vpop.f32.mrf.mxu0
        %v870 = vadd.f32 0.0, %v869
        %v871 = vpop.f32.mrf.mxu0
        %v872 = vadd.f32 0.0, %v871
        %873 = vdwg.mxu0
        %v878 = vunpack.c.l.b16 %v602
        %v879 = vunpack.c.l.b16 %v603
        %v880 = vunpack.c.l.b16 %v604
        %v881 = vunpack.c.l.b16 %v605
        %v882 = vpack.c.b16 %v879, %v878
        %v883 = vpack.c.b16 %v881, %v880
        %v887 = vsel %vm407, %v598, 0
        %v890 = vsel %vm407, %v599, 0
        %v893 = vsel %vm407, %v600, 0
        %v896 = vsel %vm407, %v601, 0
        %898 = vmatpush.bf16.msra.mxu0 0
        %899 = vmatpush.bf16.msra.mxu0 0
        %900 = vmatpush.bf16.msra.mxu0 0
        %901 = vmatpush.bf16.msra.mxu0 0
        %902 = vmatpush.bf16.msra.mxu0 0
        %903 = vmatpush.bf16.msra.mxu0 0
        %904 = vmatpush.bf16.msra.mxu0 %v883
        %905 = vmatpush.bf16.msra.mxu0 %v882
        %906 = vmatmul.bf16.gmra.mxu0 %v887
        %v907 = vpop.f32.mrf.mxu0
        %v908 = vadd.f32 %v855, %v907
        %v909 = vpop.f32.mrf.mxu0
        %v910 = vadd.f32 %v857, %v909
        %911 = vmatmul.bf16.gmra.mxu0 %v890
        %v912 = vpop.f32.mrf.mxu0
        %v913 = vadd.f32 %v860, %v912
        %v914 = vpop.f32.mrf.mxu0
        %v915 = vadd.f32 %v862, %v914
        %916 = vmatmul.bf16.gmra.mxu0 %v893
        %v917 = vpop.f32.mrf.mxu0
        %v918 = vadd.f32 %v865, %v917
        %v919 = vpop.f32.mrf.mxu0
        %v920 = vadd.f32 %v867, %v919
        %921 = vmatmul.bf16.gmra.mxu0 %v896
        %v922 = vpop.f32.mrf.mxu0
        %v923 = vadd.f32 %v870, %v922
        %v924 = vpop.f32.mrf.mxu0
        %v925 = vadd.f32 %v872, %v924
        %926 = vdwg.mxu0
        %v927 = vld [vmem:[#allocation2] sm:$0x1]
        %v929 = vperm.slane %v927, 0
        %v931 = vadd.f32 %v908, %v929
        %v932 = vadd.f32 %v910, %v929
        %v933 = vadd.f32 %v913, %v929
        %v934 = vadd.f32 %v915, %v929
        %v935 = vadd.f32 %v918, %v929
        %v936 = vadd.f32 %v920, %v929
        %v937 = vadd.f32 %v923, %v929
        %v938 = vadd.f32 %v925, %v929
        %v939 = vld [vmem:[%s364] sm:$0xf]
        %v940 = vld [vmem:[%s364 + $0x4] sm:$0xf]
        %v941 = vld [vmem:[%s364 + $0x8] sm:$0xf]
        %v942 = vld [vmem:[%s364 + $0xc] sm:$0xf]
        %v943 = vld [vmem:[%s364 + $0x10] sm:$0xf]
        %v944 = vld [vmem:[%s364 + $0x14] sm:$0xf]
        %v945 = vld [vmem:[%s364 + $0x18] sm:$0xf]
        %v946 = vld [vmem:[%s364 + $0x1c] sm:$0xf]
        %v947 = vunpack.c.l.bf16 %v939
        %v948 = vunpack.c.l.bf16 %v940
        %v949 = vunpack.c.l.bf16 %v941
        %v950 = vunpack.c.l.bf16 %v942
        %v951 = vunpack.c.l.bf16 %v943
        %v952 = vunpack.c.l.bf16 %v944
        %v953 = vunpack.c.l.bf16 %v945
        %v954 = vunpack.c.l.bf16 %v946
        %v955 = vadd.f32 %v931, %v947
        %v956 = vadd.f32 %v932, %v948
        %v957 = vadd.f32 %v933, %v949
        %v958 = vadd.f32 %v934, %v950
        %v959 = vadd.f32 %v935, %v951
        %v960 = vadd.f32 %v936, %v952
        %v961 = vadd.f32 %v937, %v953
        %v962 = vadd.f32 %v938, %v954
        %v963 = vpack.c.bf16 %v955, %v955
        %v964 = vpack.c.bf16 %v956, %v956
        %v965 = vpack.c.bf16 %v957, %v957
        %v966 = vpack.c.bf16 %v958, %v958
        %v967 = vpack.c.bf16 %v959, %v959
        %v968 = vpack.c.bf16 %v960, %v960
        %v969 = vpack.c.bf16 %v961, %v961
        %v970 = vpack.c.bf16 %v962, %v962
        %vm971 = vcmask 519168
        %972 = vst.msk [vmem:[%s374] sm:$0xf] %vm971, %v963
        %973 = vst.msk [vmem:[%s374 + $0x4] sm:$0xf] %vm971, %v964
        %974 = vst.msk [vmem:[%s374 + $0x8] sm:$0xf] %vm971, %v965
        %975 = vst.msk [vmem:[%s374 + $0xc] sm:$0xf] %vm971, %v966
        %976 = vst.msk [vmem:[%s374 + $0x10] sm:$0xf] %vm971, %v967
        %977 = vst.msk [vmem:[%s374 + $0x14] sm:$0xf] %vm971, %v968
        %978 = vst.msk [vmem:[%s374 + $0x18] sm:$0xf] %vm971, %v969
        %979 = vst.msk [vmem:[%s374 + $0x1c] sm:$0xf] %vm971, %v970
        %s980 = smul.u32 8, %s23
        %p981 = scmp.lt.s32.totalorder %s22, 1
        %s982 = scalar_select %p981, %s22, 1
        %p983 = scmp.lt.s32.totalorder %s980, 7
        %s984 = scalar_select %p983, %s980, 7
        %s985 = smul.addr %s982, 8
        %s986 = sadd.s32 %s984, %s985
        %s987 = smul.addr %s986, 4
        %s988 = scalar_lea.vmem %s6, %s987
        // Predicated region
        $region49: #{query_transformer_forward.25} parent=43 // pred_check
          %p989 = pneg %p200
        $region50: #{query_transformer_forward.25} parent=43 // pred_check_branch
          %991 = sbr.rel (%p989) target = $region52
        $region51: #{query_transformer_forward.25} parent=43 // pred_region
          %s992 = smul.u32 8, %s23
        $region52: #{query_transformer_forward.25} parent=43 // pred_fallthru
          _
      $region44: #{query_transformer_forward.25} parent=5 // pred_fallthru
        _
      %p993 = scmp.le.s32.totalorder 2, %s13
      // Predicated region
      $region53: #{query_transformer_forward.25} parent=5 // pred_check
        %p994 = pneg %p993
      $region54: #{query_transformer_forward.25} parent=5 // pred_check_branch
        %996 = sbr.rel (%p994) target = $region56
      $region55: #{query_transformer_forward.25} parent=5 // pred_region
        %s997 = ssub.s32 %s13, 2
        // Predicated region
        $region57: #{query_transformer_forward.25} parent=55 // pred_check
          %p998 = pneg %p206
        $region58: #{query_transformer_forward.25} parent=55 // pred_check_branch
          %1000 = sbr.rel (%p998) target = $region60
        $region59: #{query_transformer_forward.25} parent=55 // pred_region
          %s1001 = smul.u32 8, %s25
          %p1002 = scmp.lt.s32.totalorder %s24, 1
          %s1003 = scalar_select %p1002, %s24, 1
          %p1004 = scmp.lt.s32.totalorder %s1001, 7
          %s1005 = scalar_select %p1004, %s1001, 7
          %s1006 = smul.addr %s1003, 8
          %s1007 = sadd.s32 %s1005, %s1006
          %s1008 = smul.addr %s1007, 4
          %s1009 = scalar_lea.vmem %s6, %s1008
        $region60: #{query_transformer_forward.25} parent=55 // pred_fallthru
          _
      $region56: #{query_transformer_forward.25} parent=5 // pred_fallthru
        _
    $region6: #{query_transformer_forward.25} parent=1 // loop_footer
      %s17 = sadd.s32 1, %s13
    $region7: #{query_transformer_forward.25} parent=1 // loop_footer_branch
      %12 = sbr.rel target = $region3
    $region8: #{query_transformer_forward.25} parent=1 // loop_exit
      _
    %1010 = vsyncpa [#allocation3], 1
    %s1011 = scalar_lea.sflag [#allocation3], 1
    %1012 = vsyncpa %s1011, 1

// kernel: query_transformer_forward.26
$region0: #{query_transformer_forward.26}
  #allocation0 [shape = 'u32[]', space=smem, size = 0x4, offset = 0x4, fixed_abs, tag = 'smem constant byte address 0x4 - core index']
  #allocation1 [shape = 'u32[72,128]{1,0:T(1,128)}', space=vmem, size = 0x9000, scoped, tag = 'internal scratch']
  %s0 = inlined_call_operand.vmem [shape: bf16[2,176,64], index: 0, kind: input, shape index: {}]
  %s1 = inlined_call_operand.vmem [shape: bf16[9,64,64], index: 1, kind: input, shape index: {}]
  %s2 = inlined_call_operand.vmem [shape: f32[1,64], index: 2, kind: input, shape index: {}]
  %s3 = inlined_call_operand.vmem [shape: bf16[2,128,64], index: 3, kind: output, shape index: {}]
  %s4 = sld [smem:[#allocation0]]
  $region45: #{query_transformer_forward.26} parent=0
    _
  %s6 = ssub.s32 1, %s4
  %s7 = scalar_select 0, %s6, %s4
  loop: start=0, step=1, limit=4
  $region2: #{query_transformer_forward.26} parent=0 // loop_pre_header
    _
  $region3: #{query_transformer_forward.26} parent=0 // loop_header
    %s9 = sphi 0, %s13
    %p10 = scmp.ge.s32.totalorder %s9, 4
    %s19 = sphi 0, %s21
    %s22 = sphi 0, %s19
    %s23 = sphi 0, %s22
    %s39 = sphi 0, %s23
    %s43 = sphi 0, %s43
    %s45 = sphi 0, %s43
    %s46 = sphi 0, %s45
    %s60 = sphi 0, %s46
    %s64 = sphi 0, %s64
    %s66 = sphi 0, %s64
    %s67 = sphi 0, %s66
    %s81 = sphi 0, %s67
    %s87 = sphi 0, %s89
    %s90 = sphi 0, %s87
    %s91 = sphi 0, %s90
    %s107 = sphi 0, %s91
  $region4: #{query_transformer_forward.26} parent=0 // loop_header_branch
    %12 = sbr.rel (%p10) target = $region8
  $region5: #{query_transformer_forward.26} parent=0 // loop_body
    %s14 = ssub.s32 %s9, 1
    %s15 = ssub.s32 %s9, 2
    %s16 = sadd.s32 %s9, 1
    %s17 = ssub.s32 %s9, %s16
    %p18 = scmp.eq.s32.totalorder %s17, 0
    %s20 = sadd.s32 %s19, 1
    %s21 = scalar_select %p18, %s19, %s20
    %p24 = pneg %p18
    %p25 = scmp.eq.s32.totalorder %s9, 1
    %p26 = por %p24, %p25
    %p27 = scmp.ne.s32.totalorder %s19, %s22
    %p28 = scmp.eq.s32.totalorder %s9, 0
    %p29 = por %p27, %p28
    %p30 = scmp.ne.s32.totalorder %s19, %s22
    %p31 = scmp.eq.s32.totalorder %s14, 1
    %p32 = por %p30, %p31
    %p33 = scmp.ne.s32.totalorder %s22, %s23
    %p34 = scmp.eq.s32.totalorder %s14, 0
    %p35 = por %p33, %p34
    %p36 = scmp.ne.s32.totalorder %s22, %s23
    %p37 = scmp.eq.s32.totalorder %s15, 1
    %p38 = por %p36, %p37
    %p40 = scmp.ne.s32.totalorder %s23, %s39
    %p41 = scmp.eq.s32.totalorder %s15, 0
    %p42 = por %p40, %p41
    %s44 = sadd.s32 %s43, 1
    %p47 = scmp.eq.s32.totalorder %s9, 1
    %p48 = scmp.ne.s32.totalorder %s43, %s45
    %p49 = scmp.eq.s32.totalorder %s9, 0
    %p50 = por %p48, %p49
    %p51 = scmp.ne.s32.totalorder %s43, %s45
    %p52 = scmp.eq.s32.totalorder %s14, 1
    %p53 = por %p51, %p52
    %p54 = scmp.ne.s32.totalorder %s45, %s46
    %p55 = scmp.eq.s32.totalorder %s14, 0
    %p56 = por %p54, %p55
    %p57 = scmp.ne.s32.totalorder %s45, %s46
    %p58 = scmp.eq.s32.totalorder %s15, 1
    %p59 = por %p57, %p58
    %p61 = scmp.ne.s32.totalorder %s46, %s60
    %p62 = scmp.eq.s32.totalorder %s15, 0
    %p63 = por %p61, %p62
    %s65 = sadd.s32 %s64, 1
    %p68 = scmp.eq.s32.totalorder %s9, 1
    %p69 = scmp.ne.s32.totalorder %s64, %s66
    %p70 = scmp.eq.s32.totalorder %s9, 0
    %p71 = por %p69, %p70
    %p72 = scmp.ne.s32.totalorder %s64, %s66
    %p73 = scmp.eq.s32.totalorder %s14, 1
    %p74 = por %p72, %p73
    %p75 = scmp.ne.s32.totalorder %s66, %s67
    %p76 = scmp.eq.s32.totalorder %s14, 0
    %p77 = por %p75, %p76
    %p78 = scmp.ne.s32.totalorder %s66, %s67
    %p79 = scmp.eq.s32.totalorder %s15, 1
    %p80 = por %p78, %p79
    %p82 = scmp.ne.s32.totalorder %s67, %s81
    %p83 = scmp.eq.s32.totalorder %s15, 0
    %p84 = por %p82, %p83
    %s85 = ssub.s32 %s9, %s16
    %p86 = scmp.eq.s32.totalorder %s85, 0
    %s88 = sadd.s32 %s87, 1
    %s89 = scalar_select %p86, %s87, %s88
    %p92 = pneg %p86
    %p93 = scmp.eq.s32.totalorder %s9, 1
    %p94 = por %p92, %p93
    %p95 = scmp.ne.s32.totalorder %s87, %s90
    %p96 = scmp.eq.s32.totalorder %s9, 0
    %p97 = por %p95, %p96
    %p98 = scmp.ne.s32.totalorder %s87, %s90
    %p99 = scmp.eq.s32.totalorder %s14, 1
    %p100 = por %p98, %p99
    %p101 = scmp.ne.s32.totalorder %s90, %s91
    %p102 = scmp.eq.s32.totalorder %s14, 0
    %p103 = por %p101, %p102
    %p104 = scmp.ne.s32.totalorder %s90, %s91
    %p105 = scmp.eq.s32.totalorder %s15, 1
    %p106 = por %p104, %p105
    %p108 = scmp.ne.s32.totalorder %s91, %s107
    %p109 = scmp.eq.s32.totalorder %s15, 0
    %p110 = por %p108, %p109
    %p111 = scmp.le.s32.totalorder 1, %s9
    %p112 = scmp.lt.s32.totalorder %s9, 3
    %p113 = pnand %p111, %p112
    %p114 = pneg %p113
    // Predicated region
    $region9: #{query_transformer_forward.26} parent=5 // pred_check
      _
    $region10: #{query_transformer_forward.26} parent=5 // pred_check_branch
      %116 = sbr.rel (%p113) target = $region12
    $region11: #{query_transformer_forward.26} parent=5 // pred_region
      %s117 = ssub.s32 %s9, 1
      // Predicated region
      $region13: #{query_transformer_forward.26} parent=11 // pred_check
        %p118 = pneg %p56
      $region14: #{query_transformer_forward.26} parent=11 // pred_check_branch
        %120 = sbr.rel (%p118) target = $region16
      $region15: #{query_transformer_forward.26} parent=11 // pred_region
        _
      $region16: #{query_transformer_forward.26} parent=11 // pred_fallthru
        _
      // Predicated region
      $region17: #{query_transformer_forward.26} parent=11 // pred_check
        %p121 = pneg %p77
      $region18: #{query_transformer_forward.26} parent=11 // pred_check_branch
        %123 = sbr.rel (%p121) target = $region20
      $region19: #{query_transformer_forward.26} parent=11 // pred_region
        _
      $region20: #{query_transformer_forward.26} parent=11 // pred_fallthru
        _
    $region12: #{query_transformer_forward.26} parent=5 // pred_fallthru
      _
    %p124 = scmp.lt.s32.totalorder %s9, 2
    // Predicated region
    $region21: #{query_transformer_forward.26} parent=5 // pred_check
      %p125 = pneg %p124
    $region22: #{query_transformer_forward.26} parent=5 // pred_check_branch
      %127 = sbr.rel (%p125) target = $region24
    $region23: #{query_transformer_forward.26} parent=5 // pred_region
      // Predicated region
      $region25: #{query_transformer_forward.26} parent=23 // pred_check
        %p128 = pneg %p29
      $region26: #{query_transformer_forward.26} parent=23 // pred_check_branch
        %130 = sbr.rel (%p128) target = $region28
      $region27: #{query_transformer_forward.26} parent=23 // pred_region
        %p131 = scmp.lt.s32.totalorder %s9, 1
        %s132 = scalar_select %p131, %s9, 1
        %s133 = smul.addr %s132, 22
        %s134 = smul.addr %s133, 4
        %s135 = scalar_lea.vmem %s0, %s134
      $region28: #{query_transformer_forward.26} parent=23 // pred_fallthru
        _
    $region24: #{query_transformer_forward.26} parent=5 // pred_fallthru
      _
    %p136 = scmp.le.s32.totalorder 1, %s9
    %p137 = scmp.lt.s32.totalorder %s9, 3
    %p138 = pnand %p136, %p137
    %p139 = pneg %p138
    // Predicated region
    $region29: #{query_transformer_forward.26} parent=5 // pred_check
      _
    $region30: #{query_transformer_forward.26} parent=5 // pred_check_branch
      %141 = sbr.rel (%p138) target = $region32
    $region31: #{query_transformer_forward.26} parent=5 // pred_region
      %s142 = ssub.s32 %s9, 1
      %p143 = scmp.lt.s32.totalorder %s14, 1
      %s144 = scalar_select %p143, %s14, 1
      %s145 = smul.addr %s144, 22
      %s146 = smul.addr %s145, 4
      %s147 = scalar_lea.vmem %s0, %s146
      %p148 = pneg %p35
      %p149 = pneg %p32
      %p150 = pneg %p56
      %p151 = pneg %p53
      %p152 = pneg %p77
      %p153 = pneg %p74
      %p154 = pneg %p103
      %p155 = pneg %p100
      %p156 = scmp.lt.s32.totalorder %s14, 1
      %s157 = scalar_select %p156, %s14, 1
      %s158 = smul.addr %s157, 16
      %s159 = smul.addr %s158, 4
      %s160 = scalar_lea.vmem %s3, %s159
      %p161 = scmp.lt.s32.totalorder %s14, 1
      %s162 = scalar_select %p161, %s14, 1
      %s163 = smul.addr %s162, 22
      %s164 = smul.addr %s163, 4
      %s165 = scalar_lea.vmem %s0, %s164
      %p166 = scmp.lt.s32.totalorder %s14, 1
      %s167 = scalar_select %p166, %s14, 1
      %s168 = smul.addr %s167, 16
      %s169 = smul.addr %s168, 4
      %s170 = scalar_lea.vmem %s3, %s169
      %v172 = vld [vmem:[%s165] sm:$0xf]
      %v173 = vld [vmem:[%s165 + $0x4] sm:$0xf]
      %v174 = vld [vmem:[%s165 + $0x8] sm:$0xf]
      %v175 = vld [vmem:[%s165 + $0xc] sm:$0xf]
      %v176 = vld [vmem:[%s165 + $0x10] sm:$0xf]
      %v177 = vld [vmem:[%s165 + $0x14] sm:$0xf]
      %v178 = vld [vmem:[%s165 + $0x18] sm:$0xf]
      %v179 = vld [vmem:[%s165 + $0x1c] sm:$0xf]
      %v180 = vld [vmem:[%s165 + $0x20] sm:$0xf]
      %v181 = vld [vmem:[%s165 + $0x24] sm:$0xf]
      %v182 = vld [vmem:[%s165 + $0x28] sm:$0xf]
      %v183 = vld [vmem:[%s165 + $0x2c] sm:$0xf]
      %v184 = vld [vmem:[%s165 + $0x30] sm:$0xf]
      %v185 = vld [vmem:[%s165 + $0x34] sm:$0xf]
      %v186 = vld [vmem:[%s165 + $0x38] sm:$0xf]
      %v187 = vld [vmem:[%s165 + $0x3c] sm:$0xf]
      %v188 = vld [vmem:[%s165 + $0x40] sm:$0xf]
      %v189 = vld [vmem:[%s165 + $0x44] sm:$0xf]
      %v190 = vld [vmem:[%s165 + $0x48] sm:$0xf]
      %v191 = vld [vmem:[%s165 + $0x4c] sm:$0xf]
      %v192 = vld [vmem:[%s165 + $0x50] sm:$0xf]
      %v193 = vld [vmem:[%s165 + $0x54] sm:$0xf]
      %v194 = vunpack.c.l.bf16 %v172
      %v195 = vunpack.c.l.bf16 %v173
      %v196 = vunpack.c.l.bf16 %v174
      %v197 = vunpack.c.l.bf16 %v175
      %v198 = vunpack.c.l.bf16 %v176
      %v199 = vunpack.c.l.bf16 %v177
      %v200 = vunpack.c.l.bf16 %v178
      %v201 = vunpack.c.l.bf16 %v179
      %v202 = vunpack.c.l.bf16 %v180
      %v203 = vunpack.c.l.bf16 %v181
      %v204 = vunpack.c.l.bf16 %v182
      %v205 = vunpack.c.l.bf16 %v183
      %v206 = vunpack.c.l.bf16 %v184
      %v207 = vunpack.c.l.bf16 %v185
      %v208 = vunpack.c.l.bf16 %v186
      %v209 = vunpack.c.l.bf16 %v187
      %v210 = vunpack.c.l.bf16 %v188
      %v211 = vunpack.c.l.bf16 %v189
      %v212 = vunpack.c.l.bf16 %v190
      %v213 = vunpack.c.l.bf16 %v191
      %v214 = vunpack.c.l.bf16 %v192
      %v215 = vunpack.c.l.bf16 %v193
      %v216 = vmax.f32 %v194, 0.0
      %v217 = vmax.f32 %v195, 0.0
      %v218 = vmax.f32 %v196, 0.0
      %v219 = vmax.f32 %v197, 0.0
      %v220 = vmax.f32 %v198, 0.0
      %v221 = vmax.f32 %v199, 0.0
      %v222 = vmax.f32 %v200, 0.0
      %v223 = vmax.f32 %v201, 0.0
      %v224 = vmax.f32 %v202, 0.0
      %v225 = vmax.f32 %v203, 0.0
      %v226 = vmax.f32 %v204, 0.0
      %v227 = vmax.f32 %v205, 0.0
      %v228 = vmax.f32 %v206, 0.0
      %v229 = vmax.f32 %v207, 0.0
      %v230 = vmax.f32 %v208, 0.0
      %v231 = vmax.f32 %v209, 0.0
      %v232 = vmax.f32 %v210, 0.0
      %v233 = vmax.f32 %v211, 0.0
      %v234 = vmax.f32 %v212, 0.0
      %v235 = vmax.f32 %v213, 0.0
      %v236 = vmax.f32 %v214, 0.0
      %v237 = vmax.f32 %v215, 0.0
      %v238 = vrot.slane %v216, 7
      %v239 = vrot.slane %v217, 7
      %v240 = vrot.slane %v218, 7
      %v241 = vrot.slane %v219, 7
      %v242 = vrot.slane %v220, 7
      %v243 = vrot.slane %v221, 7
      %v244 = vrot.slane %v222, 7
      %v245 = vrot.slane %v223, 7
      %v246 = vrot.slane %v224, 7
      %v247 = vrot.slane %v225, 7
      %v248 = vrot.slane %v226, 7
      %v249 = vrot.slane %v227, 7
      %v250 = vrot.slane %v228, 7
      %v251 = vrot.slane %v229, 7
      %v252 = vrot.slane %v230, 7
      %v253 = vrot.slane %v231, 7
      %v254 = vrot.slane %v232, 7
      %v255 = vrot.slane %v233, 7
      %v256 = vrot.slane %v234, 7
      %v257 = vrot.slane %v235, 7
      %v258 = vrot.slane %v236, 7
      %v259 = vlaneseq
      %v260 = vshrl.u32 %v259, 7
      %vm261 = vcmp.lt.s32.totalorder %v260, 1
      %v262 = vsel %vm261, %v257, %v258
      %v263 = vsel %vm261, %v256, %v257
      %v264 = vsel %vm261, %v255, %v256
      %v265 = vsel %vm261, %v254, %v255
      %v266 = vsel %vm261, %v253, %v254
      %v267 = vsel %vm261, %v252, %v253
      %v268 = vsel %vm261, %v251, %v252
      %v269 = vsel %vm261, %v250, %v251
      %v270 = vsel %vm261, %v249, %v250
      %v271 = vsel %vm261, %v248, %v249
      %v272 = vsel %vm261, %v247, %v248
      %v273 = vsel %vm261, %v246, %v247
      %v274 = vsel %vm261, %v245, %v246
      %v275 = vsel %vm261, %v244, %v245
      %v276 = vsel %vm261, %v243, %v244
      %v277 = vsel %vm261, %v242, %v243
      %v278 = vsel %vm261, %v241, %v242
      %v279 = vsel %vm261, %v240, %v241
      %v280 = vsel %vm261, %v239, %v240
      %v281 = vsel %vm261, %v238, %v239
      %v282 = vrot.slane %v217, 1
      %v283 = vrot.slane %v218, 1
      %v284 = vrot.slane %v219, 1
      %v285 = vrot.slane %v220, 1
      %v286 = vrot.slane %v221, 1
      %v287 = vrot.slane %v222, 1
      %v288 = vrot.slane %v223, 1
      %v289 = vrot.slane %v224, 1
      %v290 = vrot.slane %v225, 1
      %v291 = vrot.slane %v226, 1
      %v292 = vrot.slane %v227, 1
      %v293 = vrot.slane %v228, 1
      %v294 = vrot.slane %v229, 1
      %v295 = vrot.slane %v230, 1
      %v296 = vrot.slane %v231, 1
      %v297 = vrot.slane %v232, 1
      %v298 = vrot.slane %v233, 1
      %v299 = vrot.slane %v234, 1
      %v300 = vrot.slane %v235, 1
      %v301 = vrot.slane %v236, 1
      %v302 = vrot.slane %v237, 1
      %vm303 = vcmp.lt.s32.totalorder %v260, 7
      %v304 = vsel %vm303, %v301, %v302
      %v305 = vsel %vm303, %v300, %v301
      %v306 = vsel %vm303, %v299, %v300
      %v307 = vsel %vm303, %v298, %v299
      %v308 = vsel %vm303, %v297, %v298
      %v309 = vsel %vm303, %v296, %v297
      %v310 = vsel %vm303, %v295, %v296
      %v311 = vsel %vm303, %v294, %v295
      %v312 = vsel %vm303, %v293, %v294
      %v313 = vsel %vm303, %v292, %v293
      %v314 = vsel %vm303, %v291, %v292
      %v315 = vsel %vm303, %v290, %v291
      %v316 = vsel %vm303, %v289, %v290
      %v317 = vsel %vm303, %v288, %v289
      %v318 = vsel %vm303, %v287, %v288
      %v319 = vsel %vm303, %v286, %v287
      %v320 = vsel %vm303, %v285, %v286
      %v321 = vsel %vm303, %v284, %v285
      %v322 = vsel %vm303, %v283, %v284
      %v323 = vsel %vm303, %v282, %v283
      %v324 = vpack.c.bf16 %v281, %v281
      %v325 = vpack.c.bf16 %v280, %v280
      %v326 = vpack.c.bf16 %v279, %v279
      %v327 = vpack.c.bf16 %v278, %v278
      %v328 = vpack.c.bf16 %v277, %v277
      %v329 = vpack.c.bf16 %v276, %v276
      %v330 = vpack.c.bf16 %v275, %v275
      %v331 = vpack.c.bf16 %v274, %v274
      %v332 = vpack.c.bf16 %v273, %v273
      %v333 = vpack.c.bf16 %v272, %v272
      %v334 = vpack.c.bf16 %v271, %v271
      %v335 = vpack.c.bf16 %v270, %v270
      %v336 = vpack.c.bf16 %v269, %v269
      %v337 = vpack.c.bf16 %v268, %v268
      %v338 = vpack.c.bf16 %v267, %v267
      %v339 = vpack.c.bf16 %v266, %v266
      %v340 = vpack.c.bf16 %v265, %v265
      %v341 = vpack.c.bf16 %v264, %v264
      %v342 = vpack.c.bf16 %v263, %v263
      %v343 = vpack.c.bf16 %v262, %v262
      %v344 = vpack.c.bf16 %v217, %v217
      %v345 = vpack.c.bf16 %v218, %v218
      %v346 = vpack.c.bf16 %v219, %v219
      %v347 = vpack.c.bf16 %v220, %v220
      %v348 = vpack.c.bf16 %v221, %v221
      %v349 = vpack.c.bf16 %v222, %v222
      %v350 = vpack.c.bf16 %v223, %v223
      %v351 = vpack.c.bf16 %v224, %v224
      %v352 = vpack.c.bf16 %v225, %v225
      %v353 = vpack.c.bf16 %v226, %v226
      %v354 = vpack.c.bf16 %v227, %v227
      %v355 = vpack.c.bf16 %v228, %v228
      %v356 = vpack.c.bf16 %v229, %v229
      %v357 = vpack.c.bf16 %v230, %v230
      %v358 = vpack.c.bf16 %v231, %v231
      %v359 = vpack.c.bf16 %v232, %v232
      %v360 = vpack.c.bf16 %v233, %v233
      %v361 = vpack.c.bf16 %v234, %v234
      %v362 = vpack.c.bf16 %v235, %v235
      %v363 = vpack.c.bf16 %v236, %v236
      %v364 = vpack.c.bf16 %v323, %v323
      %v365 = vpack.c.bf16 %v322, %v322
      %v366 = vpack.c.bf16 %v321, %v321
      %v367 = vpack.c.bf16 %v320, %v320
      %v368 = vpack.c.bf16 %v319, %v319
      %v369 = vpack.c.bf16 %v318, %v318
      %v370 = vpack.c.bf16 %v317, %v317
      %v371 = vpack.c.bf16 %v316, %v316
      %v372 = vpack.c.bf16 %v315, %v315
      %v373 = vpack.c.bf16 %v314, %v314
      %v374 = vpack.c.bf16 %v313, %v313
      %v375 = vpack.c.bf16 %v312, %v312
      %v376 = vpack.c.bf16 %v311, %v311
      %v377 = vpack.c.bf16 %v310, %v310
      %v378 = vpack.c.bf16 %v309, %v309
      %v379 = vpack.c.bf16 %v308, %v308
      %v380 = vpack.c.bf16 %v307, %v307
      %v381 = vpack.c.bf16 %v306, %v306
      %v382 = vpack.c.bf16 %v305, %v305
      %v383 = vpack.c.bf16 %v304, %v304
      %v384 = vld [vmem:[%s1] sm:$0xf]
      %v385 = vld [vmem:[%s1 + $0x4] sm:$0xf]
      %v386 = vld [vmem:[%s1 + $0x8] sm:$0xf]
      %v387 = vld [vmem:[%s1 + $0xc] sm:$0xf]
      %v388 = vld [vmem:[%s1 + $0x10] sm:$0xf]
      %v389 = vld [vmem:[%s1 + $0x14] sm:$0xf]
      %v390 = vld [vmem:[%s1 + $0x18] sm:$0xf]
      %v391 = vld [vmem:[%s1 + $0x1c] sm:$0xf]
      %s392 = scalar_lea.vmem %s1, 32
      %v393 = vld [vmem:[%s392] sm:$0xf]
      %v394 = vld [vmem:[%s392 + $0x4] sm:$0xf]
      %v395 = vld [vmem:[%s392 + $0x8] sm:$0xf]
      %v396 = vld [vmem:[%s392 + $0xc] sm:$0xf]
      %v397 = vld [vmem:[%s392 + $0x10] sm:$0xf]
      %v398 = vld [vmem:[%s392 + $0x14] sm:$0xf]
      %v399 = vld [vmem:[%s392 + $0x18] sm:$0xf]
      %v400 = vld [vmem:[%s392 + $0x1c] sm:$0xf]
      %v417 = vunpack.c.l.b16 %v344
      %v418 = vunpack.c.l.b16 %v345
      %v419 = vunpack.c.l.b16 %v346
      %v420 = vunpack.c.l.b16 %v347
      %v421 = vunpack.c.l.b16 %v348
      %v422 = vunpack.c.l.b16 %v349
      %v423 = vunpack.c.l.b16 %v350
      %v424 = vunpack.c.l.b16 %v351
      %v425 = vunpack.c.l.b16 %v352
      %v426 = vunpack.c.l.b16 %v353
      %v427 = vunpack.c.l.b16 %v354
      %v428 = vunpack.c.l.b16 %v355
      %v429 = vunpack.c.l.b16 %v356
      %v430 = vunpack.c.l.b16 %v357
      %v431 = vunpack.c.l.b16 %v358
      %v432 = vunpack.c.l.b16 %v359
      %v433 = vpack.c.b16 %v418, %v417
      %v434 = vpack.c.b16 %v420, %v419
      %v435 = vpack.c.b16 %v422, %v421
      %v436 = vpack.c.b16 %v424, %v423
      %v437 = vpack.c.b16 %v426, %v425
      %v438 = vpack.c.b16 %v428, %v427
      %v439 = vpack.c.b16 %v430, %v429
      %v440 = vpack.c.b16 %v432, %v431
      %v449 = vunpack.c.l.b16 %v393
      %v450 = vunpack.c.l.b16 %v394
      %v451 = vunpack.c.l.b16 %v395
      %v452 = vunpack.c.l.b16 %v396
      %v453 = vunpack.c.l.b16 %v397
      %v454 = vunpack.c.l.b16 %v398
      %v455 = vunpack.c.l.b16 %v399
      %v456 = vunpack.c.l.b16 %v400
      %v457 = vpack.c.b16 %v450, %v449
      %v458 = vpack.c.b16 %v452, %v451
      %v459 = vpack.c.b16 %v454, %v453
      %v460 = vpack.c.b16 %v456, %v455
      %vm465 = vcmask 523264
      %v467 = vsel %vm465, %v433, 0
      %v470 = vsel %vm465, %v434, 0
      %v473 = vsel %vm465, %v435, 0
      %v476 = vsel %vm465, %v436, 0
      %v479 = vsel %vm465, %v437, 0
      %v482 = vsel %vm465, %v438, 0
      %v485 = vsel %vm465, %v439, 0
      %v488 = vsel %vm465, %v440, 0
      %490 = vmatpush.bf16.msra.mxu0 0
      %491 = vmatpush.bf16.msra.mxu0 0
      %492 = vmatpush.bf16.msra.mxu0 0
      %493 = vmatpush.bf16.msra.mxu0 0
      %494 = vmatpush.bf16.msra.mxu0 %v460
      %495 = vmatpush.bf16.msra.mxu0 %v459
      %496 = vmatpush.bf16.msra.mxu0 %v458
      %497 = vmatpush.bf16.msra.mxu0 %v457
      %498 = vmatmul.bf16.gmra.mxu0 %v467
      %v499 = vpop.f32.mrf.mxu0
      %v500 = vadd.f32 0.0, %v499
      %v501 = vpop.f32.mrf.mxu0
      %v502 = vadd.f32 0.0, %v501
      %503 = vmatmul.bf16.gmra.mxu0 %v470
      %v504 = vpop.f32.mrf.mxu0
      %v505 = vadd.f32 0.0, %v504
      %v506 = vpop.f32.mrf.mxu0
      %v507 = vadd.f32 0.0, %v506
      %508 = vmatmul.bf16.gmra.mxu0 %v473
      %v509 = vpop.f32.mrf.mxu0
      %v510 = vadd.f32 0.0, %v509
      %v511 = vpop.f32.mrf.mxu0
      %v512 = vadd.f32 0.0, %v511
      %513 = vmatmul.bf16.gmra.mxu0 %v476
      %v514 = vpop.f32.mrf.mxu0
      %v515 = vadd.f32 0.0, %v514
      %v516 = vpop.f32.mrf.mxu0
      %v517 = vadd.f32 0.0, %v516
      %518 = vmatmul.bf16.gmra.mxu0 %v479
      %v519 = vpop.f32.mrf.mxu0
      %v520 = vadd.f32 0.0, %v519
      %v521 = vpop.f32.mrf.mxu0
      %v522 = vadd.f32 0.0, %v521
      %523 = vmatmul.bf16.gmra.mxu0 %v482
      %v524 = vpop.f32.mrf.mxu0
      %v525 = vadd.f32 0.0, %v524
      %v526 = vpop.f32.mrf.mxu0
      %v527 = vadd.f32 0.0, %v526
      %528 = vmatmul.bf16.gmra.mxu0 %v485
      %v529 = vpop.f32.mrf.mxu0
      %v530 = vadd.f32 0.0, %v529
      %v531 = vpop.f32.mrf.mxu0
      %v532 = vadd.f32 0.0, %v531
      %533 = vmatmul.bf16.gmra.mxu0 %v488
      %v534 = vpop.f32.mrf.mxu0
      %v535 = vadd.f32 0.0, %v534
      %v536 = vpop.f32.mrf.mxu0
      %v537 = vadd.f32 0.0, %v536
      %538 = vdwg.mxu0
      %v555 = vunpack.c.l.b16 %v324
      %v556 = vunpack.c.l.b16 %v325
      %v557 = vunpack.c.l.b16 %v326
      %v558 = vunpack.c.l.b16 %v327
      %v559 = vunpack.c.l.b16 %v328
      %v560 = vunpack.c.l.b16 %v329
      %v561 = vunpack.c.l.b16 %v330
      %v562 = vunpack.c.l.b16 %v331
      %v563 = vunpack.c.l.b16 %v332
      %v564 = vunpack.c.l.b16 %v333
      %v565 = vunpack.c.l.b16 %v334
      %v566 = vunpack.c.l.b16 %v335
      %v567 = vunpack.c.l.b16 %v336
      %v568 = vunpack.c.l.b16 %v337
      %v569 = vunpack.c.l.b16 %v338
      %v570 = vunpack.c.l.b16 %v339
      %v571 = vpack.c.b16 %v556, %v555
      %v572 = vpack.c.b16 %v558, %v557
      %v573 = vpack.c.b16 %v560, %v559
      %v574 = vpack.c.b16 %v562, %v561
      %v575 = vpack.c.b16 %v564, %v563
      %v576 = vpack.c.b16 %v566, %v565
      %v577 = vpack.c.b16 %v568, %v567
      %v578 = vpack.c.b16 %v570, %v569
      %v587 = vunpack.c.l.b16 %v384
      %v588 = vunpack.c.l.b16 %v385
      %v589 = vunpack.c.l.b16 %v386
      %v590 = vunpack.c.l.b16 %v387
      %v591 = vunpack.c.l.b16 %v388
      %v592 = vunpack.c.l.b16 %v389
      %v593 = vunpack.c.l.b16 %v390
      %v594 = vunpack.c.l.b16 %v391
      %v595 = vpack.c.b16 %v588, %v587
      %v596 = vpack.c.b16 %v590, %v589
      %v597 = vpack.c.b16 %v592, %v591
      %v598 = vpack.c.b16 %v594, %v593
      %v604 = vsel %vm465, %v571, 0
      %v607 = vsel %vm465, %v572, 0
      %v610 = vsel %vm465, %v573, 0
      %v613 = vsel %vm465, %v574, 0
      %v616 = vsel %vm465, %v575, 0
      %v619 = vsel %vm465, %v576, 0
      %v622 = vsel %vm465, %v577, 0
      %v625 = vsel %vm465, %v578, 0
      %627 = vmatpush.bf16.msra.mxu0 0
      %628 = vmatpush.bf16.msra.mxu0 0
      %629 = vmatpush.bf16.msra.mxu0 0
      %630 = vmatpush.bf16.msra.mxu0 0
      %631 = vmatpush.bf16.msra.mxu0 %v598
      %632 = vmatpush.bf16.msra.mxu0 %v597
      %633 = vmatpush.bf16.msra.mxu0 %v596
      %634 = vmatpush.bf16.msra.mxu0 %v595
      %635 = vmatmul.bf16.gmra.mxu0 %v604
      %v636 = vpop.f32.mrf.mxu0
      %v637 = vadd.f32 %v500, %v636
      %v638 = vpop.f32.mrf.mxu0
      %v639 = vadd.f32 %v502, %v638
      %640 = vmatmul.bf16.gmra.mxu0 %v607
      %v641 = vpop.f32.mrf.mxu0
      %v642 = vadd.f32 %v505, %v641
      %v643 = vpop.f32.mrf.mxu0
      %v644 = vadd.f32 %v507, %v643
      %645 = vmatmul.bf16.gmra.mxu0 %v610
      %v646 = vpop.f32.mrf.mxu0
      %v647 = vadd.f32 %v510, %v646
      %v648 = vpop.f32.mrf.mxu0
      %v649 = vadd.f32 %v512, %v648
      %650 = vmatmul.bf16.gmra.mxu0 %v613
      %v651 = vpop.f32.mrf.mxu0
      %v652 = vadd.f32 %v515, %v651
      %v653 = vpop.f32.mrf.mxu0
      %v654 = vadd.f32 %v517, %v653
      %655 = vmatmul.bf16.gmra.mxu0 %v616
      %v656 = vpop.f32.mrf.mxu0
      %v657 = vadd.f32 %v520, %v656
      %v658 = vpop.f32.mrf.mxu0
      %v659 = vadd.f32 %v522, %v658
      %660 = vmatmul.bf16.gmra.mxu0 %v619
      %v661 = vpop.f32.mrf.mxu0
      %v662 = vadd.f32 %v525, %v661
      %v663 = vpop.f32.mrf.mxu0
      %v664 = vadd.f32 %v527, %v663
      %665 = vmatmul.bf16.gmra.mxu0 %v622
      %v666 = vpop.f32.mrf.mxu0
      %v667 = vadd.f32 %v530, %v666
      %v668 = vpop.f32.mrf.mxu0
      %v669 = vadd.f32 %v532, %v668
      %670 = vmatmul.bf16.gmra.mxu0 %v625
      %v671 = vpop.f32.mrf.mxu0
      %v672 = vadd.f32 %v535, %v671
      %v673 = vpop.f32.mrf.mxu0
      %v674 = vadd.f32 %v537, %v673
      %675 = vdwg.mxu0
      %s676 = scalar_lea.vmem %s1, 64
      %v677 = vld [vmem:[%s676] sm:$0xf]
      %v678 = vld [vmem:[%s676 + $0x4] sm:$0xf]
      %v679 = vld [vmem:[%s676 + $0x8] sm:$0xf]
      %v680 = vld [vmem:[%s676 + $0xc] sm:$0xf]
      %v681 = vld [vmem:[%s676 + $0x10] sm:$0xf]
      %v682 = vld [vmem:[%s676 + $0x14] sm:$0xf]
      %v683 = vld [vmem:[%s676 + $0x18] sm:$0xf]
      %v684 = vld [vmem:[%s676 + $0x1c] sm:$0xf]
      %v701 = vunpack.c.l.b16 %v364
      %v702 = vunpack.c.l.b16 %v365
      %v703 = vunpack.c.l.b16 %v366
      %v704 = vunpack.c.l.b16 %v367
      %v705 = vunpack.c.l.b16 %v368
      %v706 = vunpack.c.l.b16 %v369
      %v707 = vunpack.c.l.b16 %v370
      %v708 = vunpack.c.l.b16 %v371
      %v709 = vunpack.c.l.b16 %v372
      %v710 = vunpack.c.l.b16 %v373
      %v711 = vunpack.c.l.b16 %v374
      %v712 = vunpack.c.l.b16 %v375
      %v713 = vunpack.c.l.b16 %v376
      %v714 = vunpack.c.l.b16 %v377
      %v715 = vunpack.c.l.b16 %v378
      %v716 = vunpack.c.l.b16 %v379
      %v717 = vpack.c.b16 %v702, %v701
      %v718 = vpack.c.b16 %v704, %v703
      %v719 = vpack.c.b16 %v706, %v705
      %v720 = vpack.c.b16 %v708, %v707
      %v721 = vpack.c.b16 %v710, %v709
      %v722 = vpack.c.b16 %v712, %v711
      %v723 = vpack.c.b16 %v714, %v713
      %v724 = vpack.c.b16 %v716, %v715
      %v733 = vunpack.c.l.b16 %v677
      %v734 = vunpack.c.l.b16 %v678
      %v735 = vunpack.c.l.b16 %v679
      %v736 = vunpack.c.l.b16 %v680
      %v737 = vunpack.c.l.b16 %v681
      %v738 = vunpack.c.l.b16 %v682
      %v739 = vunpack.c.l.b16 %v683
      %v740 = vunpack.c.l.b16 %v684
      %v741 = vpack.c.b16 %v734, %v733
      %v742 = vpack.c.b16 %v736, %v735
      %v743 = vpack.c.b16 %v738, %v737
      %v744 = vpack.c.b16 %v740, %v739
      %v750 = vsel %vm465, %v717, 0
      %v753 = vsel %vm465, %v718, 0
      %v756 = vsel %vm465, %v719, 0
      %v759 = vsel %vm465, %v720, 0
      %v762 = vsel %vm465, %v721, 0
      %v765 = vsel %vm465, %v722, 0
      %v768 = vsel %vm465, %v723, 0
      %v771 = vsel %vm465, %v724, 0
      %773 = vmatpush.bf16.msra.mxu0 0
      %774 = vmatpush.bf16.msra.mxu0 0
      %775 = vmatpush.bf16.msra.mxu0 0
      %776 = vmatpush.bf16.msra.mxu0 0
      %777 = vmatpush.bf16.msra.mxu0 %v744
      %778 = vmatpush.bf16.msra.mxu0 %v743
      %779 = vmatpush.bf16.msra.mxu0 %v742
      %780 = vmatpush.bf16.msra.mxu0 %v741
      %781 = vmatmul.bf16.gmra.mxu0 %v750
      %v782 = vpop.f32.mrf.mxu0
      %v783 = vadd.f32 0.0, %v782
      %v784 = vpop.f32.mrf.mxu0
      %v785 = vadd.f32 0.0, %v784
      %786 = vmatmul.bf16.gmra.mxu0 %v753
      %v787 = vpop.f32.mrf.mxu0
      %v788 = vadd.f32 0.0, %v787
      %v789 = vpop.f32.mrf.mxu0
      %v790 = vadd.f32 0.0, %v789
      %791 = vmatmul.bf16.gmra.mxu0 %v756
      %v792 = vpop.f32.mrf.mxu0
      %v793 = vadd.f32 0.0, %v792
      %v794 = vpop.f32.mrf.mxu0
      %v795 = vadd.f32 0.0, %v794
      %796 = vmatmul.bf16.gmra.mxu0 %v759
      %v797 = vpop.f32.mrf.mxu0
      %v798 = vadd.f32 0.0, %v797
      %v799 = vpop.f32.mrf.mxu0
      %v800 = vadd.f32 0.0, %v799
      %801 = vmatmul.bf16.gmra.mxu0 %v762
      %v802 = vpop.f32.mrf.mxu0
      %v803 = vadd.f32 0.0, %v802
      %v804 = vpop.f32.mrf.mxu0
      %v805 = vadd.f32 0.0, %v804
      %806 = vmatmul.bf16.gmra.mxu0 %v765
      %v807 = vpop.f32.mrf.mxu0
      %v808 = vadd.f32 0.0, %v807
      %v809 = vpop.f32.mrf.mxu0
      %v810 = vadd.f32 0.0, %v809
      %811 = vmatmul.bf16.gmra.mxu0 %v768
      %v812 = vpop.f32.mrf.mxu0
      %v813 = vadd.f32 0.0, %v812
      %v814 = vpop.f32.mrf.mxu0
      %v815 = vadd.f32 0.0, %v814
      %816 = vmatmul.bf16.gmra.mxu0 %v771
      %v817 = vpop.f32.mrf.mxu0
      %v818 = vadd.f32 0.0, %v817
      %v819 = vpop.f32.mrf.mxu0
      %v820 = vadd.f32 0.0, %v819
      %821 = vdwg.mxu0
      %v822 = vadd.f32 %v637, %v783
      %v823 = vadd.f32 %v639, %v785
      %v824 = vadd.f32 %v642, %v788
      %v825 = vadd.f32 %v644, %v790
      %v826 = vadd.f32 %v647, %v793
      %v827 = vadd.f32 %v649, %v795
      %v828 = vadd.f32 %v652, %v798
      %v829 = vadd.f32 %v654, %v800
      %v830 = vadd.f32 %v657, %v803
      %v831 = vadd.f32 %v659, %v805
      %v832 = vadd.f32 %v662, %v808
      %v833 = vadd.f32 %v664, %v810
      %v834 = vadd.f32 %v667, %v813
      %v835 = vadd.f32 %v669, %v815
      %v836 = vadd.f32 %v672, %v818
      %v837 = vadd.f32 %v674, %v820
      %s838 = scalar_lea.vmem %s1, 96
      %v839 = vld [vmem:[%s838] sm:$0xf]
      %v840 = vld [vmem:[%s838 + $0x4] sm:$0xf]
      %v841 = vld [vmem:[%s838 + $0x8] sm:$0xf]
      %v842 = vld [vmem:[%s838 + $0xc] sm:$0xf]
      %v843 = vld [vmem:[%s838 + $0x10] sm:$0xf]
      %v844 = vld [vmem:[%s838 + $0x14] sm:$0xf]
      %v845 = vld [vmem:[%s838 + $0x18] sm:$0xf]
      %v846 = vld [vmem:[%s838 + $0x1c] sm:$0xf]
      %v849 = vunpack.c.l.b16 %v340
      %v850 = vunpack.c.l.b16 %v341
      %v851 = vpack.c.b16 %v850, %v849
      %v860 = vunpack.c.l.b16 %v839
      %v861 = vunpack.c.l.b16 %v840
      %v862 = vunpack.c.l.b16 %v841
      %v863 = vunpack.c.l.b16 %v842
      %v864 = vunpack.c.l.b16 %v843
      %v865 = vunpack.c.l.b16 %v844
      %v866 = vunpack.c.l.b16 %v845
      %v867 = vunpack.c.l.b16 %v846
      %v868 = vpack.c.b16 %v861, %v860
      %v869 = vpack.c.b16 %v863, %v862
      %v870 = vpack.c.b16 %v865, %v864
      %v871 = vpack.c.b16 %v867, %v866
      %v877 = vsel %vm465, %v851, 0
      %879 = vmatpush.bf16.msra.mxu0 0
      %880 = vmatpush.bf16.msra.mxu0 0
      %881 = vmatpush.bf16.msra.mxu0 0
      %882 = vmatpush.bf16.msra.mxu0 0
      %883 = vmatpush.bf16.msra.mxu0 %v871
      %884 = vmatpush.bf16.msra.mxu0 %v870
      %885 = vmatpush.bf16.msra.mxu0 %v869
      %886 = vmatpush.bf16.msra.mxu0 %v868
      %887 = vmatmul.bf16.gmra.mxu0 %v607
      %v888 = vpop.f32.mrf.mxu0
      %v889 = vadd.f32 0.0, %v888
      %v890 = vpop.f32.mrf.mxu0
      %v891 = vadd.f32 0.0, %v890
      %892 = vmatmul.bf16.gmra.mxu0 %v610
      %v893 = vpop.f32.mrf.mxu0
      %v894 = vadd.f32 0.0, %v893
      %v895 = vpop.f32.mrf.mxu0
      %v896 = vadd.f32 0.0, %v895
      %897 = vmatmul.bf16.gmra.mxu0 %v613
      %v898 = vpop.f32.mrf.mxu0
      %v899 = vadd.f32 0.0, %v898
      %v900 = vpop.f32.mrf.mxu0
      %v901 = vadd.f32 0.0, %v900
      %902 = vmatmul.bf16.gmra.mxu0 %v616
      %v903 = vpop.f32.mrf.mxu0
      %v904 = vadd.f32 0.0, %v903
      %v905 = vpop.f32.mrf.mxu0
      %v906 = vadd.f32 0.0, %v905
      %907 = vmatmul.bf16.gmra.mxu0 %v619
      %v908 = vpop.f32.mrf.mxu0
      %v909 = vadd.f32 0.0, %v908
      %v910 = vpop.f32.mrf.mxu0
      %v911 = vadd.f32 0.0, %v910
      %912 = vmatmul.bf16.gmra.mxu0 %v622
      %v913 = vpop.f32.mrf.mxu0
      %v914 = vadd.f32 0.0, %v913
      %v915 = vpop.f32.mrf.mxu0
      %v916 = vadd.f32 0.0, %v915
      %917 = vmatmul.bf16.gmra.mxu0 %v625
      %v918 = vpop.f32.mrf.mxu0
      %v919 = vadd.f32 0.0, %v918
      %v920 = vpop.f32.mrf.mxu0
      %v921 = vadd.f32 0.0, %v920
      %922 = vmatmul.bf16.gmra.mxu0 %v877
      %v923 = vpop.f32.mrf.mxu0
      %v924 = vadd.f32 0.0, %v923
      %v925 = vpop.f32.mrf.mxu0
      %v926 = vadd.f32 0.0, %v925
      %927 = vdwg.mxu0
      %v928 = vadd.f32 %v822, %v889
      %v929 = vadd.f32 %v823, %v891
      %v930 = vadd.f32 %v824, %v894
      %v931 = vadd.f32 %v825, %v896
      %v932 = vadd.f32 %v826, %v899
      %v933 = vadd.f32 %v827, %v901
      %v934 = vadd.f32 %v828, %v904
      %v935 = vadd.f32 %v829, %v906
      %v936 = vadd.f32 %v830, %v909
      %v937 = vadd.f32 %v831, %v911
      %v938 = vadd.f32 %v832, %v914
      %v939 = vadd.f32 %v833, %v916
      %v940 = vadd.f32 %v834, %v919
      %v941 = vadd.f32 %v835, %v921
      %v942 = vadd.f32 %v836, %v924
      %v943 = vadd.f32 %v837, %v926
      %s944 = scalar_lea.vmem %s1, 128
      %v945 = vld [vmem:[%s944] sm:$0xf]
      %v946 = vld [vmem:[%s944 + $0x4] sm:$0xf]
      %v947 = vld [vmem:[%s944 + $0x8] sm:$0xf]
      %v948 = vld [vmem:[%s944 + $0xc] sm:$0xf]
      %v949 = vld [vmem:[%s944 + $0x10] sm:$0xf]
      %v950 = vld [vmem:[%s944 + $0x14] sm:$0xf]
      %v951 = vld [vmem:[%s944 + $0x18] sm:$0xf]
      %v952 = vld [vmem:[%s944 + $0x1c] sm:$0xf]
      %v955 = vunpack.c.l.b16 %v360
      %v956 = vunpack.c.l.b16 %v361
      %v957 = vpack.c.b16 %v956, %v955
      %v966 = vunpack.c.l.b16 %v945
      %v967 = vunpack.c.l.b16 %v946
      %v968 = vunpack.c.l.b16 %v947
      %v969 = vunpack.c.l.b16 %v948
      %v970 = vunpack.c.l.b16 %v949
      %v971 = vunpack.c.l.b16 %v950
      %v972 = vunpack.c.l.b16 %v951
      %v973 = vunpack.c.l.b16 %v952
      %v974 = vpack.c.b16 %v967, %v966
      %v975 = vpack.c.b16 %v969, %v968
      %v976 = vpack.c.b16 %v971, %v970
      %v977 = vpack.c.b16 %v973, %v972
      %v983 = vsel %vm465, %v957, 0
      %985 = vmatpush.bf16.msra.mxu0 0
      %986 = vmatpush.bf16.msra.mxu0 0
      %987 = vmatpush.bf16.msra.mxu0 0
      %988 = vmatpush.bf16.msra.mxu0 0
      %989 = vmatpush.bf16.msra.mxu0 %v977
      %990 = vmatpush.bf16.msra.mxu0 %v976
      %991 = vmatpush.bf16.msra.mxu0 %v975
      %992 = vmatpush.bf16.msra.mxu0 %v974
      %993 = vmatmul.bf16.gmra.mxu0 %v470
      %v994 = vpop.f32.mrf.mxu0
      %v995 = vadd.f32 0.0, %v994
      %v996 = vpop.f32.mrf.mxu0
      %v997 = vadd.f32 0.0, %v996
      %998 = vmatmul.bf16.gmra.mxu0 %v473
      %v999 = vpop.f32.mrf.mxu0
      %v1000 = vadd.f32 0.0, %v999
      %v1001 = vpop.f32.mrf.mxu0
      %v1002 = vadd.f32 0.0, %v1001
      %1003 = vmatmul.bf16.gmra.mxu0 %v476
      %v1004 = vpop.f32.mrf.mxu0
      %v1005 = vadd.f32 0.0, %v1004
      %v1006 = vpop.f32.mrf.mxu0
      %v1007 = vadd.f32 0.0, %v1006
      %1008 = vmatmul.bf16.gmra.mxu0 %v479
      %v1009 = vpop.f32.mrf.mxu0
      %v1010 = vadd.f32 0.0, %v1009
      %v1011 = vpop.f32.mrf.mxu0
      %v1012 = vadd.f32 0.0, %v1011
      %1013 = vmatmul.bf16.gmra.mxu0 %v482
      %v1014 = vpop.f32.mrf.mxu0
      %v1015 = vadd.f32 0.0, %v1014
      %v1016 = vpop.f32.mrf.mxu0
      %v1017 = vadd.f32 0.0, %v1016
      %1018 = vmatmul.bf16.gmra.mxu0 %v485
      %v1019 = vpop.f32.mrf.mxu0
      %v1020 = vadd.f32 0.0, %v1019
      %v1021 = vpop.f32.mrf.mxu0
      %v1022 = vadd.f32 0.0, %v1021
      %1023 = vmatmul.bf16.gmra.mxu0 %v488
      %v1024 = vpop.f32.mrf.mxu0
      %v1025 = vadd.f32 0.0, %v1024
      %v1026 = vpop.f32.mrf.mxu0
      %v1027 = vadd.f32 0.0, %v1026
      %1028 = vmatmul.bf16.gmra.mxu0 %v983
      %v1029 = vpop.f32.mrf.mxu0
      %v1030 = vadd.f32 0.0, %v1029
      %v1031 = vpop.f32.mrf.mxu0
      %v1032 = vadd.f32 0.0, %v1031
      %1033 = vdwg.mxu0
      %v1034 = vadd.f32 %v928, %v995
      %v1035 = vadd.f32 %v929, %v997
      %v1036 = vadd.f32 %v930, %v1000
      %v1037 = vadd.f32 %v931, %v1002
      %v1038 = vadd.f32 %v932, %v1005
      %v1039 = vadd.f32 %v933, %v1007
      %v1040 = vadd.f32 %v934, %v1010
      %v1041 = vadd.f32 %v935, %v1012
      %v1042 = vadd.f32 %v936, %v1015
      %v1043 = vadd.f32 %v937, %v1017
      %v1044 = vadd.f32 %v938, %v1020
      %v1045 = vadd.f32 %v939, %v1022
      %v1046 = vadd.f32 %v940, %v1025
      %v1047 = vadd.f32 %v941, %v1027
      %v1048 = vadd.f32 %v942, %v1030
      %v1049 = vadd.f32 %v943, %v1032
      %s1050 = scalar_lea.vmem %s1, 160
      %v1051 = vld [vmem:[%s1050] sm:$0xf]
      %v1052 = vld [vmem:[%s1050 + $0x4] sm:$0xf]
      %v1053 = vld [vmem:[%s1050 + $0x8] sm:$0xf]
      %v1054 = vld [vmem:[%s1050 + $0xc] sm:$0xf]
      %v1055 = vld [vmem:[%s1050 + $0x10] sm:$0xf]
      %v1056 = vld [vmem:[%s1050 + $0x14] sm:$0xf]
      %v1057 = vld [vmem:[%s1050 + $0x18] sm:$0xf]
      %v1058 = vld [vmem:[%s1050 + $0x1c] sm:$0xf]
      %v1061 = vunpack.c.l.b16 %v380
      %v1062 = vunpack.c.l.b16 %v381
      %v1063 = vpack.c.b16 %v1062, %v1061
      %v1072 = vunpack.c.l.b16 %v1051
      %v1073 = vunpack.c.l.b16 %v1052
      %v1074 = vunpack.c.l.b16 %v1053
      %v1075 = vunpack.c.l.b16 %v1054
      %v1076 = vunpack.c.l.b16 %v1055
      %v1077 = vunpack.c.l.b16 %v1056
      %v1078 = vunpack.c.l.b16 %v1057
      %v1079 = vunpack.c.l.b16 %v1058
      %v1080 = vpack.c.b16 %v1073, %v1072
      %v1081 = vpack.c.b16 %v1075, %v1074
      %v1082 = vpack.c.b16 %v1077, %v1076
      %v1083 = vpack.c.b16 %v1079, %v1078
      %v1089 = vsel %vm465, %v1063, 0
      %1091 = vmatpush.bf16.msra.mxu0 0
      %1092 = vmatpush.bf16.msra.mxu0 0
      %1093 = vmatpush.bf16.msra.mxu0 0
      %1094 = vmatpush.bf16.msra.mxu0 0
      %1095 = vmatpush.bf16.msra.mxu0 %v1083
      %1096 = vmatpush.bf16.msra.mxu0 %v1082
      %1097 = vmatpush.bf16.msra.mxu0 %v1081
      %1098 = vmatpush.bf16.msra.mxu0 %v1080
      %1099 = vmatmul.bf16.gmra.mxu0 %v753
      %v1100 = vpop.f32.mrf.mxu0
      %v1101 = vadd.f32 0.0, %v1100
      %v1102 = vpop.f32.mrf.mxu0
      %v1103 = vadd.f32 0.0, %v1102
      %1104 = vmatmul.bf16.gmra.mxu0 %v756
      %v1105 = vpop.f32.mrf.mxu0
      %v1106 = vadd.f32 0.0, %v1105
      %v1107 = vpop.f32.mrf.mxu0
      %v1108 = vadd.f32 0.0, %v1107
      %1109 = vmatmul.bf16.gmra.mxu0 %v759
      %v1110 = vpop.f32.mrf.mxu0
      %v1111 = vadd.f32 0.0, %v1110
      %v1112 = vpop.f32.mrf.mxu0
      %v1113 = vadd.f32 0.0, %v1112
      %1114 = vmatmul.bf16.gmra.mxu0 %v762
      %v1115 = vpop.f32.mrf.mxu0
      %v1116 = vadd.f32 0.0, %v1115
      %v1117 = vpop.f32.mrf.mxu0
      %v1118 = vadd.f32 0.0, %v1117
      %1119 = vmatmul.bf16.gmra.mxu0 %v765
      %v1120 = vpop.f32.mrf.mxu0
      %v1121 = vadd.f32 0.0, %v1120
      %v1122 = vpop.f32.mrf.mxu0
      %v1123 = vadd.f32 0.0, %v1122
      %1124 = vmatmul.bf16.gmra.mxu0 %v768
      %v1125 = vpop.f32.mrf.mxu0
      %v1126 = vadd.f32 0.0, %v1125
      %v1127 = vpop.f32.mrf.mxu0
      %v1128 = vadd.f32 0.0, %v1127
      %1129 = vmatmul.bf16.gmra.mxu0 %v771
      %v1130 = vpop.f32.mrf.mxu0
      %v1131 = vadd.f32 0.0, %v1130
      %v1132 = vpop.f32.mrf.mxu0
      %v1133 = vadd.f32 0.0, %v1132
      %1134 = vmatmul.bf16.gmra.mxu0 %v1089
      %v1135 = vpop.f32.mrf.mxu0
      %v1136 = vadd.f32 0.0, %v1135
      %v1137 = vpop.f32.mrf.mxu0
      %v1138 = vadd.f32 0.0, %v1137
      %1139 = vdwg.mxu0
      %v1140 = vadd.f32 %v1034, %v1101
      %v1141 = vadd.f32 %v1035, %v1103
      %v1142 = vadd.f32 %v1036, %v1106
      %v1143 = vadd.f32 %v1037, %v1108
      %v1144 = vadd.f32 %v1038, %v1111
      %v1145 = vadd.f32 %v1039, %v1113
      %v1146 = vadd.f32 %v1040, %v1116
      %v1147 = vadd.f32 %v1041, %v1118
      %v1148 = vadd.f32 %v1042, %v1121
      %v1149 = vadd.f32 %v1043, %v1123
      %v1150 = vadd.f32 %v1044, %v1126
      %v1151 = vadd.f32 %v1045, %v1128
      %v1152 = vadd.f32 %v1046, %v1131
      %v1153 = vadd.f32 %v1047, %v1133
      %v1154 = vadd.f32 %v1048, %v1136
      %v1155 = vadd.f32 %v1049, %v1138
      %s1156 = scalar_lea.vmem %s1, 192
      %v1157 = vld [vmem:[%s1156] sm:$0xf]
      %v1158 = vld [vmem:[%s1156 + $0x4] sm:$0xf]
      %v1159 = vld [vmem:[%s1156 + $0x8] sm:$0xf]
      %v1160 = vld [vmem:[%s1156 + $0xc] sm:$0xf]
      %v1161 = vld [vmem:[%s1156 + $0x10] sm:$0xf]
      %v1162 = vld [vmem:[%s1156 + $0x14] sm:$0xf]
      %v1163 = vld [vmem:[%s1156 + $0x18] sm:$0xf]
      %v1164 = vld [vmem:[%s1156 + $0x1c] sm:$0xf]
      %v1167 = vunpack.c.l.b16 %v342
      %v1168 = vunpack.c.l.b16 %v343
      %v1169 = vpack.c.b16 %v1168, %v1167
      %v1178 = vunpack.c.l.b16 %v1157
      %v1179 = vunpack.c.l.b16 %v1158
      %v1180 = vunpack.c.l.b16 %v1159
      %v1181 = vunpack.c.l.b16 %v1160
      %v1182 = vunpack.c.l.b16 %v1161
      %v1183 = vunpack.c.l.b16 %v1162
      %v1184 = vunpack.c.l.b16 %v1163
      %v1185 = vunpack.c.l.b16 %v1164
      %v1186 = vpack.c.b16 %v1179, %v1178
      %v1187 = vpack.c.b16 %v1181, %v1180
      %v1188 = vpack.c.b16 %v1183, %v1182
      %v1189 = vpack.c.b16 %v1185, %v1184
      %v1195 = vsel %vm465, %v1169, 0
      %1197 = vmatpush.bf16.msra.mxu0 0
      %1198 = vmatpush.bf16.msra.mxu0 0
      %1199 = vmatpush.bf16.msra.mxu0 0
      %1200 = vmatpush.bf16.msra.mxu0 0
      %1201 = vmatpush.bf16.msra.mxu0 %v1189
      %1202 = vmatpush.bf16.msra.mxu0 %v1188
      %1203 = vmatpush.bf16.msra.mxu0 %v1187
      %1204 = vmatpush.bf16.msra.mxu0 %v1186
      %1205 = vmatmul.bf16.gmra.mxu0 %v610
      %v1206 = vpop.f32.mrf.mxu0
      %v1207 = vadd.f32 0.0, %v1206
      %v1208 = vpop.f32.mrf.mxu0
      %v1209 = vadd.f32 0.0, %v1208
      %1210 = vmatmul.bf16.gmra.mxu0 %v613
      %v1211 = vpop.f32.mrf.mxu0
      %v1212 = vadd.f32 0.0, %v1211
      %v1213 = vpop.f32.mrf.mxu0
      %v1214 = vadd.f32 0.0, %v1213
      %1215 = vmatmul.bf16.gmra.mxu0 %v616
      %v1216 = vpop.f32.mrf.mxu0
      %v1217 = vadd.f32 0.0, %v1216
      %v1218 = vpop.f32.mrf.mxu0
      %v1219 = vadd.f32 0.0, %v1218
      %1220 = vmatmul.bf16.gmra.mxu0 %v619
      %v1221 = vpop.f32.mrf.mxu0
      %v1222 = vadd.f32 0.0, %v1221
      %v1223 = vpop.f32.mrf.mxu0
      %v1224 = vadd.f32 0.0, %v1223
      %1225 = vmatmul.bf16.gmra.mxu0 %v622
      %v1226 = vpop.f32.mrf.mxu0
      %v1227 = vadd.f32 0.0, %v1226
      %v1228 = vpop.f32.mrf.mxu0
      %v1229 = vadd.f32 0.0, %v1228
      %1230 = vmatmul.bf16.gmra.mxu0 %v625
      %v1231 = vpop.f32.mrf.mxu0
      %v1232 = vadd.f32 0.0, %v1231
      %v1233 = vpop.f32.mrf.mxu0
      %v1234 = vadd.f32 0.0, %v1233
      %1235 = vmatmul.bf16.gmra.mxu0 %v877
      %v1236 = vpop.f32.mrf.mxu0
      %v1237 = vadd.f32 0.0, %v1236
      %v1238 = vpop.f32.mrf.mxu0
      %v1239 = vadd.f32 0.0, %v1238
      %1240 = vmatmul.bf16.gmra.mxu0 %v1195
      %v1241 = vpop.f32.mrf.mxu0
      %v1242 = vadd.f32 0.0, %v1241
      %v1243 = vpop.f32.mrf.mxu0
      %v1244 = vadd.f32 0.0, %v1243
      %1245 = vdwg.mxu0
      %v1246 = vadd.f32 %v1140, %v1207
      %v1247 = vadd.f32 %v1141, %v1209
      %v1248 = vadd.f32 %v1142, %v1212
      %v1249 = vadd.f32 %v1143, %v1214
      %v1250 = vadd.f32 %v1144, %v1217
      %v1251 = vadd.f32 %v1145, %v1219
      %v1252 = vadd.f32 %v1146, %v1222
      %v1253 = vadd.f32 %v1147, %v1224
      %v1254 = vadd.f32 %v1148, %v1227
      %v1255 = vadd.f32 %v1149, %v1229
      %v1256 = vadd.f32 %v1150, %v1232
      %v1257 = vadd.f32 %v1151, %v1234
      %v1258 = vadd.f32 %v1152, %v1237
      %v1259 = vadd.f32 %v1153, %v1239
      %v1260 = vadd.f32 %v1154, %v1242
      %v1261 = vadd.f32 %v1155, %v1244
      %s1262 = scalar_lea.vmem %s1, 224
      %v1263 = vld [vmem:[%s1262] sm:$0xf]
      %v1264 = vld [vmem:[%s1262 + $0x4] sm:$0xf]
      %v1265 = vld [vmem:[%s1262 + $0x8] sm:$0xf]
      %v1266 = vld [vmem:[%s1262 + $0xc] sm:$0xf]
      %v1267 = vld [vmem:[%s1262 + $0x10] sm:$0xf]
      %v1268 = vld [vmem:[%s1262 + $0x14] sm:$0xf]
      %v1269 = vld [vmem:[%s1262 + $0x18] sm:$0xf]
      %v1270 = vld [vmem:[%s1262 + $0x1c] sm:$0xf]
      %v1273 = vunpack.c.l.b16 %v362
      %v1274 = vunpack.c.l.b16 %v363
      %v1275 = vpack.c.b16 %v1274, %v1273
      %v1284 = vunpack.c.l.b16 %v1263
      %v1285 = vunpack.c.l.b16 %v1264
      %v1286 = vunpack.c.l.b16 %v1265
      %v1287 = vunpack.c.l.b16 %v1266
      %v1288 = vunpack.c.l.b16 %v1267
      %v1289 = vunpack.c.l.b16 %v1268
      %v1290 = vunpack.c.l.b16 %v1269
      %v1291 = vunpack.c.l.b16 %v1270
      %v1292 = vpack.c.b16 %v1285, %v1284
      %v1293 = vpack.c.b16 %v1287, %v1286
      %v1294 = vpack.c.b16 %v1289, %v1288
      %v1295 = vpack.c.b16 %v1291, %v1290
      %v1301 = vsel %vm465, %v1275, 0
      %1303 = vmatpush.bf16.msra.mxu0 0
      %1304 = vmatpush.bf16.msra.mxu0 0
      %1305 = vmatpush.bf16.msra.mxu0 0
      %1306 = vmatpush.bf16.msra.mxu0 0
      %1307 = vmatpush.bf16.msra.mxu0 %v1295
      %1308 = vmatpush.bf16.msra.mxu0 %v1294
      %1309 = vmatpush.bf16.msra.mxu0 %v1293
      %1310 = vmatpush.bf16.msra.mxu0 %v1292
      %1311 = vmatmul.bf16.gmra.mxu0 %v473
      %v1312 = vpop.f32.mrf.mxu0
      %v1313 = vadd.f32 0.0, %v1312
      %v1314 = vpop.f32.mrf.mxu0
      %v1315 = vadd.f32 0.0, %v1314
      %1316 = vmatmul.bf16.gmra.mxu0 %v476
      %v1317 = vpop.f32.mrf.mxu0
      %v1318 = vadd.f32 0.0, %v1317
      %v1319 = vpop.f32.mrf.mxu0
      %v1320 = vadd.f32 0.0, %v1319
      %1321 = vmatmul.bf16.gmra.mxu0 %v479
      %v1322 = vpop.f32.mrf.mxu0
      %v1323 = vadd.f32 0.0, %v1322
      %v1324 = vpop.f32.mrf.mxu0
      %v1325 = vadd.f32 0.0, %v1324
      %1326 = vmatmul.bf16.gmra.mxu0 %v482
      %v1327 = vpop.f32.mrf.mxu0
      %v1328 = vadd.f32 0.0, %v1327
      %v1329 = vpop.f32.mrf.mxu0
      %v1330 = vadd.f32 0.0, %v1329
      %1331 = vmatmul.bf16.gmra.mxu0 %v485
      %v1332 = vpop.f32.mrf.mxu0
      %v1333 = vadd.f32 0.0, %v1332
      %v1334 = vpop.f32.mrf.mxu0
      %v1335 = vadd.f32 0.0, %v1334
      %1336 = vmatmul.bf16.gmra.mxu0 %v488
      %v1337 = vpop.f32.mrf.mxu0
      %v1338 = vadd.f32 0.0, %v1337
      %v1339 = vpop.f32.mrf.mxu0
      %v1340 = vadd.f32 0.0, %v1339
      %1341 = vmatmul.bf16.gmra.mxu0 %v983
      %v1342 = vpop.f32.mrf.mxu0
      %v1343 = vadd.f32 0.0, %v1342
      %v1344 = vpop.f32.mrf.mxu0
      %v1345 = vadd.f32 0.0, %v1344
      %1346 = vmatmul.bf16.gmra.mxu0 %v1301
      %v1347 = vpop.f32.mrf.mxu0
      %v1348 = vadd.f32 0.0, %v1347
      %v1349 = vpop.f32.mrf.mxu0
      %v1350 = vadd.f32 0.0, %v1349
      %1351 = vdwg.mxu0
      %v1352 = vadd.f32 %v1246, %v1313
      %v1353 = vadd.f32 %v1247, %v1315
      %v1354 = vadd.f32 %v1248, %v1318
      %v1355 = vadd.f32 %v1249, %v1320
      %v1356 = vadd.f32 %v1250, %v1323
      %v1357 = vadd.f32 %v1251, %v1325
      %v1358 = vadd.f32 %v1252, %v1328
      %v1359 = vadd.f32 %v1253, %v1330
      %v1360 = vadd.f32 %v1254, %v1333
      %v1361 = vadd.f32 %v1255, %v1335
      %v1362 = vadd.f32 %v1256, %v1338
      %v1363 = vadd.f32 %v1257, %v1340
      %v1364 = vadd.f32 %v1258, %v1343
      %v1365 = vadd.f32 %v1259, %v1345
      %v1366 = vadd.f32 %v1260, %v1348
      %v1367 = vadd.f32 %v1261, %v1350
      %s1368 = scalar_lea.vmem %s1, 256
      %v1369 = vld [vmem:[%s1368] sm:$0xf]
      %v1370 = vld [vmem:[%s1368 + $0x4] sm:$0xf]
      %v1371 = vld [vmem:[%s1368 + $0x8] sm:$0xf]
      %v1372 = vld [vmem:[%s1368 + $0xc] sm:$0xf]
      %v1373 = vld [vmem:[%s1368 + $0x10] sm:$0xf]
      %v1374 = vld [vmem:[%s1368 + $0x14] sm:$0xf]
      %v1375 = vld [vmem:[%s1368 + $0x18] sm:$0xf]
      %v1376 = vld [vmem:[%s1368 + $0x1c] sm:$0xf]
      %v1379 = vunpack.c.l.b16 %v382
      %v1380 = vunpack.c.l.b16 %v383
      %v1381 = vpack.c.b16 %v1380, %v1379
      %v1390 = vunpack.c.l.b16 %v1369
      %v1391 = vunpack.c.l.b16 %v1370
      %v1392 = vunpack.c.l.b16 %v1371
      %v1393 = vunpack.c.l.b16 %v1372
      %v1394 = vunpack.c.l.b16 %v1373
      %v1395 = vunpack.c.l.b16 %v1374
      %v1396 = vunpack.c.l.b16 %v1375
      %v1397 = vunpack.c.l.b16 %v1376
      %v1398 = vpack.c.b16 %v1391, %v1390
      %v1399 = vpack.c.b16 %v1393, %v1392
      %v1400 = vpack.c.b16 %v1395, %v1394
      %v1401 = vpack.c.b16 %v1397, %v1396
      %v1407 = vsel %vm465, %v1381, 0
      %1409 = vmatpush.bf16.msra.mxu0 0
      %1410 = vmatpush.bf16.msra.mxu0 0
      %1411 = vmatpush.bf16.msra.mxu0 0
      %1412 = vmatpush.bf16.msra.mxu0 0
      %1413 = vmatpush.bf16.msra.mxu0 %v1401
      %1414 = vmatpush.bf16.msra.mxu0 %v1400
      %1415 = vmatpush.bf16.msra.mxu0 %v1399
      %1416 = vmatpush.bf16.msra.mxu0 %v1398
      %1417 = vmatmul.bf16.gmra.mxu0 %v756
      %v1418 = vpop.f32.mrf.mxu0
      %v1419 = vadd.f32 0.0, %v1418
      %v1420 = vpop.f32.mrf.mxu0
      %v1421 = vadd.f32 0.0, %v1420
      %1422 = vmatmul.bf16.gmra.mxu0 %v759
      %v1423 = vpop.f32.mrf.mxu0
      %v1424 = vadd.f32 0.0, %v1423
      %v1425 = vpop.f32.mrf.mxu0
      %v1426 = vadd.f32 0.0, %v1425
      %1427 = vmatmul.bf16.gmra.mxu0 %v762
      %v1428 = vpop.f32.mrf.mxu0
      %v1429 = vadd.f32 0.0, %v1428
      %v1430 = vpop.f32.mrf.mxu0
      %v1431 = vadd.f32 0.0, %v1430
      %1432 = vmatmul.bf16.gmra.mxu0 %v765
      %v1433 = vpop.f32.mrf.mxu0
      %v1434 = vadd.f32 0.0, %v1433
      %v1435 = vpop.f32.mrf.mxu0
      %v1436 = vadd.f32 0.0, %v1435
      %1437 = vmatmul.bf16.gmra.mxu0 %v768
      %v1438 = vpop.f32.mrf.mxu0
      %v1439 = vadd.f32 0.0, %v1438
      %v1440 = vpop.f32.mrf.mxu0
      %v1441 = vadd.f32 0.0, %v1440
      %1442 = vmatmul.bf16.gmra.mxu0 %v771
      %v1443 = vpop.f32.mrf.mxu0
      %v1444 = vadd.f32 0.0, %v1443
      %v1445 = vpop.f32.mrf.mxu0
      %v1446 = vadd.f32 0.0, %v1445
      %1447 = vmatmul.bf16.gmra.mxu0 %v1089
      %v1448 = vpop.f32.mrf.mxu0
      %v1449 = vadd.f32 0.0, %v1448
      %v1450 = vpop.f32.mrf.mxu0
      %v1451 = vadd.f32 0.0, %v1450
      %1452 = vmatmul.bf16.gmra.mxu0 %v1407
      %v1453 = vpop.f32.mrf.mxu0
      %v1454 = vadd.f32 0.0, %v1453
      %v1455 = vpop.f32.mrf.mxu0
      %v1456 = vadd.f32 0.0, %v1455
      %1457 = vdwg.mxu0
      %v1458 = vadd.f32 %v1352, %v1419
      %v1459 = vadd.f32 %v1353, %v1421
      %v1460 = vadd.f32 %v1354, %v1424
      %v1461 = vadd.f32 %v1355, %v1426
      %v1462 = vadd.f32 %v1356, %v1429
      %v1463 = vadd.f32 %v1357, %v1431
      %v1464 = vadd.f32 %v1358, %v1434
      %v1465 = vadd.f32 %v1359, %v1436
      %v1466 = vadd.f32 %v1360, %v1439
      %v1467 = vadd.f32 %v1361, %v1441
      %v1468 = vadd.f32 %v1362, %v1444
      %v1469 = vadd.f32 %v1363, %v1446
      %v1470 = vadd.f32 %v1364, %v1449
      %v1471 = vadd.f32 %v1365, %v1451
      %v1472 = vadd.f32 %v1366, %v1454
      %v1473 = vadd.f32 %v1367, %v1456
      %v1474 = vld [vmem:[%s2] sm:$0x1]
      %v1476 = vperm.slane %v1474, 0
      %v1478 = vadd.f32 %v1458, %v1476
      %v1479 = vadd.f32 %v1459, %v1476
      %v1480 = vadd.f32 %v1460, %v1476
      %v1481 = vadd.f32 %v1461, %v1476
      %v1482 = vadd.f32 %v1462, %v1476
      %v1483 = vadd.f32 %v1463, %v1476
      %v1484 = vadd.f32 %v1464, %v1476
      %v1485 = vadd.f32 %v1465, %v1476
      %v1486 = vadd.f32 %v1466, %v1476
      %v1487 = vadd.f32 %v1467, %v1476
      %v1488 = vadd.f32 %v1468, %v1476
      %v1489 = vadd.f32 %v1469, %v1476
      %v1490 = vadd.f32 %v1470, %v1476
      %v1491 = vadd.f32 %v1471, %v1476
      %v1492 = vadd.f32 %v1472, %v1476
      %v1493 = vadd.f32 %v1473, %v1476
      %v1494 = vpack.c.bf16 %v1478, %v1478
      %v1495 = vpack.c.bf16 %v1479, %v1479
      %v1496 = vpack.c.bf16 %v1480, %v1480
      %v1497 = vpack.c.bf16 %v1481, %v1481
      %v1498 = vpack.c.bf16 %v1482, %v1482
      %v1499 = vpack.c.bf16 %v1483, %v1483
      %v1500 = vpack.c.bf16 %v1484, %v1484
      %v1501 = vpack.c.bf16 %v1485, %v1485
      %v1502 = vpack.c.bf16 %v1486, %v1486
      %v1503 = vpack.c.bf16 %v1487, %v1487
      %v1504 = vpack.c.bf16 %v1488, %v1488
      %v1505 = vpack.c.bf16 %v1489, %v1489
      %v1506 = vpack.c.bf16 %v1490, %v1490
      %v1507 = vpack.c.bf16 %v1491, %v1491
      %v1508 = vpack.c.bf16 %v1492, %v1492
      %v1509 = vpack.c.bf16 %v1493, %v1493
      %vm1510 = vcmask 519168
      %1511 = vst.msk [vmem:[%s170] sm:$0xf] %vm1510, %v1494
      %1512 = vst.msk [vmem:[%s170 + $0x4] sm:$0xf] %vm1510, %v1495
      %1513 = vst.msk [vmem:[%s170 + $0x8] sm:$0xf] %vm1510, %v1496
      %1514 = vst.msk [vmem:[%s170 + $0xc] sm:$0xf] %vm1510, %v1497
      %1515 = vst.msk [vmem:[%s170 + $0x10] sm:$0xf] %vm1510, %v1498
      %1516 = vst.msk [vmem:[%s170 + $0x14] sm:$0xf] %vm1510, %v1499
      %1517 = vst.msk [vmem:[%s170 + $0x18] sm:$0xf] %vm1510, %v1500
      %1518 = vst.msk [vmem:[%s170 + $0x1c] sm:$0xf] %vm1510, %v1501
      %1519 = vst.msk [vmem:[%s170 + $0x20] sm:$0xf] %vm1510, %v1502
      %1520 = vst.msk [vmem:[%s170 + $0x24] sm:$0xf] %vm1510, %v1503
      %1521 = vst.msk [vmem:[%s170 + $0x28] sm:$0xf] %vm1510, %v1504
      %1522 = vst.msk [vmem:[%s170 + $0x2c] sm:$0xf] %vm1510, %v1505
      %1523 = vst.msk [vmem:[%s170 + $0x30] sm:$0xf] %vm1510, %v1506
      %1524 = vst.msk [vmem:[%s170 + $0x34] sm:$0xf] %vm1510, %v1507
      %1525 = vst.msk [vmem:[%s170 + $0x38] sm:$0xf] %vm1510, %v1508
      %1526 = vst.msk [vmem:[%s170 + $0x3c] sm:$0xf] %vm1510, %v1509
      %p1527 = scmp.lt.s32.totalorder %s14, 1
      %s1528 = scalar_select %p1527, %s14, 1
      %s1529 = smul.addr %s1528, 16
      %s1530 = smul.addr %s1529, 4
      %s1531 = scalar_lea.vmem %s3, %s1530
      // Predicated region
      $region33: #{query_transformer_forward.26} parent=31 // pred_check
        %p1532 = pneg %p100
      $region34: #{query_transformer_forward.26} parent=31 // pred_check_branch
        %1534 = sbr.rel (%p1532) target = $region36
      $region35: #{query_transformer_forward.26} parent=31 // pred_region
        _
      $region36: #{query_transformer_forward.26} parent=31 // pred_fallthru
        _
    $region32: #{query_transformer_forward.26} parent=5 // pred_fallthru
      _
    %p1535 = scmp.le.s32.totalorder 2, %s9
    // Predicated region
    $region37: #{query_transformer_forward.26} parent=5 // pred_check
      %p1536 = pneg %p1535
    $region38: #{query_transformer_forward.26} parent=5 // pred_check_branch
      %1538 = sbr.rel (%p1536) target = $region40
    $region39: #{query_transformer_forward.26} parent=5 // pred_region
      %s1539 = ssub.s32 %s9, 2
      // Predicated region
      $region41: #{query_transformer_forward.26} parent=39 // pred_check
        %p1540 = pneg %p106
      $region42: #{query_transformer_forward.26} parent=39 // pred_check_branch
        %1542 = sbr.rel (%p1540) target = $region44
      $region43: #{query_transformer_forward.26} parent=39 // pred_region
        %p1543 = scmp.lt.s32.totalorder %s15, 1
        %s1544 = scalar_select %p1543, %s15, 1
        %s1545 = smul.addr %s1544, 16
        %s1546 = smul.addr %s1545, 4
        %s1547 = scalar_lea.vmem %s3, %s1546
      $region44: #{query_transformer_forward.26} parent=39 // pred_fallthru
        _
    $region40: #{query_transformer_forward.26} parent=5 // pred_fallthru
      _
  $region6: #{query_transformer_forward.26} parent=0 // loop_footer
    %s13 = sadd.s32 1, %s9
  $region7: #{query_transformer_forward.26} parent=0 // loop_footer_branch
    %8 = sbr.rel target = $region3
  $region8: #{query_transformer_forward.26} parent=0 // loop_exit
    _

</llo_original>
